<compile_context>
chip_gen: v6e
topology: v6e:2x2x1
jax: 0.10.0
libtpu: 0.0.40
codegen_flags: <defaults>
</compile_context>

<pallas_src>
import functools

import jax
import jax.numpy as jnp
from jax import lax
from jax.experimental import pallas as pl
from jax.experimental.pallas import tpu as pltpu


# ---------------------------------------------------------------------------
# Fused whole-model kernel
# ---------------------------------------------------------------------------
def _model_kernel(
    # CNN branch operands
    cols1_ref, w1_ref, b1_ref, w2_ref, b2_ref,
    # LSTM branch operands (fused-bidirectional packing, see host-side helpers)
    xseq_ref, wih0_ref, whh0_ref, bl0_ref,
    wih1f_ref, wih1b_ref, whh1_ref, bl1_ref,
    # adapter head operands
    wf1c_ref, wf1l_ref, bf1_ref, wf2_ref, bf2_ref,
    # output
    out_ref,
    # scratch
    xa_scr, xc_scr, hseq_scr, pool_scr,
    *, B, T, H):
    f32 = jnp.float32
    bf16 = jnp.bfloat16
    HH = 2 * H              # [h_fwd | h_bwd] hidden width (128) -> lane dense
    G = 4 * HH              # 4 gates x (fwd|bwd) = 512
    T2 = T // 2
    NB = B * T2
    OCP = w1_ref.shape[1]   # padded CNN channel width (128)

    # Lane masks: inside every 128-wide block the first H lanes belong to the
    # forward direction, the last H to the backward direction.
    gate_lane = lax.broadcasted_iota(jnp.int32, (B, G), 1)
    fwd_gate_mask = (gate_lane & (HH - 1)) < H            # [B, G]
    hid_lane = lax.broadcasted_iota(jnp.int32, (B, HH), 1)
    fwd_hid_mask = hid_lane < H                           # [B, HH]

    # -------- fused bidirectional LSTM layer (fwd+bwd share one recurrence) --------
    def lstm_layer(whh_ref, xin_fn, step_cb):
        whh = whh_ref[...]                                # [HH, G] bf16, block-diag per dir
        h = jnp.zeros((B, HH), f32)
        c = jnp.zeros((B, HH), f32)
        for s in range(T):                                # fully unrolled (static idx)
            gates = xin_fn(s) + jnp.dot(h.astype(bf16), whh,
                                        preferred_element_type=f32)
            # 128-lane aligned gate views (i, f, g, o); f32 gate math (v5e-friendly).
            i_g = jax.nn.sigmoid(gates[:, 0 * HH:1 * HH])
            f_g = jax.nn.sigmoid(gates[:, 1 * HH:2 * HH])
            g_g = jnp.tanh(gates[:, 2 * HH:3 * HH])
            o_g = jax.nn.sigmoid(gates[:, 3 * HH:4 * HH])
            c = f_g * c + i_g * g_g
            h = o_g * jnp.tanh(c)
            step_cb(s, h)
        return h

    # ----- LSTM layer 0: hoisted input projection, then recurrence -----
    xa_scr[...] = (jnp.dot(xseq_ref[...], wih0_ref[...],
                           preferred_element_type=f32) + bl0_ref[...])

    def xin0(s):
        return jnp.where(fwd_gate_mask,
                         xa_scr[pl.ds(s * B, B), :],              # fwd uses time s
                         xa_scr[pl.ds((T - 1 - s) * B, B), :])    # bwd uses time T-1-s

    def store0(s, h):
        # step-ordered 2-D layout: row s*B+b = [h_fwd(s) | h_bwd(T-1-s)]
        hseq_scr[pl.ds(s * B, B), :] = h

    lstm_layer(whh0_ref, xin0, store0)

    # ----- layer-1 hoisted input projections -----
    # Split by hidden direction (A = fwd-hidden rows of W_ih, C = bwd-hidden rows) so
    # the step-ordered state sequence is consumed directly: no reorder / concat / l0
    # store->reload.  The gate input for output time t is A[t] + C[T-1-t] (+bias once).
    hs_all = hseq_scr[...].astype(bf16)                           # [T*B, HH]
    xa_scr[...] = (jnp.dot(hs_all, wih1f_ref[...], preferred_element_type=f32)
                   + bl1_ref[...])                                # A (bias folded here)
    xc_scr[...] = jnp.dot(hs_all, wih1b_ref[...], preferred_element_type=f32)   # C

    # ----- LSTM layer 1: recurrence only; keep first/last step in registers -----
    first_h = []

    def xin1(s):
        a_s = xa_scr[pl.ds(s * B, B), :]
        a_m = xa_scr[pl.ds((T - 1 - s) * B, B), :]
        c_s = xc_scr[pl.ds(s * B, B), :]
        c_m = xc_scr[pl.ds((T - 1 - s) * B, B), :]
        return jnp.where(fwd_gate_mask, a_s + c_m, a_m + c_s)

    def keep_first(s, h):
        if s == 0:
            first_h.append(h)

    h_last = lstm_layer(whh1_ref, xin1, keep_first)
    # lstm_out[:, -1, :] = [h_fwd(T-1) | h_bwd(T-1)] -> fwd half from the last step,
    # bwd half from the bwd direction's first processed step.
    lstm_feat = jnp.where(fwd_hid_mask, h_last, first_h[0])       # [B, HH] f32

    # -------- CNN branch (hides under the recurrence slack) --------
    # conv1 (+folded BN) + ReLU as one matmul over parity-major im2col rows; weight
    # columns are padded to 128 lanes so everything downstream is lane dense.
    h1 = jnp.maximum(
        jnp.dot(cols1_ref[...], w1_ref[...], preferred_element_type=f32)
        + b1_ref[...], 0.0)                               # [2*NB, 128]
    # MaxPool1d(2): rows are parity-major, so pooling = max(even half, odd half);
    # result rows are batch-major (b*T2 + t).
    pooled = jnp.maximum(h1[:NB, :], h1[NB:, :])          # [NB, 128]

    # conv2 (+folded BN) + ReLU as ONE matmul over a lane-concatenated im2col.
    # +/-1-row shifted views come from a tiny halo scratch; batch/sequence boundary
    # rows are masked with jnp.where (no zero-fill, no per-batch loops).
    pool_scr[pl.ds(1, NB), :] = pooled
    row = lax.broadcasted_iota(jnp.int32, (NB, OCP), 0)
    t_in_b = row & (T2 - 1)                               # T2 is a power of two (host assert)
    prev = jnp.where(t_in_b == 0, 0.0, pool_scr[pl.ds(0, NB), :])
    nxt = jnp.where(t_in_b == T2 - 1, 0.0, pool_scr[pl.ds(2, NB), :])
    cols2 = jnp.concatenate([prev, pooled, nxt], axis=-1).astype(bf16)   # [NB, 3*128]
    h2 = jnp.maximum(
        jnp.dot(cols2, w2_ref[...], preferred_element_type=f32)
        + b2_ref[...], 0.0)                               # [NB, 128]
    # AdaptiveMaxPool1d(1): per-batch max over the T2 time rows (tile-exact reshape).
    cnn_feat = jnp.max(h2.reshape(B, T2, OCP), axis=1)    # [B, 128]

    # -------- adapter head: fc1 + ReLU + fc2 + sigmoid*90 (Dropout = identity) --------
    fc1 = jnp.maximum(
        jnp.dot(cnn_feat.astype(bf16), wf1c_ref[...], preferred_element_type=f32)
        + jnp.dot(lstm_feat.astype(bf16), wf1l_ref[...], preferred_element_type=f32)
        + bf1_ref[...], 0.0)                              # [B, 128] (64 real + zero pad)
    logits = (jnp.dot(fc1.astype(bf16), wf2_ref[...], preferred_element_type=f32)
              + bf2_ref[...])                             # [B, 128] (5 real outputs)
    out_ref[...] = (jax.nn.sigmoid(logits) * 90.0).astype(out_ref.dtype)


# ---------------------------------------------------------------------------
# Host-side packing helpers (plain JAX, run ONCE in prepare_params)
# ---------------------------------------------------------------------------
def _full_spec(shape):
    n = len(shape)
    return pl.BlockSpec(shape, lambda i, n=n: (0,) * n)


def _fold_bn(w, b, gamma, beta, mean, var, eps=1e-5):
    """Fold eval-mode BatchNorm1d into conv weight/bias. w: [OC, C, k], b: [OC]."""
    scale = gamma / jnp.sqrt(var + eps)
    return w * scale[:, None, None], (b - mean) * scale + beta


def _pack_bilstm(fwd, bwd, H):
    """Pack fwd/bwd LSTM weights into the fused lane-dense layout (f32).

    Combined gate columns: [gate g (i,f,g,o)] x [fwd H lanes | bwd H lanes].
      wih : [In, 8H]   whh : [2H, 8H] (block-diagonal per direction)   bias : [1, 8H]
    """
    w_ih_f, w_hh_f, b_ih_f, b_hh_f = fwd
    w_ih_b, w_hh_b, b_ih_b, b_hh_b = bwd
    In = w_ih_f.shape[1]
    wih = jnp.concatenate(
        [w_ih_f.T.reshape(In, 4, H), w_ih_b.T.reshape(In, 4, H)], axis=-1
    ).reshape(In, 8 * H)
    z = jnp.zeros((H, 4, H), jnp.float32)
    whh = jnp.concatenate(
        [jnp.concatenate([w_hh_f.T.reshape(H, 4, H), z], axis=-1),
         jnp.concatenate([z, w_hh_b.T.reshape(H, 4, H)], axis=-1)], axis=0
    ).reshape(2 * H, 8 * H)
    bias = jnp.concatenate(
        [(b_ih_f + b_hh_f).reshape(4, H), (b_ih_b + b_hh_b).reshape(4, H)],
        axis=-1).reshape(1, 8 * H)
    return wih, whh, bias


def _conv1_cols(x, k, pad):
    """im2col for conv1, rows ordered parity-major so MaxPool1d(2) becomes
    max(first-half rows, second-half rows) inside the kernel (x-dependent, per call)."""
    B, C, T = x.shape
    T2 = T // 2
    xp = jnp.pad(x, ((0, 0), (0, 0), (pad, pad)))
    cols = jnp.stack([xp[:, :, j:j + T] for j in range(k)], axis=-1)    # [B, C, T, k]
    cols = cols.transpose(0, 2, 1, 3).reshape(B, T, C * k)              # feature = c*k + j
    cols = cols.reshape(B, T2, 2, C * k).transpose(2, 0, 1, 3).reshape(2 * B * T2, C * k)
    return cols


def prepare_params(p):
    """One-time host-side packing of every weight-side operand (BN fold, LSTM lane
    packing, fc1 split, 128-lane padding, bf16 casts).  Hoisted out of the per-call
    path per the perf review; only x-dependent prep remains in the jitted forward."""
    f32, bf16 = jnp.float32, jnp.bfloat16
    OC1, C, K1 = p["conv1_w"].shape
    OC2, _, K2 = p["conv2_w"].shape
    H = p["l0_fwd"][1].shape[1]
    F1 = p["fc1_b"].shape[0]
    NOUT = p["fc2_b"].shape[0]
    OCP = 128

    # --- CNN: fold eval-mode BN, pad output channels to 128 lanes ---
    w1f, b1f = _fold_bn(p["conv1_w"], p["conv1_b"], *p["bn1"])
    w2f, b2f = _fold_bn(p["conv2_w"], p["conv2_b"], *p["bn2"])
    w1m = jnp.zeros((C * K1, OCP), f32).at[:, :OC1].set(
        w1f.reshape(OC1, C * K1).T).astype(bf16)                        # [C*K1, 128]
    b1m = jnp.zeros((1, OCP), f32).at[:, :OC1].set(b1f[None])
    w2m = jnp.zeros((K2, OCP, OCP), f32).at[:, :OC1, :OC2].set(
        w2f.transpose(2, 1, 0)).reshape(K2 * OCP, OCP).astype(bf16)     # [K2*128, 128]
    b2m = jnp.zeros((1, OCP), f32).at[:, :OC2].set(b2f[None])

    # --- LSTM: fused [fwd|bwd] lane packing; layer-1 input weights split per
    #     hidden direction so the step-ordered state sequence is used directly ---
    wih0, whh0, bl0 = _pack_bilstm(p["l0_fwd"], p["l0_bwd"], H)
    wih1, whh1, bl1 = _pack_bilstm(p["l1_fwd"], p["l1_bwd"], H)
    wih1f = wih1.at[H:, :].set(0.0).astype(bf16)   # only fwd-hidden input rows kept
    wih1b = wih1.at[:H, :].set(0.0).astype(bf16)   # only bwd-hidden input rows kept

    # --- adapter head: fc1 split (cnn part / lstm part), all dims padded to 128 ---
    wf1c = jnp.zeros((OCP, OCP), f32).at[:OC2, :F1].set(p["fc1_w"][:, :OC2].T).astype(bf16)
    wf1l = jnp.zeros((2 * H, OCP), f32).at[:, :F1].set(p["fc1_w"][:, OC2:].T).astype(bf16)
    bf1 = jnp.zeros((1, OCP), f32).at[:, :F1].set(p["fc1_b"][None])
    wf2 = jnp.zeros((OCP, OCP), f32).at[:F1, :NOUT].set(p["fc2_w"].T).astype(bf16)
    bf2 = jnp.zeros((1, OCP), f32).at[:, :NOUT].set(p["fc2_b"][None])

    return dict(
        w1m=w1m, b1m=b1m, w2m=w2m, b2m=b2m,
        wih0=wih0.astype(bf16), whh0=whh0.astype(bf16), bl0=bl0,
        wih1f=wih1f, wih1b=wih1b, whh1=whh1.astype(bf16), bl1=bl1,
        wf1c=wf1c, wf1l=wf1l, bf1=bf1, wf2=wf2, bf2=bf2,
    )


# ---------------------------------------------------------------------------
# Full forward pass (single pallas_call; only x-dependent prep per call)
# ---------------------------------------------------------------------------
@functools.partial(jax.jit, static_argnames=("nout",))
def transfer_learning_forward(x, packed, nout=5):
    """x: [B, 8, T] (NCL, PyTorch Conv1d layout). Returns [B, nout]."""
    B, C, T = x.shape
    T2 = T // 2
    assert T % 2 == 0 and (T2 & (T2 - 1)) == 0          # power-of-two T2 (lane-mask trick)
    bf16 = jnp.bfloat16
    H = packed["whh0"].shape[0] // 2                     # 64
    HH, G = 2 * H, 8 * H
    K1 = packed["w1m"].shape[0] // C
    OCP = packed["w1m"].shape[1]                         # 128

    # per-call, x-dependent prep only (weights were packed once in prepare_params)
    cols1 = _conv1_cols(x, K1, K1 // 2).astype(bf16)             # [2*B*T2, C*K1]
    xseq = x.transpose(2, 0, 1).reshape(T * B, C).astype(bf16)   # time-major rows

    args = (cols1, packed["w1m"], packed["b1m"], packed["w2m"], packed["b2m"],
            xseq, packed["wih0"], packed["whh0"], packed["bl0"],
            packed["wih1f"], packed["wih1b"], packed["whh1"], packed["bl1"],
            packed["wf1c"], packed["wf1l"], packed["bf1"], packed["wf2"], packed["bf2"])

    out128 = pl.pallas_call(
        functools.partial(_model_kernel, B=B, T=T, H=H),
        out_shape=jax.ShapeDtypeStruct((B, OCP), jnp.float32),
        grid=(1,),
        in_specs=[_full_spec(a.shape) for a in args],
        out_specs=_full_spec((B, OCP)),
        scratch_shapes=[
            pltpu.VMEM((T * B, G), jnp.float32),           # hoisted projection A (+layer-0 proj)
            pltpu.VMEM((T * B, G), jnp.float32),           # hoisted projection C (layer 1, bwd rows)
            pltpu.VMEM((T * B, HH), jnp.float32),          # layer-0 step-ordered hidden states
            pltpu.VMEM((B * T2 + 2, OCP), jnp.float32),    # pooled map with +/-1 row halo (conv2 im2col)
        ],
        compiler_params=pltpu.CompilerParams(
            dimension_semantics=("arbitrary",),
            vmem_limit_bytes=16 * 1024 * 1024,             # footprint << limit on all generations
        ),
    )(*args)
    return out128[:, :nout]


# ---------------------------------------------------------------------------
# Parameter construction (deterministic, synthetic; PyTorch-shaped)
# ---------------------------------------------------------------------------
def init_params(key):
    ks = jax.random.split(key, 24)
    s = 0.1
    p = {}
    # CNN
    p["conv1_w"] = s * jax.random.normal(ks[0], (32, 8, 5), jnp.float32)
    p["conv1_b"] = s * jax.random.normal(ks[1], (32,), jnp.float32)
    p["bn1"] = (jnp.ones((32,)), jnp.zeros((32,)), jnp.zeros((32,)), jnp.ones((32,)))
    p["conv2_w"] = s * jax.random.normal(ks[2], (64, 32, 3), jnp.float32)
    p["conv2_b"] = s * jax.random.normal(ks[3], (64,), jnp.float32)
    p["bn2"] = (jnp.ones((64,)), jnp.zeros((64,)), jnp.zeros((64,)), jnp.ones((64,)))
    # LSTM (2 layers, bidirectional); H=64 -> 4H=256 per direction
    H = 64

    def lstm_dir(kw, kh, kb1, kb2, in_size):
        return (
            s * jax.random.normal(kw, (4 * H, in_size), jnp.float32),
            s * jax.random.normal(kh, (4 * H, H), jnp.float32),
            s * jax.random.normal(kb1, (4 * H,), jnp.float32),
            s * jax.random.normal(kb2, (4 * H,), jnp.float32),
        )

    p["l0_fwd"] = lstm_dir(ks[4], ks[5], ks[6], ks[7], 8)
    p["l0_bwd"] = lstm_dir(ks[8], ks[9], ks[10], ks[11], 8)
    p["l1_fwd"] = lstm_dir(ks[12], ks[13], ks[14], ks[15], 2 * H)
    p["l1_bwd"] = lstm_dir(ks[16], ks[17], ks[18], ks[19], 2 * H)
    # adapter: Linear(192 -> 64), Linear(64 -> 5); input is cat([cnn(64), lstm(128)])
    p["fc1_w"] = s * jax.random.normal(ks[20], (64, 192), jnp.float32)
    p["fc1_b"] = s * jax.random.normal(ks[21], (64,), jnp.float32)
    p["fc2_w"] = s * jax.random.normal(ks[22], (5, 64), jnp.float32)
    p["fc2_b"] = s * jax.random.normal(ks[23], (5,), jnp.float32)
    return p


if __name__ == "__main__":
    key = jax.random.PRNGKey(0)
    k_param, k_x = jax.random.split(key)
    params = init_params(k_param)
    packed = prepare_params(params)        # one-time weight packing (outside per-call path)

    B, C, T = 2, 8, 16
    x = jax.random.normal(k_x, (B, C, T), jnp.float32)

    out = transfer_learning_forward(x, packed)
    out = jax.block_until_ready(out)
    assert out.shape == (B, 5)
    assert bool(jnp.all(jnp.isfinite(out)))
    assert bool(jnp.all(out >= 0.0)) and bool(jnp.all(out <= 90.0))
    print("KERNEL_OK")
</pallas_src>

<mosaic_0001>
module attributes {stable_mosaic.version = 11 : i64} {
  func.func @_model_kernel(%arg0: i32, %arg1: memref<32x40xbf16, #tpu.memory_space<vmem>>, %arg2: memref<40x128xbf16, #tpu.memory_space<vmem>>, %arg3: memref<1x128xf32, #tpu.memory_space<vmem>>, %arg4: memref<384x128xbf16, #tpu.memory_space<vmem>>, %arg5: memref<1x128xf32, #tpu.memory_space<vmem>>, %arg6: memref<32x8xbf16, #tpu.memory_space<vmem>>, %arg7: memref<8x512xbf16, #tpu.memory_space<vmem>>, %arg8: memref<128x512xbf16, #tpu.memory_space<vmem>>, %arg9: memref<1x512xf32, #tpu.memory_space<vmem>>, %arg10: memref<128x512xbf16, #tpu.memory_space<vmem>>, %arg11: memref<128x512xbf16, #tpu.memory_space<vmem>>, %arg12: memref<128x512xbf16, #tpu.memory_space<vmem>>, %arg13: memref<1x512xf32, #tpu.memory_space<vmem>>, %arg14: memref<128x128xbf16, #tpu.memory_space<vmem>>, %arg15: memref<128x128xbf16, #tpu.memory_space<vmem>>, %arg16: memref<1x128xf32, #tpu.memory_space<vmem>>, %arg17: memref<128x128xbf16, #tpu.memory_space<vmem>>, %arg18: memref<1x128xf32, #tpu.memory_space<vmem>>, %arg19: memref<2x128xf32, #tpu.memory_space<vmem>>, %arg20: memref<32x512xf32, #tpu.memory_space<vmem>>, %arg21: memref<32x512xf32, #tpu.memory_space<vmem>>, %arg22: memref<32x128xf32, #tpu.memory_space<vmem>>, %arg23: memref<18x128xf32, #tpu.memory_space<vmem>>) attributes {dimension_semantics = [#tpu.dimension_semantics<arbitrary>], iteration_bounds = array<i64: 1>, scalar_prefetch = 0 : i64, scratch_operands = 4 : i64, tpu.core_type = #tpu.core_type<tc>, window_params = [{pipeline_mode = #tpu.pipeline_mode<synchronous>, transform_indices = @transform_0, window_bounds = array<i64: 32, 40>}, {pipeline_mode = #tpu.pipeline_mode<synchronous>, transform_indices = @transform_1, window_bounds = array<i64: 40, 128>}, {pipeline_mode = #tpu.pipeline_mode<synchronous>, transform_indices = @transform_2, window_bounds = array<i64: 1, 128>}, {pipeline_mode = #tpu.pipeline_mode<synchronous>, transform_indices = @transform_3, window_bounds = array<i64: 384, 128>}, {pipeline_mode = #tpu.pipeline_mode<synchronous>, transform_indices = @transform_4, window_bounds = array<i64: 1, 128>}, {pipeline_mode = #tpu.pipeline_mode<synchronous>, transform_indices = @transform_5, window_bounds = array<i64: 32, 8>}, {pipeline_mode = #tpu.pipeline_mode<synchronous>, transform_indices = @transform_6, window_bounds = array<i64: 8, 512>}, {pipeline_mode = #tpu.pipeline_mode<synchronous>, transform_indices = @transform_7, window_bounds = array<i64: 128, 512>}, {pipeline_mode = #tpu.pipeline_mode<synchronous>, transform_indices = @transform_8, window_bounds = array<i64: 1, 512>}, {pipeline_mode = #tpu.pipeline_mode<synchronous>, transform_indices = @transform_9, window_bounds = array<i64: 128, 512>}, {pipeline_mode = #tpu.pipeline_mode<synchronous>, transform_indices = @transform_10, window_bounds = array<i64: 128, 512>}, {pipeline_mode = #tpu.pipeline_mode<synchronous>, transform_indices = @transform_11, window_bounds = array<i64: 128, 512>}, {pipeline_mode = #tpu.pipeline_mode<synchronous>, transform_indices = @transform_12, window_bounds = array<i64: 1, 512>}, {pipeline_mode = #tpu.pipeline_mode<synchronous>, transform_indices = @transform_13, window_bounds = array<i64: 128, 128>}, {pipeline_mode = #tpu.pipeline_mode<synchronous>, transform_indices = @transform_14, window_bounds = array<i64: 128, 128>}, {pipeline_mode = #tpu.pipeline_mode<synchronous>, transform_indices = @transform_15, window_bounds = array<i64: 1, 128>}, {pipeline_mode = #tpu.pipeline_mode<synchronous>, transform_indices = @transform_16, window_bounds = array<i64: 128, 128>}, {pipeline_mode = #tpu.pipeline_mode<synchronous>, transform_indices = @transform_17, window_bounds = array<i64: 1, 128>}, {pipeline_mode = #tpu.pipeline_mode<synchronous>, transform_indices = @transform_18, window_bounds = array<i64: 2, 128>}]} {
    %0 = tpu.iota {dimensions = array<i32: 1>} : vector<2x512xi32>
    %c127_i32 = arith.constant 127 : i32
    %1 = vector.broadcast %c127_i32 : i32 to vector<2x512xi32>
    %2 = arith.andi %0, %1 : vector<2x512xi32>
    %c64_i32 = arith.constant 64 : i32
    %3 = vector.broadcast %c64_i32 : i32 to vector<2x512xi32>
    %4 = arith.cmpi slt, %2, %3 : vector<2x512xi32>
    %5 = tpu.iota {dimensions = array<i32: 1>} : vector<2x128xi32>
    %c64_i32_0 = arith.constant 64 : i32
    %6 = vector.broadcast %c64_i32_0 : i32 to vector<2x128xi32>
    %7 = arith.cmpi slt, %5, %6 : vector<2x128xi32>
    %c0 = arith.constant 0 : index
    %c0_1 = arith.constant 0 : index
    %8 = vector.load %arg6[%c0, %c0_1] : memref<32x8xbf16, #tpu.memory_space<vmem>>, vector<32x8xbf16>
    %c0_2 = arith.constant 0 : index
    %c0_3 = arith.constant 0 : index
    %9 = vector.load %arg7[%c0_2, %c0_3] : memref<8x512xbf16, #tpu.memory_space<vmem>>, vector<8x512xbf16>
    %cst = arith.constant dense<0.000000e+00> : vector<32x512xf32>
    %10 = tpu.matmul %8, %9, %cst {dimension_numbers = #tpu.dot_dimension_numbers<[1], [0], [0], [1], [0, 0, 1, 1], [], []>} : vector<32x8xbf16>, vector<8x512xbf16>, vector<32x512xf32> -> vector<32x512xf32>
    %c0_4 = arith.constant 0 : index
    %c0_5 = arith.constant 0 : index
    %11 = vector.load %arg9[%c0_4, %c0_5] : memref<1x512xf32, #tpu.memory_space<vmem>>, vector<1x512xf32>
    %12 = vector.broadcast %11 : vector<1x512xf32> to vector<32x512xf32>
    %13 = arith.addf %10, %12 : vector<32x512xf32>
    %c0_6 = arith.constant 0 : index
    %c0_7 = arith.constant 0 : index
    %14 = vector.load %arg20[%c0_6, %c0_7] : memref<32x512xf32, #tpu.memory_space<vmem>>, vector<32x512xf32>
    tpu.vector_store %arg20[%c0_6, %c0_7], %13 {strides = array<i32>} : memref<32x512xf32, #tpu.memory_space<vmem>>, vector<32x512xf32>,
    %c0_8 = arith.constant 0 : index
    %c0_9 = arith.constant 0 : index
    %15 = vector.load %arg8[%c0_8, %c0_9] : memref<128x512xbf16, #tpu.memory_space<vmem>>, vector<128x512xbf16>
    %cst_10 = arith.constant 0.000000e+00 : f32
    %16 = vector.broadcast %cst_10 : f32 to vector<2x128xf32>
    %cst_11 = arith.constant 0.000000e+00 : f32
    %17 = vector.broadcast %cst_11 : f32 to vector<2x128xf32>
    %c0_12 = arith.constant 0 : index
    %c0_13 = arith.constant 0 : index
    %18 = vector.load %arg20[%c0_12, %c0_13] : memref<32x512xf32, #tpu.memory_space<vmem>>, vector<2x512xf32>
    %c30 = arith.constant 30 : index
    %c0_14 = arith.constant 0 : index
    %19 = vector.load %arg20[%c30, %c0_14] : memref<32x512xf32, #tpu.memory_space<vmem>>, vector<2x512xf32>
    %20 = arith.select %4, %18, %19 : vector<2x512xi1>, vector<2x512xf32>
    %21 = arith.truncf %16 : vector<2x128xf32> to vector<2x128xbf16>
    %cst_15 = arith.constant dense<0.000000e+00> : vector<2x512xf32>
    %22 = tpu.matmul %21, %15, %cst_15 {dimension_numbers = #tpu.dot_dimension_numbers<[1], [0], [0], [1], [0, 0, 1, 1], [], []>} : vector<2x128xbf16>, vector<128x512xbf16>, vector<2x512xf32> -> vector<2x512xf32>
    %23 = arith.addf %20, %22 : vector<2x512xf32>
    %24 = vector.extract_strided_slice %23 {offsets = [0, 0], sizes = [2, 128], strides = [1, 1]} : vector<2x512xf32> to vector<2x128xf32>
    %25 = arith.negf %24 : vector<2x128xf32>
    %26 = math.exp %25 : vector<2x128xf32>
    %cst_16 = arith.constant 1.000000e+00 : f32
    %27 = vector.broadcast %cst_16 : f32 to vector<2x128xf32>
    %28 = arith.addf %27, %26 : vector<2x128xf32>
    %29 = arith.divf %27, %28 : vector<2x128xf32>
    %30 = vector.extract_strided_slice %23 {offsets = [0, 128], sizes = [2, 128], strides = [1, 1]} : vector<2x512xf32> to vector<2x128xf32>
    %31 = arith.negf %30 : vector<2x128xf32>
    %32 = math.exp %31 : vector<2x128xf32>
    %cst_17 = arith.constant 1.000000e+00 : f32
    %33 = vector.broadcast %cst_17 : f32 to vector<2x128xf32>
    %34 = arith.addf %33, %32 : vector<2x128xf32>
    %35 = arith.divf %33, %34 : vector<2x128xf32>
    %36 = vector.extract_strided_slice %23 {offsets = [0, 256], sizes = [2, 128], strides = [1, 1]} : vector<2x512xf32> to vector<2x128xf32>
    %37 = math.tanh %36 : vector<2x128xf32>
    %38 = vector.extract_strided_slice %23 {offsets = [0, 384], sizes = [2, 128], strides = [1, 1]} : vector<2x512xf32> to vector<2x128xf32>
    %39 = arith.negf %38 : vector<2x128xf32>
    %40 = math.exp %39 : vector<2x128xf32>
    %cst_18 = arith.constant 1.000000e+00 : f32
    %41 = vector.broadcast %cst_18 : f32 to vector<2x128xf32>
    %42 = arith.addf %41, %40 : vector<2x128xf32>
    %43 = arith.divf %41, %42 : vector<2x128xf32>
    %44 = arith.mulf %35, %17 : vector<2x128xf32>
    %45 = arith.mulf %29, %37 : vector<2x128xf32>
    %46 = arith.addf %44, %45 : vector<2x128xf32>
    %47 = math.tanh %46 : vector<2x128xf32>
    %48 = arith.mulf %43, %47 : vector<2x128xf32>
    %c0_19 = arith.constant 0 : index
    %c0_20 = arith.constant 0 : index
    %49 = vector.load %arg22[%c0_19, %c0_20] : memref<32x128xf32, #tpu.memory_space<vmem>>, vector<2x128xf32>
    tpu.vector_store %arg22[%c0_19, %c0_20], %48 {strides = array<i32>} : memref<32x128xf32, #tpu.memory_space<vmem>>, vector<2x128xf32>,
    %c2 = arith.constant 2 : index
    %c0_21 = arith.constant 0 : index
    %50 = vector.load %arg20[%c2, %c0_21] : memref<32x512xf32, #tpu.memory_space<vmem>>, vector<2x512xf32>
    %c28 = arith.constant 28 : index
    %c0_22 = arith.constant 0 : index
    %51 = vector.load %arg20[%c28, %c0_22] : memref<32x512xf32, #tpu.memory_space<vmem>>, vector<2x512xf32>
    %52 = arith.select %4, %50, %51 : vector<2x512xi1>, vector<2x512xf32>
    %53 = arith.truncf %48 : vector<2x128xf32> to vector<2x128xbf16>
    %cst_23 = arith.constant dense<0.000000e+00> : vector<2x512xf32>
    %54 = tpu.matmul %53, %15, %cst_23 {dimension_numbers = #tpu.dot_dimension_numbers<[1], [0], [0], [1], [0, 0, 1, 1], [], []>} : vector<2x128xbf16>, vector<128x512xbf16>, vector<2x512xf32> -> vector<2x512xf32>
    %55 = arith.addf %52, %54 : vector<2x512xf32>
    %56 = vector.extract_strided_slice %55 {offsets = [0, 0], sizes = [2, 128], strides = [1, 1]} : vector<2x512xf32> to vector<2x128xf32>
    %57 = arith.negf %56 : vector<2x128xf32>
    %58 = math.exp %57 : vector<2x128xf32>
    %cst_24 = arith.constant 1.000000e+00 : f32
    %59 = vector.broadcast %cst_24 : f32 to vector<2x128xf32>
    %60 = arith.addf %59, %58 : vector<2x128xf32>
    %61 = arith.divf %59, %60 : vector<2x128xf32>
    %62 = vector.extract_strided_slice %55 {offsets = [0, 128], sizes = [2, 128], strides = [1, 1]} : vector<2x512xf32> to vector<2x128xf32>
    %63 = arith.negf %62 : vector<2x128xf32>
    %64 = math.exp %63 : vector<2x128xf32>
    %cst_25 = arith.constant 1.000000e+00 : f32
    %65 = vector.broadcast %cst_25 : f32 to vector<2x128xf32>
    %66 = arith.addf %65, %64 : vector<2x128xf32>
    %67 = arith.divf %65, %66 : vector<2x128xf32>
    %68 = vector.extract_strided_slice %55 {offsets = [0, 256], sizes = [2, 128], strides = [1, 1]} : vector<2x512xf32> to vector<2x128xf32>
    %69 = math.tanh %68 : vector<2x128xf32>
    %70 = vector.extract_strided_slice %55 {offsets = [0, 384], sizes = [2, 128], strides = [1, 1]} : vector<2x512xf32> to vector<2x128xf32>
    %71 = arith.negf %70 : vector<2x128xf32>
    %72 = math.exp %71 : vector<2x128xf32>
    %cst_26 = arith.constant 1.000000e+00 : f32
    %73 = vector.broadcast %cst_26 : f32 to vector<2x128xf32>
    %74 = arith.addf %73, %72 : vector<2x128xf32>
    %75 = arith.divf %73, %74 : vector<2x128xf32>
    %76 = arith.mulf %67, %46 : vector<2x128xf32>
    %77 = arith.mulf %61, %69 : vector<2x128xf32>
    %78 = arith.addf %76, %77 : vector<2x128xf32>
    %79 = math.tanh %78 : vector<2x128xf32>
    %80 = arith.mulf %75, %79 : vector<2x128xf32>
    %c2_27 = arith.constant 2 : index
    %c0_28 = arith.constant 0 : index
    %81 = vector.load %arg22[%c2_27, %c0_28] : memref<32x128xf32, #tpu.memory_space<vmem>>, vector<2x128xf32>
    tpu.vector_store %arg22[%c2_27, %c0_28], %80 {strides = array<i32>} : memref<32x128xf32, #tpu.memory_space<vmem>>, vector<2x128xf32>,
    %c4 = arith.constant 4 : index
    %c0_29 = arith.constant 0 : index
    %82 = vector.load %arg20[%c4, %c0_29] : memref<32x512xf32, #tpu.memory_space<vmem>>, vector<2x512xf32>
    %c26 = arith.constant 26 : index
    %c0_30 = arith.constant 0 : index
    %83 = vector.load %arg20[%c26, %c0_30] : memref<32x512xf32, #tpu.memory_space<vmem>>, vector<2x512xf32>
    %84 = arith.select %4, %82, %83 : vector<2x512xi1>, vector<2x512xf32>
    %85 = arith.truncf %80 : vector<2x128xf32> to vector<2x128xbf16>
    %cst_31 = arith.constant dense<0.000000e+00> : vector<2x512xf32>
    %86 = tpu.matmul %85, %15, %cst_31 {dimension_numbers = #tpu.dot_dimension_numbers<[1], [0], [0], [1], [0, 0, 1, 1], [], []>} : vector<2x128xbf16>, vector<128x512xbf16>, vector<2x512xf32> -> vector<2x512xf32>
    %87 = arith.addf %84, %86 : vector<2x512xf32>
    %88 = vector.extract_strided_slice %87 {offsets = [0, 0], sizes = [2, 128], strides = [1, 1]} : vector<2x512xf32> to vector<2x128xf32>
    %89 = arith.negf %88 : vector<2x128xf32>
    %90 = math.exp %89 : vector<2x128xf32>
    %cst_32 = arith.constant 1.000000e+00 : f32
    %91 = vector.broadcast %cst_32 : f32 to vector<2x128xf32>
    %92 = arith.addf %91, %90 : vector<2x128xf32>
    %93 = arith.divf %91, %92 : vector<2x128xf32>
    %94 = vector.extract_strided_slice %87 {offsets = [0, 128], sizes = [2, 128], strides = [1, 1]} : vector<2x512xf32> to vector<2x128xf32>
    %95 = arith.negf %94 : vector<2x128xf32>
    %96 = math.exp %95 : vector<2x128xf32>
    %cst_33 = arith.constant 1.000000e+00 : f32
    %97 = vector.broadcast %cst_33 : f32 to vector<2x128xf32>
    %98 = arith.addf %97, %96 : vector<2x128xf32>
    %99 = arith.divf %97, %98 : vector<2x128xf32>
    %100 = vector.extract_strided_slice %87 {offsets = [0, 256], sizes = [2, 128], strides = [1, 1]} : vector<2x512xf32> to vector<2x128xf32>
    %101 = math.tanh %100 : vector<2x128xf32>
    %102 = vector.extract_strided_slice %87 {offsets = [0, 384], sizes = [2, 128], strides = [1, 1]} : vector<2x512xf32> to vector<2x128xf32>
    %103 = arith.negf %102 : vector<2x128xf32>
    %104 = math.exp %103 : vector<2x128xf32>
    %cst_34 = arith.constant 1.000000e+00 : f32
    %105 = vector.broadcast %cst_34 : f32 to vector<2x128xf32>
    %106 = arith.addf %105, %104 : vector<2x128xf32>
    %107 = arith.divf %105, %106 : vector<2x128xf32>
    %108 = arith.mulf %99, %78 : vector<2x128xf32>
    %109 = arith.mulf %93, %101 : vector<2x128xf32>
    %110 = arith.addf %108, %109 : vector<2x128xf32>
    %111 = math.tanh %110 : vector<2x128xf32>
    %112 = arith.mulf %107, %111 : vector<2x128xf32>
    %c4_35 = arith.constant 4 : index
    %c0_36 = arith.constant 0 : index
    %113 = vector.load %arg22[%c4_35, %c0_36] : memref<32x128xf32, #tpu.memory_space<vmem>>, vector<2x128xf32>
    tpu.vector_store %arg22[%c4_35, %c0_36], %112 {strides = array<i32>} : memref<32x128xf32, #tpu.memory_space<vmem>>, vector<2x128xf32>,
    %c6 = arith.constant 6 : index
    %c0_37 = arith.constant 0 : index
    %114 = vector.load %arg20[%c6, %c0_37] : memref<32x512xf32, #tpu.memory_space<vmem>>, vector<2x512xf32>
    %c24 = arith.constant 24 : index
    %c0_38 = arith.constant 0 : index
    %115 = vector.load %arg20[%c24, %c0_38] : memref<32x512xf32, #tpu.memory_space<vmem>>, vector<2x512xf32>
    %116 = arith.select %4, %114, %115 : vector<2x512xi1>, vector<2x512xf32>
    %117 = arith.truncf %112 : vector<2x128xf32> to vector<2x128xbf16>
    %cst_39 = arith.constant dense<0.000000e+00> : vector<2x512xf32>
    %118 = tpu.matmul %117, %15, %cst_39 {dimension_numbers = #tpu.dot_dimension_numbers<[1], [0], [0], [1], [0, 0, 1, 1], [], []>} : vector<2x128xbf16>, vector<128x512xbf16>, vector<2x512xf32> -> vector<2x512xf32>
    %119 = arith.addf %116, %118 : vector<2x512xf32>
    %120 = vector.extract_strided_slice %119 {offsets = [0, 0], sizes = [2, 128], strides = [1, 1]} : vector<2x512xf32> to vector<2x128xf32>
    %121 = arith.negf %120 : vector<2x128xf32>
    %122 = math.exp %121 : vector<2x128xf32>
    %cst_40 = arith.constant 1.000000e+00 : f32
    %123 = vector.broadcast %cst_40 : f32 to vector<2x128xf32>
    %124 = arith.addf %123, %122 : vector<2x128xf32>
    %125 = arith.divf %123, %124 : vector<2x128xf32>
    %126 = vector.extract_strided_slice %119 {offsets = [0, 128], sizes = [2, 128], strides = [1, 1]} : vector<2x512xf32> to vector<2x128xf32>
    %127 = arith.negf %126 : vector<2x128xf32>
    %128 = math.exp %127 : vector<2x128xf32>
    %cst_41 = arith.constant 1.000000e+00 : f32
    %129 = vector.broadcast %cst_41 : f32 to vector<2x128xf32>
    %130 = arith.addf %129, %128 : vector<2x128xf32>
    %131 = arith.divf %129, %130 : vector<2x128xf32>
    %132 = vector.extract_strided_slice %119 {offsets = [0, 256], sizes = [2, 128], strides = [1, 1]} : vector<2x512xf32> to vector<2x128xf32>
    %133 = math.tanh %132 : vector<2x128xf32>
    %134 = vector.extract_strided_slice %119 {offsets = [0, 384], sizes = [2, 128], strides = [1, 1]} : vector<2x512xf32> to vector<2x128xf32>
    %135 = arith.negf %134 : vector<2x128xf32>
    %136 = math.exp %135 : vector<2x128xf32>
    %cst_42 = arith.constant 1.000000e+00 : f32
    %137 = vector.broadcast %cst_42 : f32 to vector<2x128xf32>
    %138 = arith.addf %137, %136 : vector<2x128xf32>
    %139 = arith.divf %137, %138 : vector<2x128xf32>
    %140 = arith.mulf %131, %110 : vector<2x128xf32>
    %141 = arith.mulf %125, %133 : vector<2x128xf32>
    %142 = arith.addf %140, %141 : vector<2x128xf32>
    %143 = math.tanh %142 : vector<2x128xf32>
    %144 = arith.mulf %139, %143 : vector<2x128xf32>
    %c6_43 = arith.constant 6 : index
    %c0_44 = arith.constant 0 : index
    %145 = vector.load %arg22[%c6_43, %c0_44] : memref<32x128xf32, #tpu.memory_space<vmem>>, vector<2x128xf32>
    tpu.vector_store %arg22[%c6_43, %c0_44], %144 {strides = array<i32>} : memref<32x128xf32, #tpu.memory_space<vmem>>, vector<2x128xf32>,
    %c8 = arith.constant 8 : index
    %c0_45 = arith.constant 0 : index
    %146 = vector.load %arg20[%c8, %c0_45] : memref<32x512xf32, #tpu.memory_space<vmem>>, vector<2x512xf32>
    %c22 = arith.constant 22 : index
    %c0_46 = arith.constant 0 : index
    %147 = vector.load %arg20[%c22, %c0_46] : memref<32x512xf32, #tpu.memory_space<vmem>>, vector<2x512xf32>
    %148 = arith.select %4, %146, %147 : vector<2x512xi1>, vector<2x512xf32>
    %149 = arith.truncf %144 : vector<2x128xf32> to vector<2x128xbf16>
    %cst_47 = arith.constant dense<0.000000e+00> : vector<2x512xf32>
    %150 = tpu.matmul %149, %15, %cst_47 {dimension_numbers = #tpu.dot_dimension_numbers<[1], [0], [0], [1], [0, 0, 1, 1], [], []>} : vector<2x128xbf16>, vector<128x512xbf16>, vector<2x512xf32> -> vector<2x512xf32>
    %151 = arith.addf %148, %150 : vector<2x512xf32>
    %152 = vector.extract_strided_slice %151 {offsets = [0, 0], sizes = [2, 128], strides = [1, 1]} : vector<2x512xf32> to vector<2x128xf32>
    %153 = arith.negf %152 : vector<2x128xf32>
    %154 = math.exp %153 : vector<2x128xf32>
    %cst_48 = arith.constant 1.000000e+00 : f32
    %155 = vector.broadcast %cst_48 : f32 to vector<2x128xf32>
    %156 = arith.addf %155, %154 : vector<2x128xf32>
    %157 = arith.divf %155, %156 : vector<2x128xf32>
    %158 = vector.extract_strided_slice %151 {offsets = [0, 128], sizes = [2, 128], strides = [1, 1]} : vector<2x512xf32> to vector<2x128xf32>
    %159 = arith.negf %158 : vector<2x128xf32>
    %160 = math.exp %159 : vector<2x128xf32>
    %cst_49 = arith.constant 1.000000e+00 : f32
    %161 = vector.broadcast %cst_49 : f32 to vector<2x128xf32>
    %162 = arith.addf %161, %160 : vector<2x128xf32>
    %163 = arith.divf %161, %162 : vector<2x128xf32>
    %164 = vector.extract_strided_slice %151 {offsets = [0, 256], sizes = [2, 128], strides = [1, 1]} : vector<2x512xf32> to vector<2x128xf32>
    %165 = math.tanh %164 : vector<2x128xf32>
    %166 = vector.extract_strided_slice %151 {offsets = [0, 384], sizes = [2, 128], strides = [1, 1]} : vector<2x512xf32> to vector<2x128xf32>
    %167 = arith.negf %166 : vector<2x128xf32>
    %168 = math.exp %167 : vector<2x128xf32>
    %cst_50 = arith.constant 1.000000e+00 : f32
    %169 = vector.broadcast %cst_50 : f32 to vector<2x128xf32>
    %170 = arith.addf %169, %168 : vector<2x128xf32>
    %171 = arith.divf %169, %170 : vector<2x128xf32>
    %172 = arith.mulf %163, %142 : vector<2x128xf32>
    %173 = arith.mulf %157, %165 : vector<2x128xf32>
    %174 = arith.addf %172, %173 : vector<2x128xf32>
    %175 = math.tanh %174 : vector<2x128xf32>
    %176 = arith.mulf %171, %175 : vector<2x128xf32>
    %c8_51 = arith.constant 8 : index
    %c0_52 = arith.constant 0 : index
    %177 = vector.load %arg22[%c8_51, %c0_52] : memref<32x128xf32, #tpu.memory_space<vmem>>, vector<2x128xf32>
    tpu.vector_store %arg22[%c8_51, %c0_52], %176 {strides = array<i32>} : memref<32x128xf32, #tpu.memory_space<vmem>>, vector<2x128xf32>,
    %c10 = arith.constant 10 : index
    %c0_53 = arith.constant 0 : index
    %178 = vector.load %arg20[%c10, %c0_53] : memref<32x512xf32, #tpu.memory_space<vmem>>, vector<2x512xf32>
    %c20 = arith.constant 20 : index
    %c0_54 = arith.constant 0 : index
    %179 = vector.load %arg20[%c20, %c0_54] : memref<32x512xf32, #tpu.memory_space<vmem>>, vector<2x512xf32>
    %180 = arith.select %4, %178, %179 : vector<2x512xi1>, vector<2x512xf32>
    %181 = arith.truncf %176 : vector<2x128xf32> to vector<2x128xbf16>
    %cst_55 = arith.constant dense<0.000000e+00> : vector<2x512xf32>
    %182 = tpu.matmul %181, %15, %cst_55 {dimension_numbers = #tpu.dot_dimension_numbers<[1], [0], [0], [1], [0, 0, 1, 1], [], []>} : vector<2x128xbf16>, vector<128x512xbf16>, vector<2x512xf32> -> vector<2x512xf32>
    %183 = arith.addf %180, %182 : vector<2x512xf32>
    %184 = vector.extract_strided_slice %183 {offsets = [0, 0], sizes = [2, 128], strides = [1, 1]} : vector<2x512xf32> to vector<2x128xf32>
    %185 = arith.negf %184 : vector<2x128xf32>
    %186 = math.exp %185 : vector<2x128xf32>
    %cst_56 = arith.constant 1.000000e+00 : f32
    %187 = vector.broadcast %cst_56 : f32 to vector<2x128xf32>
    %188 = arith.addf %187, %186 : vector<2x128xf32>
    %189 = arith.divf %187, %188 : vector<2x128xf32>
    %190 = vector.extract_strided_slice %183 {offsets = [0, 128], sizes = [2, 128], strides = [1, 1]} : vector<2x512xf32> to vector<2x128xf32>
    %191 = arith.negf %190 : vector<2x128xf32>
    %192 = math.exp %191 : vector<2x128xf32>
    %cst_57 = arith.constant 1.000000e+00 : f32
    %193 = vector.broadcast %cst_57 : f32 to vector<2x128xf32>
    %194 = arith.addf %193, %192 : vector<2x128xf32>
    %195 = arith.divf %193, %194 : vector<2x128xf32>
    %196 = vector.extract_strided_slice %183 {offsets = [0, 256], sizes = [2, 128], strides = [1, 1]} : vector<2x512xf32> to vector<2x128xf32>
    %197 = math.tanh %196 : vector<2x128xf32>
    %198 = vector.extract_strided_slice %183 {offsets = [0, 384], sizes = [2, 128], strides = [1, 1]} : vector<2x512xf32> to vector<2x128xf32>
    %199 = arith.negf %198 : vector<2x128xf32>
    %200 = math.exp %199 : vector<2x128xf32>
    %cst_58 = arith.constant 1.000000e+00 : f32
    %201 = vector.broadcast %cst_58 : f32 to vector<2x128xf32>
    %202 = arith.addf %201, %200 : vector<2x128xf32>
    %203 = arith.divf %201, %202 : vector<2x128xf32>
    %204 = arith.mulf %195, %174 : vector<2x128xf32>
    %205 = arith.mulf %189, %197 : vector<2x128xf32>
    %206 = arith.addf %204, %205 : vector<2x128xf32>
    %207 = math.tanh %206 : vector<2x128xf32>
    %208 = arith.mulf %203, %207 : vector<2x128xf32>
    %c10_59 = arith.constant 10 : index
    %c0_60 = arith.constant 0 : index
    %209 = vector.load %arg22[%c10_59, %c0_60] : memref<32x128xf32, #tpu.memory_space<vmem>>, vector<2x128xf32>
    tpu.vector_store %arg22[%c10_59, %c0_60], %208 {strides = array<i32>} : memref<32x128xf32, #tpu.memory_space<vmem>>, vector<2x128xf32>,
    %c12 = arith.constant 12 : index
    %c0_61 = arith.constant 0 : index
    %210 = vector.load %arg20[%c12, %c0_61] : memref<32x512xf32, #tpu.memory_space<vmem>>, vector<2x512xf32>
    %c18 = arith.constant 18 : index
    %c0_62 = arith.constant 0 : index
    %211 = vector.load %arg20[%c18, %c0_62] : memref<32x512xf32, #tpu.memory_space<vmem>>, vector<2x512xf32>
    %212 = arith.select %4, %210, %211 : vector<2x512xi1>, vector<2x512xf32>
    %213 = arith.truncf %208 : vector<2x128xf32> to vector<2x128xbf16>
    %cst_63 = arith.constant dense<0.000000e+00> : vector<2x512xf32>
    %214 = tpu.matmul %213, %15, %cst_63 {dimension_numbers = #tpu.dot_dimension_numbers<[1], [0], [0], [1], [0, 0, 1, 1], [], []>} : vector<2x128xbf16>, vector<128x512xbf16>, vector<2x512xf32> -> vector<2x512xf32>
    %215 = arith.addf %212, %214 : vector<2x512xf32>
    %216 = vector.extract_strided_slice %215 {offsets = [0, 0], sizes = [2, 128], strides = [1, 1]} : vector<2x512xf32> to vector<2x128xf32>
    %217 = arith.negf %216 : vector<2x128xf32>
    %218 = math.exp %217 : vector<2x128xf32>
    %cst_64 = arith.constant 1.000000e+00 : f32
    %219 = vector.broadcast %cst_64 : f32 to vector<2x128xf32>
    %220 = arith.addf %219, %218 : vector<2x128xf32>
    %221 = arith.divf %219, %220 : vector<2x128xf32>
    %222 = vector.extract_strided_slice %215 {offsets = [0, 128], sizes = [2, 128], strides = [1, 1]} : vector<2x512xf32> to vector<2x128xf32>
    %223 = arith.negf %222 : vector<2x128xf32>
    %224 = math.exp %223 : vector<2x128xf32>
    %cst_65 = arith.constant 1.000000e+00 : f32
    %225 = vector.broadcast %cst_65 : f32 to vector<2x128xf32>
    %226 = arith.addf %225, %224 : vector<2x128xf32>
    %227 = arith.divf %225, %226 : vector<2x128xf32>
    %228 = vector.extract_strided_slice %215 {offsets = [0, 256], sizes = [2, 128], strides = [1, 1]} : vector<2x512xf32> to vector<2x128xf32>
    %229 = math.tanh %228 : vector<2x128xf32>
    %230 = vector.extract_strided_slice %215 {offsets = [0, 384], sizes = [2, 128], strides = [1, 1]} : vector<2x512xf32> to vector<2x128xf32>
    %231 = arith.negf %230 : vector<2x128xf32>
    %232 = math.exp %231 : vector<2x128xf32>
    %cst_66 = arith.constant 1.000000e+00 : f32
    %233 = vector.broadcast %cst_66 : f32 to vector<2x128xf32>
    %234 = arith.addf %233, %232 : vector<2x128xf32>
    %235 = arith.divf %233, %234 : vector<2x128xf32>
    %236 = arith.mulf %227, %206 : vector<2x128xf32>
    %237 = arith.mulf %221, %229 : vector<2x128xf32>
    %238 = arith.addf %236, %237 : vector<2x128xf32>
    %239 = math.tanh %238 : vector<2x128xf32>
    %240 = arith.mulf %235, %239 : vector<2x128xf32>
    %c12_67 = arith.constant 12 : index
    %c0_68 = arith.constant 0 : index
    %241 = vector.load %arg22[%c12_67, %c0_68] : memref<32x128xf32, #tpu.memory_space<vmem>>, vector<2x128xf32>
    tpu.vector_store %arg22[%c12_67, %c0_68], %240 {strides = array<i32>} : memref<32x128xf32, #tpu.memory_space<vmem>>, vector<2x128xf32>,
    %c14 = arith.constant 14 : index
    %c0_69 = arith.constant 0 : index
    %242 = vector.load %arg20[%c14, %c0_69] : memref<32x512xf32, #tpu.memory_space<vmem>>, vector<2x512xf32>
    %c16 = arith.constant 16 : index
    %c0_70 = arith.constant 0 : index
    %243 = vector.load %arg20[%c16, %c0_70] : memref<32x512xf32, #tpu.memory_space<vmem>>, vector<2x512xf32>
    %244 = arith.select %4, %242, %243 : vector<2x512xi1>, vector<2x512xf32>
    %245 = arith.truncf %240 : vector<2x128xf32> to vector<2x128xbf16>
    %cst_71 = arith.constant dense<0.000000e+00> : vector<2x512xf32>
    %246 = tpu.matmul %245, %15, %cst_71 {dimension_numbers = #tpu.dot_dimension_numbers<[1], [0], [0], [1], [0, 0, 1, 1], [], []>} : vector<2x128xbf16>, vector<128x512xbf16>, vector<2x512xf32> -> vector<2x512xf32>
    %247 = arith.addf %244, %246 : vector<2x512xf32>
    %248 = vector.extract_strided_slice %247 {offsets = [0, 0], sizes = [2, 128], strides = [1, 1]} : vector<2x512xf32> to vector<2x128xf32>
    %249 = arith.negf %248 : vector<2x128xf32>
    %250 = math.exp %249 : vector<2x128xf32>
    %cst_72 = arith.constant 1.000000e+00 : f32
    %251 = vector.broadcast %cst_72 : f32 to vector<2x128xf32>
    %252 = arith.addf %251, %250 : vector<2x128xf32>
    %253 = arith.divf %251, %252 : vector<2x128xf32>
    %254 = vector.extract_strided_slice %247 {offsets = [0, 128], sizes = [2, 128], strides = [1, 1]} : vector<2x512xf32> to vector<2x128xf32>
    %255 = arith.negf %254 : vector<2x128xf32>
    %256 = math.exp %255 : vector<2x128xf32>
    %cst_73 = arith.constant 1.000000e+00 : f32
    %257 = vector.broadcast %cst_73 : f32 to vector<2x128xf32>
    %258 = arith.addf %257, %256 : vector<2x128xf32>
    %259 = arith.divf %257, %258 : vector<2x128xf32>
    %260 = vector.extract_strided_slice %247 {offsets = [0, 256], sizes = [2, 128], strides = [1, 1]} : vector<2x512xf32> to vector<2x128xf32>
    %261 = math.tanh %260 : vector<2x128xf32>
    %262 = vector.extract_strided_slice %247 {offsets = [0, 384], sizes = [2, 128], strides = [1, 1]} : vector<2x512xf32> to vector<2x128xf32>
    %263 = arith.negf %262 : vector<2x128xf32>
    %264 = math.exp %263 : vector<2x128xf32>
    %cst_74 = arith.constant 1.000000e+00 : f32
    %265 = vector.broadcast %cst_74 : f32 to vector<2x128xf32>
    %266 = arith.addf %265, %264 : vector<2x128xf32>
    %267 = arith.divf %265, %266 : vector<2x128xf32>
    %268 = arith.mulf %259, %238 : vector<2x128xf32>
    %269 = arith.mulf %253, %261 : vector<2x128xf32>
    %270 = arith.addf %268, %269 : vector<2x128xf32>
    %271 = math.tanh %270 : vector<2x128xf32>
    %272 = arith.mulf %267, %271 : vector<2x128xf32>
    %c14_75 = arith.constant 14 : index
    %c0_76 = arith.constant 0 : index
    %273 = vector.load %arg22[%c14_75, %c0_76] : memref<32x128xf32, #tpu.memory_space<vmem>>, vector<2x128xf32>
    tpu.vector_store %arg22[%c14_75, %c0_76], %272 {strides = array<i32>} : memref<32x128xf32, #tpu.memory_space<vmem>>, vector<2x128xf32>,
    %c16_77 = arith.constant 16 : index
    %c0_78 = arith.constant 0 : index
    %274 = vector.load %arg20[%c16_77, %c0_78] : memref<32x512xf32, #tpu.memory_space<vmem>>, vector<2x512xf32>
    %c14_79 = arith.constant 14 : index
    %c0_80 = arith.constant 0 : index
    %275 = vector.load %arg20[%c14_79, %c0_80] : memref<32x512xf32, #tpu.memory_space<vmem>>, vector<2x512xf32>
    %276 = arith.select %4, %274, %275 : vector<2x512xi1>, vector<2x512xf32>
    %277 = arith.truncf %272 : vector<2x128xf32> to vector<2x128xbf16>
    %cst_81 = arith.constant dense<0.000000e+00> : vector<2x512xf32>
    %278 = tpu.matmul %277, %15, %cst_81 {dimension_numbers = #tpu.dot_dimension_numbers<[1], [0], [0], [1], [0, 0, 1, 1], [], []>} : vector<2x128xbf16>, vector<128x512xbf16>, vector<2x512xf32> -> vector<2x512xf32>
    %279 = arith.addf %276, %278 : vector<2x512xf32>
    %280 = vector.extract_strided_slice %279 {offsets = [0, 0], sizes = [2, 128], strides = [1, 1]} : vector<2x512xf32> to vector<2x128xf32>
    %281 = arith.negf %280 : vector<2x128xf32>
    %282 = math.exp %281 : vector<2x128xf32>
    %cst_82 = arith.constant 1.000000e+00 : f32
    %283 = vector.broadcast %cst_82 : f32 to vector<2x128xf32>
    %284 = arith.addf %283, %282 : vector<2x128xf32>
    %285 = arith.divf %283, %284 : vector<2x128xf32>
    %286 = vector.extract_strided_slice %279 {offsets = [0, 128], sizes = [2, 128], strides = [1, 1]} : vector<2x512xf32> to vector<2x128xf32>
    %287 = arith.negf %286 : vector<2x128xf32>
    %288 = math.exp %287 : vector<2x128xf32>
    %cst_83 = arith.constant 1.000000e+00 : f32
    %289 = vector.broadcast %cst_83 : f32 to vector<2x128xf32>
    %290 = arith.addf %289, %288 : vector<2x128xf32>
    %291 = arith.divf %289, %290 : vector<2x128xf32>
    %292 = vector.extract_strided_slice %279 {offsets = [0, 256], sizes = [2, 128], strides = [1, 1]} : vector<2x512xf32> to vector<2x128xf32>
    %293 = math.tanh %292 : vector<2x128xf32>
    %294 = vector.extract_strided_slice %279 {offsets = [0, 384], sizes = [2, 128], strides = [1, 1]} : vector<2x512xf32> to vector<2x128xf32>
    %295 = arith.negf %294 : vector<2x128xf32>
    %296 = math.exp %295 : vector<2x128xf32>
    %cst_84 = arith.constant 1.000000e+00 : f32
    %297 = vector.broadcast %cst_84 : f32 to vector<2x128xf32>
    %298 = arith.addf %297, %296 : vector<2x128xf32>
    %299 = arith.divf %297, %298 : vector<2x128xf32>
    %300 = arith.mulf %291, %270 : vector<2x128xf32>
    %301 = arith.mulf %285, %293 : vector<2x128xf32>
    %302 = arith.addf %300, %301 : vector<2x128xf32>
    %303 = math.tanh %302 : vector<2x128xf32>
    %304 = arith.mulf %299, %303 : vector<2x128xf32>
    %c16_85 = arith.constant 16 : index
    %c0_86 = arith.constant 0 : index
    %305 = vector.load %arg22[%c16_85, %c0_86] : memref<32x128xf32, #tpu.memory_space<vmem>>, vector<2x128xf32>
    tpu.vector_store %arg22[%c16_85, %c0_86], %304 {strides = array<i32>} : memref<32x128xf32, #tpu.memory_space<vmem>>, vector<2x128xf32>,
    %c18_87 = arith.constant 18 : index
    %c0_88 = arith.constant 0 : index
    %306 = vector.load %arg20[%c18_87, %c0_88] : memref<32x512xf32, #tpu.memory_space<vmem>>, vector<2x512xf32>
    %c12_89 = arith.constant 12 : index
    %c0_90 = arith.constant 0 : index
    %307 = vector.load %arg20[%c12_89, %c0_90] : memref<32x512xf32, #tpu.memory_space<vmem>>, vector<2x512xf32>
    %308 = arith.select %4, %306, %307 : vector<2x512xi1>, vector<2x512xf32>
    %309 = arith.truncf %304 : vector<2x128xf32> to vector<2x128xbf16>
    %cst_91 = arith.constant dense<0.000000e+00> : vector<2x512xf32>
    %310 = tpu.matmul %309, %15, %cst_91 {dimension_numbers = #tpu.dot_dimension_numbers<[1], [0], [0], [1], [0, 0, 1, 1], [], []>} : vector<2x128xbf16>, vector<128x512xbf16>, vector<2x512xf32> -> vector<2x512xf32>
    %311 = arith.addf %308, %310 : vector<2x512xf32>
    %312 = vector.extract_strided_slice %311 {offsets = [0, 0], sizes = [2, 128], strides = [1, 1]} : vector<2x512xf32> to vector<2x128xf32>
    %313 = arith.negf %312 : vector<2x128xf32>
    %314 = math.exp %313 : vector<2x128xf32>
    %cst_92 = arith.constant 1.000000e+00 : f32
    %315 = vector.broadcast %cst_92 : f32 to vector<2x128xf32>
    %316 = arith.addf %315, %314 : vector<2x128xf32>
    %317 = arith.divf %315, %316 : vector<2x128xf32>
    %318 = vector.extract_strided_slice %311 {offsets = [0, 128], sizes = [2, 128], strides = [1, 1]} : vector<2x512xf32> to vector<2x128xf32>
    %319 = arith.negf %318 : vector<2x128xf32>
    %320 = math.exp %319 : vector<2x128xf32>
    %cst_93 = arith.constant 1.000000e+00 : f32
    %321 = vector.broadcast %cst_93 : f32 to vector<2x128xf32>
    %322 = arith.addf %321, %320 : vector<2x128xf32>
    %323 = arith.divf %321, %322 : vector<2x128xf32>
    %324 = vector.extract_strided_slice %311 {offsets = [0, 256], sizes = [2, 128], strides = [1, 1]} : vector<2x512xf32> to vector<2x128xf32>
    %325 = math.tanh %324 : vector<2x128xf32>
    %326 = vector.extract_strided_slice %311 {offsets = [0, 384], sizes = [2, 128], strides = [1, 1]} : vector<2x512xf32> to vector<2x128xf32>
    %327 = arith.negf %326 : vector<2x128xf32>
    %328 = math.exp %327 : vector<2x128xf32>
    %cst_94 = arith.constant 1.000000e+00 : f32
    %329 = vector.broadcast %cst_94 : f32 to vector<2x128xf32>
    %330 = arith.addf %329, %328 : vector<2x128xf32>
    %331 = arith.divf %329, %330 : vector<2x128xf32>
    %332 = arith.mulf %323, %302 : vector<2x128xf32>
    %333 = arith.mulf %317, %325 : vector<2x128xf32>
    %334 = arith.addf %332, %333 : vector<2x128xf32>
    %335 = math.tanh %334 : vector<2x128xf32>
    %336 = arith.mulf %331, %335 : vector<2x128xf32>
    %c18_95 = arith.constant 18 : index
    %c0_96 = arith.constant 0 : index
    %337 = vector.load %arg22[%c18_95, %c0_96] : memref<32x128xf32, #tpu.memory_space<vmem>>, vector<2x128xf32>
    tpu.vector_store %arg22[%c18_95, %c0_96], %336 {strides = array<i32>} : memref<32x128xf32, #tpu.memory_space<vmem>>, vector<2x128xf32>,
    %c20_97 = arith.constant 20 : index
    %c0_98 = arith.constant 0 : index
    %338 = vector.load %arg20[%c20_97, %c0_98] : memref<32x512xf32, #tpu.memory_space<vmem>>, vector<2x512xf32>
    %c10_99 = arith.constant 10 : index
    %c0_100 = arith.constant 0 : index
    %339 = vector.load %arg20[%c10_99, %c0_100] : memref<32x512xf32, #tpu.memory_space<vmem>>, vector<2x512xf32>
    %340 = arith.select %4, %338, %339 : vector<2x512xi1>, vector<2x512xf32>
    %341 = arith.truncf %336 : vector<2x128xf32> to vector<2x128xbf16>
    %cst_101 = arith.constant dense<0.000000e+00> : vector<2x512xf32>
    %342 = tpu.matmul %341, %15, %cst_101 {dimension_numbers = #tpu.dot_dimension_numbers<[1], [0], [0], [1], [0, 0, 1, 1], [], []>} : vector<2x128xbf16>, vector<128x512xbf16>, vector<2x512xf32> -> vector<2x512xf32>
    %343 = arith.addf %340, %342 : vector<2x512xf32>
    %344 = vector.extract_strided_slice %343 {offsets = [0, 0], sizes = [2, 128], strides = [1, 1]} : vector<2x512xf32> to vector<2x128xf32>
    %345 = arith.negf %344 : vector<2x128xf32>
    %346 = math.exp %345 : vector<2x128xf32>
    %cst_102 = arith.constant 1.000000e+00 : f32
    %347 = vector.broadcast %cst_102 : f32 to vector<2x128xf32>
    %348 = arith.addf %347, %346 : vector<2x128xf32>
    %349 = arith.divf %347, %348 : vector<2x128xf32>
    %350 = vector.extract_strided_slice %343 {offsets = [0, 128], sizes = [2, 128], strides = [1, 1]} : vector<2x512xf32> to vector<2x128xf32>
    %351 = arith.negf %350 : vector<2x128xf32>
    %352 = math.exp %351 : vector<2x128xf32>
    %cst_103 = arith.constant 1.000000e+00 : f32
    %353 = vector.broadcast %cst_103 : f32 to vector<2x128xf32>
    %354 = arith.addf %353, %352 : vector<2x128xf32>
    %355 = arith.divf %353, %354 : vector<2x128xf32>
    %356 = vector.extract_strided_slice %343 {offsets = [0, 256], sizes = [2, 128], strides = [1, 1]} : vector<2x512xf32> to vector<2x128xf32>
    %357 = math.tanh %356 : vector<2x128xf32>
    %358 = vector.extract_strided_slice %343 {offsets = [0, 384], sizes = [2, 128], strides = [1, 1]} : vector<2x512xf32> to vector<2x128xf32>
    %359 = arith.negf %358 : vector<2x128xf32>
    %360 = math.exp %359 : vector<2x128xf32>
    %cst_104 = arith.constant 1.000000e+00 : f32
    %361 = vector.broadcast %cst_104 : f32 to vector<2x128xf32>
    %362 = arith.addf %361, %360 : vector<2x128xf32>
    %363 = arith.divf %361, %362 : vector<2x128xf32>
    %364 = arith.mulf %355, %334 : vector<2x128xf32>
    %365 = arith.mulf %349, %357 : vector<2x128xf32>
    %366 = arith.addf %364, %365 : vector<2x128xf32>
    %367 = math.tanh %366 : vector<2x128xf32>
    %368 = arith.mulf %363, %367 : vector<2x128xf32>
    %c20_105 = arith.constant 20 : index
    %c0_106 = arith.constant 0 : index
    %369 = vector.load %arg22[%c20_105, %c0_106] : memref<32x128xf32, #tpu.memory_space<vmem>>, vector<2x128xf32>
    tpu.vector_store %arg22[%c20_105, %c0_106], %368 {strides = array<i32>} : memref<32x128xf32, #tpu.memory_space<vmem>>, vector<2x128xf32>,
    %c22_107 = arith.constant 22 : index
    %c0_108 = arith.constant 0 : index
    %370 = vector.load %arg20[%c22_107, %c0_108] : memref<32x512xf32, #tpu.memory_space<vmem>>, vector<2x512xf32>
    %c8_109 = arith.constant 8 : index
    %c0_110 = arith.constant 0 : index
    %371 = vector.load %arg20[%c8_109, %c0_110] : memref<32x512xf32, #tpu.memory_space<vmem>>, vector<2x512xf32>
    %372 = arith.select %4, %370, %371 : vector<2x512xi1>, vector<2x512xf32>
    %373 = arith.truncf %368 : vector<2x128xf32> to vector<2x128xbf16>
    %cst_111 = arith.constant dense<0.000000e+00> : vector<2x512xf32>
    %374 = tpu.matmul %373, %15, %cst_111 {dimension_numbers = #tpu.dot_dimension_numbers<[1], [0], [0], [1], [0, 0, 1, 1], [], []>} : vector<2x128xbf16>, vector<128x512xbf16>, vector<2x512xf32> -> vector<2x512xf32>
    %375 = arith.addf %372, %374 : vector<2x512xf32>
    %376 = vector.extract_strided_slice %375 {offsets = [0, 0], sizes = [2, 128], strides = [1, 1]} : vector<2x512xf32> to vector<2x128xf32>
    %377 = arith.negf %376 : vector<2x128xf32>
    %378 = math.exp %377 : vector<2x128xf32>
    %cst_112 = arith.constant 1.000000e+00 : f32
    %379 = vector.broadcast %cst_112 : f32 to vector<2x128xf32>
    %380 = arith.addf %379, %378 : vector<2x128xf32>
    %381 = arith.divf %379, %380 : vector<2x128xf32>
    %382 = vector.extract_strided_slice %375 {offsets = [0, 128], sizes = [2, 128], strides = [1, 1]} : vector<2x512xf32> to vector<2x128xf32>
    %383 = arith.negf %382 : vector<2x128xf32>
    %384 = math.exp %383 : vector<2x128xf32>
    %cst_113 = arith.constant 1.000000e+00 : f32
    %385 = vector.broadcast %cst_113 : f32 to vector<2x128xf32>
    %386 = arith.addf %385, %384 : vector<2x128xf32>
    %387 = arith.divf %385, %386 : vector<2x128xf32>
    %388 = vector.extract_strided_slice %375 {offsets = [0, 256], sizes = [2, 128], strides = [1, 1]} : vector<2x512xf32> to vector<2x128xf32>
    %389 = math.tanh %388 : vector<2x128xf32>
    %390 = vector.extract_strided_slice %375 {offsets = [0, 384], sizes = [2, 128], strides = [1, 1]} : vector<2x512xf32> to vector<2x128xf32>
    %391 = arith.negf %390 : vector<2x128xf32>
    %392 = math.exp %391 : vector<2x128xf32>
    %cst_114 = arith.constant 1.000000e+00 : f32
    %393 = vector.broadcast %cst_114 : f32 to vector<2x128xf32>
    %394 = arith.addf %393, %392 : vector<2x128xf32>
    %395 = arith.divf %393, %394 : vector<2x128xf32>
    %396 = arith.mulf %387, %366 : vector<2x128xf32>
    %397 = arith.mulf %381, %389 : vector<2x128xf32>
    %398 = arith.addf %396, %397 : vector<2x128xf32>
    %399 = math.tanh %398 : vector<2x128xf32>
    %400 = arith.mulf %395, %399 : vector<2x128xf32>
    %c22_115 = arith.constant 22 : index
    %c0_116 = arith.constant 0 : index
    %401 = vector.load %arg22[%c22_115, %c0_116] : memref<32x128xf32, #tpu.memory_space<vmem>>, vector<2x128xf32>
    tpu.vector_store %arg22[%c22_115, %c0_116], %400 {strides = array<i32>} : memref<32x128xf32, #tpu.memory_space<vmem>>, vector<2x128xf32>,
    %c24_117 = arith.constant 24 : index
    %c0_118 = arith.constant 0 : index
    %402 = vector.load %arg20[%c24_117, %c0_118] : memref<32x512xf32, #tpu.memory_space<vmem>>, vector<2x512xf32>
    %c6_119 = arith.constant 6 : index
    %c0_120 = arith.constant 0 : index
    %403 = vector.load %arg20[%c6_119, %c0_120] : memref<32x512xf32, #tpu.memory_space<vmem>>, vector<2x512xf32>
    %404 = arith.select %4, %402, %403 : vector<2x512xi1>, vector<2x512xf32>
    %405 = arith.truncf %400 : vector<2x128xf32> to vector<2x128xbf16>
    %cst_121 = arith.constant dense<0.000000e+00> : vector<2x512xf32>
    %406 = tpu.matmul %405, %15, %cst_121 {dimension_numbers = #tpu.dot_dimension_numbers<[1], [0], [0], [1], [0, 0, 1, 1], [], []>} : vector<2x128xbf16>, vector<128x512xbf16>, vector<2x512xf32> -> vector<2x512xf32>
    %407 = arith.addf %404, %406 : vector<2x512xf32>
    %408 = vector.extract_strided_slice %407 {offsets = [0, 0], sizes = [2, 128], strides = [1, 1]} : vector<2x512xf32> to vector<2x128xf32>
    %409 = arith.negf %408 : vector<2x128xf32>
    %410 = math.exp %409 : vector<2x128xf32>
    %cst_122 = arith.constant 1.000000e+00 : f32
    %411 = vector.broadcast %cst_122 : f32 to vector<2x128xf32>
    %412 = arith.addf %411, %410 : vector<2x128xf32>
    %413 = arith.divf %411, %412 : vector<2x128xf32>
    %414 = vector.extract_strided_slice %407 {offsets = [0, 128], sizes = [2, 128], strides = [1, 1]} : vector<2x512xf32> to vector<2x128xf32>
    %415 = arith.negf %414 : vector<2x128xf32>
    %416 = math.exp %415 : vector<2x128xf32>
    %cst_123 = arith.constant 1.000000e+00 : f32
    %417 = vector.broadcast %cst_123 : f32 to vector<2x128xf32>
    %418 = arith.addf %417, %416 : vector<2x128xf32>
    %419 = arith.divf %417, %418 : vector<2x128xf32>
    %420 = vector.extract_strided_slice %407 {offsets = [0, 256], sizes = [2, 128], strides = [1, 1]} : vector<2x512xf32> to vector<2x128xf32>
    %421 = math.tanh %420 : vector<2x128xf32>
    %422 = vector.extract_strided_slice %407 {offsets = [0, 384], sizes = [2, 128], strides = [1, 1]} : vector<2x512xf32> to vector<2x128xf32>
    %423 = arith.negf %422 : vector<2x128xf32>
    %424 = math.exp %423 : vector<2x128xf32>
    %cst_124 = arith.constant 1.000000e+00 : f32
    %425 = vector.broadcast %cst_124 : f32 to vector<2x128xf32>
    %426 = arith.addf %425, %424 : vector<2x128xf32>
    %427 = arith.divf %425, %426 : vector<2x128xf32>
    %428 = arith.mulf %419, %398 : vector<2x128xf32>
    %429 = arith.mulf %413, %421 : vector<2x128xf32>
    %430 = arith.addf %428, %429 : vector<2x128xf32>
    %431 = math.tanh %430 : vector<2x128xf32>
    %432 = arith.mulf %427, %431 : vector<2x128xf32>
    %c24_125 = arith.constant 24 : index
    %c0_126 = arith.constant 0 : index
    %433 = vector.load %arg22[%c24_125, %c0_126] : memref<32x128xf32, #tpu.memory_space<vmem>>, vector<2x128xf32>
    tpu.vector_store %arg22[%c24_125, %c0_126], %432 {strides = array<i32>} : memref<32x128xf32, #tpu.memory_space<vmem>>, vector<2x128xf32>,
    %c26_127 = arith.constant 26 : index
    %c0_128 = arith.constant 0 : index
    %434 = vector.load %arg20[%c26_127, %c0_128] : memref<32x512xf32, #tpu.memory_space<vmem>>, vector<2x512xf32>
    %c4_129 = arith.constant 4 : index
    %c0_130 = arith.constant 0 : index
    %435 = vector.load %arg20[%c4_129, %c0_130] : memref<32x512xf32, #tpu.memory_space<vmem>>, vector<2x512xf32>
    %436 = arith.select %4, %434, %435 : vector<2x512xi1>, vector<2x512xf32>
    %437 = arith.truncf %432 : vector<2x128xf32> to vector<2x128xbf16>
    %cst_131 = arith.constant dense<0.000000e+00> : vector<2x512xf32>
    %438 = tpu.matmul %437, %15, %cst_131 {dimension_numbers = #tpu.dot_dimension_numbers<[1], [0], [0], [1], [0, 0, 1, 1], [], []>} : vector<2x128xbf16>, vector<128x512xbf16>, vector<2x512xf32> -> vector<2x512xf32>
    %439 = arith.addf %436, %438 : vector<2x512xf32>
    %440 = vector.extract_strided_slice %439 {offsets = [0, 0], sizes = [2, 128], strides = [1, 1]} : vector<2x512xf32> to vector<2x128xf32>
    %441 = arith.negf %440 : vector<2x128xf32>
    %442 = math.exp %441 : vector<2x128xf32>
    %cst_132 = arith.constant 1.000000e+00 : f32
    %443 = vector.broadcast %cst_132 : f32 to vector<2x128xf32>
    %444 = arith.addf %443, %442 : vector<2x128xf32>
    %445 = arith.divf %443, %444 : vector<2x128xf32>
    %446 = vector.extract_strided_slice %439 {offsets = [0, 128], sizes = [2, 128], strides = [1, 1]} : vector<2x512xf32> to vector<2x128xf32>
    %447 = arith.negf %446 : vector<2x128xf32>
    %448 = math.exp %447 : vector<2x128xf32>
    %cst_133 = arith.constant 1.000000e+00 : f32
    %449 = vector.broadcast %cst_133 : f32 to vector<2x128xf32>
    %450 = arith.addf %449, %448 : vector<2x128xf32>
    %451 = arith.divf %449, %450 : vector<2x128xf32>
    %452 = vector.extract_strided_slice %439 {offsets = [0, 256], sizes = [2, 128], strides = [1, 1]} : vector<2x512xf32> to vector<2x128xf32>
    %453 = math.tanh %452 : vector<2x128xf32>
    %454 = vector.extract_strided_slice %439 {offsets = [0, 384], sizes = [2, 128], strides = [1, 1]} : vector<2x512xf32> to vector<2x128xf32>
    %455 = arith.negf %454 : vector<2x128xf32>
    %456 = math.exp %455 : vector<2x128xf32>
    %cst_134 = arith.constant 1.000000e+00 : f32
    %457 = vector.broadcast %cst_134 : f32 to vector<2x128xf32>
    %458 = arith.addf %457, %456 : vector<2x128xf32>
    %459 = arith.divf %457, %458 : vector<2x128xf32>
    %460 = arith.mulf %451, %430 : vector<2x128xf32>
    %461 = arith.mulf %445, %453 : vector<2x128xf32>
    %462 = arith.addf %460, %461 : vector<2x128xf32>
    %463 = math.tanh %462 : vector<2x128xf32>
    %464 = arith.mulf %459, %463 : vector<2x128xf32>
    %c26_135 = arith.constant 26 : index
    %c0_136 = arith.constant 0 : index
    %465 = vector.load %arg22[%c26_135, %c0_136] : memref<32x128xf32, #tpu.memory_space<vmem>>, vector<2x128xf32>
    tpu.vector_store %arg22[%c26_135, %c0_136], %464 {strides = array<i32>} : memref<32x128xf32, #tpu.memory_space<vmem>>, vector<2x128xf32>,
    %c28_137 = arith.constant 28 : index
    %c0_138 = arith.constant 0 : index
    %466 = vector.load %arg20[%c28_137, %c0_138] : memref<32x512xf32, #tpu.memory_space<vmem>>, vector<2x512xf32>
    %c2_139 = arith.constant 2 : index
    %c0_140 = arith.constant 0 : index
    %467 = vector.load %arg20[%c2_139, %c0_140] : memref<32x512xf32, #tpu.memory_space<vmem>>, vector<2x512xf32>
    %468 = arith.select %4, %466, %467 : vector<2x512xi1>, vector<2x512xf32>
    %469 = arith.truncf %464 : vector<2x128xf32> to vector<2x128xbf16>
    %cst_141 = arith.constant dense<0.000000e+00> : vector<2x512xf32>
    %470 = tpu.matmul %469, %15, %cst_141 {dimension_numbers = #tpu.dot_dimension_numbers<[1], [0], [0], [1], [0, 0, 1, 1], [], []>} : vector<2x128xbf16>, vector<128x512xbf16>, vector<2x512xf32> -> vector<2x512xf32>
    %471 = arith.addf %468, %470 : vector<2x512xf32>
    %472 = vector.extract_strided_slice %471 {offsets = [0, 0], sizes = [2, 128], strides = [1, 1]} : vector<2x512xf32> to vector<2x128xf32>
    %473 = arith.negf %472 : vector<2x128xf32>
    %474 = math.exp %473 : vector<2x128xf32>
    %cst_142 = arith.constant 1.000000e+00 : f32
    %475 = vector.broadcast %cst_142 : f32 to vector<2x128xf32>
    %476 = arith.addf %475, %474 : vector<2x128xf32>
    %477 = arith.divf %475, %476 : vector<2x128xf32>
    %478 = vector.extract_strided_slice %471 {offsets = [0, 128], sizes = [2, 128], strides = [1, 1]} : vector<2x512xf32> to vector<2x128xf32>
    %479 = arith.negf %478 : vector<2x128xf32>
    %480 = math.exp %479 : vector<2x128xf32>
    %cst_143 = arith.constant 1.000000e+00 : f32
    %481 = vector.broadcast %cst_143 : f32 to vector<2x128xf32>
    %482 = arith.addf %481, %480 : vector<2x128xf32>
    %483 = arith.divf %481, %482 : vector<2x128xf32>
    %484 = vector.extract_strided_slice %471 {offsets = [0, 256], sizes = [2, 128], strides = [1, 1]} : vector<2x512xf32> to vector<2x128xf32>
    %485 = math.tanh %484 : vector<2x128xf32>
    %486 = vector.extract_strided_slice %471 {offsets = [0, 384], sizes = [2, 128], strides = [1, 1]} : vector<2x512xf32> to vector<2x128xf32>
    %487 = arith.negf %486 : vector<2x128xf32>
    %488 = math.exp %487 : vector<2x128xf32>
    %cst_144 = arith.constant 1.000000e+00 : f32
    %489 = vector.broadcast %cst_144 : f32 to vector<2x128xf32>
    %490 = arith.addf %489, %488 : vector<2x128xf32>
    %491 = arith.divf %489, %490 : vector<2x128xf32>
    %492 = arith.mulf %483, %462 : vector<2x128xf32>
    %493 = arith.mulf %477, %485 : vector<2x128xf32>
    %494 = arith.addf %492, %493 : vector<2x128xf32>
    %495 = math.tanh %494 : vector<2x128xf32>
    %496 = arith.mulf %491, %495 : vector<2x128xf32>
    %c28_145 = arith.constant 28 : index
    %c0_146 = arith.constant 0 : index
    %497 = vector.load %arg22[%c28_145, %c0_146] : memref<32x128xf32, #tpu.memory_space<vmem>>, vector<2x128xf32>
    tpu.vector_store %arg22[%c28_145, %c0_146], %496 {strides = array<i32>} : memref<32x128xf32, #tpu.memory_space<vmem>>, vector<2x128xf32>,
    %c30_147 = arith.constant 30 : index
    %c0_148 = arith.constant 0 : index
    %498 = vector.load %arg20[%c30_147, %c0_148] : memref<32x512xf32, #tpu.memory_space<vmem>>, vector<2x512xf32>
    %c0_149 = arith.constant 0 : index
    %c0_150 = arith.constant 0 : index
    %499 = vector.load %arg20[%c0_149, %c0_150] : memref<32x512xf32, #tpu.memory_space<vmem>>, vector<2x512xf32>
    %500 = arith.select %4, %498, %499 : vector<2x512xi1>, vector<2x512xf32>
    %501 = arith.truncf %496 : vector<2x128xf32> to vector<2x128xbf16>
    %cst_151 = arith.constant dense<0.000000e+00> : vector<2x512xf32>
    %502 = tpu.matmul %501, %15, %cst_151 {dimension_numbers = #tpu.dot_dimension_numbers<[1], [0], [0], [1], [0, 0, 1, 1], [], []>} : vector<2x128xbf16>, vector<128x512xbf16>, vector<2x512xf32> -> vector<2x512xf32>
    %503 = arith.addf %500, %502 : vector<2x512xf32>
    %504 = vector.extract_strided_slice %503 {offsets = [0, 0], sizes = [2, 128], strides = [1, 1]} : vector<2x512xf32> to vector<2x128xf32>
    %505 = arith.negf %504 : vector<2x128xf32>
    %506 = math.exp %505 : vector<2x128xf32>
    %cst_152 = arith.constant 1.000000e+00 : f32
    %507 = vector.broadcast %cst_152 : f32 to vector<2x128xf32>
    %508 = arith.addf %507, %506 : vector<2x128xf32>
    %509 = arith.divf %507, %508 : vector<2x128xf32>
    %510 = vector.extract_strided_slice %503 {offsets = [0, 128], sizes = [2, 128], strides = [1, 1]} : vector<2x512xf32> to vector<2x128xf32>
    %511 = arith.negf %510 : vector<2x128xf32>
    %512 = math.exp %511 : vector<2x128xf32>
    %cst_153 = arith.constant 1.000000e+00 : f32
    %513 = vector.broadcast %cst_153 : f32 to vector<2x128xf32>
    %514 = arith.addf %513, %512 : vector<2x128xf32>
    %515 = arith.divf %513, %514 : vector<2x128xf32>
    %516 = vector.extract_strided_slice %503 {offsets = [0, 256], sizes = [2, 128], strides = [1, 1]} : vector<2x512xf32> to vector<2x128xf32>
    %517 = math.tanh %516 : vector<2x128xf32>
    %518 = vector.extract_strided_slice %503 {offsets = [0, 384], sizes = [2, 128], strides = [1, 1]} : vector<2x512xf32> to vector<2x128xf32>
    %519 = arith.negf %518 : vector<2x128xf32>
    %520 = math.exp %519 : vector<2x128xf32>
    %cst_154 = arith.constant 1.000000e+00 : f32
    %521 = vector.broadcast %cst_154 : f32 to vector<2x128xf32>
    %522 = arith.addf %521, %520 : vector<2x128xf32>
    %523 = arith.divf %521, %522 : vector<2x128xf32>
    %524 = arith.mulf %515, %494 : vector<2x128xf32>
    %525 = arith.mulf %509, %517 : vector<2x128xf32>
    %526 = arith.addf %524, %525 : vector<2x128xf32>
    %527 = math.tanh %526 : vector<2x128xf32>
    %528 = arith.mulf %523, %527 : vector<2x128xf32>
    %c30_155 = arith.constant 30 : index
    %c0_156 = arith.constant 0 : index
    %529 = vector.load %arg22[%c30_155, %c0_156] : memref<32x128xf32, #tpu.memory_space<vmem>>, vector<2x128xf32>
    tpu.vector_store %arg22[%c30_155, %c0_156], %528 {strides = array<i32>} : memref<32x128xf32, #tpu.memory_space<vmem>>, vector<2x128xf32>,
    %c0_157 = arith.constant 0 : index
    %c0_158 = arith.constant 0 : index
    %530 = vector.load %arg22[%c0_157, %c0_158] : memref<32x128xf32, #tpu.memory_space<vmem>>, vector<32x128xf32>
    %531 = arith.truncf %530 : vector<32x128xf32> to vector<32x128xbf16>
    %c0_159 = arith.constant 0 : index
    %c0_160 = arith.constant 0 : index
    %532 = vector.load %arg10[%c0_159, %c0_160] : memref<128x512xbf16, #tpu.memory_space<vmem>>, vector<128x512xbf16>
    %cst_161 = arith.constant dense<0.000000e+00> : vector<32x512xf32>
    %533 = tpu.matmul %531, %532, %cst_161 {dimension_numbers = #tpu.dot_dimension_numbers<[1], [0], [0], [1], [0, 0, 1, 1], [], []>} : vector<32x128xbf16>, vector<128x512xbf16>, vector<32x512xf32> -> vector<32x512xf32>
    %c0_162 = arith.constant 0 : index
    %c0_163 = arith.constant 0 : index
    %534 = vector.load %arg13[%c0_162, %c0_163] : memref<1x512xf32, #tpu.memory_space<vmem>>, vector<1x512xf32>
    %535 = vector.broadcast %534 : vector<1x512xf32> to vector<32x512xf32>
    %536 = arith.addf %533, %535 : vector<32x512xf32>
    %c0_164 = arith.constant 0 : index
    %c0_165 = arith.constant 0 : index
    %537 = vector.load %arg20[%c0_164, %c0_165] : memref<32x512xf32, #tpu.memory_space<vmem>>, vector<32x512xf32>
    tpu.vector_store %arg20[%c0_164, %c0_165], %536 {strides = array<i32>} : memref<32x512xf32, #tpu.memory_space<vmem>>, vector<32x512xf32>,
    %c0_166 = arith.constant 0 : index
    %c0_167 = arith.constant 0 : index
    %538 = vector.load %arg11[%c0_166, %c0_167] : memref<128x512xbf16, #tpu.memory_space<vmem>>, vector<128x512xbf16>
    %cst_168 = arith.constant dense<0.000000e+00> : vector<32x512xf32>
    %539 = tpu.matmul %531, %538, %cst_168 {dimension_numbers = #tpu.dot_dimension_numbers<[1], [0], [0], [1], [0, 0, 1, 1], [], []>} : vector<32x128xbf16>, vector<128x512xbf16>, vector<32x512xf32> -> vector<32x512xf32>
    %c0_169 = arith.constant 0 : index
    %c0_170 = arith.constant 0 : index
    %540 = vector.load %arg21[%c0_169, %c0_170] : memref<32x512xf32, #tpu.memory_space<vmem>>, vector<32x512xf32>
    tpu.vector_store %arg21[%c0_169, %c0_170], %539 {strides = array<i32>} : memref<32x512xf32, #tpu.memory_space<vmem>>, vector<32x512xf32>,
    %c0_171 = arith.constant 0 : index
    %c0_172 = arith.constant 0 : index
    %541 = vector.load %arg12[%c0_171, %c0_172] : memref<128x512xbf16, #tpu.memory_space<vmem>>, vector<128x512xbf16>
    %cst_173 = arith.constant 0.000000e+00 : f32
    %542 = vector.broadcast %cst_173 : f32 to vector<2x128xf32>
    %cst_174 = arith.constant 0.000000e+00 : f32
    %543 = vector.broadcast %cst_174 : f32 to vector<2x128xf32>
    %c0_175 = arith.constant 0 : index
    %c0_176 = arith.constant 0 : index
    %544 = vector.load %arg20[%c0_175, %c0_176] : memref<32x512xf32, #tpu.memory_space<vmem>>, vector<2x512xf32>
    %c30_177 = arith.constant 30 : index
    %c0_178 = arith.constant 0 : index
    %545 = vector.load %arg20[%c30_177, %c0_178] : memref<32x512xf32, #tpu.memory_space<vmem>>, vector<2x512xf32>
    %c0_179 = arith.constant 0 : index
    %c0_180 = arith.constant 0 : index
    %546 = vector.load %arg21[%c0_179, %c0_180] : memref<32x512xf32, #tpu.memory_space<vmem>>, vector<2x512xf32>
    %c30_181 = arith.constant 30 : index
    %c0_182 = arith.constant 0 : index
    %547 = vector.load %arg21[%c30_181, %c0_182] : memref<32x512xf32, #tpu.memory_space<vmem>>, vector<2x512xf32>
    %548 = arith.addf %544, %547 : vector<2x512xf32>
    %549 = arith.addf %545, %546 : vector<2x512xf32>
    %550 = arith.select %4, %548, %549 : vector<2x512xi1>, vector<2x512xf32>
    %551 = arith.truncf %542 : vector<2x128xf32> to vector<2x128xbf16>
    %cst_183 = arith.constant dense<0.000000e+00> : vector<2x512xf32>
    %552 = tpu.matmul %551, %541, %cst_183 {dimension_numbers = #tpu.dot_dimension_numbers<[1], [0], [0], [1], [0, 0, 1, 1], [], []>} : vector<2x128xbf16>, vector<128x512xbf16>, vector<2x512xf32> -> vector<2x512xf32>
    %553 = arith.addf %550, %552 : vector<2x512xf32>
    %554 = vector.extract_strided_slice %553 {offsets = [0, 0], sizes = [2, 128], strides = [1, 1]} : vector<2x512xf32> to vector<2x128xf32>
    %555 = arith.negf %554 : vector<2x128xf32>
    %556 = math.exp %555 : vector<2x128xf32>
    %cst_184 = arith.constant 1.000000e+00 : f32
    %557 = vector.broadcast %cst_184 : f32 to vector<2x128xf32>
    %558 = arith.addf %557, %556 : vector<2x128xf32>
    %559 = arith.divf %557, %558 : vector<2x128xf32>
    %560 = vector.extract_strided_slice %553 {offsets = [0, 128], sizes = [2, 128], strides = [1, 1]} : vector<2x512xf32> to vector<2x128xf32>
    %561 = arith.negf %560 : vector<2x128xf32>
    %562 = math.exp %561 : vector<2x128xf32>
    %cst_185 = arith.constant 1.000000e+00 : f32
    %563 = vector.broadcast %cst_185 : f32 to vector<2x128xf32>
    %564 = arith.addf %563, %562 : vector<2x128xf32>
    %565 = arith.divf %563, %564 : vector<2x128xf32>
    %566 = vector.extract_strided_slice %553 {offsets = [0, 256], sizes = [2, 128], strides = [1, 1]} : vector<2x512xf32> to vector<2x128xf32>
    %567 = math.tanh %566 : vector<2x128xf32>
    %568 = vector.extract_strided_slice %553 {offsets = [0, 384], sizes = [2, 128], strides = [1, 1]} : vector<2x512xf32> to vector<2x128xf32>
    %569 = arith.negf %568 : vector<2x128xf32>
    %570 = math.exp %569 : vector<2x128xf32>
    %cst_186 = arith.constant 1.000000e+00 : f32
    %571 = vector.broadcast %cst_186 : f32 to vector<2x128xf32>
    %572 = arith.addf %571, %570 : vector<2x128xf32>
    %573 = arith.divf %571, %572 : vector<2x128xf32>
    %574 = arith.mulf %565, %543 : vector<2x128xf32>
    %575 = arith.mulf %559, %567 : vector<2x128xf32>
    %576 = arith.addf %574, %575 : vector<2x128xf32>
    %577 = math.tanh %576 : vector<2x128xf32>
    %578 = arith.mulf %573, %577 : vector<2x128xf32>
    %c2_187 = arith.constant 2 : index
    %c0_188 = arith.constant 0 : index
    %579 = vector.load %arg20[%c2_187, %c0_188] : memref<32x512xf32, #tpu.memory_space<vmem>>, vector<2x512xf32>
    %c28_189 = arith.constant 28 : index
    %c0_190 = arith.constant 0 : index
    %580 = vector.load %arg20[%c28_189, %c0_190] : memref<32x512xf32, #tpu.memory_space<vmem>>, vector<2x512xf32>
    %c2_191 = arith.constant 2 : index
    %c0_192 = arith.constant 0 : index
    %581 = vector.load %arg21[%c2_191, %c0_192] : memref<32x512xf32, #tpu.memory_space<vmem>>, vector<2x512xf32>
    %c28_193 = arith.constant 28 : index
    %c0_194 = arith.constant 0 : index
    %582 = vector.load %arg21[%c28_193, %c0_194] : memref<32x512xf32, #tpu.memory_space<vmem>>, vector<2x512xf32>
    %583 = arith.addf %579, %582 : vector<2x512xf32>
    %584 = arith.addf %580, %581 : vector<2x512xf32>
    %585 = arith.select %4, %583, %584 : vector<2x512xi1>, vector<2x512xf32>
    %586 = arith.truncf %578 : vector<2x128xf32> to vector<2x128xbf16>
    %cst_195 = arith.constant dense<0.000000e+00> : vector<2x512xf32>
    %587 = tpu.matmul %586, %541, %cst_195 {dimension_numbers = #tpu.dot_dimension_numbers<[1], [0], [0], [1], [0, 0, 1, 1], [], []>} : vector<2x128xbf16>, vector<128x512xbf16>, vector<2x512xf32> -> vector<2x512xf32>
    %588 = arith.addf %585, %587 : vector<2x512xf32>
    %589 = vector.extract_strided_slice %588 {offsets = [0, 0], sizes = [2, 128], strides = [1, 1]} : vector<2x512xf32> to vector<2x128xf32>
    %590 = arith.negf %589 : vector<2x128xf32>
    %591 = math.exp %590 : vector<2x128xf32>
    %cst_196 = arith.constant 1.000000e+00 : f32
    %592 = vector.broadcast %cst_196 : f32 to vector<2x128xf32>
    %593 = arith.addf %592, %591 : vector<2x128xf32>
    %594 = arith.divf %592, %593 : vector<2x128xf32>
    %595 = vector.extract_strided_slice %588 {offsets = [0, 128], sizes = [2, 128], strides = [1, 1]} : vector<2x512xf32> to vector<2x128xf32>
    %596 = arith.negf %595 : vector<2x128xf32>
    %597 = math.exp %596 : vector<2x128xf32>
    %cst_197 = arith.constant 1.000000e+00 : f32
    %598 = vector.broadcast %cst_197 : f32 to vector<2x128xf32>
    %599 = arith.addf %598, %597 : vector<2x128xf32>
    %600 = arith.divf %598, %599 : vector<2x128xf32>
    %601 = vector.extract_strided_slice %588 {offsets = [0, 256], sizes = [2, 128], strides = [1, 1]} : vector<2x512xf32> to vector<2x128xf32>
    %602 = math.tanh %601 : vector<2x128xf32>
    %603 = vector.extract_strided_slice %588 {offsets = [0, 384], sizes = [2, 128], strides = [1, 1]} : vector<2x512xf32> to vector<2x128xf32>
    %604 = arith.negf %603 : vector<2x128xf32>
    %605 = math.exp %604 : vector<2x128xf32>
    %cst_198 = arith.constant 1.000000e+00 : f32
    %606 = vector.broadcast %cst_198 : f32 to vector<2x128xf32>
    %607 = arith.addf %606, %605 : vector<2x128xf32>
    %608 = arith.divf %606, %607 : vector<2x128xf32>
    %609 = arith.mulf %600, %576 : vector<2x128xf32>
    %610 = arith.mulf %594, %602 : vector<2x128xf32>
    %611 = arith.addf %609, %610 : vector<2x128xf32>
    %612 = math.tanh %611 : vector<2x128xf32>
    %613 = arith.mulf %608, %612 : vector<2x128xf32>
    %c4_199 = arith.constant 4 : index
    %c0_200 = arith.constant 0 : index
    %614 = vector.load %arg20[%c4_199, %c0_200] : memref<32x512xf32, #tpu.memory_space<vmem>>, vector<2x512xf32>
    %c26_201 = arith.constant 26 : index
    %c0_202 = arith.constant 0 : index
    %615 = vector.load %arg20[%c26_201, %c0_202] : memref<32x512xf32, #tpu.memory_space<vmem>>, vector<2x512xf32>
    %c4_203 = arith.constant 4 : index
    %c0_204 = arith.constant 0 : index
    %616 = vector.load %arg21[%c4_203, %c0_204] : memref<32x512xf32, #tpu.memory_space<vmem>>, vector<2x512xf32>
    %c26_205 = arith.constant 26 : index
    %c0_206 = arith.constant 0 : index
    %617 = vector.load %arg21[%c26_205, %c0_206] : memref<32x512xf32, #tpu.memory_space<vmem>>, vector<2x512xf32>
    %618 = arith.addf %614, %617 : vector<2x512xf32>
    %619 = arith.addf %615, %616 : vector<2x512xf32>
    %620 = arith.select %4, %618, %619 : vector<2x512xi1>, vector<2x512xf32>
    %621 = arith.truncf %613 : vector<2x128xf32> to vector<2x128xbf16>
    %cst_207 = arith.constant dense<0.000000e+00> : vector<2x512xf32>
    %622 = tpu.matmul %621, %541, %cst_207 {dimension_numbers = #tpu.dot_dimension_numbers<[1], [0], [0], [1], [0, 0, 1, 1], [], []>} : vector<2x128xbf16>, vector<128x512xbf16>, vector<2x512xf32> -> vector<2x512xf32>
    %623 = arith.addf %620, %622 : vector<2x512xf32>
    %624 = vector.extract_strided_slice %623 {offsets = [0, 0], sizes = [2, 128], strides = [1, 1]} : vector<2x512xf32> to vector<2x128xf32>
    %625 = arith.negf %624 : vector<2x128xf32>
    %626 = math.exp %625 : vector<2x128xf32>
    %cst_208 = arith.constant 1.000000e+00 : f32
    %627 = vector.broadcast %cst_208 : f32 to vector<2x128xf32>
    %628 = arith.addf %627, %626 : vector<2x128xf32>
    %629 = arith.divf %627, %628 : vector<2x128xf32>
    %630 = vector.extract_strided_slice %623 {offsets = [0, 128], sizes = [2, 128], strides = [1, 1]} : vector<2x512xf32> to vector<2x128xf32>
    %631 = arith.negf %630 : vector<2x128xf32>
    %632 = math.exp %631 : vector<2x128xf32>
    %cst_209 = arith.constant 1.000000e+00 : f32
    %633 = vector.broadcast %cst_209 : f32 to vector<2x128xf32>
    %634 = arith.addf %633, %632 : vector<2x128xf32>
    %635 = arith.divf %633, %634 : vector<2x128xf32>
    %636 = vector.extract_strided_slice %623 {offsets = [0, 256], sizes = [2, 128], strides = [1, 1]} : vector<2x512xf32> to vector<2x128xf32>
    %637 = math.tanh %636 : vector<2x128xf32>
    %638 = vector.extract_strided_slice %623 {offsets = [0, 384], sizes = [2, 128], strides = [1, 1]} : vector<2x512xf32> to vector<2x128xf32>
    %639 = arith.negf %638 : vector<2x128xf32>
    %640 = math.exp %639 : vector<2x128xf32>
    %cst_210 = arith.constant 1.000000e+00 : f32
    %641 = vector.broadcast %cst_210 : f32 to vector<2x128xf32>
    %642 = arith.addf %641, %640 : vector<2x128xf32>
    %643 = arith.divf %641, %642 : vector<2x128xf32>
    %644 = arith.mulf %635, %611 : vector<2x128xf32>
    %645 = arith.mulf %629, %637 : vector<2x128xf32>
    %646 = arith.addf %644, %645 : vector<2x128xf32>
    %647 = math.tanh %646 : vector<2x128xf32>
    %648 = arith.mulf %643, %647 : vector<2x128xf32>
    %c6_211 = arith.constant 6 : index
    %c0_212 = arith.constant 0 : index
    %649 = vector.load %arg20[%c6_211, %c0_212] : memref<32x512xf32, #tpu.memory_space<vmem>>, vector<2x512xf32>
    %c24_213 = arith.constant 24 : index
    %c0_214 = arith.constant 0 : index
    %650 = vector.load %arg20[%c24_213, %c0_214] : memref<32x512xf32, #tpu.memory_space<vmem>>, vector<2x512xf32>
    %c6_215 = arith.constant 6 : index
    %c0_216 = arith.constant 0 : index
    %651 = vector.load %arg21[%c6_215, %c0_216] : memref<32x512xf32, #tpu.memory_space<vmem>>, vector<2x512xf32>
    %c24_217 = arith.constant 24 : index
    %c0_218 = arith.constant 0 : index
    %652 = vector.load %arg21[%c24_217, %c0_218] : memref<32x512xf32, #tpu.memory_space<vmem>>, vector<2x512xf32>
    %653 = arith.addf %649, %652 : vector<2x512xf32>
    %654 = arith.addf %650, %651 : vector<2x512xf32>
    %655 = arith.select %4, %653, %654 : vector<2x512xi1>, vector<2x512xf32>
    %656 = arith.truncf %648 : vector<2x128xf32> to vector<2x128xbf16>
    %cst_219 = arith.constant dense<0.000000e+00> : vector<2x512xf32>
    %657 = tpu.matmul %656, %541, %cst_219 {dimension_numbers = #tpu.dot_dimension_numbers<[1], [0], [0], [1], [0, 0, 1, 1], [], []>} : vector<2x128xbf16>, vector<128x512xbf16>, vector<2x512xf32> -> vector<2x512xf32>
    %658 = arith.addf %655, %657 : vector<2x512xf32>
    %659 = vector.extract_strided_slice %658 {offsets = [0, 0], sizes = [2, 128], strides = [1, 1]} : vector<2x512xf32> to vector<2x128xf32>
    %660 = arith.negf %659 : vector<2x128xf32>
    %661 = math.exp %660 : vector<2x128xf32>
    %cst_220 = arith.constant 1.000000e+00 : f32
    %662 = vector.broadcast %cst_220 : f32 to vector<2x128xf32>
    %663 = arith.addf %662, %661 : vector<2x128xf32>
    %664 = arith.divf %662, %663 : vector<2x128xf32>
    %665 = vector.extract_strided_slice %658 {offsets = [0, 128], sizes = [2, 128], strides = [1, 1]} : vector<2x512xf32> to vector<2x128xf32>
    %666 = arith.negf %665 : vector<2x128xf32>
    %667 = math.exp %666 : vector<2x128xf32>
    %cst_221 = arith.constant 1.000000e+00 : f32
    %668 = vector.broadcast %cst_221 : f32 to vector<2x128xf32>
    %669 = arith.addf %668, %667 : vector<2x128xf32>
    %670 = arith.divf %668, %669 : vector<2x128xf32>
    %671 = vector.extract_strided_slice %658 {offsets = [0, 256], sizes = [2, 128], strides = [1, 1]} : vector<2x512xf32> to vector<2x128xf32>
    %672 = math.tanh %671 : vector<2x128xf32>
    %673 = vector.extract_strided_slice %658 {offsets = [0, 384], sizes = [2, 128], strides = [1, 1]} : vector<2x512xf32> to vector<2x128xf32>
    %674 = arith.negf %673 : vector<2x128xf32>
    %675 = math.exp %674 : vector<2x128xf32>
    %cst_222 = arith.constant 1.000000e+00 : f32
    %676 = vector.broadcast %cst_222 : f32 to vector<2x128xf32>
    %677 = arith.addf %676, %675 : vector<2x128xf32>
    %678 = arith.divf %676, %677 : vector<2x128xf32>
    %679 = arith.mulf %670, %646 : vector<2x128xf32>
    %680 = arith.mulf %664, %672 : vector<2x128xf32>
    %681 = arith.addf %679, %680 : vector<2x128xf32>
    %682 = math.tanh %681 : vector<2x128xf32>
    %683 = arith.mulf %678, %682 : vector<2x128xf32>
    %c8_223 = arith.constant 8 : index
    %c0_224 = arith.constant 0 : index
    %684 = vector.load %arg20[%c8_223, %c0_224] : memref<32x512xf32, #tpu.memory_space<vmem>>, vector<2x512xf32>
    %c22_225 = arith.constant 22 : index
    %c0_226 = arith.constant 0 : index
    %685 = vector.load %arg20[%c22_225, %c0_226] : memref<32x512xf32, #tpu.memory_space<vmem>>, vector<2x512xf32>
    %c8_227 = arith.constant 8 : index
    %c0_228 = arith.constant 0 : index
    %686 = vector.load %arg21[%c8_227, %c0_228] : memref<32x512xf32, #tpu.memory_space<vmem>>, vector<2x512xf32>
    %c22_229 = arith.constant 22 : index
    %c0_230 = arith.constant 0 : index
    %687 = vector.load %arg21[%c22_229, %c0_230] : memref<32x512xf32, #tpu.memory_space<vmem>>, vector<2x512xf32>
    %688 = arith.addf %684, %687 : vector<2x512xf32>
    %689 = arith.addf %685, %686 : vector<2x512xf32>
    %690 = arith.select %4, %688, %689 : vector<2x512xi1>, vector<2x512xf32>
    %691 = arith.truncf %683 : vector<2x128xf32> to vector<2x128xbf16>
    %cst_231 = arith.constant dense<0.000000e+00> : vector<2x512xf32>
    %692 = tpu.matmul %691, %541, %cst_231 {dimension_numbers = #tpu.dot_dimension_numbers<[1], [0], [0], [1], [0, 0, 1, 1], [], []>} : vector<2x128xbf16>, vector<128x512xbf16>, vector<2x512xf32> -> vector<2x512xf32>
    %693 = arith.addf %690, %692 : vector<2x512xf32>
    %694 = vector.extract_strided_slice %693 {offsets = [0, 0], sizes = [2, 128], strides = [1, 1]} : vector<2x512xf32> to vector<2x128xf32>
    %695 = arith.negf %694 : vector<2x128xf32>
    %696 = math.exp %695 : vector<2x128xf32>
    %cst_232 = arith.constant 1.000000e+00 : f32
    %697 = vector.broadcast %cst_232 : f32 to vector<2x128xf32>
    %698 = arith.addf %697, %696 : vector<2x128xf32>
    %699 = arith.divf %697, %698 : vector<2x128xf32>
    %700 = vector.extract_strided_slice %693 {offsets = [0, 128], sizes = [2, 128], strides = [1, 1]} : vector<2x512xf32> to vector<2x128xf32>
    %701 = arith.negf %700 : vector<2x128xf32>
    %702 = math.exp %701 : vector<2x128xf32>
    %cst_233 = arith.constant 1.000000e+00 : f32
    %703 = vector.broadcast %cst_233 : f32 to vector<2x128xf32>
    %704 = arith.addf %703, %702 : vector<2x128xf32>
    %705 = arith.divf %703, %704 : vector<2x128xf32>
    %706 = vector.extract_strided_slice %693 {offsets = [0, 256], sizes = [2, 128], strides = [1, 1]} : vector<2x512xf32> to vector<2x128xf32>
    %707 = math.tanh %706 : vector<2x128xf32>
    %708 = vector.extract_strided_slice %693 {offsets = [0, 384], sizes = [2, 128], strides = [1, 1]} : vector<2x512xf32> to vector<2x128xf32>
    %709 = arith.negf %708 : vector<2x128xf32>
    %710 = math.exp %709 : vector<2x128xf32>
    %cst_234 = arith.constant 1.000000e+00 : f32
    %711 = vector.broadcast %cst_234 : f32 to vector<2x128xf32>
    %712 = arith.addf %711, %710 : vector<2x128xf32>
    %713 = arith.divf %711, %712 : vector<2x128xf32>
    %714 = arith.mulf %705, %681 : vector<2x128xf32>
    %715 = arith.mulf %699, %707 : vector<2x128xf32>
    %716 = arith.addf %714, %715 : vector<2x128xf32>
    %717 = math.tanh %716 : vector<2x128xf32>
    %718 = arith.mulf %713, %717 : vector<2x128xf32>
    %c10_235 = arith.constant 10 : index
    %c0_236 = arith.constant 0 : index
    %719 = vector.load %arg20[%c10_235, %c0_236] : memref<32x512xf32, #tpu.memory_space<vmem>>, vector<2x512xf32>
    %c20_237 = arith.constant 20 : index
    %c0_238 = arith.constant 0 : index
    %720 = vector.load %arg20[%c20_237, %c0_238] : memref<32x512xf32, #tpu.memory_space<vmem>>, vector<2x512xf32>
    %c10_239 = arith.constant 10 : index
    %c0_240 = arith.constant 0 : index
    %721 = vector.load %arg21[%c10_239, %c0_240] : memref<32x512xf32, #tpu.memory_space<vmem>>, vector<2x512xf32>
    %c20_241 = arith.constant 20 : index
    %c0_242 = arith.constant 0 : index
    %722 = vector.load %arg21[%c20_241, %c0_242] : memref<32x512xf32, #tpu.memory_space<vmem>>, vector<2x512xf32>
    %723 = arith.addf %719, %722 : vector<2x512xf32>
    %724 = arith.addf %720, %721 : vector<2x512xf32>
    %725 = arith.select %4, %723, %724 : vector<2x512xi1>, vector<2x512xf32>
    %726 = arith.truncf %718 : vector<2x128xf32> to vector<2x128xbf16>
    %cst_243 = arith.constant dense<0.000000e+00> : vector<2x512xf32>
    %727 = tpu.matmul %726, %541, %cst_243 {dimension_numbers = #tpu.dot_dimension_numbers<[1], [0], [0], [1], [0, 0, 1, 1], [], []>} : vector<2x128xbf16>, vector<128x512xbf16>, vector<2x512xf32> -> vector<2x512xf32>
    %728 = arith.addf %725, %727 : vector<2x512xf32>
    %729 = vector.extract_strided_slice %728 {offsets = [0, 0], sizes = [2, 128], strides = [1, 1]} : vector<2x512xf32> to vector<2x128xf32>
    %730 = arith.negf %729 : vector<2x128xf32>
    %731 = math.exp %730 : vector<2x128xf32>
    %cst_244 = arith.constant 1.000000e+00 : f32
    %732 = vector.broadcast %cst_244 : f32 to vector<2x128xf32>
    %733 = arith.addf %732, %731 : vector<2x128xf32>
    %734 = arith.divf %732, %733 : vector<2x128xf32>
    %735 = vector.extract_strided_slice %728 {offsets = [0, 128], sizes = [2, 128], strides = [1, 1]} : vector<2x512xf32> to vector<2x128xf32>
    %736 = arith.negf %735 : vector<2x128xf32>
    %737 = math.exp %736 : vector<2x128xf32>
    %cst_245 = arith.constant 1.000000e+00 : f32
    %738 = vector.broadcast %cst_245 : f32 to vector<2x128xf32>
    %739 = arith.addf %738, %737 : vector<2x128xf32>
    %740 = arith.divf %738, %739 : vector<2x128xf32>
    %741 = vector.extract_strided_slice %728 {offsets = [0, 256], sizes = [2, 128], strides = [1, 1]} : vector<2x512xf32> to vector<2x128xf32>
    %742 = math.tanh %741 : vector<2x128xf32>
    %743 = vector.extract_strided_slice %728 {offsets = [0, 384], sizes = [2, 128], strides = [1, 1]} : vector<2x512xf32> to vector<2x128xf32>
    %744 = arith.negf %743 : vector<2x128xf32>
    %745 = math.exp %744 : vector<2x128xf32>
    %cst_246 = arith.constant 1.000000e+00 : f32
    %746 = vector.broadcast %cst_246 : f32 to vector<2x128xf32>
    %747 = arith.addf %746, %745 : vector<2x128xf32>
    %748 = arith.divf %746, %747 : vector<2x128xf32>
    %749 = arith.mulf %740, %716 : vector<2x128xf32>
    %750 = arith.mulf %734, %742 : vector<2x128xf32>
    %751 = arith.addf %749, %750 : vector<2x128xf32>
    %752 = math.tanh %751 : vector<2x128xf32>
    %753 = arith.mulf %748, %752 : vector<2x128xf32>
    %c12_247 = arith.constant 12 : index
    %c0_248 = arith.constant 0 : index
    %754 = vector.load %arg20[%c12_247, %c0_248] : memref<32x512xf32, #tpu.memory_space<vmem>>, vector<2x512xf32>
    %c18_249 = arith.constant 18 : index
    %c0_250 = arith.constant 0 : index
    %755 = vector.load %arg20[%c18_249, %c0_250] : memref<32x512xf32, #tpu.memory_space<vmem>>, vector<2x512xf32>
    %c12_251 = arith.constant 12 : index
    %c0_252 = arith.constant 0 : index
    %756 = vector.load %arg21[%c12_251, %c0_252] : memref<32x512xf32, #tpu.memory_space<vmem>>, vector<2x512xf32>
    %c18_253 = arith.constant 18 : index
    %c0_254 = arith.constant 0 : index
    %757 = vector.load %arg21[%c18_253, %c0_254] : memref<32x512xf32, #tpu.memory_space<vmem>>, vector<2x512xf32>
    %758 = arith.addf %754, %757 : vector<2x512xf32>
    %759 = arith.addf %755, %756 : vector<2x512xf32>
    %760 = arith.select %4, %758, %759 : vector<2x512xi1>, vector<2x512xf32>
    %761 = arith.truncf %753 : vector<2x128xf32> to vector<2x128xbf16>
    %cst_255 = arith.constant dense<0.000000e+00> : vector<2x512xf32>
    %762 = tpu.matmul %761, %541, %cst_255 {dimension_numbers = #tpu.dot_dimension_numbers<[1], [0], [0], [1], [0, 0, 1, 1], [], []>} : vector<2x128xbf16>, vector<128x512xbf16>, vector<2x512xf32> -> vector<2x512xf32>
    %763 = arith.addf %760, %762 : vector<2x512xf32>
    %764 = vector.extract_strided_slice %763 {offsets = [0, 0], sizes = [2, 128], strides = [1, 1]} : vector<2x512xf32> to vector<2x128xf32>
    %765 = arith.negf %764 : vector<2x128xf32>
    %766 = math.exp %765 : vector<2x128xf32>
    %cst_256 = arith.constant 1.000000e+00 : f32
    %767 = vector.broadcast %cst_256 : f32 to vector<2x128xf32>
    %768 = arith.addf %767, %766 : vector<2x128xf32>
    %769 = arith.divf %767, %768 : vector<2x128xf32>
    %770 = vector.extract_strided_slice %763 {offsets = [0, 128], sizes = [2, 128], strides = [1, 1]} : vector<2x512xf32> to vector<2x128xf32>
    %771 = arith.negf %770 : vector<2x128xf32>
    %772 = math.exp %771 : vector<2x128xf32>
    %cst_257 = arith.constant 1.000000e+00 : f32
    %773 = vector.broadcast %cst_257 : f32 to vector<2x128xf32>
    %774 = arith.addf %773, %772 : vector<2x128xf32>
    %775 = arith.divf %773, %774 : vector<2x128xf32>
    %776 = vector.extract_strided_slice %763 {offsets = [0, 256], sizes = [2, 128], strides = [1, 1]} : vector<2x512xf32> to vector<2x128xf32>
    %777 = math.tanh %776 : vector<2x128xf32>
    %778 = vector.extract_strided_slice %763 {offsets = [0, 384], sizes = [2, 128], strides = [1, 1]} : vector<2x512xf32> to vector<2x128xf32>
    %779 = arith.negf %778 : vector<2x128xf32>
    %780 = math.exp %779 : vector<2x128xf32>
    %cst_258 = arith.constant 1.000000e+00 : f32
    %781 = vector.broadcast %cst_258 : f32 to vector<2x128xf32>
    %782 = arith.addf %781, %780 : vector<2x128xf32>
    %783 = arith.divf %781, %782 : vector<2x128xf32>
    %784 = arith.mulf %775, %751 : vector<2x128xf32>
    %785 = arith.mulf %769, %777 : vector<2x128xf32>
    %786 = arith.addf %784, %785 : vector<2x128xf32>
    %787 = math.tanh %786 : vector<2x128xf32>
    %788 = arith.mulf %783, %787 : vector<2x128xf32>
    %c14_259 = arith.constant 14 : index
    %c0_260 = arith.constant 0 : index
    %789 = vector.load %arg20[%c14_259, %c0_260] : memref<32x512xf32, #tpu.memory_space<vmem>>, vector<2x512xf32>
    %c16_261 = arith.constant 16 : index
    %c0_262 = arith.constant 0 : index
    %790 = vector.load %arg20[%c16_261, %c0_262] : memref<32x512xf32, #tpu.memory_space<vmem>>, vector<2x512xf32>
    %c14_263 = arith.constant 14 : index
    %c0_264 = arith.constant 0 : index
    %791 = vector.load %arg21[%c14_263, %c0_264] : memref<32x512xf32, #tpu.memory_space<vmem>>, vector<2x512xf32>
    %c16_265 = arith.constant 16 : index
    %c0_266 = arith.constant 0 : index
    %792 = vector.load %arg21[%c16_265, %c0_266] : memref<32x512xf32, #tpu.memory_space<vmem>>, vector<2x512xf32>
    %793 = arith.addf %789, %792 : vector<2x512xf32>
    %794 = arith.addf %790, %791 : vector<2x512xf32>
    %795 = arith.select %4, %793, %794 : vector<2x512xi1>, vector<2x512xf32>
    %796 = arith.truncf %788 : vector<2x128xf32> to vector<2x128xbf16>
    %cst_267 = arith.constant dense<0.000000e+00> : vector<2x512xf32>
    %797 = tpu.matmul %796, %541, %cst_267 {dimension_numbers = #tpu.dot_dimension_numbers<[1], [0], [0], [1], [0, 0, 1, 1], [], []>} : vector<2x128xbf16>, vector<128x512xbf16>, vector<2x512xf32> -> vector<2x512xf32>
    %798 = arith.addf %795, %797 : vector<2x512xf32>
    %799 = vector.extract_strided_slice %798 {offsets = [0, 0], sizes = [2, 128], strides = [1, 1]} : vector<2x512xf32> to vector<2x128xf32>
    %800 = arith.negf %799 : vector<2x128xf32>
    %801 = math.exp %800 : vector<2x128xf32>
    %cst_268 = arith.constant 1.000000e+00 : f32
    %802 = vector.broadcast %cst_268 : f32 to vector<2x128xf32>
    %803 = arith.addf %802, %801 : vector<2x128xf32>
    %804 = arith.divf %802, %803 : vector<2x128xf32>
    %805 = vector.extract_strided_slice %798 {offsets = [0, 128], sizes = [2, 128], strides = [1, 1]} : vector<2x512xf32> to vector<2x128xf32>
    %806 = arith.negf %805 : vector<2x128xf32>
    %807 = math.exp %806 : vector<2x128xf32>
    %cst_269 = arith.constant 1.000000e+00 : f32
    %808 = vector.broadcast %cst_269 : f32 to vector<2x128xf32>
    %809 = arith.addf %808, %807 : vector<2x128xf32>
    %810 = arith.divf %808, %809 : vector<2x128xf32>
    %811 = vector.extract_strided_slice %798 {offsets = [0, 256], sizes = [2, 128], strides = [1, 1]} : vector<2x512xf32> to vector<2x128xf32>
    %812 = math.tanh %811 : vector<2x128xf32>
    %813 = vector.extract_strided_slice %798 {offsets = [0, 384], sizes = [2, 128], strides = [1, 1]} : vector<2x512xf32> to vector<2x128xf32>
    %814 = arith.negf %813 : vector<2x128xf32>
    %815 = math.exp %814 : vector<2x128xf32>
    %cst_270 = arith.constant 1.000000e+00 : f32
    %816 = vector.broadcast %cst_270 : f32 to vector<2x128xf32>
    %817 = arith.addf %816, %815 : vector<2x128xf32>
    %818 = arith.divf %816, %817 : vector<2x128xf32>
    %819 = arith.mulf %810, %786 : vector<2x128xf32>
    %820 = arith.mulf %804, %812 : vector<2x128xf32>
    %821 = arith.addf %819, %820 : vector<2x128xf32>
    %822 = math.tanh %821 : vector<2x128xf32>
    %823 = arith.mulf %818, %822 : vector<2x128xf32>
    %c16_271 = arith.constant 16 : index
    %c0_272 = arith.constant 0 : index
    %824 = vector.load %arg20[%c16_271, %c0_272] : memref<32x512xf32, #tpu.memory_space<vmem>>, vector<2x512xf32>
    %c14_273 = arith.constant 14 : index
    %c0_274 = arith.constant 0 : index
    %825 = vector.load %arg20[%c14_273, %c0_274] : memref<32x512xf32, #tpu.memory_space<vmem>>, vector<2x512xf32>
    %c16_275 = arith.constant 16 : index
    %c0_276 = arith.constant 0 : index
    %826 = vector.load %arg21[%c16_275, %c0_276] : memref<32x512xf32, #tpu.memory_space<vmem>>, vector<2x512xf32>
    %c14_277 = arith.constant 14 : index
    %c0_278 = arith.constant 0 : index
    %827 = vector.load %arg21[%c14_277, %c0_278] : memref<32x512xf32, #tpu.memory_space<vmem>>, vector<2x512xf32>
    %828 = arith.addf %824, %827 : vector<2x512xf32>
    %829 = arith.addf %825, %826 : vector<2x512xf32>
    %830 = arith.select %4, %828, %829 : vector<2x512xi1>, vector<2x512xf32>
    %831 = arith.truncf %823 : vector<2x128xf32> to vector<2x128xbf16>
    %cst_279 = arith.constant dense<0.000000e+00> : vector<2x512xf32>
    %832 = tpu.matmul %831, %541, %cst_279 {dimension_numbers = #tpu.dot_dimension_numbers<[1], [0], [0], [1], [0, 0, 1, 1], [], []>} : vector<2x128xbf16>, vector<128x512xbf16>, vector<2x512xf32> -> vector<2x512xf32>
    %833 = arith.addf %830, %832 : vector<2x512xf32>
    %834 = vector.extract_strided_slice %833 {offsets = [0, 0], sizes = [2, 128], strides = [1, 1]} : vector<2x512xf32> to vector<2x128xf32>
    %835 = arith.negf %834 : vector<2x128xf32>
    %836 = math.exp %835 : vector<2x128xf32>
    %cst_280 = arith.constant 1.000000e+00 : f32
    %837 = vector.broadcast %cst_280 : f32 to vector<2x128xf32>
    %838 = arith.addf %837, %836 : vector<2x128xf32>
    %839 = arith.divf %837, %838 : vector<2x128xf32>
    %840 = vector.extract_strided_slice %833 {offsets = [0, 128], sizes = [2, 128], strides = [1, 1]} : vector<2x512xf32> to vector<2x128xf32>
    %841 = arith.negf %840 : vector<2x128xf32>
    %842 = math.exp %841 : vector<2x128xf32>
    %cst_281 = arith.constant 1.000000e+00 : f32
    %843 = vector.broadcast %cst_281 : f32 to vector<2x128xf32>
    %844 = arith.addf %843, %842 : vector<2x128xf32>
    %845 = arith.divf %843, %844 : vector<2x128xf32>
    %846 = vector.extract_strided_slice %833 {offsets = [0, 256], sizes = [2, 128], strides = [1, 1]} : vector<2x512xf32> to vector<2x128xf32>
    %847 = math.tanh %846 : vector<2x128xf32>
    %848 = vector.extract_strided_slice %833 {offsets = [0, 384], sizes = [2, 128], strides = [1, 1]} : vector<2x512xf32> to vector<2x128xf32>
    %849 = arith.negf %848 : vector<2x128xf32>
    %850 = math.exp %849 : vector<2x128xf32>
    %cst_282 = arith.constant 1.000000e+00 : f32
    %851 = vector.broadcast %cst_282 : f32 to vector<2x128xf32>
    %852 = arith.addf %851, %850 : vector<2x128xf32>
    %853 = arith.divf %851, %852 : vector<2x128xf32>
    %854 = arith.mulf %845, %821 : vector<2x128xf32>
    %855 = arith.mulf %839, %847 : vector<2x128xf32>
    %856 = arith.addf %854, %855 : vector<2x128xf32>
    %857 = math.tanh %856 : vector<2x128xf32>
    %858 = arith.mulf %853, %857 : vector<2x128xf32>
    %c18_283 = arith.constant 18 : index
    %c0_284 = arith.constant 0 : index
    %859 = vector.load %arg20[%c18_283, %c0_284] : memref<32x512xf32, #tpu.memory_space<vmem>>, vector<2x512xf32>
    %c12_285 = arith.constant 12 : index
    %c0_286 = arith.constant 0 : index
    %860 = vector.load %arg20[%c12_285, %c0_286] : memref<32x512xf32, #tpu.memory_space<vmem>>, vector<2x512xf32>
    %c18_287 = arith.constant 18 : index
    %c0_288 = arith.constant 0 : index
    %861 = vector.load %arg21[%c18_287, %c0_288] : memref<32x512xf32, #tpu.memory_space<vmem>>, vector<2x512xf32>
    %c12_289 = arith.constant 12 : index
    %c0_290 = arith.constant 0 : index
    %862 = vector.load %arg21[%c12_289, %c0_290] : memref<32x512xf32, #tpu.memory_space<vmem>>, vector<2x512xf32>
    %863 = arith.addf %859, %862 : vector<2x512xf32>
    %864 = arith.addf %860, %861 : vector<2x512xf32>
    %865 = arith.select %4, %863, %864 : vector<2x512xi1>, vector<2x512xf32>
    %866 = arith.truncf %858 : vector<2x128xf32> to vector<2x128xbf16>
    %cst_291 = arith.constant dense<0.000000e+00> : vector<2x512xf32>
    %867 = tpu.matmul %866, %541, %cst_291 {dimension_numbers = #tpu.dot_dimension_numbers<[1], [0], [0], [1], [0, 0, 1, 1], [], []>} : vector<2x128xbf16>, vector<128x512xbf16>, vector<2x512xf32> -> vector<2x512xf32>
    %868 = arith.addf %865, %867 : vector<2x512xf32>
    %869 = vector.extract_strided_slice %868 {offsets = [0, 0], sizes = [2, 128], strides = [1, 1]} : vector<2x512xf32> to vector<2x128xf32>
    %870 = arith.negf %869 : vector<2x128xf32>
    %871 = math.exp %870 : vector<2x128xf32>
    %cst_292 = arith.constant 1.000000e+00 : f32
    %872 = vector.broadcast %cst_292 : f32 to vector<2x128xf32>
    %873 = arith.addf %872, %871 : vector<2x128xf32>
    %874 = arith.divf %872, %873 : vector<2x128xf32>
    %875 = vector.extract_strided_slice %868 {offsets = [0, 128], sizes = [2, 128], strides = [1, 1]} : vector<2x512xf32> to vector<2x128xf32>
    %876 = arith.negf %875 : vector<2x128xf32>
    %877 = math.exp %876 : vector<2x128xf32>
    %cst_293 = arith.constant 1.000000e+00 : f32
    %878 = vector.broadcast %cst_293 : f32 to vector<2x128xf32>
    %879 = arith.addf %878, %877 : vector<2x128xf32>
    %880 = arith.divf %878, %879 : vector<2x128xf32>
    %881 = vector.extract_strided_slice %868 {offsets = [0, 256], sizes = [2, 128], strides = [1, 1]} : vector<2x512xf32> to vector<2x128xf32>
    %882 = math.tanh %881 : vector<2x128xf32>
    %883 = vector.extract_strided_slice %868 {offsets = [0, 384], sizes = [2, 128], strides = [1, 1]} : vector<2x512xf32> to vector<2x128xf32>
    %884 = arith.negf %883 : vector<2x128xf32>
    %885 = math.exp %884 : vector<2x128xf32>
    %cst_294 = arith.constant 1.000000e+00 : f32
    %886 = vector.broadcast %cst_294 : f32 to vector<2x128xf32>
    %887 = arith.addf %886, %885 : vector<2x128xf32>
    %888 = arith.divf %886, %887 : vector<2x128xf32>
    %889 = arith.mulf %880, %856 : vector<2x128xf32>
    %890 = arith.mulf %874, %882 : vector<2x128xf32>
    %891 = arith.addf %889, %890 : vector<2x128xf32>
    %892 = math.tanh %891 : vector<2x128xf32>
    %893 = arith.mulf %888, %892 : vector<2x128xf32>
    %c20_295 = arith.constant 20 : index
    %c0_296 = arith.constant 0 : index
    %894 = vector.load %arg20[%c20_295, %c0_296] : memref<32x512xf32, #tpu.memory_space<vmem>>, vector<2x512xf32>
    %c10_297 = arith.constant 10 : index
    %c0_298 = arith.constant 0 : index
    %895 = vector.load %arg20[%c10_297, %c0_298] : memref<32x512xf32, #tpu.memory_space<vmem>>, vector<2x512xf32>
    %c20_299 = arith.constant 20 : index
    %c0_300 = arith.constant 0 : index
    %896 = vector.load %arg21[%c20_299, %c0_300] : memref<32x512xf32, #tpu.memory_space<vmem>>, vector<2x512xf32>
    %c10_301 = arith.constant 10 : index
    %c0_302 = arith.constant 0 : index
    %897 = vector.load %arg21[%c10_301, %c0_302] : memref<32x512xf32, #tpu.memory_space<vmem>>, vector<2x512xf32>
    %898 = arith.addf %894, %897 : vector<2x512xf32>
    %899 = arith.addf %895, %896 : vector<2x512xf32>
    %900 = arith.select %4, %898, %899 : vector<2x512xi1>, vector<2x512xf32>
    %901 = arith.truncf %893 : vector<2x128xf32> to vector<2x128xbf16>
    %cst_303 = arith.constant dense<0.000000e+00> : vector<2x512xf32>
    %902 = tpu.matmul %901, %541, %cst_303 {dimension_numbers = #tpu.dot_dimension_numbers<[1], [0], [0], [1], [0, 0, 1, 1], [], []>} : vector<2x128xbf16>, vector<128x512xbf16>, vector<2x512xf32> -> vector<2x512xf32>
    %903 = arith.addf %900, %902 : vector<2x512xf32>
    %904 = vector.extract_strided_slice %903 {offsets = [0, 0], sizes = [2, 128], strides = [1, 1]} : vector<2x512xf32> to vector<2x128xf32>
    %905 = arith.negf %904 : vector<2x128xf32>
    %906 = math.exp %905 : vector<2x128xf32>
    %cst_304 = arith.constant 1.000000e+00 : f32
    %907 = vector.broadcast %cst_304 : f32 to vector<2x128xf32>
    %908 = arith.addf %907, %906 : vector<2x128xf32>
    %909 = arith.divf %907, %908 : vector<2x128xf32>
    %910 = vector.extract_strided_slice %903 {offsets = [0, 128], sizes = [2, 128], strides = [1, 1]} : vector<2x512xf32> to vector<2x128xf32>
    %911 = arith.negf %910 : vector<2x128xf32>
    %912 = math.exp %911 : vector<2x128xf32>
    %cst_305 = arith.constant 1.000000e+00 : f32
    %913 = vector.broadcast %cst_305 : f32 to vector<2x128xf32>
    %914 = arith.addf %913, %912 : vector<2x128xf32>
    %915 = arith.divf %913, %914 : vector<2x128xf32>
    %916 = vector.extract_strided_slice %903 {offsets = [0, 256], sizes = [2, 128], strides = [1, 1]} : vector<2x512xf32> to vector<2x128xf32>
    %917 = math.tanh %916 : vector<2x128xf32>
    %918 = vector.extract_strided_slice %903 {offsets = [0, 384], sizes = [2, 128], strides = [1, 1]} : vector<2x512xf32> to vector<2x128xf32>
    %919 = arith.negf %918 : vector<2x128xf32>
    %920 = math.exp %919 : vector<2x128xf32>
    %cst_306 = arith.constant 1.000000e+00 : f32
    %921 = vector.broadcast %cst_306 : f32 to vector<2x128xf32>
    %922 = arith.addf %921, %920 : vector<2x128xf32>
    %923 = arith.divf %921, %922 : vector<2x128xf32>
    %924 = arith.mulf %915, %891 : vector<2x128xf32>
    %925 = arith.mulf %909, %917 : vector<2x128xf32>
    %926 = arith.addf %924, %925 : vector<2x128xf32>
    %927 = math.tanh %926 : vector<2x128xf32>
    %928 = arith.mulf %923, %927 : vector<2x128xf32>
    %c22_307 = arith.constant 22 : index
    %c0_308 = arith.constant 0 : index
    %929 = vector.load %arg20[%c22_307, %c0_308] : memref<32x512xf32, #tpu.memory_space<vmem>>, vector<2x512xf32>
    %c8_309 = arith.constant 8 : index
    %c0_310 = arith.constant 0 : index
    %930 = vector.load %arg20[%c8_309, %c0_310] : memref<32x512xf32, #tpu.memory_space<vmem>>, vector<2x512xf32>
    %c22_311 = arith.constant 22 : index
    %c0_312 = arith.constant 0 : index
    %931 = vector.load %arg21[%c22_311, %c0_312] : memref<32x512xf32, #tpu.memory_space<vmem>>, vector<2x512xf32>
    %c8_313 = arith.constant 8 : index
    %c0_314 = arith.constant 0 : index
    %932 = vector.load %arg21[%c8_313, %c0_314] : memref<32x512xf32, #tpu.memory_space<vmem>>, vector<2x512xf32>
    %933 = arith.addf %929, %932 : vector<2x512xf32>
    %934 = arith.addf %930, %931 : vector<2x512xf32>
    %935 = arith.select %4, %933, %934 : vector<2x512xi1>, vector<2x512xf32>
    %936 = arith.truncf %928 : vector<2x128xf32> to vector<2x128xbf16>
    %cst_315 = arith.constant dense<0.000000e+00> : vector<2x512xf32>
    %937 = tpu.matmul %936, %541, %cst_315 {dimension_numbers = #tpu.dot_dimension_numbers<[1], [0], [0], [1], [0, 0, 1, 1], [], []>} : vector<2x128xbf16>, vector<128x512xbf16>, vector<2x512xf32> -> vector<2x512xf32>
    %938 = arith.addf %935, %937 : vector<2x512xf32>
    %939 = vector.extract_strided_slice %938 {offsets = [0, 0], sizes = [2, 128], strides = [1, 1]} : vector<2x512xf32> to vector<2x128xf32>
    %940 = arith.negf %939 : vector<2x128xf32>
    %941 = math.exp %940 : vector<2x128xf32>
    %cst_316 = arith.constant 1.000000e+00 : f32
    %942 = vector.broadcast %cst_316 : f32 to vector<2x128xf32>
    %943 = arith.addf %942, %941 : vector<2x128xf32>
    %944 = arith.divf %942, %943 : vector<2x128xf32>
    %945 = vector.extract_strided_slice %938 {offsets = [0, 128], sizes = [2, 128], strides = [1, 1]} : vector<2x512xf32> to vector<2x128xf32>
    %946 = arith.negf %945 : vector<2x128xf32>
    %947 = math.exp %946 : vector<2x128xf32>
    %cst_317 = arith.constant 1.000000e+00 : f32
    %948 = vector.broadcast %cst_317 : f32 to vector<2x128xf32>
    %949 = arith.addf %948, %947 : vector<2x128xf32>
    %950 = arith.divf %948, %949 : vector<2x128xf32>
    %951 = vector.extract_strided_slice %938 {offsets = [0, 256], sizes = [2, 128], strides = [1, 1]} : vector<2x512xf32> to vector<2x128xf32>
    %952 = math.tanh %951 : vector<2x128xf32>
    %953 = vector.extract_strided_slice %938 {offsets = [0, 384], sizes = [2, 128], strides = [1, 1]} : vector<2x512xf32> to vector<2x128xf32>
    %954 = arith.negf %953 : vector<2x128xf32>
    %955 = math.exp %954 : vector<2x128xf32>
    %cst_318 = arith.constant 1.000000e+00 : f32
    %956 = vector.broadcast %cst_318 : f32 to vector<2x128xf32>
    %957 = arith.addf %956, %955 : vector<2x128xf32>
    %958 = arith.divf %956, %957 : vector<2x128xf32>
    %959 = arith.mulf %950, %926 : vector<2x128xf32>
    %960 = arith.mulf %944, %952 : vector<2x128xf32>
    %961 = arith.addf %959, %960 : vector<2x128xf32>
    %962 = math.tanh %961 : vector<2x128xf32>
    %963 = arith.mulf %958, %962 : vector<2x128xf32>
    %c24_319 = arith.constant 24 : index
    %c0_320 = arith.constant 0 : index
    %964 = vector.load %arg20[%c24_319, %c0_320] : memref<32x512xf32, #tpu.memory_space<vmem>>, vector<2x512xf32>
    %c6_321 = arith.constant 6 : index
    %c0_322 = arith.constant 0 : index
    %965 = vector.load %arg20[%c6_321, %c0_322] : memref<32x512xf32, #tpu.memory_space<vmem>>, vector<2x512xf32>
    %c24_323 = arith.constant 24 : index
    %c0_324 = arith.constant 0 : index
    %966 = vector.load %arg21[%c24_323, %c0_324] : memref<32x512xf32, #tpu.memory_space<vmem>>, vector<2x512xf32>
    %c6_325 = arith.constant 6 : index
    %c0_326 = arith.constant 0 : index
    %967 = vector.load %arg21[%c6_325, %c0_326] : memref<32x512xf32, #tpu.memory_space<vmem>>, vector<2x512xf32>
    %968 = arith.addf %964, %967 : vector<2x512xf32>
    %969 = arith.addf %965, %966 : vector<2x512xf32>
    %970 = arith.select %4, %968, %969 : vector<2x512xi1>, vector<2x512xf32>
    %971 = arith.truncf %963 : vector<2x128xf32> to vector<2x128xbf16>
    %cst_327 = arith.constant dense<0.000000e+00> : vector<2x512xf32>
    %972 = tpu.matmul %971, %541, %cst_327 {dimension_numbers = #tpu.dot_dimension_numbers<[1], [0], [0], [1], [0, 0, 1, 1], [], []>} : vector<2x128xbf16>, vector<128x512xbf16>, vector<2x512xf32> -> vector<2x512xf32>
    %973 = arith.addf %970, %972 : vector<2x512xf32>
    %974 = vector.extract_strided_slice %973 {offsets = [0, 0], sizes = [2, 128], strides = [1, 1]} : vector<2x512xf32> to vector<2x128xf32>
    %975 = arith.negf %974 : vector<2x128xf32>
    %976 = math.exp %975 : vector<2x128xf32>
    %cst_328 = arith.constant 1.000000e+00 : f32
    %977 = vector.broadcast %cst_328 : f32 to vector<2x128xf32>
    %978 = arith.addf %977, %976 : vector<2x128xf32>
    %979 = arith.divf %977, %978 : vector<2x128xf32>
    %980 = vector.extract_strided_slice %973 {offsets = [0, 128], sizes = [2, 128], strides = [1, 1]} : vector<2x512xf32> to vector<2x128xf32>
    %981 = arith.negf %980 : vector<2x128xf32>
    %982 = math.exp %981 : vector<2x128xf32>
    %cst_329 = arith.constant 1.000000e+00 : f32
    %983 = vector.broadcast %cst_329 : f32 to vector<2x128xf32>
    %984 = arith.addf %983, %982 : vector<2x128xf32>
    %985 = arith.divf %983, %984 : vector<2x128xf32>
    %986 = vector.extract_strided_slice %973 {offsets = [0, 256], sizes = [2, 128], strides = [1, 1]} : vector<2x512xf32> to vector<2x128xf32>
    %987 = math.tanh %986 : vector<2x128xf32>
    %988 = vector.extract_strided_slice %973 {offsets = [0, 384], sizes = [2, 128], strides = [1, 1]} : vector<2x512xf32> to vector<2x128xf32>
    %989 = arith.negf %988 : vector<2x128xf32>
    %990 = math.exp %989 : vector<2x128xf32>
    %cst_330 = arith.constant 1.000000e+00 : f32
    %991 = vector.broadcast %cst_330 : f32 to vector<2x128xf32>
    %992 = arith.addf %991, %990 : vector<2x128xf32>
    %993 = arith.divf %991, %992 : vector<2x128xf32>
    %994 = arith.mulf %985, %961 : vector<2x128xf32>
    %995 = arith.mulf %979, %987 : vector<2x128xf32>
    %996 = arith.addf %994, %995 : vector<2x128xf32>
    %997 = math.tanh %996 : vector<2x128xf32>
    %998 = arith.mulf %993, %997 : vector<2x128xf32>
    %c26_331 = arith.constant 26 : index
    %c0_332 = arith.constant 0 : index
    %999 = vector.load %arg20[%c26_331, %c0_332] : memref<32x512xf32, #tpu.memory_space<vmem>>, vector<2x512xf32>
    %c4_333 = arith.constant 4 : index
    %c0_334 = arith.constant 0 : index
    %1000 = vector.load %arg20[%c4_333, %c0_334] : memref<32x512xf32, #tpu.memory_space<vmem>>, vector<2x512xf32>
    %c26_335 = arith.constant 26 : index
    %c0_336 = arith.constant 0 : index
    %1001 = vector.load %arg21[%c26_335, %c0_336] : memref<32x512xf32, #tpu.memory_space<vmem>>, vector<2x512xf32>
    %c4_337 = arith.constant 4 : index
    %c0_338 = arith.constant 0 : index
    %1002 = vector.load %arg21[%c4_337, %c0_338] : memref<32x512xf32, #tpu.memory_space<vmem>>, vector<2x512xf32>
    %1003 = arith.addf %999, %1002 : vector<2x512xf32>
    %1004 = arith.addf %1000, %1001 : vector<2x512xf32>
    %1005 = arith.select %4, %1003, %1004 : vector<2x512xi1>, vector<2x512xf32>
    %1006 = arith.truncf %998 : vector<2x128xf32> to vector<2x128xbf16>
    %cst_339 = arith.constant dense<0.000000e+00> : vector<2x512xf32>
    %1007 = tpu.matmul %1006, %541, %cst_339 {dimension_numbers = #tpu.dot_dimension_numbers<[1], [0], [0], [1], [0, 0, 1, 1], [], []>} : vector<2x128xbf16>, vector<128x512xbf16>, vector<2x512xf32> -> vector<2x512xf32>
    %1008 = arith.addf %1005, %1007 : vector<2x512xf32>
    %1009 = vector.extract_strided_slice %1008 {offsets = [0, 0], sizes = [2, 128], strides = [1, 1]} : vector<2x512xf32> to vector<2x128xf32>
    %1010 = arith.negf %1009 : vector<2x128xf32>
    %1011 = math.exp %1010 : vector<2x128xf32>
    %cst_340 = arith.constant 1.000000e+00 : f32
    %1012 = vector.broadcast %cst_340 : f32 to vector<2x128xf32>
    %1013 = arith.addf %1012, %1011 : vector<2x128xf32>
    %1014 = arith.divf %1012, %1013 : vector<2x128xf32>
    %1015 = vector.extract_strided_slice %1008 {offsets = [0, 128], sizes = [2, 128], strides = [1, 1]} : vector<2x512xf32> to vector<2x128xf32>
    %1016 = arith.negf %1015 : vector<2x128xf32>
    %1017 = math.exp %1016 : vector<2x128xf32>
    %cst_341 = arith.constant 1.000000e+00 : f32
    %1018 = vector.broadcast %cst_341 : f32 to vector<2x128xf32>
    %1019 = arith.addf %1018, %1017 : vector<2x128xf32>
    %1020 = arith.divf %1018, %1019 : vector<2x128xf32>
    %1021 = vector.extract_strided_slice %1008 {offsets = [0, 256], sizes = [2, 128], strides = [1, 1]} : vector<2x512xf32> to vector<2x128xf32>
    %1022 = math.tanh %1021 : vector<2x128xf32>
    %1023 = vector.extract_strided_slice %1008 {offsets = [0, 384], sizes = [2, 128], strides = [1, 1]} : vector<2x512xf32> to vector<2x128xf32>
    %1024 = arith.negf %1023 : vector<2x128xf32>
    %1025 = math.exp %1024 : vector<2x128xf32>
    %cst_342 = arith.constant 1.000000e+00 : f32
    %1026 = vector.broadcast %cst_342 : f32 to vector<2x128xf32>
    %1027 = arith.addf %1026, %1025 : vector<2x128xf32>
    %1028 = arith.divf %1026, %1027 : vector<2x128xf32>
    %1029 = arith.mulf %1020, %996 : vector<2x128xf32>
    %1030 = arith.mulf %1014, %1022 : vector<2x128xf32>
    %1031 = arith.addf %1029, %1030 : vector<2x128xf32>
    %1032 = math.tanh %1031 : vector<2x128xf32>
    %1033 = arith.mulf %1028, %1032 : vector<2x128xf32>
    %c28_343 = arith.constant 28 : index
    %c0_344 = arith.constant 0 : index
    %1034 = vector.load %arg20[%c28_343, %c0_344] : memref<32x512xf32, #tpu.memory_space<vmem>>, vector<2x512xf32>
    %c2_345 = arith.constant 2 : index
    %c0_346 = arith.constant 0 : index
    %1035 = vector.load %arg20[%c2_345, %c0_346] : memref<32x512xf32, #tpu.memory_space<vmem>>, vector<2x512xf32>
    %c28_347 = arith.constant 28 : index
    %c0_348 = arith.constant 0 : index
    %1036 = vector.load %arg21[%c28_347, %c0_348] : memref<32x512xf32, #tpu.memory_space<vmem>>, vector<2x512xf32>
    %c2_349 = arith.constant 2 : index
    %c0_350 = arith.constant 0 : index
    %1037 = vector.load %arg21[%c2_349, %c0_350] : memref<32x512xf32, #tpu.memory_space<vmem>>, vector<2x512xf32>
    %1038 = arith.addf %1034, %1037 : vector<2x512xf32>
    %1039 = arith.addf %1035, %1036 : vector<2x512xf32>
    %1040 = arith.select %4, %1038, %1039 : vector<2x512xi1>, vector<2x512xf32>
    %1041 = arith.truncf %1033 : vector<2x128xf32> to vector<2x128xbf16>
    %cst_351 = arith.constant dense<0.000000e+00> : vector<2x512xf32>
    %1042 = tpu.matmul %1041, %541, %cst_351 {dimension_numbers = #tpu.dot_dimension_numbers<[1], [0], [0], [1], [0, 0, 1, 1], [], []>} : vector<2x128xbf16>, vector<128x512xbf16>, vector<2x512xf32> -> vector<2x512xf32>
    %1043 = arith.addf %1040, %1042 : vector<2x512xf32>
    %1044 = vector.extract_strided_slice %1043 {offsets = [0, 0], sizes = [2, 128], strides = [1, 1]} : vector<2x512xf32> to vector<2x128xf32>
    %1045 = arith.negf %1044 : vector<2x128xf32>
    %1046 = math.exp %1045 : vector<2x128xf32>
    %cst_352 = arith.constant 1.000000e+00 : f32
    %1047 = vector.broadcast %cst_352 : f32 to vector<2x128xf32>
    %1048 = arith.addf %1047, %1046 : vector<2x128xf32>
    %1049 = arith.divf %1047, %1048 : vector<2x128xf32>
    %1050 = vector.extract_strided_slice %1043 {offsets = [0, 128], sizes = [2, 128], strides = [1, 1]} : vector<2x512xf32> to vector<2x128xf32>
    %1051 = arith.negf %1050 : vector<2x128xf32>
    %1052 = math.exp %1051 : vector<2x128xf32>
    %cst_353 = arith.constant 1.000000e+00 : f32
    %1053 = vector.broadcast %cst_353 : f32 to vector<2x128xf32>
    %1054 = arith.addf %1053, %1052 : vector<2x128xf32>
    %1055 = arith.divf %1053, %1054 : vector<2x128xf32>
    %1056 = vector.extract_strided_slice %1043 {offsets = [0, 256], sizes = [2, 128], strides = [1, 1]} : vector<2x512xf32> to vector<2x128xf32>
    %1057 = math.tanh %1056 : vector<2x128xf32>
    %1058 = vector.extract_strided_slice %1043 {offsets = [0, 384], sizes = [2, 128], strides = [1, 1]} : vector<2x512xf32> to vector<2x128xf32>
    %1059 = arith.negf %1058 : vector<2x128xf32>
    %1060 = math.exp %1059 : vector<2x128xf32>
    %cst_354 = arith.constant 1.000000e+00 : f32
    %1061 = vector.broadcast %cst_354 : f32 to vector<2x128xf32>
    %1062 = arith.addf %1061, %1060 : vector<2x128xf32>
    %1063 = arith.divf %1061, %1062 : vector<2x128xf32>
    %1064 = arith.mulf %1055, %1031 : vector<2x128xf32>
    %1065 = arith.mulf %1049, %1057 : vector<2x128xf32>
    %1066 = arith.addf %1064, %1065 : vector<2x128xf32>
    %1067 = math.tanh %1066 : vector<2x128xf32>
    %1068 = arith.mulf %1063, %1067 : vector<2x128xf32>
    %c30_355 = arith.constant 30 : index
    %c0_356 = arith.constant 0 : index
    %1069 = vector.load %arg20[%c30_355, %c0_356] : memref<32x512xf32, #tpu.memory_space<vmem>>, vector<2x512xf32>
    %c0_357 = arith.constant 0 : index
    %c0_358 = arith.constant 0 : index
    %1070 = vector.load %arg20[%c0_357, %c0_358] : memref<32x512xf32, #tpu.memory_space<vmem>>, vector<2x512xf32>
    %c30_359 = arith.constant 30 : index
    %c0_360 = arith.constant 0 : index
    %1071 = vector.load %arg21[%c30_359, %c0_360] : memref<32x512xf32, #tpu.memory_space<vmem>>, vector<2x512xf32>
    %c0_361 = arith.constant 0 : index
    %c0_362 = arith.constant 0 : index
    %1072 = vector.load %arg21[%c0_361, %c0_362] : memref<32x512xf32, #tpu.memory_space<vmem>>, vector<2x512xf32>
    %1073 = arith.addf %1069, %1072 : vector<2x512xf32>
    %1074 = arith.addf %1070, %1071 : vector<2x512xf32>
    %1075 = arith.select %4, %1073, %1074 : vector<2x512xi1>, vector<2x512xf32>
    %1076 = arith.truncf %1068 : vector<2x128xf32> to vector<2x128xbf16>
    %cst_363 = arith.constant dense<0.000000e+00> : vector<2x512xf32>
    %1077 = tpu.matmul %1076, %541, %cst_363 {dimension_numbers = #tpu.dot_dimension_numbers<[1], [0], [0], [1], [0, 0, 1, 1], [], []>} : vector<2x128xbf16>, vector<128x512xbf16>, vector<2x512xf32> -> vector<2x512xf32>
    %1078 = arith.addf %1075, %1077 : vector<2x512xf32>
    %1079 = vector.extract_strided_slice %1078 {offsets = [0, 0], sizes = [2, 128], strides = [1, 1]} : vector<2x512xf32> to vector<2x128xf32>
    %1080 = arith.negf %1079 : vector<2x128xf32>
    %1081 = math.exp %1080 : vector<2x128xf32>
    %cst_364 = arith.constant 1.000000e+00 : f32
    %1082 = vector.broadcast %cst_364 : f32 to vector<2x128xf32>
    %1083 = arith.addf %1082, %1081 : vector<2x128xf32>
    %1084 = arith.divf %1082, %1083 : vector<2x128xf32>
    %1085 = vector.extract_strided_slice %1078 {offsets = [0, 128], sizes = [2, 128], strides = [1, 1]} : vector<2x512xf32> to vector<2x128xf32>
    %1086 = arith.negf %1085 : vector<2x128xf32>
    %1087 = math.exp %1086 : vector<2x128xf32>
    %cst_365 = arith.constant 1.000000e+00 : f32
    %1088 = vector.broadcast %cst_365 : f32 to vector<2x128xf32>
    %1089 = arith.addf %1088, %1087 : vector<2x128xf32>
    %1090 = arith.divf %1088, %1089 : vector<2x128xf32>
    %1091 = vector.extract_strided_slice %1078 {offsets = [0, 256], sizes = [2, 128], strides = [1, 1]} : vector<2x512xf32> to vector<2x128xf32>
    %1092 = math.tanh %1091 : vector<2x128xf32>
    %1093 = vector.extract_strided_slice %1078 {offsets = [0, 384], sizes = [2, 128], strides = [1, 1]} : vector<2x512xf32> to vector<2x128xf32>
    %1094 = arith.negf %1093 : vector<2x128xf32>
    %1095 = math.exp %1094 : vector<2x128xf32>
    %cst_366 = arith.constant 1.000000e+00 : f32
    %1096 = vector.broadcast %cst_366 : f32 to vector<2x128xf32>
    %1097 = arith.addf %1096, %1095 : vector<2x128xf32>
    %1098 = arith.divf %1096, %1097 : vector<2x128xf32>
    %1099 = arith.mulf %1090, %1066 : vector<2x128xf32>
    %1100 = arith.mulf %1084, %1092 : vector<2x128xf32>
    %1101 = arith.addf %1099, %1100 : vector<2x128xf32>
    %1102 = math.tanh %1101 : vector<2x128xf32>
    %1103 = arith.mulf %1098, %1102 : vector<2x128xf32>
    %1104 = arith.select %7, %1103, %578 : vector<2x128xi1>, vector<2x128xf32>
    %c0_367 = arith.constant 0 : index
    %c0_368 = arith.constant 0 : index
    %1105 = vector.load %arg1[%c0_367, %c0_368] : memref<32x40xbf16, #tpu.memory_space<vmem>>, vector<32x40xbf16>
    %c0_369 = arith.constant 0 : index
    %c0_370 = arith.constant 0 : index
    %1106 = vector.load %arg2[%c0_369, %c0_370] : memref<40x128xbf16, #tpu.memory_space<vmem>>, vector<40x128xbf16>
    %cst_371 = arith.constant dense<0.000000e+00> : vector<32x128xf32>
    %1107 = tpu.matmul %1105, %1106, %cst_371 {dimension_numbers = #tpu.dot_dimension_numbers<[1], [0], [0], [1], [0, 0, 1, 1], [], []>} : vector<32x40xbf16>, vector<40x128xbf16>, vector<32x128xf32> -> vector<32x128xf32>
    %c0_372 = arith.constant 0 : index
    %c0_373 = arith.constant 0 : index
    %1108 = vector.load %arg3[%c0_372, %c0_373] : memref<1x128xf32, #tpu.memory_space<vmem>>, vector<1x128xf32>
    %1109 = vector.broadcast %1108 : vector<1x128xf32> to vector<32x128xf32>
    %1110 = arith.addf %1107, %1109 : vector<32x128xf32>
    %cst_374 = arith.constant 0.000000e+00 : f32
    %1111 = vector.broadcast %cst_374 : f32 to vector<32x128xf32>
    %1112 = arith.maximumf %1110, %1111 : vector<32x128xf32>
    %1113 = vector.extract_strided_slice %1112 {offsets = [0, 0], sizes = [16, 128], strides = [1, 1]} : vector<32x128xf32> to vector<16x128xf32>
    %1114 = vector.extract_strided_slice %1112 {offsets = [16, 0], sizes = [16, 128], strides = [1, 1]} : vector<32x128xf32> to vector<16x128xf32>
    %1115 = arith.maximumf %1113, %1114 : vector<16x128xf32>
    %c1 = arith.constant 1 : index
    %c0_375 = arith.constant 0 : index
    %1116 = vector.load %arg23[%c1, %c0_375] : memref<18x128xf32, #tpu.memory_space<vmem>>, vector<16x128xf32>
    tpu.vector_store %arg23[%c1, %c0_375], %1115 {strides = array<i32>} : memref<18x128xf32, #tpu.memory_space<vmem>>, vector<16x128xf32>,
    %1117 = tpu.iota {dimensions = array<i32: 0>} : vector<16x128xi32>
    %c7_i32 = arith.constant 7 : i32
    %1118 = vector.broadcast %c7_i32 : i32 to vector<16x128xi32>
    %1119 = arith.andi %1117, %1118 : vector<16x128xi32>
    %c0_i32 = arith.constant 0 : i32
    %1120 = vector.broadcast %c0_i32 : i32 to vector<16x128xi32>
    %1121 = arith.cmpi eq, %1119, %1120 : vector<16x128xi32>
    %c0_376 = arith.constant 0 : index
    %c0_377 = arith.constant 0 : index
    %1122 = vector.load %arg23[%c0_376, %c0_377] : memref<18x128xf32, #tpu.memory_space<vmem>>, vector<16x128xf32>
    %cst_378 = arith.constant 0.000000e+00 : f32
    %1123 = vector.broadcast %cst_378 : f32 to vector<16x128xf32>
    %1124 = arith.select %1121, %1123, %1122 : vector<16x128xi1>, vector<16x128xf32>
    %c7_i32_379 = arith.constant 7 : i32
    %1125 = vector.broadcast %c7_i32_379 : i32 to vector<16x128xi32>
    %1126 = arith.cmpi eq, %1119, %1125 : vector<16x128xi32>
    %c2_380 = arith.constant 2 : index
    %c0_381 = arith.constant 0 : index
    %1127 = vector.load %arg23[%c2_380, %c0_381] : memref<18x128xf32, #tpu.memory_space<vmem>>, vector<16x128xf32>
    %cst_382 = arith.constant 0.000000e+00 : f32
    %1128 = vector.broadcast %cst_382 : f32 to vector<16x128xf32>
    %1129 = arith.select %1126, %1128, %1127 : vector<16x128xi1>, vector<16x128xf32>
    %1130 = tpu.concatenate %1124, %1115, %1129 in 1 : vector<16x128xf32>, vector<16x128xf32>, vector<16x128xf32> -> vector<16x384xf32>
    %1131 = arith.truncf %1130 : vector<16x384xf32> to vector<16x384xbf16>
    %c0_383 = arith.constant 0 : index
    %c0_384 = arith.constant 0 : index
    %1132 = vector.load %arg4[%c0_383, %c0_384] : memref<384x128xbf16, #tpu.memory_space<vmem>>, vector<384x128xbf16>
    %cst_385 = arith.constant dense<0.000000e+00> : vector<16x128xf32>
    %1133 = tpu.matmul %1131, %1132, %cst_385 {dimension_numbers = #tpu.dot_dimension_numbers<[1], [0], [0], [1], [0, 0, 1, 1], [], []>} : vector<16x384xbf16>, vector<384x128xbf16>, vector<16x128xf32> -> vector<16x128xf32>
    %c0_386 = arith.constant 0 : index
    %c0_387 = arith.constant 0 : index
    %1134 = vector.load %arg5[%c0_386, %c0_387] : memref<1x128xf32, #tpu.memory_space<vmem>>, vector<1x128xf32>
    %1135 = vector.broadcast %1134 : vector<1x128xf32> to vector<16x128xf32>
    %1136 = arith.addf %1133, %1135 : vector<16x128xf32>
    %cst_388 = arith.constant 0.000000e+00 : f32
    %1137 = vector.broadcast %cst_388 : f32 to vector<16x128xf32>
    %1138 = arith.maximumf %1136, %1137 : vector<16x128xf32>
    %1139 = vector.shape_cast %1138 : vector<16x128xf32> to vector<2x8x128xf32>
    %cst_389 = arith.constant dense<0xFF800000> : vector<2x128xf32>
    %1140 = vector.multi_reduction <maximumf>, %1139, %cst_389 [1] : vector<2x8x128xf32> to vector<2x128xf32>
    %1141 = arith.truncf %1140 : vector<2x128xf32> to vector<2x128xbf16>
    %c0_390 = arith.constant 0 : index
    %c0_391 = arith.constant 0 : index
    %1142 = vector.load %arg14[%c0_390, %c0_391] : memref<128x128xbf16, #tpu.memory_space<vmem>>, vector<128x128xbf16>
    %cst_392 = arith.constant dense<0.000000e+00> : vector<2x128xf32>
    %1143 = tpu.matmul %1141, %1142, %cst_392 {dimension_numbers = #tpu.dot_dimension_numbers<[1], [0], [0], [1], [0, 0, 1, 1], [], []>} : vector<2x128xbf16>, vector<128x128xbf16>, vector<2x128xf32> -> vector<2x128xf32>
    %1144 = arith.truncf %1104 : vector<2x128xf32> to vector<2x128xbf16>
    %c0_393 = arith.constant 0 : index
    %c0_394 = arith.constant 0 : index
    %1145 = vector.load %arg15[%c0_393, %c0_394] : memref<128x128xbf16, #tpu.memory_space<vmem>>, vector<128x128xbf16>
    %cst_395 = arith.constant dense<0.000000e+00> : vector<2x128xf32>
    %1146 = tpu.matmul %1144, %1145, %cst_395 {dimension_numbers = #tpu.dot_dimension_numbers<[1], [0], [0], [1], [0, 0, 1, 1], [], []>} : vector<2x128xbf16>, vector<128x128xbf16>, vector<2x128xf32> -> vector<2x128xf32>
    %1147 = arith.addf %1143, %1146 : vector<2x128xf32>
    %c0_396 = arith.constant 0 : index
    %c0_397 = arith.constant 0 : index
    %1148 = vector.load %arg16[%c0_396, %c0_397] : memref<1x128xf32, #tpu.memory_space<vmem>>, vector<1x128xf32>
    %1149 = vector.broadcast %1148 : vector<1x128xf32> to vector<2x128xf32>
    %1150 = arith.addf %1147, %1149 : vector<2x128xf32>
    %cst_398 = arith.constant 0.000000e+00 : f32
    %1151 = vector.broadcast %cst_398 : f32 to vector<2x128xf32>
    %1152 = arith.maximumf %1150, %1151 : vector<2x128xf32>
    %1153 = arith.truncf %1152 : vector<2x128xf32> to vector<2x128xbf16>
    %c0_399 = arith.constant 0 : index
    %c0_400 = arith.constant 0 : index
    %1154 = vector.load %arg17[%c0_399, %c0_400] : memref<128x128xbf16, #tpu.memory_space<vmem>>, vector<128x128xbf16>
    %cst_401 = arith.constant dense<0.000000e+00> : vector<2x128xf32>
    %1155 = tpu.matmul %1153, %1154, %cst_401 {dimension_numbers = #tpu.dot_dimension_numbers<[1], [0], [0], [1], [0, 0, 1, 1], [], []>} : vector<2x128xbf16>, vector<128x128xbf16>, vector<2x128xf32> -> vector<2x128xf32>
    %c0_402 = arith.constant 0 : index
    %c0_403 = arith.constant 0 : index
    %1156 = vector.load %arg18[%c0_402, %c0_403] : memref<1x128xf32, #tpu.memory_space<vmem>>, vector<1x128xf32>
    %1157 = vector.broadcast %1156 : vector<1x128xf32> to vector<2x128xf32>
    %1158 = arith.addf %1155, %1157 : vector<2x128xf32>
    %1159 = arith.negf %1158 : vector<2x128xf32>
    %1160 = math.exp %1159 : vector<2x128xf32>
    %cst_404 = arith.constant 1.000000e+00 : f32
    %1161 = vector.broadcast %cst_404 : f32 to vector<2x128xf32>
    %1162 = arith.addf %1161, %1160 : vector<2x128xf32>
    %1163 = arith.divf %1161, %1162 : vector<2x128xf32>
    %cst_405 = arith.constant 9.000000e+01 : f32
    %1164 = vector.broadcast %cst_405 : f32 to vector<2x128xf32>
    %1165 = arith.mulf %1163, %1164 : vector<2x128xf32>
    %c0_406 = arith.constant 0 : index
    %c0_407 = arith.constant 0 : index
    %1166 = vector.load %arg19[%c0_406, %c0_407] : memref<2x128xf32, #tpu.memory_space<vmem>>, vector<2x128xf32>
    tpu.vector_store %arg19[%c0_406, %c0_407], %1165 {strides = array<i32>} : memref<2x128xf32, #tpu.memory_space<vmem>>, vector<2x128xf32>,
    return
  }
  func.func @transform_0(%arg0: i32) -> (i32, i32) {
    %c0_i32 = arith.constant 0 : i32
    %c0_i32_0 = arith.constant 0 : i32
    %c0_i32_1 = arith.constant 0 : i32
    return %c0_i32, %c0_i32_0 : i32, i32
  }
  func.func @transform_1(%arg0: i32) -> (i32, i32) {
    %c0_i32 = arith.constant 0 : i32
    %c0_i32_0 = arith.constant 0 : i32
    %c0_i32_1 = arith.constant 0 : i32
    return %c0_i32, %c0_i32_0 : i32, i32
  }
  func.func @transform_2(%arg0: i32) -> (i32, i32) {
    %c0_i32 = arith.constant 0 : i32
    %c0_i32_0 = arith.constant 0 : i32
    %c0_i32_1 = arith.constant 0 : i32
    return %c0_i32, %c0_i32_0 : i32, i32
  }
  func.func @transform_3(%arg0: i32) -> (i32, i32) {
    %c0_i32 = arith.constant 0 : i32
    %c0_i32_0 = arith.constant 0 : i32
    %c0_i32_1 = arith.constant 0 : i32
    return %c0_i32, %c0_i32_0 : i32, i32
  }
  func.func @transform_4(%arg0: i32) -> (i32, i32) {
    %c0_i32 = arith.constant 0 : i32
    %c0_i32_0 = arith.constant 0 : i32
    %c0_i32_1 = arith.constant 0 : i32
    return %c0_i32, %c0_i32_0 : i32, i32
  }
  func.func @transform_5(%arg0: i32) -> (i32, i32) {
    %c0_i32 = arith.constant 0 : i32
    %c0_i32_0 = arith.constant 0 : i32
    %c0_i32_1 = arith.constant 0 : i32
    return %c0_i32, %c0_i32_0 : i32, i32
  }
  func.func @transform_6(%arg0: i32) -> (i32, i32) {
    %c0_i32 = arith.constant 0 : i32
    %c0_i32_0 = arith.constant 0 : i32
    %c0_i32_1 = arith.constant 0 : i32
    return %c0_i32, %c0_i32_0 : i32, i32
  }
  func.func @transform_7(%arg0: i32) -> (i32, i32) {
    %c0_i32 = arith.constant 0 : i32
    %c0_i32_0 = arith.constant 0 : i32
    %c0_i32_1 = arith.constant 0 : i32
    return %c0_i32, %c0_i32_0 : i32, i32
  }
  func.func @transform_8(%arg0: i32) -> (i32, i32) {
    %c0_i32 = arith.constant 0 : i32
    %c0_i32_0 = arith.constant 0 : i32
    %c0_i32_1 = arith.constant 0 : i32
    return %c0_i32, %c0_i32_0 : i32, i32
  }
  func.func @transform_9(%arg0: i32) -> (i32, i32) {
    %c0_i32 = arith.constant 0 : i32
    %c0_i32_0 = arith.constant 0 : i32
    %c0_i32_1 = arith.constant 0 : i32
    return %c0_i32, %c0_i32_0 : i32, i32
  }
  func.func @transform_10(%arg0: i32) -> (i32, i32) {
    %c0_i32 = arith.constant 0 : i32
    %c0_i32_0 = arith.constant 0 : i32
    %c0_i32_1 = arith.constant 0 : i32
    return %c0_i32, %c0_i32_0 : i32, i32
  }
  func.func @transform_11(%arg0: i32) -> (i32, i32) {
    %c0_i32 = arith.constant 0 : i32
    %c0_i32_0 = arith.constant 0 : i32
    %c0_i32_1 = arith.constant 0 : i32
    return %c0_i32, %c0_i32_0 : i32, i32
  }
  func.func @transform_12(%arg0: i32) -> (i32, i32) {
    %c0_i32 = arith.constant 0 : i32
    %c0_i32_0 = arith.constant 0 : i32
    %c0_i32_1 = arith.constant 0 : i32
    return %c0_i32, %c0_i32_0 : i32, i32
  }
  func.func @transform_13(%arg0: i32) -> (i32, i32) {
    %c0_i32 = arith.constant 0 : i32
    %c0_i32_0 = arith.constant 0 : i32
    %c0_i32_1 = arith.constant 0 : i32
    return %c0_i32, %c0_i32_0 : i32, i32
  }
  func.func @transform_14(%arg0: i32) -> (i32, i32) {
    %c0_i32 = arith.constant 0 : i32
    %c0_i32_0 = arith.constant 0 : i32
    %c0_i32_1 = arith.constant 0 : i32
    return %c0_i32, %c0_i32_0 : i32, i32
  }
  func.func @transform_15(%arg0: i32) -> (i32, i32) {
    %c0_i32 = arith.constant 0 : i32
    %c0_i32_0 = arith.constant 0 : i32
    %c0_i32_1 = arith.constant 0 : i32
    return %c0_i32, %c0_i32_0 : i32, i32
  }
  func.func @transform_16(%arg0: i32) -> (i32, i32) {
    %c0_i32 = arith.constant 0 : i32
    %c0_i32_0 = arith.constant 0 : i32
    %c0_i32_1 = arith.constant 0 : i32
    return %c0_i32, %c0_i32_0 : i32, i32
  }
  func.func @transform_17(%arg0: i32) -> (i32, i32) {
    %c0_i32 = arith.constant 0 : i32
    %c0_i32_0 = arith.constant 0 : i32
    %c0_i32_1 = arith.constant 0 : i32
    return %c0_i32, %c0_i32_0 : i32, i32
  }
  func.func @transform_18(%arg0: i32) -> (i32, i32) {
    %c0_i32 = arith.constant 0 : i32
    %c0_i32_0 = arith.constant 0 : i32
    %c0_i32_1 = arith.constant 0 : i32
    return %c0_i32, %c0_i32_0 : i32, i32
  }
}

</mosaic_0001>

<llo_original>
// kernel: transfer_learning_forward.1
$region0: #{transfer_learning_forward.1}
  #allocation0 [shape = 'u32[]', space=smem, size = 0x4, offset = 0x4, fixed_abs, tag = 'smem constant byte address 0x4 - core index']
  #allocation1 [shape = 'u32[144,128]{1,0:T(1,128)}', space=vmem, size = 0x12000, scoped, tag = 'internal scratch']
  #allocation2 [shape = 'f32[32,512]{1,0:T(8,128)}', space=vmem, size = 0x10000, scoped, tag = 'scratch operand']
  #allocation3 [shape = 'f32[32,512]{1,0:T(8,128)}', space=vmem, size = 0x10000, scoped, tag = 'scratch operand']
  #allocation4 [shape = 'f32[32,128]{1,0:T(8,128)}', space=vmem, size = 0x4000, scoped, tag = 'scratch operand']
  #allocation5 [shape = 'f32[18,128]{1,0:T(8,128)}', space=vmem, size = 0x3000, scoped, tag = 'scratch operand']
  %s0 = inlined_call_operand.vmem [shape: bf16[32,40], index: 0, kind: input, shape index: {}]
  %s1 = inlined_call_operand.hbm [shape: bf16[40,128], index: 1, kind: input, shape index: {}]
  %s2 = inlined_call_operand.vmem [shape: f32[1,128], index: 2, kind: input, shape index: {}]
  %s3 = inlined_call_operand.hbm [shape: bf16[384,128], index: 3, kind: input, shape index: {}]
  %s4 = inlined_call_operand.vmem [shape: f32[1,128], index: 4, kind: input, shape index: {}]
  %s5 = inlined_call_operand.vmem [shape: bf16[32,8], index: 5, kind: input, shape index: {}]
  %s6 = inlined_call_operand.hbm [shape: bf16[8,512], index: 6, kind: input, shape index: {}]
  %s7 = inlined_call_operand.vmem [shape: bf16[128,512], index: 7, kind: input, shape index: {}]
  %s8 = inlined_call_operand.vmem [shape: f32[1,512], index: 8, kind: input, shape index: {}]
  %s9 = inlined_call_operand.hbm [shape: bf16[128,512], index: 9, kind: input, shape index: {}]
  %s10 = inlined_call_operand.vmem [shape: bf16[128,512], index: 10, kind: input, shape index: {}]
  %s11 = inlined_call_operand.hbm [shape: bf16[128,512], index: 11, kind: input, shape index: {}]
  %s12 = inlined_call_operand.vmem [shape: f32[1,512], index: 12, kind: input, shape index: {}]
  %s13 = inlined_call_operand.hbm [shape: bf16[128,128], index: 13, kind: input, shape index: {}]
  %s14 = inlined_call_operand.hbm [shape: bf16[128,128], index: 14, kind: input, shape index: {}]
  %s15 = inlined_call_operand.vmem [shape: f32[1,128], index: 15, kind: input, shape index: {}]
  %s16 = inlined_call_operand.hbm [shape: bf16[128,128], index: 16, kind: input, shape index: {}]
  %s17 = inlined_call_operand.vmem [shape: f32[1,128], index: 17, kind: input, shape index: {}]
  %s18 = inlined_call_operand.hbm [shape: f32[2,128], index: 18, kind: output, shape index: {}]
  %s19 = sld [smem:[#allocation0]]
  $region114: #{transfer_learning_forward.1} parent=0
    _
  %s21 = ssub.s32 1, %s19
  %s22 = scalar_select 0, %s21, %s19
  $region1: #{transfer_learning_forward.1} parent=0
    #allocation6 [shape = 'u8[10240]{0}', space=vmem, size = 0x2800, scoped, tag = 'input window, operand 1, single buffered']
    #allocation7 [shape = 's32[1]{0}', space=sflag, size = 0x4, scoped, tag = 'scoped memory for transfer_learning_forward.1']
    #allocation8 [shape = 's32[1]{0}', space=sflag, size = 0x4, scoped, tag = 'scoped memory for transfer_learning_forward.1']
    #allocation9 [shape = 'u8[98304]{0}', space=vmem, size = 0x18000, scoped, tag = 'input window, operand 3, single buffered']
    #allocation10 [shape = 's32[1]{0}', space=sflag, size = 0x4, scoped, tag = 'scoped memory for transfer_learning_forward.1']
    #allocation11 [shape = 'u8[8192]{0}', space=vmem, size = 0x2000, scoped, tag = 'input window, operand 6, single buffered']
    #allocation12 [shape = 'u8[131072]{0}', space=vmem, size = 0x20000, scoped, tag = 'input window, operand 9, single buffered']
    #allocation13 [shape = 's32[1]{0}', space=sflag, size = 0x4, scoped, tag = 'scoped memory for transfer_learning_forward.1']
    #allocation14 [shape = 'u8[131072]{0}', space=vmem, size = 0x20000, scoped, tag = 'input window, operand 11, single buffered']
    #allocation15 [shape = 'u8[32768]{0}', space=vmem, size = 0x8000, scoped, tag = 'input window, operand 13, single buffered']
    #allocation16 [shape = 's32[1]{0}', space=sflag, size = 0x4, scoped, tag = 'scoped memory for transfer_learning_forward.1']
    #allocation17 [shape = 'u8[32768]{0}', space=vmem, size = 0x8000, scoped, tag = 'input window, operand 14, single buffered']
    #allocation18 [shape = 'u8[32768]{0}', space=vmem, size = 0x8000, scoped, tag = 'input window, operand 16, single buffered']
    #allocation19 [shape = 's32[1]{0}', space=sflag, size = 0x4, scoped, tag = 'scoped memory for transfer_learning_forward.1']
    #allocation20 [shape = 'u8[1024]{0}', space=vmem, size = 0x400, scoped, tag = 'output window, operand 0, single buffered']
    %23 = vsyncpa [#allocation7], 0
    %24 = vsyncpa [#allocation10], 0
    %25 = vsyncpa [#allocation13], 0
    %26 = vsyncpa [#allocation16], 0
    %27 = vsyncpa [#allocation19], 0
    %28 = vsyncpa [#allocation8], 0
    // Predicated region
    $region2: #{transfer_learning_forward.1} parent=1 // pred_check
      _
    $region3: #{transfer_learning_forward.1} parent=1 // pred_check_branch
      %30 = sbr.rel (0) target = $region5
    $region4: #{transfer_learning_forward.1} parent=1 // pred_region
      _
    $region5: #{transfer_learning_forward.1} parent=1 // pred_fallthru
      _
    // Predicated region
    $region6: #{transfer_learning_forward.1} parent=1 // pred_check
      _
    $region7: #{transfer_learning_forward.1} parent=1 // pred_check_branch
      %32 = sbr.rel (0) target = $region9
    $region8: #{transfer_learning_forward.1} parent=1 // pred_region
      %s34 = ssub.s32 320, 320
      %35 = vsyncadd [#allocation7], %s34
      %s36 = sshll.u32 [#allocation6], 4
      %s37 = int_to_ptr.vmem [resolvable:$true] %s36
      %42 = dma.hbm_to_vmem [thread:$0]  %s1, 320, %s37, [#allocation7], 64, 64, 4
    $region9: #{transfer_learning_forward.1} parent=1 // pred_fallthru
      _
    // Predicated region
    $region10: #{transfer_learning_forward.1} parent=1 // pred_check
      _
    $region11: #{transfer_learning_forward.1} parent=1 // pred_check_branch
      %44 = sbr.rel (0) target = $region13
    $region12: #{transfer_learning_forward.1} parent=1 // pred_region
      _
    $region13: #{transfer_learning_forward.1} parent=1 // pred_fallthru
      _
    // Predicated region
    $region14: #{transfer_learning_forward.1} parent=1 // pred_check
      _
    $region15: #{transfer_learning_forward.1} parent=1 // pred_check_branch
      %46 = sbr.rel (0) target = $region17
    $region16: #{transfer_learning_forward.1} parent=1 // pred_region
      %s48 = ssub.s32 3072, 3072
      %49 = vsyncadd [#allocation10], %s48
      %s50 = sshll.u32 [#allocation9], 4
      %s51 = int_to_ptr.vmem [resolvable:$true] %s50
      %56 = dma.hbm_to_vmem [thread:$0]  %s3, 3072, %s51, [#allocation10], 64, 64, 4
    $region17: #{transfer_learning_forward.1} parent=1 // pred_fallthru
      _
    // Predicated region
    $region18: #{transfer_learning_forward.1} parent=1 // pred_check
      _
    $region19: #{transfer_learning_forward.1} parent=1 // pred_check_branch
      %58 = sbr.rel (0) target = $region21
    $region20: #{transfer_learning_forward.1} parent=1 // pred_region
      _
    $region21: #{transfer_learning_forward.1} parent=1 // pred_fallthru
      _
    // Predicated region
    $region22: #{transfer_learning_forward.1} parent=1 // pred_check
      _
    $region23: #{transfer_learning_forward.1} parent=1 // pred_check_branch
      %60 = sbr.rel (0) target = $region25
    $region24: #{transfer_learning_forward.1} parent=1 // pred_region
      _
    $region25: #{transfer_learning_forward.1} parent=1 // pred_fallthru
      _
    // Predicated region
    $region26: #{transfer_learning_forward.1} parent=1 // pred_check
      _
    $region27: #{transfer_learning_forward.1} parent=1 // pred_check_branch
      %62 = sbr.rel (0) target = $region29
    $region28: #{transfer_learning_forward.1} parent=1 // pred_region
      %s64 = ssub.s32 256, 256
      %65 = vsyncadd [#allocation10], %s64
      %s67 = sshll.u32 [#allocation11], 4
      %s68 = int_to_ptr.vmem [resolvable:$true] %s67
      %70 = dma.hbm_to_vmem [thread:$0]  %s6, 256, %s68, [#allocation10]
    $region29: #{transfer_learning_forward.1} parent=1 // pred_fallthru
      _
    // Predicated region
    $region30: #{transfer_learning_forward.1} parent=1 // pred_check
      _
    $region31: #{transfer_learning_forward.1} parent=1 // pred_check_branch
      %72 = sbr.rel (0) target = $region33
    $region32: #{transfer_learning_forward.1} parent=1 // pred_region
      _
    $region33: #{transfer_learning_forward.1} parent=1 // pred_fallthru
      _
    // Predicated region
    $region34: #{transfer_learning_forward.1} parent=1 // pred_check
      _
    $region35: #{transfer_learning_forward.1} parent=1 // pred_check_branch
      %74 = sbr.rel (0) target = $region37
    $region36: #{transfer_learning_forward.1} parent=1 // pred_region
      _
    $region37: #{transfer_learning_forward.1} parent=1 // pred_fallthru
      _
    // Predicated region
    $region38: #{transfer_learning_forward.1} parent=1 // pred_check
      _
    $region39: #{transfer_learning_forward.1} parent=1 // pred_check_branch
      %76 = sbr.rel (0) target = $region41
    $region40: #{transfer_learning_forward.1} parent=1 // pred_region
      %s78 = ssub.s32 4096, 4096
      %79 = vsyncadd [#allocation13], %s78
      %s80 = sshll.u32 [#allocation12], 4
      %s81 = int_to_ptr.vmem [resolvable:$true] %s80
      %86 = dma.hbm_to_vmem [thread:$0]  %s9, 4096, %s81, [#allocation13], 256, 256, 16
    $region41: #{transfer_learning_forward.1} parent=1 // pred_fallthru
      _
    // Predicated region
    $region42: #{transfer_learning_forward.1} parent=1 // pred_check
      _
    $region43: #{transfer_learning_forward.1} parent=1 // pred_check_branch
      %88 = sbr.rel (0) target = $region45
    $region44: #{transfer_learning_forward.1} parent=1 // pred_region
      _
    $region45: #{transfer_learning_forward.1} parent=1 // pred_fallthru
      _
    // Predicated region
    $region46: #{transfer_learning_forward.1} parent=1 // pred_check
      _
    $region47: #{transfer_learning_forward.1} parent=1 // pred_check_branch
      %90 = sbr.rel (0) target = $region49
    $region48: #{transfer_learning_forward.1} parent=1 // pred_region
      %s92 = ssub.s32 4096, 4096
      %93 = vsyncadd [#allocation13], %s92
      %s94 = sshll.u32 [#allocation14], 4
      %s95 = int_to_ptr.vmem [resolvable:$true] %s94
      %100 = dma.hbm_to_vmem [thread:$0]  %s11, 4096, %s95, [#allocation13], 256, 256, 16
    $region49: #{transfer_learning_forward.1} parent=1 // pred_fallthru
      _
    // Predicated region
    $region50: #{transfer_learning_forward.1} parent=1 // pred_check
      _
    $region51: #{transfer_learning_forward.1} parent=1 // pred_check_branch
      %102 = sbr.rel (0) target = $region53
    $region52: #{transfer_learning_forward.1} parent=1 // pred_region
      _
    $region53: #{transfer_learning_forward.1} parent=1 // pred_fallthru
      _
    // Predicated region
    $region54: #{transfer_learning_forward.1} parent=1 // pred_check
      _
    $region55: #{transfer_learning_forward.1} parent=1 // pred_check_branch
      %104 = sbr.rel (0) target = $region57
    $region56: #{transfer_learning_forward.1} parent=1 // pred_region
      %s106 = ssub.s32 1024, 1024
      %107 = vsyncadd [#allocation16], %s106
      %s108 = sshll.u32 [#allocation15], 4
      %s109 = int_to_ptr.vmem [resolvable:$true] %s108
      %114 = dma.hbm_to_vmem [thread:$0]  %s13, 1024, %s109, [#allocation16], 64, 64, 4
    $region57: #{transfer_learning_forward.1} parent=1 // pred_fallthru
      _
    // Predicated region
    $region58: #{transfer_learning_forward.1} parent=1 // pred_check
      _
    $region59: #{transfer_learning_forward.1} parent=1 // pred_check_branch
      %116 = sbr.rel (0) target = $region61
    $region60: #{transfer_learning_forward.1} parent=1 // pred_region
      %s118 = ssub.s32 1024, 1024
      %119 = vsyncadd [#allocation16], %s118
      %s120 = sshll.u32 [#allocation17], 4
      %s121 = int_to_ptr.vmem [resolvable:$true] %s120
      %126 = dma.hbm_to_vmem [thread:$0]  %s14, 1024, %s121, [#allocation16], 64, 64, 4
    $region61: #{transfer_learning_forward.1} parent=1 // pred_fallthru
      _
    // Predicated region
    $region62: #{transfer_learning_forward.1} parent=1 // pred_check
      _
    $region63: #{transfer_learning_forward.1} parent=1 // pred_check_branch
      %128 = sbr.rel (0) target = $region65
    $region64: #{transfer_learning_forward.1} parent=1 // pred_region
      _
    $region65: #{transfer_learning_forward.1} parent=1 // pred_fallthru
      _
    // Predicated region
    $region66: #{transfer_learning_forward.1} parent=1 // pred_check
      _
    $region67: #{transfer_learning_forward.1} parent=1 // pred_check_branch
      %130 = sbr.rel (0) target = $region69
    $region68: #{transfer_learning_forward.1} parent=1 // pred_region
      %s132 = ssub.s32 1024, 1024
      %133 = vsyncadd [#allocation19], %s132
      %s134 = sshll.u32 [#allocation18], 4
      %s135 = int_to_ptr.vmem [resolvable:$true] %s134
      %140 = dma.hbm_to_vmem [thread:$0]  %s16, 1024, %s135, [#allocation19], 64, 64, 4
    $region69: #{transfer_learning_forward.1} parent=1 // pred_fallthru
      _
    // Predicated region
    $region70: #{transfer_learning_forward.1} parent=1 // pred_check
      _
    $region71: #{transfer_learning_forward.1} parent=1 // pred_check_branch
      %142 = sbr.rel (0) target = $region73
    $region72: #{transfer_learning_forward.1} parent=1 // pred_region
      _
    $region73: #{transfer_learning_forward.1} parent=1 // pred_fallthru
      _
    // Predicated region
    $region74: #{transfer_learning_forward.1} parent=1 // pred_check
      _
    $region75: #{transfer_learning_forward.1} parent=1 // pred_check_branch
      %144 = sbr.rel (0) target = $region77
    $region76: #{transfer_learning_forward.1} parent=1 // pred_region
      %145 = dma.done [#allocation7], 320
    $region77: #{transfer_learning_forward.1} parent=1 // pred_fallthru
      _
    // Predicated region
    $region78: #{transfer_learning_forward.1} parent=1 // pred_check
      _
    $region79: #{transfer_learning_forward.1} parent=1 // pred_check_branch
      %147 = sbr.rel (0) target = $region81
    $region80: #{transfer_learning_forward.1} parent=1 // pred_region
      %148 = dma.done [#allocation10], 3072
    $region81: #{transfer_learning_forward.1} parent=1 // pred_fallthru
      _
    // Predicated region
    $region82: #{transfer_learning_forward.1} parent=1 // pred_check
      _
    $region83: #{transfer_learning_forward.1} parent=1 // pred_check_branch
      %150 = sbr.rel (0) target = $region85
    $region84: #{transfer_learning_forward.1} parent=1 // pred_region
      %151 = dma.done [#allocation10], 256
    $region85: #{transfer_learning_forward.1} parent=1 // pred_fallthru
      _
    // Predicated region
    $region86: #{transfer_learning_forward.1} parent=1 // pred_check
      _
    $region87: #{transfer_learning_forward.1} parent=1 // pred_check_branch
      %153 = sbr.rel (0) target = $region89
    $region88: #{transfer_learning_forward.1} parent=1 // pred_region
      %154 = dma.done [#allocation13], 4096
    $region89: #{transfer_learning_forward.1} parent=1 // pred_fallthru
      _
    // Predicated region
    $region90: #{transfer_learning_forward.1} parent=1 // pred_check
      _
    $region91: #{transfer_learning_forward.1} parent=1 // pred_check_branch
      %156 = sbr.rel (0) target = $region93
    $region92: #{transfer_learning_forward.1} parent=1 // pred_region
      %157 = dma.done [#allocation13], 4096
    $region93: #{transfer_learning_forward.1} parent=1 // pred_fallthru
      _
    // Predicated region
    $region94: #{transfer_learning_forward.1} parent=1 // pred_check
      _
    $region95: #{transfer_learning_forward.1} parent=1 // pred_check_branch
      %159 = sbr.rel (0) target = $region97
    $region96: #{transfer_learning_forward.1} parent=1 // pred_region
      %160 = dma.done [#allocation16], 1024
    $region97: #{transfer_learning_forward.1} parent=1 // pred_fallthru
      _
    // Predicated region
    $region98: #{transfer_learning_forward.1} parent=1 // pred_check
      _
    $region99: #{transfer_learning_forward.1} parent=1 // pred_check_branch
      %162 = sbr.rel (0) target = $region101
    $region100: #{transfer_learning_forward.1} parent=1 // pred_region
      %163 = dma.done [#allocation16], 1024
    $region101: #{transfer_learning_forward.1} parent=1 // pred_fallthru
      _
    // Predicated region
    $region102: #{transfer_learning_forward.1} parent=1 // pred_check
      _
    $region103: #{transfer_learning_forward.1} parent=1 // pred_check_branch
      %165 = sbr.rel (0) target = $region105
    $region104: #{transfer_learning_forward.1} parent=1 // pred_region
      %166 = dma.done [#allocation19], 1024
    $region105: #{transfer_learning_forward.1} parent=1 // pred_fallthru
      _
    %v168 = vlaneseq
    %v169 = vand.u32 %v168, 127
    %v170 = vadd.s32 %v169, 128
    %v171 = vadd.s32 %v169, 256
    %v172 = vadd.s32 %v169, 384
    %v173 = vand.u32 %v169, 127
    %v174 = vand.u32 %v170, 127
    %v175 = vand.u32 %v171, 127
    %v176 = vand.u32 %v172, 127
    %vm177 = vcmp.lt.s32.totalorder %v173, 64
    %vm178 = vcmp.lt.s32.totalorder %v174, 64
    %vm179 = vcmp.lt.s32.totalorder %v175, 64
    %vm180 = vcmp.lt.s32.totalorder %v176, 64
    %vm181 = vcmp.lt.s32.totalorder %v169, 64
    %v182 = vld [vmem:[%s5] sm:$0xf]
    %v183 = vld [vmem:[%s5 + $0x4] sm:$0xf]
    %v184 = vld [vmem:[%s5 + $0x8] sm:$0xf]
    %v185 = vld [vmem:[%s5 + $0xc] sm:$0xf]
    %v186 = vld [vmem:[#allocation11] sm:$0xff]
    %v187 = vld [vmem:[#allocation11 + $0x8] sm:$0xff]
    %v188 = vld [vmem:[%s8] sm:$0xf]
    %v190 = vlaneseq
    %v191 = vshrl.u32 %v190, 7
    %v192 = vsub.s32 0, %v191
    %v193 = vrot.slane %v188, %v192
    %v194 = vlaneseq
    %v195 = vshrl.u32 %v194, 7
    %v196 = vsub.s32 1, %v195
    %v197 = vrot.slane %v188, %v196
    %v198 = vlaneseq
    %v199 = vshrl.u32 %v198, 7
    %v200 = vsub.s32 2, %v199
    %v201 = vrot.slane %v188, %v200
    %v202 = vlaneseq
    %v203 = vshrl.u32 %v202, 7
    %v204 = vsub.s32 3, %v203
    %v205 = vrot.slane %v188, %v204
    %v214 = vunpack.c.l.b16 %v182
    %v215 = vunpack.c.l.b16 %v183
    %v216 = vunpack.c.l.b16 %v184
    %v217 = vunpack.c.l.b16 %v185
    %v218 = vpack.c.b16 %v215, %v214
    %v219 = vpack.c.b16 %v217, %v216
    %v222 = vunpack.c.l.b16 %v186
    %v223 = vunpack.c.h.b16 %v186
    %v224 = vunpack.c.l.b16 %v187
    %v225 = vunpack.c.h.b16 %v187
    %v226 = vpack.c.b16 %v222, %v222
    %v227 = vpack.c.b16 %v223, %v223
    %v228 = vpack.c.b16 %v224, %v224
    %v229 = vpack.c.b16 %v225, %v225
    %vm230 = vcmask 64512
    %v232 = vsel %vm230, %v218, 0
    %v235 = vsel %vm230, %v219, 0
    %vm237 = vcmask 1043456
    %v239 = vsel %vm237, %v226, 0
    %v242 = vsel %vm237, %v227, 0
    %v245 = vsel %vm237, %v228, 0
    %v248 = vsel %vm237, %v229, 0
    %250 = vmatprep.subr.bf16.mxu0 0
    %251 = vmatpush1.bf16.msra.mxu0 0
    %252 = vmatprep.subr.bf16.mxu0 0
    %253 = vmatpush1.bf16.msra.mxu0 0
    %254 = vmatprep.subr.bf16.mxu0 0
    %255 = vmatpush1.bf16.msra.mxu0 0
    %256 = vmatprep.subr.bf16.mxu0 0
    %257 = vmatpush1.bf16.msra.mxu0 0
    %258 = vmatprep.subr.bf16.mxu0 0
    %259 = vmatpush1.bf16.msra.mxu0 0
    %260 = vmatprep.subr.bf16.mxu0 0
    %261 = vmatpush1.bf16.msra.mxu0 0
    %262 = vmatprep.subr.bf16.mxu0 0
    %263 = vmatpush1.bf16.msra.mxu0 0
    %264 = vmatprep.subr.bf16.mxu0 %v242
    %265 = vmatpush1.bf16.msra.mxu0 %v239
    %266 = vmatprep.subr.bf16.mxu0 0
    %267 = vmatpush2.bf16.msra.mxu0 0
    %268 = vmatprep.subr.bf16.mxu0 0
    %269 = vmatpush2.bf16.msra.mxu0 0
    %270 = vmatprep.subr.bf16.mxu0 0
    %271 = vmatpush2.bf16.msra.mxu0 0
    %272 = vmatprep.subr.bf16.mxu0 0
    %273 = vmatpush2.bf16.msra.mxu0 0
    %274 = vmatprep.subr.bf16.mxu0 0
    %275 = vmatpush2.bf16.msra.mxu0 0
    %276 = vmatprep.subr.bf16.mxu0 0
    %277 = vmatpush2.bf16.msra.mxu0 0
    %278 = vmatprep.subr.bf16.mxu0 0
    %279 = vmatpush2.bf16.msra.mxu0 0
    %280 = vmatprep.subr.bf16.mxu0 0
    %281 = vmatpush2.bf16.msra.mxu0 0
    %282 = vmatprep.mubr.bf16.mxu0 0
    %283 = vmatmul.mubr.bf16.gmra.mxu0 %v232
    %v284 = vpop.f32.mrf.mxu0
    %v285 = vadd.f32 %v193, %v284
    %v286 = vpop.f32.mrf.mxu0
    %v287 = vadd.f32 %v197, %v286
    %v288 = vpop.f32.mrf.mxu0
    %v289 = vadd.f32 %v193, %v288
    %v290 = vpop.f32.mrf.mxu0
    %v291 = vadd.f32 %v197, %v290
    %292 = vmatprep.mubr.bf16.mxu0 0
    %293 = vmatmul.mubr.bf16.gmra.mxu0 %v235
    %v294 = vpop.f32.mrf.mxu0
    %v295 = vadd.f32 %v193, %v294
    %v296 = vpop.f32.mrf.mxu0
    %v297 = vadd.f32 %v197, %v296
    %v298 = vpop.f32.mrf.mxu0
    %v299 = vadd.f32 %v193, %v298
    %v300 = vpop.f32.mrf.mxu0
    %v301 = vadd.f32 %v197, %v300
    %302 = vdwg.mxu0
    %303 = vmatprep.subr.bf16.mxu0 0
    %304 = vmatpush1.bf16.msra.mxu0 0
    %305 = vmatprep.subr.bf16.mxu0 0
    %306 = vmatpush1.bf16.msra.mxu0 0
    %307 = vmatprep.subr.bf16.mxu0 0
    %308 = vmatpush1.bf16.msra.mxu0 0
    %309 = vmatprep.subr.bf16.mxu0 0
    %310 = vmatpush1.bf16.msra.mxu0 0
    %311 = vmatprep.subr.bf16.mxu0 0
    %312 = vmatpush1.bf16.msra.mxu0 0
    %313 = vmatprep.subr.bf16.mxu0 0
    %314 = vmatpush1.bf16.msra.mxu0 0
    %315 = vmatprep.subr.bf16.mxu0 0
    %316 = vmatpush1.bf16.msra.mxu0 0
    %317 = vmatprep.subr.bf16.mxu0 %v248
    %318 = vmatpush1.bf16.msra.mxu0 %v245
    %319 = vmatprep.subr.bf16.mxu0 0
    %320 = vmatpush2.bf16.msra.mxu0 0
    %321 = vmatprep.subr.bf16.mxu0 0
    %322 = vmatpush2.bf16.msra.mxu0 0
    %323 = vmatprep.subr.bf16.mxu0 0
    %324 = vmatpush2.bf16.msra.mxu0 0
    %325 = vmatprep.subr.bf16.mxu0 0
    %326 = vmatpush2.bf16.msra.mxu0 0
    %327 = vmatprep.subr.bf16.mxu0 0
    %328 = vmatpush2.bf16.msra.mxu0 0
    %329 = vmatprep.subr.bf16.mxu0 0
    %330 = vmatpush2.bf16.msra.mxu0 0
    %331 = vmatprep.subr.bf16.mxu0 0
    %332 = vmatpush2.bf16.msra.mxu0 0
    %333 = vmatprep.subr.bf16.mxu0 0
    %334 = vmatpush2.bf16.msra.mxu0 0
    %335 = vmatprep.mubr.bf16.mxu0 0
    %336 = vmatmul.mubr.bf16.gmra.mxu0 %v232
    %v337 = vpop.f32.mrf.mxu0
    %v338 = vadd.f32 %v201, %v337
    %v339 = vpop.f32.mrf.mxu0
    %v340 = vadd.f32 %v205, %v339
    %v341 = vpop.f32.mrf.mxu0
    %v342 = vadd.f32 %v201, %v341
    %v343 = vpop.f32.mrf.mxu0
    %v344 = vadd.f32 %v205, %v343
    %345 = vmatprep.mubr.bf16.mxu0 0
    %346 = vmatmul.mubr.bf16.gmra.mxu0 %v235
    %v347 = vpop.f32.mrf.mxu0
    %v348 = vadd.f32 %v201, %v347
    %v349 = vpop.f32.mrf.mxu0
    %v350 = vadd.f32 %v205, %v349
    %v351 = vpop.f32.mrf.mxu0
    %v352 = vadd.f32 %v201, %v351
    %v353 = vpop.f32.mrf.mxu0
    %v354 = vadd.f32 %v205, %v353
    %355 = vdwg.mxu0
    %356 = vst [vmem:[#allocation2] sm:$0xff] %v285
    %357 = vst [vmem:[#allocation2 + $0x8] sm:$0xff] %v287
    %358 = vst [vmem:[#allocation2 + $0x10] sm:$0xff] %v338
    %359 = vst [vmem:[#allocation2 + $0x18] sm:$0xff] %v340
    %360 = vst [vmem:[#allocation2 + $0x20] sm:$0xff] %v289
    %361 = vst [vmem:[#allocation2 + $0x28] sm:$0xff] %v291
    %362 = vst [vmem:[#allocation2 + $0x30] sm:$0xff] %v342
    %363 = vst [vmem:[#allocation2 + $0x38] sm:$0xff] %v344
    %364 = vst [vmem:[#allocation2 + $0x40] sm:$0xff] %v295
    %365 = vst [vmem:[#allocation2 + $0x48] sm:$0xff] %v297
    %366 = vst [vmem:[#allocation2 + $0x50] sm:$0xff] %v348
    %367 = vst [vmem:[#allocation2 + $0x58] sm:$0xff] %v350
    %368 = vst [vmem:[#allocation2 + $0x60] sm:$0xff] %v299
    %369 = vst [vmem:[#allocation2 + $0x68] sm:$0xff] %v301
    %370 = vst [vmem:[#allocation2 + $0x70] sm:$0xff] %v352
    %371 = vst [vmem:[#allocation2 + $0x78] sm:$0xff] %v354
    %v372 = vld [vmem:[%s7] sm:$0xff]
    %v373 = vld [vmem:[%s7 + $0x8] sm:$0xff]
    %v374 = vld [vmem:[%s7 + $0x10] sm:$0xff]
    %v375 = vld [vmem:[%s7 + $0x18] sm:$0xff]
    %v376 = vld [vmem:[%s7 + $0x20] sm:$0xff]
    %v377 = vld [vmem:[%s7 + $0x28] sm:$0xff]
    %v378 = vld [vmem:[%s7 + $0x30] sm:$0xff]
    %v379 = vld [vmem:[%s7 + $0x38] sm:$0xff]
    %v380 = vld [vmem:[%s7 + $0x40] sm:$0xff]
    %v381 = vld [vmem:[%s7 + $0x48] sm:$0xff]
    %v382 = vld [vmem:[%s7 + $0x50] sm:$0xff]
    %v383 = vld [vmem:[%s7 + $0x58] sm:$0xff]
    %v384 = vld [vmem:[%s7 + $0x60] sm:$0xff]
    %v385 = vld [vmem:[%s7 + $0x68] sm:$0xff]
    %v386 = vld [vmem:[%s7 + $0x70] sm:$0xff]
    %v387 = vld [vmem:[%s7 + $0x78] sm:$0xff]
    %v388 = vld [vmem:[%s7 + $0x80] sm:$0xff]
    %v389 = vld [vmem:[%s7 + $0x88] sm:$0xff]
    %v390 = vld [vmem:[%s7 + $0x90] sm:$0xff]
    %v391 = vld [vmem:[%s7 + $0x98] sm:$0xff]
    %v392 = vld [vmem:[%s7 + $0xa0] sm:$0xff]
    %v393 = vld [vmem:[%s7 + $0xa8] sm:$0xff]
    %v394 = vld [vmem:[%s7 + $0xb0] sm:$0xff]
    %v395 = vld [vmem:[%s7 + $0xb8] sm:$0xff]
    %v396 = vld [vmem:[%s7 + $0xc0] sm:$0xff]
    %v397 = vld [vmem:[%s7 + $0xc8] sm:$0xff]
    %v398 = vld [vmem:[%s7 + $0xd0] sm:$0xff]
    %v399 = vld [vmem:[%s7 + $0xd8] sm:$0xff]
    %v400 = vld [vmem:[%s7 + $0xe0] sm:$0xff]
    %v401 = vld [vmem:[%s7 + $0xe8] sm:$0xff]
    %v402 = vld [vmem:[%s7 + $0xf0] sm:$0xff]
    %v403 = vld [vmem:[%s7 + $0xf8] sm:$0xff]
    %v404 = vld [vmem:[#allocation2] sm:$0x3]
    %v405 = vld [vmem:[#allocation2 + $0x8] sm:$0x3]
    %v406 = vld [vmem:[#allocation2 + $0x10] sm:$0x3]
    %v407 = vld [vmem:[#allocation2 + $0x18] sm:$0x3]
    %v408 = vld [vmem:[#allocation2 + $0x60] sm:$0xc0]
    %v409 = vld [vmem:[#allocation2 + $0x68] sm:$0xc0]
    %v410 = vld [vmem:[#allocation2 + $0x70] sm:$0xc0]
    %v411 = vld [vmem:[#allocation2 + $0x78] sm:$0xc0]
    %v416 = vrot.slane %v408, 6
    %v417 = vrot.slane %v409, 6
    %v418 = vrot.slane %v410, 6
    %v419 = vrot.slane %v411, 6
    %v424 = vsel %vm177, %v404, %v416
    %v425 = vsel %vm178, %v405, %v417
    %v426 = vsel %vm179, %v406, %v418
    %v427 = vsel %vm180, %v407, %v419
    %v460 = vunpack.c.l.b16 %v372
    %v461 = vunpack.c.h.b16 %v372
    %v462 = vunpack.c.l.b16 %v373
    %v463 = vunpack.c.h.b16 %v373
    %v464 = vunpack.c.l.b16 %v374
    %v465 = vunpack.c.h.b16 %v374
    %v466 = vunpack.c.l.b16 %v375
    %v467 = vunpack.c.h.b16 %v375
    %v468 = vunpack.c.l.b16 %v376
    %v469 = vunpack.c.h.b16 %v376
    %v470 = vunpack.c.l.b16 %v377
    %v471 = vunpack.c.h.b16 %v377
    %v472 = vunpack.c.l.b16 %v378
    %v473 = vunpack.c.h.b16 %v378
    %v474 = vunpack.c.l.b16 %v379
    %v475 = vunpack.c.h.b16 %v379
    %v476 = vunpack.c.l.b16 %v380
    %v477 = vunpack.c.h.b16 %v380
    %v478 = vunpack.c.l.b16 %v381
    %v479 = vunpack.c.h.b16 %v381
    %v480 = vunpack.c.l.b16 %v382
    %v481 = vunpack.c.h.b16 %v382
    %v482 = vunpack.c.l.b16 %v383
    %v483 = vunpack.c.h.b16 %v383
    %v484 = vunpack.c.l.b16 %v384
    %v485 = vunpack.c.h.b16 %v384
    %v486 = vunpack.c.l.b16 %v385
    %v487 = vunpack.c.h.b16 %v385
    %v488 = vunpack.c.l.b16 %v386
    %v489 = vunpack.c.h.b16 %v386
    %v490 = vunpack.c.l.b16 %v387
    %v491 = vunpack.c.h.b16 %v387
    %v492 = vunpack.c.l.b16 %v388
    %v493 = vunpack.c.h.b16 %v388
    %v494 = vunpack.c.l.b16 %v389
    %v495 = vunpack.c.h.b16 %v389
    %v496 = vunpack.c.l.b16 %v390
    %v497 = vunpack.c.h.b16 %v390
    %v498 = vunpack.c.l.b16 %v391
    %v499 = vunpack.c.h.b16 %v391
    %v500 = vunpack.c.l.b16 %v392
    %v501 = vunpack.c.h.b16 %v392
    %v502 = vunpack.c.l.b16 %v393
    %v503 = vunpack.c.h.b16 %v393
    %v504 = vunpack.c.l.b16 %v394
    %v505 = vunpack.c.h.b16 %v394
    %v506 = vunpack.c.l.b16 %v395
    %v507 = vunpack.c.h.b16 %v395
    %v508 = vunpack.c.l.b16 %v396
    %v509 = vunpack.c.h.b16 %v396
    %v510 = vunpack.c.l.b16 %v397
    %v511 = vunpack.c.h.b16 %v397
    %v512 = vunpack.c.l.b16 %v398
    %v513 = vunpack.c.h.b16 %v398
    %v514 = vunpack.c.l.b16 %v399
    %v515 = vunpack.c.h.b16 %v399
    %v516 = vunpack.c.l.b16 %v400
    %v517 = vunpack.c.h.b16 %v400
    %v518 = vunpack.c.l.b16 %v401
    %v519 = vunpack.c.h.b16 %v401
    %v520 = vunpack.c.l.b16 %v402
    %v521 = vunpack.c.h.b16 %v402
    %v522 = vunpack.c.l.b16 %v403
    %v523 = vunpack.c.h.b16 %v403
    %v524 = vpack.c.b16 %v464, %v460
    %v525 = vpack.c.b16 %v465, %v461
    %v526 = vpack.c.b16 %v466, %v462
    %v527 = vpack.c.b16 %v467, %v463
    %v528 = vpack.c.b16 %v472, %v468
    %v529 = vpack.c.b16 %v473, %v469
    %v530 = vpack.c.b16 %v474, %v470
    %v531 = vpack.c.b16 %v475, %v471
    %v532 = vpack.c.b16 %v480, %v476
    %v533 = vpack.c.b16 %v481, %v477
    %v534 = vpack.c.b16 %v482, %v478
    %v535 = vpack.c.b16 %v483, %v479
    %v536 = vpack.c.b16 %v488, %v484
    %v537 = vpack.c.b16 %v489, %v485
    %v538 = vpack.c.b16 %v490, %v486
    %v539 = vpack.c.b16 %v491, %v487
    %v540 = vpack.c.b16 %v496, %v492
    %v541 = vpack.c.b16 %v497, %v493
    %v542 = vpack.c.b16 %v498, %v494
    %v543 = vpack.c.b16 %v499, %v495
    %v544 = vpack.c.b16 %v504, %v500
    %v545 = vpack.c.b16 %v505, %v501
    %v546 = vpack.c.b16 %v506, %v502
    %v547 = vpack.c.b16 %v507, %v503
    %v548 = vpack.c.b16 %v512, %v508
    %v549 = vpack.c.b16 %v513, %v509
    %v550 = vpack.c.b16 %v514, %v510
    %v551 = vpack.c.b16 %v515, %v511
    %v552 = vpack.c.b16 %v520, %v516
    %v553 = vpack.c.b16 %v521, %v517
    %v554 = vpack.c.b16 %v522, %v518
    %v555 = vpack.c.b16 %v523, %v519
    %588 = vmatprep.subr.bf16.mxu0 %v553
    %589 = vmatpush1.bf16.msra.mxu0 %v552
    %590 = vmatprep.subr.bf16.mxu0 %v549
    %591 = vmatpush1.bf16.msra.mxu0 %v548
    %592 = vmatprep.subr.bf16.mxu0 %v545
    %593 = vmatpush1.bf16.msra.mxu0 %v544
    %594 = vmatprep.subr.bf16.mxu0 %v541
    %595 = vmatpush1.bf16.msra.mxu0 %v540
    %596 = vmatprep.subr.bf16.mxu0 %v537
    %597 = vmatpush1.bf16.msra.mxu0 %v536
    %598 = vmatprep.subr.bf16.mxu0 %v533
    %599 = vmatpush1.bf16.msra.mxu0 %v532
    %600 = vmatprep.subr.bf16.mxu0 %v529
    %601 = vmatpush1.bf16.msra.mxu0 %v528
    %602 = vmatprep.subr.bf16.mxu0 %v525
    %603 = vmatpush1.bf16.msra.mxu0 %v524
    %604 = vmatprep.subr.bf16.mxu0 0
    %605 = vmatpush2.bf16.msra.mxu0 0
    %606 = vmatprep.subr.bf16.mxu0 0
    %607 = vmatpush2.bf16.msra.mxu0 0
    %608 = vmatprep.subr.bf16.mxu0 0
    %609 = vmatpush2.bf16.msra.mxu0 0
    %610 = vmatprep.subr.bf16.mxu0 0
    %611 = vmatpush2.bf16.msra.mxu0 0
    %612 = vmatprep.subr.bf16.mxu0 0
    %613 = vmatpush2.bf16.msra.mxu0 0
    %614 = vmatprep.subr.bf16.mxu0 0
    %615 = vmatpush2.bf16.msra.mxu0 0
    %616 = vmatprep.subr.bf16.mxu0 0
    %617 = vmatpush2.bf16.msra.mxu0 0
    %618 = vmatprep.subr.bf16.mxu0 0
    %619 = vmatpush2.bf16.msra.mxu0 0
    %620 = vmatprep.mubr.bf16.mxu0 0
    %621 = vmatmul.mubr.bf16.gmra.mxu0 0
    %v622 = vpop.f32.mrf.mxu0
    %v623 = vadd.f32 0.0, %v622
    %v624 = vpop.f32.mrf.mxu0
    %v625 = vadd.f32 0.0, %v624
    %v626 = vpop.f32.mrf.mxu0
    %v627 = vpop.f32.mrf.mxu0
    %628 = vdwg.mxu0
    %629 = vmatprep.subr.bf16.mxu0 %v555
    %630 = vmatpush1.bf16.msra.mxu0 %v554
    %631 = vmatprep.subr.bf16.mxu0 %v551
    %632 = vmatpush1.bf16.msra.mxu0 %v550
    %633 = vmatprep.subr.bf16.mxu0 %v547
    %634 = vmatpush1.bf16.msra.mxu0 %v546
    %635 = vmatprep.subr.bf16.mxu0 %v543
    %636 = vmatpush1.bf16.msra.mxu0 %v542
    %637 = vmatprep.subr.bf16.mxu0 %v539
    %638 = vmatpush1.bf16.msra.mxu0 %v538
    %639 = vmatprep.subr.bf16.mxu0 %v535
    %640 = vmatpush1.bf16.msra.mxu0 %v534
    %641 = vmatprep.subr.bf16.mxu0 %v531
    %642 = vmatpush1.bf16.msra.mxu0 %v530
    %643 = vmatprep.subr.bf16.mxu0 %v527
    %644 = vmatpush1.bf16.msra.mxu0 %v526
    %645 = vmatprep.subr.bf16.mxu0 0
    %646 = vmatpush2.bf16.msra.mxu0 0
    %647 = vmatprep.subr.bf16.mxu0 0
    %648 = vmatpush2.bf16.msra.mxu0 0
    %649 = vmatprep.subr.bf16.mxu0 0
    %650 = vmatpush2.bf16.msra.mxu0 0
    %651 = vmatprep.subr.bf16.mxu0 0
    %652 = vmatpush2.bf16.msra.mxu0 0
    %653 = vmatprep.subr.bf16.mxu0 0
    %654 = vmatpush2.bf16.msra.mxu0 0
    %655 = vmatprep.subr.bf16.mxu0 0
    %656 = vmatpush2.bf16.msra.mxu0 0
    %657 = vmatprep.subr.bf16.mxu0 0
    %658 = vmatpush2.bf16.msra.mxu0 0
    %659 = vmatprep.subr.bf16.mxu0 0
    %660 = vmatpush2.bf16.msra.mxu0 0
    %661 = vmatprep.mubr.bf16.mxu0 0
    %662 = vmatmul.mubr.bf16.gmra.mxu0 0
    %v663 = vpop.f32.mrf.mxu0
    %v664 = vadd.f32 0.0, %v663
    %v665 = vpop.f32.mrf.mxu0
    %v666 = vadd.f32 0.0, %v665
    %v667 = vpop.f32.mrf.mxu0
    %v668 = vpop.f32.mrf.mxu0
    %669 = vdwg.mxu0
    %v670 = vadd.f32 %v424, %v623
    %v671 = vadd.f32 %v425, %v625
    %v672 = vadd.f32 %v426, %v664
    %v673 = vadd.f32 %v427, %v666
    %v674 = vxor.u32 %v670, 2147483648
    %v675 = vmul.f32 %v674, 1.442695
    %v676 = vpow.pop %v675
    %v677 = vadd.f32 %v676, 1.0
    %v678 = vrcp.pop %v677
    %v679 = vmul.f32 1.0, %v678
    %v680 = vxor.u32 %v671, 2147483648
    %v681 = vmul.f32 %v680, 1.442695
    %v682 = vpow.pop %v681
    %v683 = vadd.f32 %v682, 1.0
    %v684 = vrcp.pop %v683
    %v685 = vmul.f32 1.0, %v684
    %v686 = vtanh.pop %v672
    %v687 = vxor.u32 %v673, 2147483648
    %v688 = vmul.f32 %v687, 1.442695
    %v689 = vpow.pop %v688
    %v690 = vadd.f32 %v689, 1.0
    %v691 = vrcp.pop %v690
    %v692 = vmul.f32 1.0, %v691
    %v693 = vmul.f32 %v685, 0.0
    %v694 = vmul.f32 %v679, %v686
    %v695 = vadd.f32 %v693, %v694
    %v696 = vtanh.pop %v695
    %v697 = vmul.f32 %v692, %v696
    %698 = vst [vmem:[#allocation4] sm:$0x3] %v697
    %v699 = vld [vmem:[#allocation2] sm:$0xc]
    %v700 = vld [vmem:[#allocation2 + $0x8] sm:$0xc]
    %v701 = vld [vmem:[#allocation2 + $0x10] sm:$0xc]
    %v702 = vld [vmem:[#allocation2 + $0x18] sm:$0xc]
    %v703 = vld [vmem:[#allocation2 + $0x60] sm:$0x30]
    %v704 = vld [vmem:[#allocation2 + $0x68] sm:$0x30]
    %v705 = vld [vmem:[#allocation2 + $0x70] sm:$0x30]
    %v706 = vld [vmem:[#allocation2 + $0x78] sm:$0x30]
    %v711 = vrot.slane %v703, 2
    %v712 = vrot.slane %v704, 2
    %v713 = vrot.slane %v705, 2
    %v714 = vrot.slane %v706, 2
    %v719 = vsel %vm177, %v699, %v711
    %v720 = vsel %vm178, %v700, %v712
    %v721 = vsel %vm179, %v701, %v713
    %v722 = vsel %vm180, %v702, %v714
    %v723 = vpack.c.bf16 %v697, %v697
    %724 = vmatprep.subr.bf16.mxu0 %v553
    %725 = vmatpush1.bf16.msra.mxu0 %v552
    %726 = vmatprep.subr.bf16.mxu0 %v549
    %727 = vmatpush1.bf16.msra.mxu0 %v548
    %728 = vmatprep.subr.bf16.mxu0 %v545
    %729 = vmatpush1.bf16.msra.mxu0 %v544
    %730 = vmatprep.subr.bf16.mxu0 %v541
    %731 = vmatpush1.bf16.msra.mxu0 %v540
    %732 = vmatprep.subr.bf16.mxu0 %v537
    %733 = vmatpush1.bf16.msra.mxu0 %v536
    %734 = vmatprep.subr.bf16.mxu0 %v533
    %735 = vmatpush1.bf16.msra.mxu0 %v532
    %736 = vmatprep.subr.bf16.mxu0 %v529
    %737 = vmatpush1.bf16.msra.mxu0 %v528
    %738 = vmatprep.subr.bf16.mxu0 %v525
    %739 = vmatpush1.bf16.msra.mxu0 %v524
    %740 = vmatprep.subr.bf16.mxu0 0
    %741 = vmatpush2.bf16.msra.mxu0 0
    %742 = vmatprep.subr.bf16.mxu0 0
    %743 = vmatpush2.bf16.msra.mxu0 0
    %744 = vmatprep.subr.bf16.mxu0 0
    %745 = vmatpush2.bf16.msra.mxu0 0
    %746 = vmatprep.subr.bf16.mxu0 0
    %747 = vmatpush2.bf16.msra.mxu0 0
    %748 = vmatprep.subr.bf16.mxu0 0
    %749 = vmatpush2.bf16.msra.mxu0 0
    %750 = vmatprep.subr.bf16.mxu0 0
    %751 = vmatpush2.bf16.msra.mxu0 0
    %752 = vmatprep.subr.bf16.mxu0 0
    %753 = vmatpush2.bf16.msra.mxu0 0
    %754 = vmatprep.subr.bf16.mxu0 0
    %755 = vmatpush2.bf16.msra.mxu0 0
    %756 = vmatprep.mubr.bf16.mxu0 0
    %757 = vmatmul.mubr.bf16.gmra.mxu0 %v723
    %v758 = vpop.f32.mrf.mxu0
    %v759 = vadd.f32 0.0, %v758
    %v760 = vpop.f32.mrf.mxu0
    %v761 = vadd.f32 0.0, %v760
    %v762 = vpop.f32.mrf.mxu0
    %v763 = vpop.f32.mrf.mxu0
    %764 = vdwg.mxu0
    %765 = vmatprep.subr.bf16.mxu0 %v555
    %766 = vmatpush1.bf16.msra.mxu0 %v554
    %767 = vmatprep.subr.bf16.mxu0 %v551
    %768 = vmatpush1.bf16.msra.mxu0 %v550
    %769 = vmatprep.subr.bf16.mxu0 %v547
    %770 = vmatpush1.bf16.msra.mxu0 %v546
    %771 = vmatprep.subr.bf16.mxu0 %v543
    %772 = vmatpush1.bf16.msra.mxu0 %v542
    %773 = vmatprep.subr.bf16.mxu0 %v539
    %774 = vmatpush1.bf16.msra.mxu0 %v538
    %775 = vmatprep.subr.bf16.mxu0 %v535
    %776 = vmatpush1.bf16.msra.mxu0 %v534
    %777 = vmatprep.subr.bf16.mxu0 %v531
    %778 = vmatpush1.bf16.msra.mxu0 %v530
    %779 = vmatprep.subr.bf16.mxu0 %v527
    %780 = vmatpush1.bf16.msra.mxu0 %v526
    %781 = vmatprep.subr.bf16.mxu0 0
    %782 = vmatpush2.bf16.msra.mxu0 0
    %783 = vmatprep.subr.bf16.mxu0 0
    %784 = vmatpush2.bf16.msra.mxu0 0
    %785 = vmatprep.subr.bf16.mxu0 0
    %786 = vmatpush2.bf16.msra.mxu0 0
    %787 = vmatprep.subr.bf16.mxu0 0
    %788 = vmatpush2.bf16.msra.mxu0 0
    %789 = vmatprep.subr.bf16.mxu0 0
    %790 = vmatpush2.bf16.msra.mxu0 0
    %791 = vmatprep.subr.bf16.mxu0 0
    %792 = vmatpush2.bf16.msra.mxu0 0
    %793 = vmatprep.subr.bf16.mxu0 0
    %794 = vmatpush2.bf16.msra.mxu0 0
    %795 = vmatprep.subr.bf16.mxu0 0
    %796 = vmatpush2.bf16.msra.mxu0 0
    %797 = vmatprep.mubr.bf16.mxu0 0
    %798 = vmatmul.mubr.bf16.gmra.mxu0 %v723
    %v799 = vpop.f32.mrf.mxu0
    %v800 = vadd.f32 0.0, %v799
    %v801 = vpop.f32.mrf.mxu0
    %v802 = vadd.f32 0.0, %v801
    %v803 = vpop.f32.mrf.mxu0
    %v804 = vpop.f32.mrf.mxu0
    %805 = vdwg.mxu0
    %v810 = vrot.slane %v759, 6
    %v811 = vrot.slane %v761, 6
    %v812 = vrot.slane %v800, 6
    %v813 = vrot.slane %v802, 6
    %v818 = vadd.f32 %v719, %v810
    %v819 = vadd.f32 %v720, %v811
    %v820 = vadd.f32 %v721, %v812
    %v821 = vadd.f32 %v722, %v813
    %v822 = vxor.u32 %v818, 2147483648
    %v823 = vmul.f32 %v822, 1.442695
    %v824 = vpow.pop %v823
    %v825 = vadd.f32 %v824, 1.0
    %v826 = vrcp.pop %v825
    %v827 = vmul.f32 1.0, %v826
    %v828 = vxor.u32 %v819, 2147483648
    %v829 = vmul.f32 %v828, 1.442695
    %v830 = vpow.pop %v829
    %v831 = vadd.f32 %v830, 1.0
    %v832 = vrcp.pop %v831
    %v833 = vmul.f32 1.0, %v832
    %v834 = vtanh.pop %v820
    %v835 = vxor.u32 %v821, 2147483648
    %v836 = vmul.f32 %v835, 1.442695
    %v837 = vpow.pop %v836
    %v838 = vadd.f32 %v837, 1.0
    %v839 = vrcp.pop %v838
    %v840 = vmul.f32 1.0, %v839
    %v842 = vrot.slane %v695, 6
    %v844 = vmul.f32 %v833, %v842
    %v845 = vmul.f32 %v827, %v834
    %v846 = vadd.f32 %v844, %v845
    %v847 = vtanh.pop %v846
    %v848 = vmul.f32 %v840, %v847
    %849 = vst [vmem:[#allocation4] sm:$0xc] %v848
    %v850 = vld [vmem:[#allocation2] sm:$0x30]
    %v851 = vld [vmem:[#allocation2 + $0x8] sm:$0x30]
    %v852 = vld [vmem:[#allocation2 + $0x10] sm:$0x30]
    %v853 = vld [vmem:[#allocation2 + $0x18] sm:$0x30]
    %v854 = vld [vmem:[#allocation2 + $0x60] sm:$0xc]
    %v855 = vld [vmem:[#allocation2 + $0x68] sm:$0xc]
    %v856 = vld [vmem:[#allocation2 + $0x70] sm:$0xc]
    %v857 = vld [vmem:[#allocation2 + $0x78] sm:$0xc]
    %v862 = vrot.slane %v854, 6
    %v863 = vrot.slane %v855, 6
    %v864 = vrot.slane %v856, 6
    %v865 = vrot.slane %v857, 6
    %v870 = vsel %vm177, %v850, %v862
    %v871 = vsel %vm178, %v851, %v863
    %v872 = vsel %vm179, %v852, %v864
    %v873 = vsel %vm180, %v853, %v865
    %v874 = vpack.c.bf16 %v848, %v848
    %v876 = vrot.slane %v874, 1
    %878 = vmatprep.subr.bf16.mxu0 %v553
    %879 = vmatpush1.bf16.msra.mxu0 %v552
    %880 = vmatprep.subr.bf16.mxu0 %v549
    %881 = vmatpush1.bf16.msra.mxu0 %v548
    %882 = vmatprep.subr.bf16.mxu0 %v545
    %883 = vmatpush1.bf16.msra.mxu0 %v544
    %884 = vmatprep.subr.bf16.mxu0 %v541
    %885 = vmatpush1.bf16.msra.mxu0 %v540
    %886 = vmatprep.subr.bf16.mxu0 %v537
    %887 = vmatpush1.bf16.msra.mxu0 %v536
    %888 = vmatprep.subr.bf16.mxu0 %v533
    %889 = vmatpush1.bf16.msra.mxu0 %v532
    %890 = vmatprep.subr.bf16.mxu0 %v529
    %891 = vmatpush1.bf16.msra.mxu0 %v528
    %892 = vmatprep.subr.bf16.mxu0 %v525
    %893 = vmatpush1.bf16.msra.mxu0 %v524
    %894 = vmatprep.subr.bf16.mxu0 0
    %895 = vmatpush2.bf16.msra.mxu0 0
    %896 = vmatprep.subr.bf16.mxu0 0
    %897 = vmatpush2.bf16.msra.mxu0 0
    %898 = vmatprep.subr.bf16.mxu0 0
    %899 = vmatpush2.bf16.msra.mxu0 0
    %900 = vmatprep.subr.bf16.mxu0 0
    %901 = vmatpush2.bf16.msra.mxu0 0
    %902 = vmatprep.subr.bf16.mxu0 0
    %903 = vmatpush2.bf16.msra.mxu0 0
    %904 = vmatprep.subr.bf16.mxu0 0
    %905 = vmatpush2.bf16.msra.mxu0 0
    %906 = vmatprep.subr.bf16.mxu0 0
    %907 = vmatpush2.bf16.msra.mxu0 0
    %908 = vmatprep.subr.bf16.mxu0 0
    %909 = vmatpush2.bf16.msra.mxu0 0
    %910 = vmatprep.mubr.bf16.mxu0 0
    %911 = vmatmul.mubr.bf16.gmra.mxu0 %v876
    %v912 = vpop.f32.mrf.mxu0
    %v913 = vadd.f32 0.0, %v912
    %v914 = vpop.f32.mrf.mxu0
    %v915 = vadd.f32 0.0, %v914
    %v916 = vpop.f32.mrf.mxu0
    %v917 = vpop.f32.mrf.mxu0
    %918 = vdwg.mxu0
    %919 = vmatprep.subr.bf16.mxu0 %v555
    %920 = vmatpush1.bf16.msra.mxu0 %v554
    %921 = vmatprep.subr.bf16.mxu0 %v551
    %922 = vmatpush1.bf16.msra.mxu0 %v550
    %923 = vmatprep.subr.bf16.mxu0 %v547
    %924 = vmatpush1.bf16.msra.mxu0 %v546
    %925 = vmatprep.subr.bf16.mxu0 %v543
    %926 = vmatpush1.bf16.msra.mxu0 %v542
    %927 = vmatprep.subr.bf16.mxu0 %v539
    %928 = vmatpush1.bf16.msra.mxu0 %v538
    %929 = vmatprep.subr.bf16.mxu0 %v535
    %930 = vmatpush1.bf16.msra.mxu0 %v534
    %931 = vmatprep.subr.bf16.mxu0 %v531
    %932 = vmatpush1.bf16.msra.mxu0 %v530
    %933 = vmatprep.subr.bf16.mxu0 %v527
    %934 = vmatpush1.bf16.msra.mxu0 %v526
    %935 = vmatprep.subr.bf16.mxu0 0
    %936 = vmatpush2.bf16.msra.mxu0 0
    %937 = vmatprep.subr.bf16.mxu0 0
    %938 = vmatpush2.bf16.msra.mxu0 0
    %939 = vmatprep.subr.bf16.mxu0 0
    %940 = vmatpush2.bf16.msra.mxu0 0
    %941 = vmatprep.subr.bf16.mxu0 0
    %942 = vmatpush2.bf16.msra.mxu0 0
    %943 = vmatprep.subr.bf16.mxu0 0
    %944 = vmatpush2.bf16.msra.mxu0 0
    %945 = vmatprep.subr.bf16.mxu0 0
    %946 = vmatpush2.bf16.msra.mxu0 0
    %947 = vmatprep.subr.bf16.mxu0 0
    %948 = vmatpush2.bf16.msra.mxu0 0
    %949 = vmatprep.subr.bf16.mxu0 0
    %950 = vmatpush2.bf16.msra.mxu0 0
    %951 = vmatprep.mubr.bf16.mxu0 0
    %952 = vmatmul.mubr.bf16.gmra.mxu0 %v876
    %v953 = vpop.f32.mrf.mxu0
    %v954 = vadd.f32 0.0, %v953
    %v955 = vpop.f32.mrf.mxu0
    %v956 = vadd.f32 0.0, %v955
    %v957 = vpop.f32.mrf.mxu0
    %v958 = vpop.f32.mrf.mxu0
    %959 = vdwg.mxu0
    %v964 = vrot.slane %v913, 4
    %v965 = vrot.slane %v915, 4
    %v966 = vrot.slane %v954, 4
    %v967 = vrot.slane %v956, 4
    %v972 = vadd.f32 %v870, %v964
    %v973 = vadd.f32 %v871, %v965
    %v974 = vadd.f32 %v872, %v966
    %v975 = vadd.f32 %v873, %v967
    %v976 = vxor.u32 %v972, 2147483648
    %v977 = vmul.f32 %v976, 1.442695
    %v978 = vpow.pop %v977
    %v979 = vadd.f32 %v978, 1.0
    %v980 = vrcp.pop %v979
    %v981 = vmul.f32 1.0, %v980
    %v982 = vxor.u32 %v973, 2147483648
    %v983 = vmul.f32 %v982, 1.442695
    %v984 = vpow.pop %v983
    %v985 = vadd.f32 %v984, 1.0
    %v986 = vrcp.pop %v985
    %v987 = vmul.f32 1.0, %v986
    %v988 = vtanh.pop %v974
    %v989 = vxor.u32 %v975, 2147483648
    %v990 = vmul.f32 %v989, 1.442695
    %v991 = vpow.pop %v990
    %v992 = vadd.f32 %v991, 1.0
    %v993 = vrcp.pop %v992
    %v994 = vmul.f32 1.0, %v993
    %v996 = vrot.slane %v846, 6
    %v998 = vmul.f32 %v987, %v996
    %v999 = vmul.f32 %v981, %v988
    %v1000 = vadd.f32 %v998, %v999
    %v1001 = vtanh.pop %v1000
    %v1002 = vmul.f32 %v994, %v1001
    %1003 = vst [vmem:[#allocation4] sm:$0x30] %v1002
    %v1004 = vld [vmem:[#allocation2] sm:$0xc0]
    %v1005 = vld [vmem:[#allocation2 + $0x8] sm:$0xc0]
    %v1006 = vld [vmem:[#allocation2 + $0x10] sm:$0xc0]
    %v1007 = vld [vmem:[#allocation2 + $0x18] sm:$0xc0]
    %v1008 = vld [vmem:[#allocation2 + $0x60] sm:$0x3]
    %v1009 = vld [vmem:[#allocation2 + $0x68] sm:$0x3]
    %v1010 = vld [vmem:[#allocation2 + $0x70] sm:$0x3]
    %v1011 = vld [vmem:[#allocation2 + $0x78] sm:$0x3]
    %v1016 = vrot.slane %v1008, 2
    %v1017 = vrot.slane %v1009, 2
    %v1018 = vrot.slane %v1010, 2
    %v1019 = vrot.slane %v1011, 2
    %v1024 = vsel %vm177, %v1004, %v1016
    %v1025 = vsel %vm178, %v1005, %v1017
    %v1026 = vsel %vm179, %v1006, %v1018
    %v1027 = vsel %vm180, %v1007, %v1019
    %v1028 = vpack.c.bf16 %v1002, %v1002
    %v1030 = vrot.slane %v1028, 2
    %1032 = vmatprep.subr.bf16.mxu0 %v553
    %1033 = vmatpush1.bf16.msra.mxu0 %v552
    %1034 = vmatprep.subr.bf16.mxu0 %v549
    %1035 = vmatpush1.bf16.msra.mxu0 %v548
    %1036 = vmatprep.subr.bf16.mxu0 %v545
    %1037 = vmatpush1.bf16.msra.mxu0 %v544
    %1038 = vmatprep.subr.bf16.mxu0 %v541
    %1039 = vmatpush1.bf16.msra.mxu0 %v540
    %1040 = vmatprep.subr.bf16.mxu0 %v537
    %1041 = vmatpush1.bf16.msra.mxu0 %v536
    %1042 = vmatprep.subr.bf16.mxu0 %v533
    %1043 = vmatpush1.bf16.msra.mxu0 %v532
    %1044 = vmatprep.subr.bf16.mxu0 %v529
    %1045 = vmatpush1.bf16.msra.mxu0 %v528
    %1046 = vmatprep.subr.bf16.mxu0 %v525
    %1047 = vmatpush1.bf16.msra.mxu0 %v524
    %1048 = vmatprep.subr.bf16.mxu0 0
    %1049 = vmatpush2.bf16.msra.mxu0 0
    %1050 = vmatprep.subr.bf16.mxu0 0
    %1051 = vmatpush2.bf16.msra.mxu0 0
    %1052 = vmatprep.subr.bf16.mxu0 0
    %1053 = vmatpush2.bf16.msra.mxu0 0
    %1054 = vmatprep.subr.bf16.mxu0 0
    %1055 = vmatpush2.bf16.msra.mxu0 0
    %1056 = vmatprep.subr.bf16.mxu0 0
    %1057 = vmatpush2.bf16.msra.mxu0 0
    %1058 = vmatprep.subr.bf16.mxu0 0
    %1059 = vmatpush2.bf16.msra.mxu0 0
    %1060 = vmatprep.subr.bf16.mxu0 0
    %1061 = vmatpush2.bf16.msra.mxu0 0
    %1062 = vmatprep.subr.bf16.mxu0 0
    %1063 = vmatpush2.bf16.msra.mxu0 0
    %1064 = vmatprep.mubr.bf16.mxu0 0
    %1065 = vmatmul.mubr.bf16.gmra.mxu0 %v1030
    %v1066 = vpop.f32.mrf.mxu0
    %v1067 = vadd.f32 0.0, %v1066
    %v1068 = vpop.f32.mrf.mxu0
    %v1069 = vadd.f32 0.0, %v1068
    %v1070 = vpop.f32.mrf.mxu0
    %v1071 = vpop.f32.mrf.mxu0
    %1072 = vdwg.mxu0
    %1073 = vmatprep.subr.bf16.mxu0 %v555
    %1074 = vmatpush1.bf16.msra.mxu0 %v554
    %1075 = vmatprep.subr.bf16.mxu0 %v551
    %1076 = vmatpush1.bf16.msra.mxu0 %v550
    %1077 = vmatprep.subr.bf16.mxu0 %v547
    %1078 = vmatpush1.bf16.msra.mxu0 %v546
    %1079 = vmatprep.subr.bf16.mxu0 %v543
    %1080 = vmatpush1.bf16.msra.mxu0 %v542
    %1081 = vmatprep.subr.bf16.mxu0 %v539
    %1082 = vmatpush1.bf16.msra.mxu0 %v538
    %1083 = vmatprep.subr.bf16.mxu0 %v535
    %1084 = vmatpush1.bf16.msra.mxu0 %v534
    %1085 = vmatprep.subr.bf16.mxu0 %v531
    %1086 = vmatpush1.bf16.msra.mxu0 %v530
    %1087 = vmatprep.subr.bf16.mxu0 %v527
    %1088 = vmatpush1.bf16.msra.mxu0 %v526
    %1089 = vmatprep.subr.bf16.mxu0 0
    %1090 = vmatpush2.bf16.msra.mxu0 0
    %1091 = vmatprep.subr.bf16.mxu0 0
    %1092 = vmatpush2.bf16.msra.mxu0 0
    %1093 = vmatprep.subr.bf16.mxu0 0
    %1094 = vmatpush2.bf16.msra.mxu0 0
    %1095 = vmatprep.subr.bf16.mxu0 0
    %1096 = vmatpush2.bf16.msra.mxu0 0
    %1097 = vmatprep.subr.bf16.mxu0 0
    %1098 = vmatpush2.bf16.msra.mxu0 0
    %1099 = vmatprep.subr.bf16.mxu0 0
    %1100 = vmatpush2.bf16.msra.mxu0 0
    %1101 = vmatprep.subr.bf16.mxu0 0
    %1102 = vmatpush2.bf16.msra.mxu0 0
    %1103 = vmatprep.subr.bf16.mxu0 0
    %1104 = vmatpush2.bf16.msra.mxu0 0
    %1105 = vmatprep.mubr.bf16.mxu0 0
    %1106 = vmatmul.mubr.bf16.gmra.mxu0 %v1030
    %v1107 = vpop.f32.mrf.mxu0
    %v1108 = vadd.f32 0.0, %v1107
    %v1109 = vpop.f32.mrf.mxu0
    %v1110 = vadd.f32 0.0, %v1109
    %v1111 = vpop.f32.mrf.mxu0
    %v1112 = vpop.f32.mrf.mxu0
    %1113 = vdwg.mxu0
    %v1118 = vrot.slane %v1067, 2
    %v1119 = vrot.slane %v1069, 2
    %v1120 = vrot.slane %v1108, 2
    %v1121 = vrot.slane %v1110, 2
    %v1126 = vadd.f32 %v1024, %v1118
    %v1127 = vadd.f32 %v1025, %v1119
    %v1128 = vadd.f32 %v1026, %v1120
    %v1129 = vadd.f32 %v1027, %v1121
    %v1130 = vxor.u32 %v1126, 2147483648
    %v1131 = vmul.f32 %v1130, 1.442695
    %v1132 = vpow.pop %v1131
    %v1133 = vadd.f32 %v1132, 1.0
    %v1134 = vrcp.pop %v1133
    %v1135 = vmul.f32 1.0, %v1134
    %v1136 = vxor.u32 %v1127, 2147483648
    %v1137 = vmul.f32 %v1136, 1.442695
    %v1138 = vpow.pop %v1137
    %v1139 = vadd.f32 %v1138, 1.0
    %v1140 = vrcp.pop %v1139
    %v1141 = vmul.f32 1.0, %v1140
    %v1142 = vtanh.pop %v1128
    %v1143 = vxor.u32 %v1129, 2147483648
    %v1144 = vmul.f32 %v1143, 1.442695
    %v1145 = vpow.pop %v1144
    %v1146 = vadd.f32 %v1145, 1.0
    %v1147 = vrcp.pop %v1146
    %v1148 = vmul.f32 1.0, %v1147
    %v1150 = vrot.slane %v1000, 6
    %v1152 = vmul.f32 %v1141, %v1150
    %v1153 = vmul.f32 %v1135, %v1142
    %v1154 = vadd.f32 %v1152, %v1153
    %v1155 = vtanh.pop %v1154
    %v1156 = vmul.f32 %v1148, %v1155
    %1157 = vst [vmem:[#allocation4] sm:$0xc0] %v1156
    %v1158 = vld [vmem:[#allocation2 + $0x20] sm:$0x3]
    %v1159 = vld [vmem:[#allocation2 + $0x28] sm:$0x3]
    %v1160 = vld [vmem:[#allocation2 + $0x30] sm:$0x3]
    %v1161 = vld [vmem:[#allocation2 + $0x38] sm:$0x3]
    %v1162 = vld [vmem:[#allocation2 + $0x40] sm:$0xc0]
    %v1163 = vld [vmem:[#allocation2 + $0x48] sm:$0xc0]
    %v1164 = vld [vmem:[#allocation2 + $0x50] sm:$0xc0]
    %v1165 = vld [vmem:[#allocation2 + $0x58] sm:$0xc0]
    %v1170 = vrot.slane %v1162, 6
    %v1171 = vrot.slane %v1163, 6
    %v1172 = vrot.slane %v1164, 6
    %v1173 = vrot.slane %v1165, 6
    %v1178 = vsel %vm177, %v1158, %v1170
    %v1179 = vsel %vm178, %v1159, %v1171
    %v1180 = vsel %vm179, %v1160, %v1172
    %v1181 = vsel %vm180, %v1161, %v1173
    %v1182 = vpack.c.bf16 %v1156, %v1156
    %v1184 = vrot.slane %v1182, 3
    %1186 = vmatprep.subr.bf16.mxu0 %v553
    %1187 = vmatpush1.bf16.msra.mxu0 %v552
    %1188 = vmatprep.subr.bf16.mxu0 %v549
    %1189 = vmatpush1.bf16.msra.mxu0 %v548
    %1190 = vmatprep.subr.bf16.mxu0 %v545
    %1191 = vmatpush1.bf16.msra.mxu0 %v544
    %1192 = vmatprep.subr.bf16.mxu0 %v541
    %1193 = vmatpush1.bf16.msra.mxu0 %v540
    %1194 = vmatprep.subr.bf16.mxu0 %v537
    %1195 = vmatpush1.bf16.msra.mxu0 %v536
    %1196 = vmatprep.subr.bf16.mxu0 %v533
    %1197 = vmatpush1.bf16.msra.mxu0 %v532
    %1198 = vmatprep.subr.bf16.mxu0 %v529
    %1199 = vmatpush1.bf16.msra.mxu0 %v528
    %1200 = vmatprep.subr.bf16.mxu0 %v525
    %1201 = vmatpush1.bf16.msra.mxu0 %v524
    %1202 = vmatprep.subr.bf16.mxu0 0
    %1203 = vmatpush2.bf16.msra.mxu0 0
    %1204 = vmatprep.subr.bf16.mxu0 0
    %1205 = vmatpush2.bf16.msra.mxu0 0
    %1206 = vmatprep.subr.bf16.mxu0 0
    %1207 = vmatpush2.bf16.msra.mxu0 0
    %1208 = vmatprep.subr.bf16.mxu0 0
    %1209 = vmatpush2.bf16.msra.mxu0 0
    %1210 = vmatprep.subr.bf16.mxu0 0
    %1211 = vmatpush2.bf16.msra.mxu0 0
    %1212 = vmatprep.subr.bf16.mxu0 0
    %1213 = vmatpush2.bf16.msra.mxu0 0
    %1214 = vmatprep.subr.bf16.mxu0 0
    %1215 = vmatpush2.bf16.msra.mxu0 0
    %1216 = vmatprep.subr.bf16.mxu0 0
    %1217 = vmatpush2.bf16.msra.mxu0 0
    %1218 = vmatprep.mubr.bf16.mxu0 0
    %1219 = vmatmul.mubr.bf16.gmra.mxu0 %v1184
    %v1220 = vpop.f32.mrf.mxu0
    %v1221 = vadd.f32 0.0, %v1220
    %v1222 = vpop.f32.mrf.mxu0
    %v1223 = vadd.f32 0.0, %v1222
    %v1224 = vpop.f32.mrf.mxu0
    %v1225 = vpop.f32.mrf.mxu0
    %1226 = vdwg.mxu0
    %1227 = vmatprep.subr.bf16.mxu0 %v555
    %1228 = vmatpush1.bf16.msra.mxu0 %v554
    %1229 = vmatprep.subr.bf16.mxu0 %v551
    %1230 = vmatpush1.bf16.msra.mxu0 %v550
    %1231 = vmatprep.subr.bf16.mxu0 %v547
    %1232 = vmatpush1.bf16.msra.mxu0 %v546
    %1233 = vmatprep.subr.bf16.mxu0 %v543
    %1234 = vmatpush1.bf16.msra.mxu0 %v542
    %1235 = vmatprep.subr.bf16.mxu0 %v539
    %1236 = vmatpush1.bf16.msra.mxu0 %v538
    %1237 = vmatprep.subr.bf16.mxu0 %v535
    %1238 = vmatpush1.bf16.msra.mxu0 %v534
    %1239 = vmatprep.subr.bf16.mxu0 %v531
    %1240 = vmatpush1.bf16.msra.mxu0 %v530
    %1241 = vmatprep.subr.bf16.mxu0 %v527
    %1242 = vmatpush1.bf16.msra.mxu0 %v526
    %1243 = vmatprep.subr.bf16.mxu0 0
    %1244 = vmatpush2.bf16.msra.mxu0 0
    %1245 = vmatprep.subr.bf16.mxu0 0
    %1246 = vmatpush2.bf16.msra.mxu0 0
    %1247 = vmatprep.subr.bf16.mxu0 0
    %1248 = vmatpush2.bf16.msra.mxu0 0
    %1249 = vmatprep.subr.bf16.mxu0 0
    %1250 = vmatpush2.bf16.msra.mxu0 0
    %1251 = vmatprep.subr.bf16.mxu0 0
    %1252 = vmatpush2.bf16.msra.mxu0 0
    %1253 = vmatprep.subr.bf16.mxu0 0
    %1254 = vmatpush2.bf16.msra.mxu0 0
    %1255 = vmatprep.subr.bf16.mxu0 0
    %1256 = vmatpush2.bf16.msra.mxu0 0
    %1257 = vmatprep.subr.bf16.mxu0 0
    %1258 = vmatpush2.bf16.msra.mxu0 0
    %1259 = vmatprep.mubr.bf16.mxu0 0
    %1260 = vmatmul.mubr.bf16.gmra.mxu0 %v1184
    %v1261 = vpop.f32.mrf.mxu0
    %v1262 = vadd.f32 0.0, %v1261
    %v1263 = vpop.f32.mrf.mxu0
    %v1264 = vadd.f32 0.0, %v1263
    %v1265 = vpop.f32.mrf.mxu0
    %v1266 = vpop.f32.mrf.mxu0
    %1267 = vdwg.mxu0
    %v1268 = vadd.f32 %v1178, %v1221
    %v1269 = vadd.f32 %v1179, %v1223
    %v1270 = vadd.f32 %v1180, %v1262
    %v1271 = vadd.f32 %v1181, %v1264
    %v1272 = vxor.u32 %v1268, 2147483648
    %v1273 = vmul.f32 %v1272, 1.442695
    %v1274 = vpow.pop %v1273
    %v1275 = vadd.f32 %v1274, 1.0
    %v1276 = vrcp.pop %v1275
    %v1277 = vmul.f32 1.0, %v1276
    %v1278 = vxor.u32 %v1269, 2147483648
    %v1279 = vmul.f32 %v1278, 1.442695
    %v1280 = vpow.pop %v1279
    %v1281 = vadd.f32 %v1280, 1.0
    %v1282 = vrcp.pop %v1281
    %v1283 = vmul.f32 1.0, %v1282
    %v1284 = vtanh.pop %v1270
    %v1285 = vxor.u32 %v1271, 2147483648
    %v1286 = vmul.f32 %v1285, 1.442695
    %v1287 = vpow.pop %v1286
    %v1288 = vadd.f32 %v1287, 1.0
    %v1289 = vrcp.pop %v1288
    %v1290 = vmul.f32 1.0, %v1289
    %v1292 = vrot.slane %v1154, 6
    %v1294 = vmul.f32 %v1283, %v1292
    %v1295 = vmul.f32 %v1277, %v1284
    %v1296 = vadd.f32 %v1294, %v1295
    %v1297 = vtanh.pop %v1296
    %v1298 = vmul.f32 %v1290, %v1297
    %1299 = vst [vmem:[#allocation4 + $0x8] sm:$0x3] %v1298
    %v1300 = vld [vmem:[#allocation2 + $0x20] sm:$0xc]
    %v1301 = vld [vmem:[#allocation2 + $0x28] sm:$0xc]
    %v1302 = vld [vmem:[#allocation2 + $0x30] sm:$0xc]
    %v1303 = vld [vmem:[#allocation2 + $0x38] sm:$0xc]
    %v1304 = vld [vmem:[#allocation2 + $0x40] sm:$0x30]
    %v1305 = vld [vmem:[#allocation2 + $0x48] sm:$0x30]
    %v1306 = vld [vmem:[#allocation2 + $0x50] sm:$0x30]
    %v1307 = vld [vmem:[#allocation2 + $0x58] sm:$0x30]
    %v1312 = vrot.slane %v1304, 2
    %v1313 = vrot.slane %v1305, 2
    %v1314 = vrot.slane %v1306, 2
    %v1315 = vrot.slane %v1307, 2
    %v1320 = vsel %vm177, %v1300, %v1312
    %v1321 = vsel %vm178, %v1301, %v1313
    %v1322 = vsel %vm179, %v1302, %v1314
    %v1323 = vsel %vm180, %v1303, %v1315
    %v1324 = vpack.c.bf16 %v1298, %v1298
    %1325 = vmatprep.subr.bf16.mxu0 %v553
    %1326 = vmatpush1.bf16.msra.mxu0 %v552
    %1327 = vmatprep.subr.bf16.mxu0 %v549
    %1328 = vmatpush1.bf16.msra.mxu0 %v548
    %1329 = vmatprep.subr.bf16.mxu0 %v545
    %1330 = vmatpush1.bf16.msra.mxu0 %v544
    %1331 = vmatprep.subr.bf16.mxu0 %v541
    %1332 = vmatpush1.bf16.msra.mxu0 %v540
    %1333 = vmatprep.subr.bf16.mxu0 %v537
    %1334 = vmatpush1.bf16.msra.mxu0 %v536
    %1335 = vmatprep.subr.bf16.mxu0 %v533
    %1336 = vmatpush1.bf16.msra.mxu0 %v532
    %1337 = vmatprep.subr.bf16.mxu0 %v529
    %1338 = vmatpush1.bf16.msra.mxu0 %v528
    %1339 = vmatprep.subr.bf16.mxu0 %v525
    %1340 = vmatpush1.bf16.msra.mxu0 %v524
    %1341 = vmatprep.subr.bf16.mxu0 0
    %1342 = vmatpush2.bf16.msra.mxu0 0
    %1343 = vmatprep.subr.bf16.mxu0 0
    %1344 = vmatpush2.bf16.msra.mxu0 0
    %1345 = vmatprep.subr.bf16.mxu0 0
    %1346 = vmatpush2.bf16.msra.mxu0 0
    %1347 = vmatprep.subr.bf16.mxu0 0
    %1348 = vmatpush2.bf16.msra.mxu0 0
    %1349 = vmatprep.subr.bf16.mxu0 0
    %1350 = vmatpush2.bf16.msra.mxu0 0
    %1351 = vmatprep.subr.bf16.mxu0 0
    %1352 = vmatpush2.bf16.msra.mxu0 0
    %1353 = vmatprep.subr.bf16.mxu0 0
    %1354 = vmatpush2.bf16.msra.mxu0 0
    %1355 = vmatprep.subr.bf16.mxu0 0
    %1356 = vmatpush2.bf16.msra.mxu0 0
    %1357 = vmatprep.mubr.bf16.mxu0 0
    %1358 = vmatmul.mubr.bf16.gmra.mxu0 %v1324
    %v1359 = vpop.f32.mrf.mxu0
    %v1360 = vadd.f32 0.0, %v1359
    %v1361 = vpop.f32.mrf.mxu0
    %v1362 = vadd.f32 0.0, %v1361
    %v1363 = vpop.f32.mrf.mxu0
    %v1364 = vpop.f32.mrf.mxu0
    %1365 = vdwg.mxu0
    %1366 = vmatprep.subr.bf16.mxu0 %v555
    %1367 = vmatpush1.bf16.msra.mxu0 %v554
    %1368 = vmatprep.subr.bf16.mxu0 %v551
    %1369 = vmatpush1.bf16.msra.mxu0 %v550
    %1370 = vmatprep.subr.bf16.mxu0 %v547
    %1371 = vmatpush1.bf16.msra.mxu0 %v546
    %1372 = vmatprep.subr.bf16.mxu0 %v543
    %1373 = vmatpush1.bf16.msra.mxu0 %v542
    %1374 = vmatprep.subr.bf16.mxu0 %v539
    %1375 = vmatpush1.bf16.msra.mxu0 %v538
    %1376 = vmatprep.subr.bf16.mxu0 %v535
    %1377 = vmatpush1.bf16.msra.mxu0 %v534
    %1378 = vmatprep.subr.bf16.mxu0 %v531
    %1379 = vmatpush1.bf16.msra.mxu0 %v530
    %1380 = vmatprep.subr.bf16.mxu0 %v527
    %1381 = vmatpush1.bf16.msra.mxu0 %v526
    %1382 = vmatprep.subr.bf16.mxu0 0
    %1383 = vmatpush2.bf16.msra.mxu0 0
    %1384 = vmatprep.subr.bf16.mxu0 0
    %1385 = vmatpush2.bf16.msra.mxu0 0
    %1386 = vmatprep.subr.bf16.mxu0 0
    %1387 = vmatpush2.bf16.msra.mxu0 0
    %1388 = vmatprep.subr.bf16.mxu0 0
    %1389 = vmatpush2.bf16.msra.mxu0 0
    %1390 = vmatprep.subr.bf16.mxu0 0
    %1391 = vmatpush2.bf16.msra.mxu0 0
    %1392 = vmatprep.subr.bf16.mxu0 0
    %1393 = vmatpush2.bf16.msra.mxu0 0
    %1394 = vmatprep.subr.bf16.mxu0 0
    %1395 = vmatpush2.bf16.msra.mxu0 0
    %1396 = vmatprep.subr.bf16.mxu0 0
    %1397 = vmatpush2.bf16.msra.mxu0 0
    %1398 = vmatprep.mubr.bf16.mxu0 0
    %1399 = vmatmul.mubr.bf16.gmra.mxu0 %v1324
    %v1400 = vpop.f32.mrf.mxu0
    %v1401 = vadd.f32 0.0, %v1400
    %v1402 = vpop.f32.mrf.mxu0
    %v1403 = vadd.f32 0.0, %v1402
    %v1404 = vpop.f32.mrf.mxu0
    %v1405 = vpop.f32.mrf.mxu0
    %1406 = vdwg.mxu0
    %v1411 = vrot.slane %v1360, 6
    %v1412 = vrot.slane %v1362, 6
    %v1413 = vrot.slane %v1401, 6
    %v1414 = vrot.slane %v1403, 6
    %v1419 = vadd.f32 %v1320, %v1411
    %v1420 = vadd.f32 %v1321, %v1412
    %v1421 = vadd.f32 %v1322, %v1413
    %v1422 = vadd.f32 %v1323, %v1414
    %v1423 = vxor.u32 %v1419, 2147483648
    %v1424 = vmul.f32 %v1423, 1.442695
    %v1425 = vpow.pop %v1424
    %v1426 = vadd.f32 %v1425, 1.0
    %v1427 = vrcp.pop %v1426
    %v1428 = vmul.f32 1.0, %v1427
    %v1429 = vxor.u32 %v1420, 2147483648
    %v1430 = vmul.f32 %v1429, 1.442695
    %v1431 = vpow.pop %v1430
    %v1432 = vadd.f32 %v1431, 1.0
    %v1433 = vrcp.pop %v1432
    %v1434 = vmul.f32 1.0, %v1433
    %v1435 = vtanh.pop %v1421
    %v1436 = vxor.u32 %v1422, 2147483648
    %v1437 = vmul.f32 %v1436, 1.442695
    %v1438 = vpow.pop %v1437
    %v1439 = vadd.f32 %v1438, 1.0
    %v1440 = vrcp.pop %v1439
    %v1441 = vmul.f32 1.0, %v1440
    %v1443 = vrot.slane %v1296, 6
    %v1445 = vmul.f32 %v1434, %v1443
    %v1446 = vmul.f32 %v1428, %v1435
    %v1447 = vadd.f32 %v1445, %v1446
    %v1448 = vtanh.pop %v1447
    %v1449 = vmul.f32 %v1441, %v1448
    %1450 = vst [vmem:[#allocation4 + $0x8] sm:$0xc] %v1449
    %v1451 = vld [vmem:[#allocation2 + $0x20] sm:$0x30]
    %v1452 = vld [vmem:[#allocation2 + $0x28] sm:$0x30]
    %v1453 = vld [vmem:[#allocation2 + $0x30] sm:$0x30]
    %v1454 = vld [vmem:[#allocation2 + $0x38] sm:$0x30]
    %v1455 = vld [vmem:[#allocation2 + $0x40] sm:$0xc]
    %v1456 = vld [vmem:[#allocation2 + $0x48] sm:$0xc]
    %v1457 = vld [vmem:[#allocation2 + $0x50] sm:$0xc]
    %v1458 = vld [vmem:[#allocation2 + $0x58] sm:$0xc]
    %v1463 = vrot.slane %v1455, 6
    %v1464 = vrot.slane %v1456, 6
    %v1465 = vrot.slane %v1457, 6
    %v1466 = vrot.slane %v1458, 6
    %v1471 = vsel %vm177, %v1451, %v1463
    %v1472 = vsel %vm178, %v1452, %v1464
    %v1473 = vsel %vm179, %v1453, %v1465
    %v1474 = vsel %vm180, %v1454, %v1466
    %v1475 = vpack.c.bf16 %v1449, %v1449
    %v1477 = vrot.slane %v1475, 1
    %1479 = vmatprep.subr.bf16.mxu0 %v553
    %1480 = vmatpush1.bf16.msra.mxu0 %v552
    %1481 = vmatprep.subr.bf16.mxu0 %v549
    %1482 = vmatpush1.bf16.msra.mxu0 %v548
    %1483 = vmatprep.subr.bf16.mxu0 %v545
    %1484 = vmatpush1.bf16.msra.mxu0 %v544
    %1485 = vmatprep.subr.bf16.mxu0 %v541
    %1486 = vmatpush1.bf16.msra.mxu0 %v540
    %1487 = vmatprep.subr.bf16.mxu0 %v537
    %1488 = vmatpush1.bf16.msra.mxu0 %v536
    %1489 = vmatprep.subr.bf16.mxu0 %v533
    %1490 = vmatpush1.bf16.msra.mxu0 %v532
    %1491 = vmatprep.subr.bf16.mxu0 %v529
    %1492 = vmatpush1.bf16.msra.mxu0 %v528
    %1493 = vmatprep.subr.bf16.mxu0 %v525
    %1494 = vmatpush1.bf16.msra.mxu0 %v524
    %1495 = vmatprep.subr.bf16.mxu0 0
    %1496 = vmatpush2.bf16.msra.mxu0 0
    %1497 = vmatprep.subr.bf16.mxu0 0
    %1498 = vmatpush2.bf16.msra.mxu0 0
    %1499 = vmatprep.subr.bf16.mxu0 0
    %1500 = vmatpush2.bf16.msra.mxu0 0
    %1501 = vmatprep.subr.bf16.mxu0 0
    %1502 = vmatpush2.bf16.msra.mxu0 0
    %1503 = vmatprep.subr.bf16.mxu0 0
    %1504 = vmatpush2.bf16.msra.mxu0 0
    %1505 = vmatprep.subr.bf16.mxu0 0
    %1506 = vmatpush2.bf16.msra.mxu0 0
    %1507 = vmatprep.subr.bf16.mxu0 0
    %1508 = vmatpush2.bf16.msra.mxu0 0
    %1509 = vmatprep.subr.bf16.mxu0 0
    %1510 = vmatpush2.bf16.msra.mxu0 0
    %1511 = vmatprep.mubr.bf16.mxu0 0
    %1512 = vmatmul.mubr.bf16.gmra.mxu0 %v1477
    %v1513 = vpop.f32.mrf.mxu0
    %v1514 = vadd.f32 0.0, %v1513
    %v1515 = vpop.f32.mrf.mxu0
    %v1516 = vadd.f32 0.0, %v1515
    %v1517 = vpop.f32.mrf.mxu0
    %v1518 = vpop.f32.mrf.mxu0
    %1519 = vdwg.mxu0
    %1520 = vmatprep.subr.bf16.mxu0 %v555
    %1521 = vmatpush1.bf16.msra.mxu0 %v554
    %1522 = vmatprep.subr.bf16.mxu0 %v551
    %1523 = vmatpush1.bf16.msra.mxu0 %v550
    %1524 = vmatprep.subr.bf16.mxu0 %v547
    %1525 = vmatpush1.bf16.msra.mxu0 %v546
    %1526 = vmatprep.subr.bf16.mxu0 %v543
    %1527 = vmatpush1.bf16.msra.mxu0 %v542
    %1528 = vmatprep.subr.bf16.mxu0 %v539
    %1529 = vmatpush1.bf16.msra.mxu0 %v538
    %1530 = vmatprep.subr.bf16.mxu0 %v535
    %1531 = vmatpush1.bf16.msra.mxu0 %v534
    %1532 = vmatprep.subr.bf16.mxu0 %v531
    %1533 = vmatpush1.bf16.msra.mxu0 %v530
    %1534 = vmatprep.subr.bf16.mxu0 %v527
    %1535 = vmatpush1.bf16.msra.mxu0 %v526
    %1536 = vmatprep.subr.bf16.mxu0 0
    %1537 = vmatpush2.bf16.msra.mxu0 0
    %1538 = vmatprep.subr.bf16.mxu0 0
    %1539 = vmatpush2.bf16.msra.mxu0 0
    %1540 = vmatprep.subr.bf16.mxu0 0
    %1541 = vmatpush2.bf16.msra.mxu0 0
    %1542 = vmatprep.subr.bf16.mxu0 0
    %1543 = vmatpush2.bf16.msra.mxu0 0
    %1544 = vmatprep.subr.bf16.mxu0 0
    %1545 = vmatpush2.bf16.msra.mxu0 0
    %1546 = vmatprep.subr.bf16.mxu0 0
    %1547 = vmatpush2.bf16.msra.mxu0 0
    %1548 = vmatprep.subr.bf16.mxu0 0
    %1549 = vmatpush2.bf16.msra.mxu0 0
    %1550 = vmatprep.subr.bf16.mxu0 0
    %1551 = vmatpush2.bf16.msra.mxu0 0
    %1552 = vmatprep.mubr.bf16.mxu0 0
    %1553 = vmatmul.mubr.bf16.gmra.mxu0 %v1477
    %v1554 = vpop.f32.mrf.mxu0
    %v1555 = vadd.f32 0.0, %v1554
    %v1556 = vpop.f32.mrf.mxu0
    %v1557 = vadd.f32 0.0, %v1556
    %v1558 = vpop.f32.mrf.mxu0
    %v1559 = vpop.f32.mrf.mxu0
    %1560 = vdwg.mxu0
    %v1565 = vrot.slane %v1514, 4
    %v1566 = vrot.slane %v1516, 4
    %v1567 = vrot.slane %v1555, 4
    %v1568 = vrot.slane %v1557, 4
    %v1573 = vadd.f32 %v1471, %v1565
    %v1574 = vadd.f32 %v1472, %v1566
    %v1575 = vadd.f32 %v1473, %v1567
    %v1576 = vadd.f32 %v1474, %v1568
    %v1577 = vxor.u32 %v1573, 2147483648
    %v1578 = vmul.f32 %v1577, 1.442695
    %v1579 = vpow.pop %v1578
    %v1580 = vadd.f32 %v1579, 1.0
    %v1581 = vrcp.pop %v1580
    %v1582 = vmul.f32 1.0, %v1581
    %v1583 = vxor.u32 %v1574, 2147483648
    %v1584 = vmul.f32 %v1583, 1.442695
    %v1585 = vpow.pop %v1584
    %v1586 = vadd.f32 %v1585, 1.0
    %v1587 = vrcp.pop %v1586
    %v1588 = vmul.f32 1.0, %v1587
    %v1589 = vtanh.pop %v1575
    %v1590 = vxor.u32 %v1576, 2147483648
    %v1591 = vmul.f32 %v1590, 1.442695
    %v1592 = vpow.pop %v1591
    %v1593 = vadd.f32 %v1592, 1.0
    %v1594 = vrcp.pop %v1593
    %v1595 = vmul.f32 1.0, %v1594
    %v1597 = vrot.slane %v1447, 6
    %v1599 = vmul.f32 %v1588, %v1597
    %v1600 = vmul.f32 %v1582, %v1589
    %v1601 = vadd.f32 %v1599, %v1600
    %v1602 = vtanh.pop %v1601
    %v1603 = vmul.f32 %v1595, %v1602
    %1604 = vst [vmem:[#allocation4 + $0x8] sm:$0x30] %v1603
    %v1605 = vld [vmem:[#allocation2 + $0x20] sm:$0xc0]
    %v1606 = vld [vmem:[#allocation2 + $0x28] sm:$0xc0]
    %v1607 = vld [vmem:[#allocation2 + $0x30] sm:$0xc0]
    %v1608 = vld [vmem:[#allocation2 + $0x38] sm:$0xc0]
    %v1609 = vld [vmem:[#allocation2 + $0x40] sm:$0x3]
    %v1610 = vld [vmem:[#allocation2 + $0x48] sm:$0x3]
    %v1611 = vld [vmem:[#allocation2 + $0x50] sm:$0x3]
    %v1612 = vld [vmem:[#allocation2 + $0x58] sm:$0x3]
    %v1617 = vrot.slane %v1609, 2
    %v1618 = vrot.slane %v1610, 2
    %v1619 = vrot.slane %v1611, 2
    %v1620 = vrot.slane %v1612, 2
    %v1625 = vsel %vm177, %v1605, %v1617
    %v1626 = vsel %vm178, %v1606, %v1618
    %v1627 = vsel %vm179, %v1607, %v1619
    %v1628 = vsel %vm180, %v1608, %v1620
    %v1629 = vpack.c.bf16 %v1603, %v1603
    %v1631 = vrot.slane %v1629, 2
    %1633 = vmatprep.subr.bf16.mxu0 %v553
    %1634 = vmatpush1.bf16.msra.mxu0 %v552
    %1635 = vmatprep.subr.bf16.mxu0 %v549
    %1636 = vmatpush1.bf16.msra.mxu0 %v548
    %1637 = vmatprep.subr.bf16.mxu0 %v545
    %1638 = vmatpush1.bf16.msra.mxu0 %v544
    %1639 = vmatprep.subr.bf16.mxu0 %v541
    %1640 = vmatpush1.bf16.msra.mxu0 %v540
    %1641 = vmatprep.subr.bf16.mxu0 %v537
    %1642 = vmatpush1.bf16.msra.mxu0 %v536
    %1643 = vmatprep.subr.bf16.mxu0 %v533
    %1644 = vmatpush1.bf16.msra.mxu0 %v532
    %1645 = vmatprep.subr.bf16.mxu0 %v529
    %1646 = vmatpush1.bf16.msra.mxu0 %v528
    %1647 = vmatprep.subr.bf16.mxu0 %v525
    %1648 = vmatpush1.bf16.msra.mxu0 %v524
    %1649 = vmatprep.subr.bf16.mxu0 0
    %1650 = vmatpush2.bf16.msra.mxu0 0
    %1651 = vmatprep.subr.bf16.mxu0 0
    %1652 = vmatpush2.bf16.msra.mxu0 0
    %1653 = vmatprep.subr.bf16.mxu0 0
    %1654 = vmatpush2.bf16.msra.mxu0 0
    %1655 = vmatprep.subr.bf16.mxu0 0
    %1656 = vmatpush2.bf16.msra.mxu0 0
    %1657 = vmatprep.subr.bf16.mxu0 0
    %1658 = vmatpush2.bf16.msra.mxu0 0
    %1659 = vmatprep.subr.bf16.mxu0 0
    %1660 = vmatpush2.bf16.msra.mxu0 0
    %1661 = vmatprep.subr.bf16.mxu0 0
    %1662 = vmatpush2.bf16.msra.mxu0 0
    %1663 = vmatprep.subr.bf16.mxu0 0
    %1664 = vmatpush2.bf16.msra.mxu0 0
    %1665 = vmatprep.mubr.bf16.mxu0 0
    %1666 = vmatmul.mubr.bf16.gmra.mxu0 %v1631
    %v1667 = vpop.f32.mrf.mxu0
    %v1668 = vadd.f32 0.0, %v1667
    %v1669 = vpop.f32.mrf.mxu0
    %v1670 = vadd.f32 0.0, %v1669
    %v1671 = vpop.f32.mrf.mxu0
    %v1672 = vpop.f32.mrf.mxu0
    %1673 = vdwg.mxu0
    %1674 = vmatprep.subr.bf16.mxu0 %v555
    %1675 = vmatpush1.bf16.msra.mxu0 %v554
    %1676 = vmatprep.subr.bf16.mxu0 %v551
    %1677 = vmatpush1.bf16.msra.mxu0 %v550
    %1678 = vmatprep.subr.bf16.mxu0 %v547
    %1679 = vmatpush1.bf16.msra.mxu0 %v546
    %1680 = vmatprep.subr.bf16.mxu0 %v543
    %1681 = vmatpush1.bf16.msra.mxu0 %v542
    %1682 = vmatprep.subr.bf16.mxu0 %v539
    %1683 = vmatpush1.bf16.msra.mxu0 %v538
    %1684 = vmatprep.subr.bf16.mxu0 %v535
    %1685 = vmatpush1.bf16.msra.mxu0 %v534
    %1686 = vmatprep.subr.bf16.mxu0 %v531
    %1687 = vmatpush1.bf16.msra.mxu0 %v530
    %1688 = vmatprep.subr.bf16.mxu0 %v527
    %1689 = vmatpush1.bf16.msra.mxu0 %v526
    %1690 = vmatprep.subr.bf16.mxu0 0
    %1691 = vmatpush2.bf16.msra.mxu0 0
    %1692 = vmatprep.subr.bf16.mxu0 0
    %1693 = vmatpush2.bf16.msra.mxu0 0
    %1694 = vmatprep.subr.bf16.mxu0 0
    %1695 = vmatpush2.bf16.msra.mxu0 0
    %1696 = vmatprep.subr.bf16.mxu0 0
    %1697 = vmatpush2.bf16.msra.mxu0 0
    %1698 = vmatprep.subr.bf16.mxu0 0
    %1699 = vmatpush2.bf16.msra.mxu0 0
    %1700 = vmatprep.subr.bf16.mxu0 0
    %1701 = vmatpush2.bf16.msra.mxu0 0
    %1702 = vmatprep.subr.bf16.mxu0 0
    %1703 = vmatpush2.bf16.msra.mxu0 0
    %1704 = vmatprep.subr.bf16.mxu0 0
    %1705 = vmatpush2.bf16.msra.mxu0 0
    %1706 = vmatprep.mubr.bf16.mxu0 0
    %1707 = vmatmul.mubr.bf16.gmra.mxu0 %v1631
    %v1708 = vpop.f32.mrf.mxu0
    %v1709 = vadd.f32 0.0, %v1708
    %v1710 = vpop.f32.mrf.mxu0
    %v1711 = vadd.f32 0.0, %v1710
    %v1712 = vpop.f32.mrf.mxu0
    %v1713 = vpop.f32.mrf.mxu0
    %1714 = vdwg.mxu0
    %v1719 = vrot.slane %v1668, 2
    %v1720 = vrot.slane %v1670, 2
    %v1721 = vrot.slane %v1709, 2
    %v1722 = vrot.slane %v1711, 2
    %v1727 = vadd.f32 %v1625, %v1719
    %v1728 = vadd.f32 %v1626, %v1720
    %v1729 = vadd.f32 %v1627, %v1721
    %v1730 = vadd.f32 %v1628, %v1722
    %v1731 = vxor.u32 %v1727, 2147483648
    %v1732 = vmul.f32 %v1731, 1.442695
    %v1733 = vpow.pop %v1732
    %v1734 = vadd.f32 %v1733, 1.0
    %v1735 = vrcp.pop %v1734
    %v1736 = vmul.f32 1.0, %v1735
    %v1737 = vxor.u32 %v1728, 2147483648
    %v1738 = vmul.f32 %v1737, 1.442695
    %v1739 = vpow.pop %v1738
    %v1740 = vadd.f32 %v1739, 1.0
    %v1741 = vrcp.pop %v1740
    %v1742 = vmul.f32 1.0, %v1741
    %v1743 = vtanh.pop %v1729
    %v1744 = vxor.u32 %v1730, 2147483648
    %v1745 = vmul.f32 %v1744, 1.442695
    %v1746 = vpow.pop %v1745
    %v1747 = vadd.f32 %v1746, 1.0
    %v1748 = vrcp.pop %v1747
    %v1749 = vmul.f32 1.0, %v1748
    %v1751 = vrot.slane %v1601, 6
    %v1753 = vmul.f32 %v1742, %v1751
    %v1754 = vmul.f32 %v1736, %v1743
    %v1755 = vadd.f32 %v1753, %v1754
    %v1756 = vtanh.pop %v1755
    %v1757 = vmul.f32 %v1749, %v1756
    %1758 = vst [vmem:[#allocation4 + $0x8] sm:$0xc0] %v1757
    %v1759 = vld [vmem:[#allocation2 + $0x40] sm:$0x3]
    %v1760 = vld [vmem:[#allocation2 + $0x48] sm:$0x3]
    %v1761 = vld [vmem:[#allocation2 + $0x50] sm:$0x3]
    %v1762 = vld [vmem:[#allocation2 + $0x58] sm:$0x3]
    %v1763 = vld [vmem:[#allocation2 + $0x20] sm:$0xc0]
    %v1764 = vld [vmem:[#allocation2 + $0x28] sm:$0xc0]
    %v1765 = vld [vmem:[#allocation2 + $0x30] sm:$0xc0]
    %v1766 = vld [vmem:[#allocation2 + $0x38] sm:$0xc0]
    %v1771 = vrot.slane %v1763, 6
    %v1772 = vrot.slane %v1764, 6
    %v1773 = vrot.slane %v1765, 6
    %v1774 = vrot.slane %v1766, 6
    %v1779 = vsel %vm177, %v1759, %v1771
    %v1780 = vsel %vm178, %v1760, %v1772
    %v1781 = vsel %vm179, %v1761, %v1773
    %v1782 = vsel %vm180, %v1762, %v1774
    %v1783 = vpack.c.bf16 %v1757, %v1757
    %v1785 = vrot.slane %v1783, 3
    %1787 = vmatprep.subr.bf16.mxu0 %v553
    %1788 = vmatpush1.bf16.msra.mxu0 %v552
    %1789 = vmatprep.subr.bf16.mxu0 %v549
    %1790 = vmatpush1.bf16.msra.mxu0 %v548
    %1791 = vmatprep.subr.bf16.mxu0 %v545
    %1792 = vmatpush1.bf16.msra.mxu0 %v544
    %1793 = vmatprep.subr.bf16.mxu0 %v541
    %1794 = vmatpush1.bf16.msra.mxu0 %v540
    %1795 = vmatprep.subr.bf16.mxu0 %v537
    %1796 = vmatpush1.bf16.msra.mxu0 %v536
    %1797 = vmatprep.subr.bf16.mxu0 %v533
    %1798 = vmatpush1.bf16.msra.mxu0 %v532
    %1799 = vmatprep.subr.bf16.mxu0 %v529
    %1800 = vmatpush1.bf16.msra.mxu0 %v528
    %1801 = vmatprep.subr.bf16.mxu0 %v525
    %1802 = vmatpush1.bf16.msra.mxu0 %v524
    %1803 = vmatprep.subr.bf16.mxu0 0
    %1804 = vmatpush2.bf16.msra.mxu0 0
    %1805 = vmatprep.subr.bf16.mxu0 0
    %1806 = vmatpush2.bf16.msra.mxu0 0
    %1807 = vmatprep.subr.bf16.mxu0 0
    %1808 = vmatpush2.bf16.msra.mxu0 0
    %1809 = vmatprep.subr.bf16.mxu0 0
    %1810 = vmatpush2.bf16.msra.mxu0 0
    %1811 = vmatprep.subr.bf16.mxu0 0
    %1812 = vmatpush2.bf16.msra.mxu0 0
    %1813 = vmatprep.subr.bf16.mxu0 0
    %1814 = vmatpush2.bf16.msra.mxu0 0
    %1815 = vmatprep.subr.bf16.mxu0 0
    %1816 = vmatpush2.bf16.msra.mxu0 0
    %1817 = vmatprep.subr.bf16.mxu0 0
    %1818 = vmatpush2.bf16.msra.mxu0 0
    %1819 = vmatprep.mubr.bf16.mxu0 0
    %1820 = vmatmul.mubr.bf16.gmra.mxu0 %v1785
    %v1821 = vpop.f32.mrf.mxu0
    %v1822 = vadd.f32 0.0, %v1821
    %v1823 = vpop.f32.mrf.mxu0
    %v1824 = vadd.f32 0.0, %v1823
    %v1825 = vpop.f32.mrf.mxu0
    %v1826 = vpop.f32.mrf.mxu0
    %1827 = vdwg.mxu0
    %1828 = vmatprep.subr.bf16.mxu0 %v555
    %1829 = vmatpush1.bf16.msra.mxu0 %v554
    %1830 = vmatprep.subr.bf16.mxu0 %v551
    %1831 = vmatpush1.bf16.msra.mxu0 %v550
    %1832 = vmatprep.subr.bf16.mxu0 %v547
    %1833 = vmatpush1.bf16.msra.mxu0 %v546
    %1834 = vmatprep.subr.bf16.mxu0 %v543
    %1835 = vmatpush1.bf16.msra.mxu0 %v542
    %1836 = vmatprep.subr.bf16.mxu0 %v539
    %1837 = vmatpush1.bf16.msra.mxu0 %v538
    %1838 = vmatprep.subr.bf16.mxu0 %v535
    %1839 = vmatpush1.bf16.msra.mxu0 %v534
    %1840 = vmatprep.subr.bf16.mxu0 %v531
    %1841 = vmatpush1.bf16.msra.mxu0 %v530
    %1842 = vmatprep.subr.bf16.mxu0 %v527
    %1843 = vmatpush1.bf16.msra.mxu0 %v526
    %1844 = vmatprep.subr.bf16.mxu0 0
    %1845 = vmatpush2.bf16.msra.mxu0 0
    %1846 = vmatprep.subr.bf16.mxu0 0
    %1847 = vmatpush2.bf16.msra.mxu0 0
    %1848 = vmatprep.subr.bf16.mxu0 0
    %1849 = vmatpush2.bf16.msra.mxu0 0
    %1850 = vmatprep.subr.bf16.mxu0 0
    %1851 = vmatpush2.bf16.msra.mxu0 0
    %1852 = vmatprep.subr.bf16.mxu0 0
    %1853 = vmatpush2.bf16.msra.mxu0 0
    %1854 = vmatprep.subr.bf16.mxu0 0
    %1855 = vmatpush2.bf16.msra.mxu0 0
    %1856 = vmatprep.subr.bf16.mxu0 0
    %1857 = vmatpush2.bf16.msra.mxu0 0
    %1858 = vmatprep.subr.bf16.mxu0 0
    %1859 = vmatpush2.bf16.msra.mxu0 0
    %1860 = vmatprep.mubr.bf16.mxu0 0
    %1861 = vmatmul.mubr.bf16.gmra.mxu0 %v1785
    %v1862 = vpop.f32.mrf.mxu0
    %v1863 = vadd.f32 0.0, %v1862
    %v1864 = vpop.f32.mrf.mxu0
    %v1865 = vadd.f32 0.0, %v1864
    %v1866 = vpop.f32.mrf.mxu0
    %v1867 = vpop.f32.mrf.mxu0
    %1868 = vdwg.mxu0
    %v1869 = vadd.f32 %v1779, %v1822
    %v1870 = vadd.f32 %v1780, %v1824
    %v1871 = vadd.f32 %v1781, %v1863
    %v1872 = vadd.f32 %v1782, %v1865
    %v1873 = vxor.u32 %v1869, 2147483648
    %v1874 = vmul.f32 %v1873, 1.442695
    %v1875 = vpow.pop %v1874
    %v1876 = vadd.f32 %v1875, 1.0
    %v1877 = vrcp.pop %v1876
    %v1878 = vmul.f32 1.0, %v1877
    %v1879 = vxor.u32 %v1870, 2147483648
    %v1880 = vmul.f32 %v1879, 1.442695
    %v1881 = vpow.pop %v1880
    %v1882 = vadd.f32 %v1881, 1.0
    %v1883 = vrcp.pop %v1882
    %v1884 = vmul.f32 1.0, %v1883
    %v1885 = vtanh.pop %v1871
    %v1886 = vxor.u32 %v1872, 2147483648
    %v1887 = vmul.f32 %v1886, 1.442695
    %v1888 = vpow.pop %v1887
    %v1889 = vadd.f32 %v1888, 1.0
    %v1890 = vrcp.pop %v1889
    %v1891 = vmul.f32 1.0, %v1890
    %v1893 = vrot.slane %v1755, 6
    %v1895 = vmul.f32 %v1884, %v1893
    %v1896 = vmul.f32 %v1878, %v1885
    %v1897 = vadd.f32 %v1895, %v1896
    %v1898 = vtanh.pop %v1897
    %v1899 = vmul.f32 %v1891, %v1898
    %1900 = vst [vmem:[#allocation4 + $0x10] sm:$0x3] %v1899
    %v1901 = vld [vmem:[#allocation2 + $0x40] sm:$0xc]
    %v1902 = vld [vmem:[#allocation2 + $0x48] sm:$0xc]
    %v1903 = vld [vmem:[#allocation2 + $0x50] sm:$0xc]
    %v1904 = vld [vmem:[#allocation2 + $0x58] sm:$0xc]
    %v1905 = vld [vmem:[#allocation2 + $0x20] sm:$0x30]
    %v1906 = vld [vmem:[#allocation2 + $0x28] sm:$0x30]
    %v1907 = vld [vmem:[#allocation2 + $0x30] sm:$0x30]
    %v1908 = vld [vmem:[#allocation2 + $0x38] sm:$0x30]
    %v1913 = vrot.slane %v1905, 2
    %v1914 = vrot.slane %v1906, 2
    %v1915 = vrot.slane %v1907, 2
    %v1916 = vrot.slane %v1908, 2
    %v1921 = vsel %vm177, %v1901, %v1913
    %v1922 = vsel %vm178, %v1902, %v1914
    %v1923 = vsel %vm179, %v1903, %v1915
    %v1924 = vsel %vm180, %v1904, %v1916
    %v1925 = vpack.c.bf16 %v1899, %v1899
    %1926 = vmatprep.subr.bf16.mxu0 %v553
    %1927 = vmatpush1.bf16.msra.mxu0 %v552
    %1928 = vmatprep.subr.bf16.mxu0 %v549
    %1929 = vmatpush1.bf16.msra.mxu0 %v548
    %1930 = vmatprep.subr.bf16.mxu0 %v545
    %1931 = vmatpush1.bf16.msra.mxu0 %v544
    %1932 = vmatprep.subr.bf16.mxu0 %v541
    %1933 = vmatpush1.bf16.msra.mxu0 %v540
    %1934 = vmatprep.subr.bf16.mxu0 %v537
    %1935 = vmatpush1.bf16.msra.mxu0 %v536
    %1936 = vmatprep.subr.bf16.mxu0 %v533
    %1937 = vmatpush1.bf16.msra.mxu0 %v532
    %1938 = vmatprep.subr.bf16.mxu0 %v529
    %1939 = vmatpush1.bf16.msra.mxu0 %v528
    %1940 = vmatprep.subr.bf16.mxu0 %v525
    %1941 = vmatpush1.bf16.msra.mxu0 %v524
    %1942 = vmatprep.subr.bf16.mxu0 0
    %1943 = vmatpush2.bf16.msra.mxu0 0
    %1944 = vmatprep.subr.bf16.mxu0 0
    %1945 = vmatpush2.bf16.msra.mxu0 0
    %1946 = vmatprep.subr.bf16.mxu0 0
    %1947 = vmatpush2.bf16.msra.mxu0 0
    %1948 = vmatprep.subr.bf16.mxu0 0
    %1949 = vmatpush2.bf16.msra.mxu0 0
    %1950 = vmatprep.subr.bf16.mxu0 0
    %1951 = vmatpush2.bf16.msra.mxu0 0
    %1952 = vmatprep.subr.bf16.mxu0 0
    %1953 = vmatpush2.bf16.msra.mxu0 0
    %1954 = vmatprep.subr.bf16.mxu0 0
    %1955 = vmatpush2.bf16.msra.mxu0 0
    %1956 = vmatprep.subr.bf16.mxu0 0
    %1957 = vmatpush2.bf16.msra.mxu0 0
    %1958 = vmatprep.mubr.bf16.mxu0 0
    %1959 = vmatmul.mubr.bf16.gmra.mxu0 %v1925
    %v1960 = vpop.f32.mrf.mxu0
    %v1961 = vadd.f32 0.0, %v1960
    %v1962 = vpop.f32.mrf.mxu0
    %v1963 = vadd.f32 0.0, %v1962
    %v1964 = vpop.f32.mrf.mxu0
    %v1965 = vpop.f32.mrf.mxu0
    %1966 = vdwg.mxu0
    %1967 = vmatprep.subr.bf16.mxu0 %v555
    %1968 = vmatpush1.bf16.msra.mxu0 %v554
    %1969 = vmatprep.subr.bf16.mxu0 %v551
    %1970 = vmatpush1.bf16.msra.mxu0 %v550
    %1971 = vmatprep.subr.bf16.mxu0 %v547
    %1972 = vmatpush1.bf16.msra.mxu0 %v546
    %1973 = vmatprep.subr.bf16.mxu0 %v543
    %1974 = vmatpush1.bf16.msra.mxu0 %v542
    %1975 = vmatprep.subr.bf16.mxu0 %v539
    %1976 = vmatpush1.bf16.msra.mxu0 %v538
    %1977 = vmatprep.subr.bf16.mxu0 %v535
    %1978 = vmatpush1.bf16.msra.mxu0 %v534
    %1979 = vmatprep.subr.bf16.mxu0 %v531
    %1980 = vmatpush1.bf16.msra.mxu0 %v530
    %1981 = vmatprep.subr.bf16.mxu0 %v527
    %1982 = vmatpush1.bf16.msra.mxu0 %v526
    %1983 = vmatprep.subr.bf16.mxu0 0
    %1984 = vmatpush2.bf16.msra.mxu0 0
    %1985 = vmatprep.subr.bf16.mxu0 0
    %1986 = vmatpush2.bf16.msra.mxu0 0
    %1987 = vmatprep.subr.bf16.mxu0 0
    %1988 = vmatpush2.bf16.msra.mxu0 0
    %1989 = vmatprep.subr.bf16.mxu0 0
    %1990 = vmatpush2.bf16.msra.mxu0 0
    %1991 = vmatprep.subr.bf16.mxu0 0
    %1992 = vmatpush2.bf16.msra.mxu0 0
    %1993 = vmatprep.subr.bf16.mxu0 0
    %1994 = vmatpush2.bf16.msra.mxu0 0
    %1995 = vmatprep.subr.bf16.mxu0 0
    %1996 = vmatpush2.bf16.msra.mxu0 0
    %1997 = vmatprep.subr.bf16.mxu0 0
    %1998 = vmatpush2.bf16.msra.mxu0 0
    %1999 = vmatprep.mubr.bf16.mxu0 0
    %2000 = vmatmul.mubr.bf16.gmra.mxu0 %v1925
    %v2001 = vpop.f32.mrf.mxu0
    %v2002 = vadd.f32 0.0, %v2001
    %v2003 = vpop.f32.mrf.mxu0
    %v2004 = vadd.f32 0.0, %v2003
    %v2005 = vpop.f32.mrf.mxu0
    %v2006 = vpop.f32.mrf.mxu0
    %2007 = vdwg.mxu0
    %v2012 = vrot.slane %v1961, 6
    %v2013 = vrot.slane %v1963, 6
    %v2014 = vrot.slane %v2002, 6
    %v2015 = vrot.slane %v2004, 6
    %v2020 = vadd.f32 %v1921, %v2012
    %v2021 = vadd.f32 %v1922, %v2013
    %v2022 = vadd.f32 %v1923, %v2014
    %v2023 = vadd.f32 %v1924, %v2015
    %v2024 = vxor.u32 %v2020, 2147483648
    %v2025 = vmul.f32 %v2024, 1.442695
    %v2026 = vpow.pop %v2025
    %v2027 = vadd.f32 %v2026, 1.0
    %v2028 = vrcp.pop %v2027
    %v2029 = vmul.f32 1.0, %v2028
    %v2030 = vxor.u32 %v2021, 2147483648
    %v2031 = vmul.f32 %v2030, 1.442695
    %v2032 = vpow.pop %v2031
    %v2033 = vadd.f32 %v2032, 1.0
    %v2034 = vrcp.pop %v2033
    %v2035 = vmul.f32 1.0, %v2034
    %v2036 = vtanh.pop %v2022
    %v2037 = vxor.u32 %v2023, 2147483648
    %v2038 = vmul.f32 %v2037, 1.442695
    %v2039 = vpow.pop %v2038
    %v2040 = vadd.f32 %v2039, 1.0
    %v2041 = vrcp.pop %v2040
    %v2042 = vmul.f32 1.0, %v2041
    %v2044 = vrot.slane %v1897, 6
    %v2046 = vmul.f32 %v2035, %v2044
    %v2047 = vmul.f32 %v2029, %v2036
    %v2048 = vadd.f32 %v2046, %v2047
    %v2049 = vtanh.pop %v2048
    %v2050 = vmul.f32 %v2042, %v2049
    %2051 = vst [vmem:[#allocation4 + $0x10] sm:$0xc] %v2050
    %v2052 = vld [vmem:[#allocation2 + $0x40] sm:$0x30]
    %v2053 = vld [vmem:[#allocation2 + $0x48] sm:$0x30]
    %v2054 = vld [vmem:[#allocation2 + $0x50] sm:$0x30]
    %v2055 = vld [vmem:[#allocation2 + $0x58] sm:$0x30]
    %v2056 = vld [vmem:[#allocation2 + $0x20] sm:$0xc]
    %v2057 = vld [vmem:[#allocation2 + $0x28] sm:$0xc]
    %v2058 = vld [vmem:[#allocation2 + $0x30] sm:$0xc]
    %v2059 = vld [vmem:[#allocation2 + $0x38] sm:$0xc]
    %v2064 = vrot.slane %v2056, 6
    %v2065 = vrot.slane %v2057, 6
    %v2066 = vrot.slane %v2058, 6
    %v2067 = vrot.slane %v2059, 6
    %v2072 = vsel %vm177, %v2052, %v2064
    %v2073 = vsel %vm178, %v2053, %v2065
    %v2074 = vsel %vm179, %v2054, %v2066
    %v2075 = vsel %vm180, %v2055, %v2067
    %v2076 = vpack.c.bf16 %v2050, %v2050
    %v2078 = vrot.slane %v2076, 1
    %2080 = vmatprep.subr.bf16.mxu0 %v553
    %2081 = vmatpush1.bf16.msra.mxu0 %v552
    %2082 = vmatprep.subr.bf16.mxu0 %v549
    %2083 = vmatpush1.bf16.msra.mxu0 %v548
    %2084 = vmatprep.subr.bf16.mxu0 %v545
    %2085 = vmatpush1.bf16.msra.mxu0 %v544
    %2086 = vmatprep.subr.bf16.mxu0 %v541
    %2087 = vmatpush1.bf16.msra.mxu0 %v540
    %2088 = vmatprep.subr.bf16.mxu0 %v537
    %2089 = vmatpush1.bf16.msra.mxu0 %v536
    %2090 = vmatprep.subr.bf16.mxu0 %v533
    %2091 = vmatpush1.bf16.msra.mxu0 %v532
    %2092 = vmatprep.subr.bf16.mxu0 %v529
    %2093 = vmatpush1.bf16.msra.mxu0 %v528
    %2094 = vmatprep.subr.bf16.mxu0 %v525
    %2095 = vmatpush1.bf16.msra.mxu0 %v524
    %2096 = vmatprep.subr.bf16.mxu0 0
    %2097 = vmatpush2.bf16.msra.mxu0 0
    %2098 = vmatprep.subr.bf16.mxu0 0
    %2099 = vmatpush2.bf16.msra.mxu0 0
    %2100 = vmatprep.subr.bf16.mxu0 0
    %2101 = vmatpush2.bf16.msra.mxu0 0
    %2102 = vmatprep.subr.bf16.mxu0 0
    %2103 = vmatpush2.bf16.msra.mxu0 0
    %2104 = vmatprep.subr.bf16.mxu0 0
    %2105 = vmatpush2.bf16.msra.mxu0 0
    %2106 = vmatprep.subr.bf16.mxu0 0
    %2107 = vmatpush2.bf16.msra.mxu0 0
    %2108 = vmatprep.subr.bf16.mxu0 0
    %2109 = vmatpush2.bf16.msra.mxu0 0
    %2110 = vmatprep.subr.bf16.mxu0 0
    %2111 = vmatpush2.bf16.msra.mxu0 0
    %2112 = vmatprep.mubr.bf16.mxu0 0
    %2113 = vmatmul.mubr.bf16.gmra.mxu0 %v2078
    %v2114 = vpop.f32.mrf.mxu0
    %v2115 = vadd.f32 0.0, %v2114
    %v2116 = vpop.f32.mrf.mxu0
    %v2117 = vadd.f32 0.0, %v2116
    %v2118 = vpop.f32.mrf.mxu0
    %v2119 = vpop.f32.mrf.mxu0
    %2120 = vdwg.mxu0
    %2121 = vmatprep.subr.bf16.mxu0 %v555
    %2122 = vmatpush1.bf16.msra.mxu0 %v554
    %2123 = vmatprep.subr.bf16.mxu0 %v551
    %2124 = vmatpush1.bf16.msra.mxu0 %v550
    %2125 = vmatprep.subr.bf16.mxu0 %v547
    %2126 = vmatpush1.bf16.msra.mxu0 %v546
    %2127 = vmatprep.subr.bf16.mxu0 %v543
    %2128 = vmatpush1.bf16.msra.mxu0 %v542
    %2129 = vmatprep.subr.bf16.mxu0 %v539
    %2130 = vmatpush1.bf16.msra.mxu0 %v538
    %2131 = vmatprep.subr.bf16.mxu0 %v535
    %2132 = vmatpush1.bf16.msra.mxu0 %v534
    %2133 = vmatprep.subr.bf16.mxu0 %v531
    %2134 = vmatpush1.bf16.msra.mxu0 %v530
    %2135 = vmatprep.subr.bf16.mxu0 %v527
    %2136 = vmatpush1.bf16.msra.mxu0 %v526
    %2137 = vmatprep.subr.bf16.mxu0 0
    %2138 = vmatpush2.bf16.msra.mxu0 0
    %2139 = vmatprep.subr.bf16.mxu0 0
    %2140 = vmatpush2.bf16.msra.mxu0 0
    %2141 = vmatprep.subr.bf16.mxu0 0
    %2142 = vmatpush2.bf16.msra.mxu0 0
    %2143 = vmatprep.subr.bf16.mxu0 0
    %2144 = vmatpush2.bf16.msra.mxu0 0
    %2145 = vmatprep.subr.bf16.mxu0 0
    %2146 = vmatpush2.bf16.msra.mxu0 0
    %2147 = vmatprep.subr.bf16.mxu0 0
    %2148 = vmatpush2.bf16.msra.mxu0 0
    %2149 = vmatprep.subr.bf16.mxu0 0
    %2150 = vmatpush2.bf16.msra.mxu0 0
    %2151 = vmatprep.subr.bf16.mxu0 0
    %2152 = vmatpush2.bf16.msra.mxu0 0
    %2153 = vmatprep.mubr.bf16.mxu0 0
    %2154 = vmatmul.mubr.bf16.gmra.mxu0 %v2078
    %v2155 = vpop.f32.mrf.mxu0
    %v2156 = vadd.f32 0.0, %v2155
    %v2157 = vpop.f32.mrf.mxu0
    %v2158 = vadd.f32 0.0, %v2157
    %v2159 = vpop.f32.mrf.mxu0
    %v2160 = vpop.f32.mrf.mxu0
    %2161 = vdwg.mxu0
    %v2166 = vrot.slane %v2115, 4
    %v2167 = vrot.slane %v2117, 4
    %v2168 = vrot.slane %v2156, 4
    %v2169 = vrot.slane %v2158, 4
    %v2174 = vadd.f32 %v2072, %v2166
    %v2175 = vadd.f32 %v2073, %v2167
    %v2176 = vadd.f32 %v2074, %v2168
    %v2177 = vadd.f32 %v2075, %v2169
    %v2178 = vxor.u32 %v2174, 2147483648
    %v2179 = vmul.f32 %v2178, 1.442695
    %v2180 = vpow.pop %v2179
    %v2181 = vadd.f32 %v2180, 1.0
    %v2182 = vrcp.pop %v2181
    %v2183 = vmul.f32 1.0, %v2182
    %v2184 = vxor.u32 %v2175, 2147483648
    %v2185 = vmul.f32 %v2184, 1.442695
    %v2186 = vpow.pop %v2185
    %v2187 = vadd.f32 %v2186, 1.0
    %v2188 = vrcp.pop %v2187
    %v2189 = vmul.f32 1.0, %v2188
    %v2190 = vtanh.pop %v2176
    %v2191 = vxor.u32 %v2177, 2147483648
    %v2192 = vmul.f32 %v2191, 1.442695
    %v2193 = vpow.pop %v2192
    %v2194 = vadd.f32 %v2193, 1.0
    %v2195 = vrcp.pop %v2194
    %v2196 = vmul.f32 1.0, %v2195
    %v2198 = vrot.slane %v2048, 6
    %v2200 = vmul.f32 %v2189, %v2198
    %v2201 = vmul.f32 %v2183, %v2190
    %v2202 = vadd.f32 %v2200, %v2201
    %v2203 = vtanh.pop %v2202
    %v2204 = vmul.f32 %v2196, %v2203
    %2205 = vst [vmem:[#allocation4 + $0x10] sm:$0x30] %v2204
    %v2206 = vld [vmem:[#allocation2 + $0x40] sm:$0xc0]
    %v2207 = vld [vmem:[#allocation2 + $0x48] sm:$0xc0]
    %v2208 = vld [vmem:[#allocation2 + $0x50] sm:$0xc0]
    %v2209 = vld [vmem:[#allocation2 + $0x58] sm:$0xc0]
    %v2210 = vld [vmem:[#allocation2 + $0x20] sm:$0x3]
    %v2211 = vld [vmem:[#allocation2 + $0x28] sm:$0x3]
    %v2212 = vld [vmem:[#allocation2 + $0x30] sm:$0x3]
    %v2213 = vld [vmem:[#allocation2 + $0x38] sm:$0x3]
    %v2218 = vrot.slane %v2210, 2
    %v2219 = vrot.slane %v2211, 2
    %v2220 = vrot.slane %v2212, 2
    %v2221 = vrot.slane %v2213, 2
    %v2226 = vsel %vm177, %v2206, %v2218
    %v2227 = vsel %vm178, %v2207, %v2219
    %v2228 = vsel %vm179, %v2208, %v2220
    %v2229 = vsel %vm180, %v2209, %v2221
    %v2230 = vpack.c.bf16 %v2204, %v2204
    %v2232 = vrot.slane %v2230, 2
    %2234 = vmatprep.subr.bf16.mxu0 %v553
    %2235 = vmatpush1.bf16.msra.mxu0 %v552
    %2236 = vmatprep.subr.bf16.mxu0 %v549
    %2237 = vmatpush1.bf16.msra.mxu0 %v548
    %2238 = vmatprep.subr.bf16.mxu0 %v545
    %2239 = vmatpush1.bf16.msra.mxu0 %v544
    %2240 = vmatprep.subr.bf16.mxu0 %v541
    %2241 = vmatpush1.bf16.msra.mxu0 %v540
    %2242 = vmatprep.subr.bf16.mxu0 %v537
    %2243 = vmatpush1.bf16.msra.mxu0 %v536
    %2244 = vmatprep.subr.bf16.mxu0 %v533
    %2245 = vmatpush1.bf16.msra.mxu0 %v532
    %2246 = vmatprep.subr.bf16.mxu0 %v529
    %2247 = vmatpush1.bf16.msra.mxu0 %v528
    %2248 = vmatprep.subr.bf16.mxu0 %v525
    %2249 = vmatpush1.bf16.msra.mxu0 %v524
    %2250 = vmatprep.subr.bf16.mxu0 0
    %2251 = vmatpush2.bf16.msra.mxu0 0
    %2252 = vmatprep.subr.bf16.mxu0 0
    %2253 = vmatpush2.bf16.msra.mxu0 0
    %2254 = vmatprep.subr.bf16.mxu0 0
    %2255 = vmatpush2.bf16.msra.mxu0 0
    %2256 = vmatprep.subr.bf16.mxu0 0
    %2257 = vmatpush2.bf16.msra.mxu0 0
    %2258 = vmatprep.subr.bf16.mxu0 0
    %2259 = vmatpush2.bf16.msra.mxu0 0
    %2260 = vmatprep.subr.bf16.mxu0 0
    %2261 = vmatpush2.bf16.msra.mxu0 0
    %2262 = vmatprep.subr.bf16.mxu0 0
    %2263 = vmatpush2.bf16.msra.mxu0 0
    %2264 = vmatprep.subr.bf16.mxu0 0
    %2265 = vmatpush2.bf16.msra.mxu0 0
    %2266 = vmatprep.mubr.bf16.mxu0 0
    %2267 = vmatmul.mubr.bf16.gmra.mxu0 %v2232
    %v2268 = vpop.f32.mrf.mxu0
    %v2269 = vadd.f32 0.0, %v2268
    %v2270 = vpop.f32.mrf.mxu0
    %v2271 = vadd.f32 0.0, %v2270
    %v2272 = vpop.f32.mrf.mxu0
    %v2273 = vpop.f32.mrf.mxu0
    %2274 = vdwg.mxu0
    %2275 = vmatprep.subr.bf16.mxu0 %v555
    %2276 = vmatpush1.bf16.msra.mxu0 %v554
    %2277 = vmatprep.subr.bf16.mxu0 %v551
    %2278 = vmatpush1.bf16.msra.mxu0 %v550
    %2279 = vmatprep.subr.bf16.mxu0 %v547
    %2280 = vmatpush1.bf16.msra.mxu0 %v546
    %2281 = vmatprep.subr.bf16.mxu0 %v543
    %2282 = vmatpush1.bf16.msra.mxu0 %v542
    %2283 = vmatprep.subr.bf16.mxu0 %v539
    %2284 = vmatpush1.bf16.msra.mxu0 %v538
    %2285 = vmatprep.subr.bf16.mxu0 %v535
    %2286 = vmatpush1.bf16.msra.mxu0 %v534
    %2287 = vmatprep.subr.bf16.mxu0 %v531
    %2288 = vmatpush1.bf16.msra.mxu0 %v530
    %2289 = vmatprep.subr.bf16.mxu0 %v527
    %2290 = vmatpush1.bf16.msra.mxu0 %v526
    %2291 = vmatprep.subr.bf16.mxu0 0
    %2292 = vmatpush2.bf16.msra.mxu0 0
    %2293 = vmatprep.subr.bf16.mxu0 0
    %2294 = vmatpush2.bf16.msra.mxu0 0
    %2295 = vmatprep.subr.bf16.mxu0 0
    %2296 = vmatpush2.bf16.msra.mxu0 0
    %2297 = vmatprep.subr.bf16.mxu0 0
    %2298 = vmatpush2.bf16.msra.mxu0 0
    %2299 = vmatprep.subr.bf16.mxu0 0
    %2300 = vmatpush2.bf16.msra.mxu0 0
    %2301 = vmatprep.subr.bf16.mxu0 0
    %2302 = vmatpush2.bf16.msra.mxu0 0
    %2303 = vmatprep.subr.bf16.mxu0 0
    %2304 = vmatpush2.bf16.msra.mxu0 0
    %2305 = vmatprep.subr.bf16.mxu0 0
    %2306 = vmatpush2.bf16.msra.mxu0 0
    %2307 = vmatprep.mubr.bf16.mxu0 0
    %2308 = vmatmul.mubr.bf16.gmra.mxu0 %v2232
    %v2309 = vpop.f32.mrf.mxu0
    %v2310 = vadd.f32 0.0, %v2309
    %v2311 = vpop.f32.mrf.mxu0
    %v2312 = vadd.f32 0.0, %v2311
    %v2313 = vpop.f32.mrf.mxu0
    %v2314 = vpop.f32.mrf.mxu0
    %2315 = vdwg.mxu0
    %v2320 = vrot.slane %v2269, 2
    %v2321 = vrot.slane %v2271, 2
    %v2322 = vrot.slane %v2310, 2
    %v2323 = vrot.slane %v2312, 2
    %v2328 = vadd.f32 %v2226, %v2320
    %v2329 = vadd.f32 %v2227, %v2321
    %v2330 = vadd.f32 %v2228, %v2322
    %v2331 = vadd.f32 %v2229, %v2323
    %v2332 = vxor.u32 %v2328, 2147483648
    %v2333 = vmul.f32 %v2332, 1.442695
    %v2334 = vpow.pop %v2333
    %v2335 = vadd.f32 %v2334, 1.0
    %v2336 = vrcp.pop %v2335
    %v2337 = vmul.f32 1.0, %v2336
    %v2338 = vxor.u32 %v2329, 2147483648
    %v2339 = vmul.f32 %v2338, 1.442695
    %v2340 = vpow.pop %v2339
    %v2341 = vadd.f32 %v2340, 1.0
    %v2342 = vrcp.pop %v2341
    %v2343 = vmul.f32 1.0, %v2342
    %v2344 = vtanh.pop %v2330
    %v2345 = vxor.u32 %v2331, 2147483648
    %v2346 = vmul.f32 %v2345, 1.442695
    %v2347 = vpow.pop %v2346
    %v2348 = vadd.f32 %v2347, 1.0
    %v2349 = vrcp.pop %v2348
    %v2350 = vmul.f32 1.0, %v2349
    %v2352 = vrot.slane %v2202, 6
    %v2354 = vmul.f32 %v2343, %v2352
    %v2355 = vmul.f32 %v2337, %v2344
    %v2356 = vadd.f32 %v2354, %v2355
    %v2357 = vtanh.pop %v2356
    %v2358 = vmul.f32 %v2350, %v2357
    %2359 = vst [vmem:[#allocation4 + $0x10] sm:$0xc0] %v2358
    %v2360 = vld [vmem:[#allocation2 + $0x60] sm:$0x3]
    %v2361 = vld [vmem:[#allocation2 + $0x68] sm:$0x3]
    %v2362 = vld [vmem:[#allocation2 + $0x70] sm:$0x3]
    %v2363 = vld [vmem:[#allocation2 + $0x78] sm:$0x3]
    %v2364 = vld [vmem:[#allocation2] sm:$0xc0]
    %v2365 = vld [vmem:[#allocation2 + $0x8] sm:$0xc0]
    %v2366 = vld [vmem:[#allocation2 + $0x10] sm:$0xc0]
    %v2367 = vld [vmem:[#allocation2 + $0x18] sm:$0xc0]
    %v2372 = vrot.slane %v2364, 6
    %v2373 = vrot.slane %v2365, 6
    %v2374 = vrot.slane %v2366, 6
    %v2375 = vrot.slane %v2367, 6
    %v2380 = vsel %vm177, %v2360, %v2372
    %v2381 = vsel %vm178, %v2361, %v2373
    %v2382 = vsel %vm179, %v2362, %v2374
    %v2383 = vsel %vm180, %v2363, %v2375
    %v2384 = vpack.c.bf16 %v2358, %v2358
    %v2386 = vrot.slane %v2384, 3
    %2388 = vmatprep.subr.bf16.mxu0 %v553
    %2389 = vmatpush1.bf16.msra.mxu0 %v552
    %2390 = vmatprep.subr.bf16.mxu0 %v549
    %2391 = vmatpush1.bf16.msra.mxu0 %v548
    %2392 = vmatprep.subr.bf16.mxu0 %v545
    %2393 = vmatpush1.bf16.msra.mxu0 %v544
    %2394 = vmatprep.subr.bf16.mxu0 %v541
    %2395 = vmatpush1.bf16.msra.mxu0 %v540
    %2396 = vmatprep.subr.bf16.mxu0 %v537
    %2397 = vmatpush1.bf16.msra.mxu0 %v536
    %2398 = vmatprep.subr.bf16.mxu0 %v533
    %2399 = vmatpush1.bf16.msra.mxu0 %v532
    %2400 = vmatprep.subr.bf16.mxu0 %v529
    %2401 = vmatpush1.bf16.msra.mxu0 %v528
    %2402 = vmatprep.subr.bf16.mxu0 %v525
    %2403 = vmatpush1.bf16.msra.mxu0 %v524
    %2404 = vmatprep.subr.bf16.mxu0 0
    %2405 = vmatpush2.bf16.msra.mxu0 0
    %2406 = vmatprep.subr.bf16.mxu0 0
    %2407 = vmatpush2.bf16.msra.mxu0 0
    %2408 = vmatprep.subr.bf16.mxu0 0
    %2409 = vmatpush2.bf16.msra.mxu0 0
    %2410 = vmatprep.subr.bf16.mxu0 0
    %2411 = vmatpush2.bf16.msra.mxu0 0
    %2412 = vmatprep.subr.bf16.mxu0 0
    %2413 = vmatpush2.bf16.msra.mxu0 0
    %2414 = vmatprep.subr.bf16.mxu0 0
    %2415 = vmatpush2.bf16.msra.mxu0 0
    %2416 = vmatprep.subr.bf16.mxu0 0
    %2417 = vmatpush2.bf16.msra.mxu0 0
    %2418 = vmatprep.subr.bf16.mxu0 0
    %2419 = vmatpush2.bf16.msra.mxu0 0
    %2420 = vmatprep.mubr.bf16.mxu0 0
    %2421 = vmatmul.mubr.bf16.gmra.mxu0 %v2386
    %v2422 = vpop.f32.mrf.mxu0
    %v2423 = vadd.f32 0.0, %v2422
    %v2424 = vpop.f32.mrf.mxu0
    %v2425 = vadd.f32 0.0, %v2424
    %v2426 = vpop.f32.mrf.mxu0
    %v2427 = vpop.f32.mrf.mxu0
    %2428 = vdwg.mxu0
    %2429 = vmatprep.subr.bf16.mxu0 %v555
    %2430 = vmatpush1.bf16.msra.mxu0 %v554
    %2431 = vmatprep.subr.bf16.mxu0 %v551
    %2432 = vmatpush1.bf16.msra.mxu0 %v550
    %2433 = vmatprep.subr.bf16.mxu0 %v547
    %2434 = vmatpush1.bf16.msra.mxu0 %v546
    %2435 = vmatprep.subr.bf16.mxu0 %v543
    %2436 = vmatpush1.bf16.msra.mxu0 %v542
    %2437 = vmatprep.subr.bf16.mxu0 %v539
    %2438 = vmatpush1.bf16.msra.mxu0 %v538
    %2439 = vmatprep.subr.bf16.mxu0 %v535
    %2440 = vmatpush1.bf16.msra.mxu0 %v534
    %2441 = vmatprep.subr.bf16.mxu0 %v531
    %2442 = vmatpush1.bf16.msra.mxu0 %v530
    %2443 = vmatprep.subr.bf16.mxu0 %v527
    %2444 = vmatpush1.bf16.msra.mxu0 %v526
    %2445 = vmatprep.subr.bf16.mxu0 0
    %2446 = vmatpush2.bf16.msra.mxu0 0
    %2447 = vmatprep.subr.bf16.mxu0 0
    %2448 = vmatpush2.bf16.msra.mxu0 0
    %2449 = vmatprep.subr.bf16.mxu0 0
    %2450 = vmatpush2.bf16.msra.mxu0 0
    %2451 = vmatprep.subr.bf16.mxu0 0
    %2452 = vmatpush2.bf16.msra.mxu0 0
    %2453 = vmatprep.subr.bf16.mxu0 0
    %2454 = vmatpush2.bf16.msra.mxu0 0
    %2455 = vmatprep.subr.bf16.mxu0 0
    %2456 = vmatpush2.bf16.msra.mxu0 0
    %2457 = vmatprep.subr.bf16.mxu0 0
    %2458 = vmatpush2.bf16.msra.mxu0 0
    %2459 = vmatprep.subr.bf16.mxu0 0
    %2460 = vmatpush2.bf16.msra.mxu0 0
    %2461 = vmatprep.mubr.bf16.mxu0 0
    %2462 = vmatmul.mubr.bf16.gmra.mxu0 %v2386
    %v2463 = vpop.f32.mrf.mxu0
    %v2464 = vadd.f32 0.0, %v2463
    %v2465 = vpop.f32.mrf.mxu0
    %v2466 = vadd.f32 0.0, %v2465
    %v2467 = vpop.f32.mrf.mxu0
    %v2468 = vpop.f32.mrf.mxu0
    %2469 = vdwg.mxu0
    %v2470 = vadd.f32 %v2380, %v2423
    %v2471 = vadd.f32 %v2381, %v2425
    %v2472 = vadd.f32 %v2382, %v2464
    %v2473 = vadd.f32 %v2383, %v2466
    %v2474 = vxor.u32 %v2470, 2147483648
    %v2475 = vmul.f32 %v2474, 1.442695
    %v2476 = vpow.pop %v2475
    %v2477 = vadd.f32 %v2476, 1.0
    %v2478 = vrcp.pop %v2477
    %v2479 = vmul.f32 1.0, %v2478
    %v2480 = vxor.u32 %v2471, 2147483648
    %v2481 = vmul.f32 %v2480, 1.442695
    %v2482 = vpow.pop %v2481
    %v2483 = vadd.f32 %v2482, 1.0
    %v2484 = vrcp.pop %v2483
    %v2485 = vmul.f32 1.0, %v2484
    %v2486 = vtanh.pop %v2472
    %v2487 = vxor.u32 %v2473, 2147483648
    %v2488 = vmul.f32 %v2487, 1.442695
    %v2489 = vpow.pop %v2488
    %v2490 = vadd.f32 %v2489, 1.0
    %v2491 = vrcp.pop %v2490
    %v2492 = vmul.f32 1.0, %v2491
    %v2494 = vrot.slane %v2356, 6
    %v2496 = vmul.f32 %v2485, %v2494
    %v2497 = vmul.f32 %v2479, %v2486
    %v2498 = vadd.f32 %v2496, %v2497
    %v2499 = vtanh.pop %v2498
    %v2500 = vmul.f32 %v2492, %v2499
    %2501 = vst [vmem:[#allocation4 + $0x18] sm:$0x3] %v2500
    %v2502 = vld [vmem:[#allocation2 + $0x60] sm:$0xc]
    %v2503 = vld [vmem:[#allocation2 + $0x68] sm:$0xc]
    %v2504 = vld [vmem:[#allocation2 + $0x70] sm:$0xc]
    %v2505 = vld [vmem:[#allocation2 + $0x78] sm:$0xc]
    %v2506 = vld [vmem:[#allocation2] sm:$0x30]
    %v2507 = vld [vmem:[#allocation2 + $0x8] sm:$0x30]
    %v2508 = vld [vmem:[#allocation2 + $0x10] sm:$0x30]
    %v2509 = vld [vmem:[#allocation2 + $0x18] sm:$0x30]
    %v2514 = vrot.slane %v2506, 2
    %v2515 = vrot.slane %v2507, 2
    %v2516 = vrot.slane %v2508, 2
    %v2517 = vrot.slane %v2509, 2
    %v2522 = vsel %vm177, %v2502, %v2514
    %v2523 = vsel %vm178, %v2503, %v2515
    %v2524 = vsel %vm179, %v2504, %v2516
    %v2525 = vsel %vm180, %v2505, %v2517
    %v2526 = vpack.c.bf16 %v2500, %v2500
    %2527 = vmatprep.subr.bf16.mxu0 %v553
    %2528 = vmatpush1.bf16.msra.mxu0 %v552
    %2529 = vmatprep.subr.bf16.mxu0 %v549
    %2530 = vmatpush1.bf16.msra.mxu0 %v548
    %2531 = vmatprep.subr.bf16.mxu0 %v545
    %2532 = vmatpush1.bf16.msra.mxu0 %v544
    %2533 = vmatprep.subr.bf16.mxu0 %v541
    %2534 = vmatpush1.bf16.msra.mxu0 %v540
    %2535 = vmatprep.subr.bf16.mxu0 %v537
    %2536 = vmatpush1.bf16.msra.mxu0 %v536
    %2537 = vmatprep.subr.bf16.mxu0 %v533
    %2538 = vmatpush1.bf16.msra.mxu0 %v532
    %2539 = vmatprep.subr.bf16.mxu0 %v529
    %2540 = vmatpush1.bf16.msra.mxu0 %v528
    %2541 = vmatprep.subr.bf16.mxu0 %v525
    %2542 = vmatpush1.bf16.msra.mxu0 %v524
    %2543 = vmatprep.subr.bf16.mxu0 0
    %2544 = vmatpush2.bf16.msra.mxu0 0
    %2545 = vmatprep.subr.bf16.mxu0 0
    %2546 = vmatpush2.bf16.msra.mxu0 0
    %2547 = vmatprep.subr.bf16.mxu0 0
    %2548 = vmatpush2.bf16.msra.mxu0 0
    %2549 = vmatprep.subr.bf16.mxu0 0
    %2550 = vmatpush2.bf16.msra.mxu0 0
    %2551 = vmatprep.subr.bf16.mxu0 0
    %2552 = vmatpush2.bf16.msra.mxu0 0
    %2553 = vmatprep.subr.bf16.mxu0 0
    %2554 = vmatpush2.bf16.msra.mxu0 0
    %2555 = vmatprep.subr.bf16.mxu0 0
    %2556 = vmatpush2.bf16.msra.mxu0 0
    %2557 = vmatprep.subr.bf16.mxu0 0
    %2558 = vmatpush2.bf16.msra.mxu0 0
    %2559 = vmatprep.mubr.bf16.mxu0 0
    %2560 = vmatmul.mubr.bf16.gmra.mxu0 %v2526
    %v2561 = vpop.f32.mrf.mxu0
    %v2562 = vadd.f32 0.0, %v2561
    %v2563 = vpop.f32.mrf.mxu0
    %v2564 = vadd.f32 0.0, %v2563
    %v2565 = vpop.f32.mrf.mxu0
    %v2566 = vpop.f32.mrf.mxu0
    %2567 = vdwg.mxu0
    %2568 = vmatprep.subr.bf16.mxu0 %v555
    %2569 = vmatpush1.bf16.msra.mxu0 %v554
    %2570 = vmatprep.subr.bf16.mxu0 %v551
    %2571 = vmatpush1.bf16.msra.mxu0 %v550
    %2572 = vmatprep.subr.bf16.mxu0 %v547
    %2573 = vmatpush1.bf16.msra.mxu0 %v546
    %2574 = vmatprep.subr.bf16.mxu0 %v543
    %2575 = vmatpush1.bf16.msra.mxu0 %v542
    %2576 = vmatprep.subr.bf16.mxu0 %v539
    %2577 = vmatpush1.bf16.msra.mxu0 %v538
    %2578 = vmatprep.subr.bf16.mxu0 %v535
    %2579 = vmatpush1.bf16.msra.mxu0 %v534
    %2580 = vmatprep.subr.bf16.mxu0 %v531
    %2581 = vmatpush1.bf16.msra.mxu0 %v530
    %2582 = vmatprep.subr.bf16.mxu0 %v527
    %2583 = vmatpush1.bf16.msra.mxu0 %v526
    %2584 = vmatprep.subr.bf16.mxu0 0
    %2585 = vmatpush2.bf16.msra.mxu0 0
    %2586 = vmatprep.subr.bf16.mxu0 0
    %2587 = vmatpush2.bf16.msra.mxu0 0
    %2588 = vmatprep.subr.bf16.mxu0 0
    %2589 = vmatpush2.bf16.msra.mxu0 0
    %2590 = vmatprep.subr.bf16.mxu0 0
    %2591 = vmatpush2.bf16.msra.mxu0 0
    %2592 = vmatprep.subr.bf16.mxu0 0
    %2593 = vmatpush2.bf16.msra.mxu0 0
    %2594 = vmatprep.subr.bf16.mxu0 0
    %2595 = vmatpush2.bf16.msra.mxu0 0
    %2596 = vmatprep.subr.bf16.mxu0 0
    %2597 = vmatpush2.bf16.msra.mxu0 0
    %2598 = vmatprep.subr.bf16.mxu0 0
    %2599 = vmatpush2.bf16.msra.mxu0 0
    %2600 = vmatprep.mubr.bf16.mxu0 0
    %2601 = vmatmul.mubr.bf16.gmra.mxu0 %v2526
    %v2602 = vpop.f32.mrf.mxu0
    %v2603 = vadd.f32 0.0, %v2602
    %v2604 = vpop.f32.mrf.mxu0
    %v2605 = vadd.f32 0.0, %v2604
    %v2606 = vpop.f32.mrf.mxu0
    %v2607 = vpop.f32.mrf.mxu0
    %2608 = vdwg.mxu0
    %v2613 = vrot.slane %v2562, 6
    %v2614 = vrot.slane %v2564, 6
    %v2615 = vrot.slane %v2603, 6
    %v2616 = vrot.slane %v2605, 6
    %v2621 = vadd.f32 %v2522, %v2613
    %v2622 = vadd.f32 %v2523, %v2614
    %v2623 = vadd.f32 %v2524, %v2615
    %v2624 = vadd.f32 %v2525, %v2616
    %v2625 = vxor.u32 %v2621, 2147483648
    %v2626 = vmul.f32 %v2625, 1.442695
    %v2627 = vpow.pop %v2626
    %v2628 = vadd.f32 %v2627, 1.0
    %v2629 = vrcp.pop %v2628
    %v2630 = vmul.f32 1.0, %v2629
    %v2631 = vxor.u32 %v2622, 2147483648
    %v2632 = vmul.f32 %v2631, 1.442695
    %v2633 = vpow.pop %v2632
    %v2634 = vadd.f32 %v2633, 1.0
    %v2635 = vrcp.pop %v2634
    %v2636 = vmul.f32 1.0, %v2635
    %v2637 = vtanh.pop %v2623
    %v2638 = vxor.u32 %v2624, 2147483648
    %v2639 = vmul.f32 %v2638, 1.442695
    %v2640 = vpow.pop %v2639
    %v2641 = vadd.f32 %v2640, 1.0
    %v2642 = vrcp.pop %v2641
    %v2643 = vmul.f32 1.0, %v2642
    %v2645 = vrot.slane %v2498, 6
    %v2647 = vmul.f32 %v2636, %v2645
    %v2648 = vmul.f32 %v2630, %v2637
    %v2649 = vadd.f32 %v2647, %v2648
    %v2650 = vtanh.pop %v2649
    %v2651 = vmul.f32 %v2643, %v2650
    %2652 = vst [vmem:[#allocation4 + $0x18] sm:$0xc] %v2651
    %v2653 = vld [vmem:[#allocation2 + $0x60] sm:$0x30]
    %v2654 = vld [vmem:[#allocation2 + $0x68] sm:$0x30]
    %v2655 = vld [vmem:[#allocation2 + $0x70] sm:$0x30]
    %v2656 = vld [vmem:[#allocation2 + $0x78] sm:$0x30]
    %v2657 = vld [vmem:[#allocation2] sm:$0xc]
    %v2658 = vld [vmem:[#allocation2 + $0x8] sm:$0xc]
    %v2659 = vld [vmem:[#allocation2 + $0x10] sm:$0xc]
    %v2660 = vld [vmem:[#allocation2 + $0x18] sm:$0xc]
    %v2665 = vrot.slane %v2657, 6
    %v2666 = vrot.slane %v2658, 6
    %v2667 = vrot.slane %v2659, 6
    %v2668 = vrot.slane %v2660, 6
    %v2673 = vsel %vm177, %v2653, %v2665
    %v2674 = vsel %vm178, %v2654, %v2666
    %v2675 = vsel %vm179, %v2655, %v2667
    %v2676 = vsel %vm180, %v2656, %v2668
    %v2677 = vpack.c.bf16 %v2651, %v2651
    %v2679 = vrot.slane %v2677, 1
    %2681 = vmatprep.subr.bf16.mxu0 %v553
    %2682 = vmatpush1.bf16.msra.mxu0 %v552
    %2683 = vmatprep.subr.bf16.mxu0 %v549
    %2684 = vmatpush1.bf16.msra.mxu0 %v548
    %2685 = vmatprep.subr.bf16.mxu0 %v545
    %2686 = vmatpush1.bf16.msra.mxu0 %v544
    %2687 = vmatprep.subr.bf16.mxu0 %v541
    %2688 = vmatpush1.bf16.msra.mxu0 %v540
    %2689 = vmatprep.subr.bf16.mxu0 %v537
    %2690 = vmatpush1.bf16.msra.mxu0 %v536
    %2691 = vmatprep.subr.bf16.mxu0 %v533
    %2692 = vmatpush1.bf16.msra.mxu0 %v532
    %2693 = vmatprep.subr.bf16.mxu0 %v529
    %2694 = vmatpush1.bf16.msra.mxu0 %v528
    %2695 = vmatprep.subr.bf16.mxu0 %v525
    %2696 = vmatpush1.bf16.msra.mxu0 %v524
    %2697 = vmatprep.subr.bf16.mxu0 0
    %2698 = vmatpush2.bf16.msra.mxu0 0
    %2699 = vmatprep.subr.bf16.mxu0 0
    %2700 = vmatpush2.bf16.msra.mxu0 0
    %2701 = vmatprep.subr.bf16.mxu0 0
    %2702 = vmatpush2.bf16.msra.mxu0 0
    %2703 = vmatprep.subr.bf16.mxu0 0
    %2704 = vmatpush2.bf16.msra.mxu0 0
    %2705 = vmatprep.subr.bf16.mxu0 0
    %2706 = vmatpush2.bf16.msra.mxu0 0
    %2707 = vmatprep.subr.bf16.mxu0 0
    %2708 = vmatpush2.bf16.msra.mxu0 0
    %2709 = vmatprep.subr.bf16.mxu0 0
    %2710 = vmatpush2.bf16.msra.mxu0 0
    %2711 = vmatprep.subr.bf16.mxu0 0
    %2712 = vmatpush2.bf16.msra.mxu0 0
    %2713 = vmatprep.mubr.bf16.mxu0 0
    %2714 = vmatmul.mubr.bf16.gmra.mxu0 %v2679
    %v2715 = vpop.f32.mrf.mxu0
    %v2716 = vadd.f32 0.0, %v2715
    %v2717 = vpop.f32.mrf.mxu0
    %v2718 = vadd.f32 0.0, %v2717
    %v2719 = vpop.f32.mrf.mxu0
    %v2720 = vpop.f32.mrf.mxu0
    %2721 = vdwg.mxu0
    %2722 = vmatprep.subr.bf16.mxu0 %v555
    %2723 = vmatpush1.bf16.msra.mxu0 %v554
    %2724 = vmatprep.subr.bf16.mxu0 %v551
    %2725 = vmatpush1.bf16.msra.mxu0 %v550
    %2726 = vmatprep.subr.bf16.mxu0 %v547
    %2727 = vmatpush1.bf16.msra.mxu0 %v546
    %2728 = vmatprep.subr.bf16.mxu0 %v543
    %2729 = vmatpush1.bf16.msra.mxu0 %v542
    %2730 = vmatprep.subr.bf16.mxu0 %v539
    %2731 = vmatpush1.bf16.msra.mxu0 %v538
    %2732 = vmatprep.subr.bf16.mxu0 %v535
    %2733 = vmatpush1.bf16.msra.mxu0 %v534
    %2734 = vmatprep.subr.bf16.mxu0 %v531
    %2735 = vmatpush1.bf16.msra.mxu0 %v530
    %2736 = vmatprep.subr.bf16.mxu0 %v527
    %2737 = vmatpush1.bf16.msra.mxu0 %v526
    %2738 = vmatprep.subr.bf16.mxu0 0
    %2739 = vmatpush2.bf16.msra.mxu0 0
    %2740 = vmatprep.subr.bf16.mxu0 0
    %2741 = vmatpush2.bf16.msra.mxu0 0
    %2742 = vmatprep.subr.bf16.mxu0 0
    %2743 = vmatpush2.bf16.msra.mxu0 0
    %2744 = vmatprep.subr.bf16.mxu0 0
    %2745 = vmatpush2.bf16.msra.mxu0 0
    %2746 = vmatprep.subr.bf16.mxu0 0
    %2747 = vmatpush2.bf16.msra.mxu0 0
    %2748 = vmatprep.subr.bf16.mxu0 0
    %2749 = vmatpush2.bf16.msra.mxu0 0
    %2750 = vmatprep.subr.bf16.mxu0 0
    %2751 = vmatpush2.bf16.msra.mxu0 0
    %2752 = vmatprep.subr.bf16.mxu0 0
    %2753 = vmatpush2.bf16.msra.mxu0 0
    %2754 = vmatprep.mubr.bf16.mxu0 0
    %2755 = vmatmul.mubr.bf16.gmra.mxu0 %v2679
    %v2756 = vpop.f32.mrf.mxu0
    %v2757 = vadd.f32 0.0, %v2756
    %v2758 = vpop.f32.mrf.mxu0
    %v2759 = vadd.f32 0.0, %v2758
    %v2760 = vpop.f32.mrf.mxu0
    %v2761 = vpop.f32.mrf.mxu0
    %2762 = vdwg.mxu0
    %v2767 = vrot.slane %v2716, 4
    %v2768 = vrot.slane %v2718, 4
    %v2769 = vrot.slane %v2757, 4
    %v2770 = vrot.slane %v2759, 4
    %v2775 = vadd.f32 %v2673, %v2767
    %v2776 = vadd.f32 %v2674, %v2768
    %v2777 = vadd.f32 %v2675, %v2769
    %v2778 = vadd.f32 %v2676, %v2770
    %v2779 = vxor.u32 %v2775, 2147483648
    %v2780 = vmul.f32 %v2779, 1.442695
    %v2781 = vpow.pop %v2780
    %v2782 = vadd.f32 %v2781, 1.0
    %v2783 = vrcp.pop %v2782
    %v2784 = vmul.f32 1.0, %v2783
    %v2785 = vxor.u32 %v2776, 2147483648
    %v2786 = vmul.f32 %v2785, 1.442695
    %v2787 = vpow.pop %v2786
    %v2788 = vadd.f32 %v2787, 1.0
    %v2789 = vrcp.pop %v2788
    %v2790 = vmul.f32 1.0, %v2789
    %v2791 = vtanh.pop %v2777
    %v2792 = vxor.u32 %v2778, 2147483648
    %v2793 = vmul.f32 %v2792, 1.442695
    %v2794 = vpow.pop %v2793
    %v2795 = vadd.f32 %v2794, 1.0
    %v2796 = vrcp.pop %v2795
    %v2797 = vmul.f32 1.0, %v2796
    %v2799 = vrot.slane %v2649, 6
    %v2801 = vmul.f32 %v2790, %v2799
    %v2802 = vmul.f32 %v2784, %v2791
    %v2803 = vadd.f32 %v2801, %v2802
    %v2804 = vtanh.pop %v2803
    %v2805 = vmul.f32 %v2797, %v2804
    %2806 = vst [vmem:[#allocation4 + $0x18] sm:$0x30] %v2805
    %v2807 = vld [vmem:[#allocation2 + $0x60] sm:$0xc0]
    %v2808 = vld [vmem:[#allocation2 + $0x68] sm:$0xc0]
    %v2809 = vld [vmem:[#allocation2 + $0x70] sm:$0xc0]
    %v2810 = vld [vmem:[#allocation2 + $0x78] sm:$0xc0]
    %v2811 = vld [vmem:[#allocation2] sm:$0x3]
    %v2812 = vld [vmem:[#allocation2 + $0x8] sm:$0x3]
    %v2813 = vld [vmem:[#allocation2 + $0x10] sm:$0x3]
    %v2814 = vld [vmem:[#allocation2 + $0x18] sm:$0x3]
    %v2819 = vrot.slane %v2811, 2
    %v2820 = vrot.slane %v2812, 2
    %v2821 = vrot.slane %v2813, 2
    %v2822 = vrot.slane %v2814, 2
    %v2827 = vsel %vm177, %v2807, %v2819
    %v2828 = vsel %vm178, %v2808, %v2820
    %v2829 = vsel %vm179, %v2809, %v2821
    %v2830 = vsel %vm180, %v2810, %v2822
    %v2831 = vpack.c.bf16 %v2805, %v2805
    %v2833 = vrot.slane %v2831, 2
    %2835 = vmatprep.subr.bf16.mxu0 %v553
    %2836 = vmatpush1.bf16.msra.mxu0 %v552
    %2837 = vmatprep.subr.bf16.mxu0 %v549
    %2838 = vmatpush1.bf16.msra.mxu0 %v548
    %2839 = vmatprep.subr.bf16.mxu0 %v545
    %2840 = vmatpush1.bf16.msra.mxu0 %v544
    %2841 = vmatprep.subr.bf16.mxu0 %v541
    %2842 = vmatpush1.bf16.msra.mxu0 %v540
    %2843 = vmatprep.subr.bf16.mxu0 %v537
    %2844 = vmatpush1.bf16.msra.mxu0 %v536
    %2845 = vmatprep.subr.bf16.mxu0 %v533
    %2846 = vmatpush1.bf16.msra.mxu0 %v532
    %2847 = vmatprep.subr.bf16.mxu0 %v529
    %2848 = vmatpush1.bf16.msra.mxu0 %v528
    %2849 = vmatprep.subr.bf16.mxu0 %v525
    %2850 = vmatpush1.bf16.msra.mxu0 %v524
    %2851 = vmatprep.subr.bf16.mxu0 0
    %2852 = vmatpush2.bf16.msra.mxu0 0
    %2853 = vmatprep.subr.bf16.mxu0 0
    %2854 = vmatpush2.bf16.msra.mxu0 0
    %2855 = vmatprep.subr.bf16.mxu0 0
    %2856 = vmatpush2.bf16.msra.mxu0 0
    %2857 = vmatprep.subr.bf16.mxu0 0
    %2858 = vmatpush2.bf16.msra.mxu0 0
    %2859 = vmatprep.subr.bf16.mxu0 0
    %2860 = vmatpush2.bf16.msra.mxu0 0
    %2861 = vmatprep.subr.bf16.mxu0 0
    %2862 = vmatpush2.bf16.msra.mxu0 0
    %2863 = vmatprep.subr.bf16.mxu0 0
    %2864 = vmatpush2.bf16.msra.mxu0 0
    %2865 = vmatprep.subr.bf16.mxu0 0
    %2866 = vmatpush2.bf16.msra.mxu0 0
    %2867 = vmatprep.mubr.bf16.mxu0 0
    %2868 = vmatmul.mubr.bf16.gmra.mxu0 %v2833
    %v2869 = vpop.f32.mrf.mxu0
    %v2870 = vadd.f32 0.0, %v2869
    %v2871 = vpop.f32.mrf.mxu0
    %v2872 = vadd.f32 0.0, %v2871
    %v2873 = vpop.f32.mrf.mxu0
    %v2874 = vpop.f32.mrf.mxu0
    %2875 = vdwg.mxu0
    %2876 = vmatprep.subr.bf16.mxu0 %v555
    %2877 = vmatpush1.bf16.msra.mxu0 %v554
    %2878 = vmatprep.subr.bf16.mxu0 %v551
    %2879 = vmatpush1.bf16.msra.mxu0 %v550
    %2880 = vmatprep.subr.bf16.mxu0 %v547
    %2881 = vmatpush1.bf16.msra.mxu0 %v546
    %2882 = vmatprep.subr.bf16.mxu0 %v543
    %2883 = vmatpush1.bf16.msra.mxu0 %v542
    %2884 = vmatprep.subr.bf16.mxu0 %v539
    %2885 = vmatpush1.bf16.msra.mxu0 %v538
    %2886 = vmatprep.subr.bf16.mxu0 %v535
    %2887 = vmatpush1.bf16.msra.mxu0 %v534
    %2888 = vmatprep.subr.bf16.mxu0 %v531
    %2889 = vmatpush1.bf16.msra.mxu0 %v530
    %2890 = vmatprep.subr.bf16.mxu0 %v527
    %2891 = vmatpush1.bf16.msra.mxu0 %v526
    %2892 = vmatprep.subr.bf16.mxu0 0
    %2893 = vmatpush2.bf16.msra.mxu0 0
    %2894 = vmatprep.subr.bf16.mxu0 0
    %2895 = vmatpush2.bf16.msra.mxu0 0
    %2896 = vmatprep.subr.bf16.mxu0 0
    %2897 = vmatpush2.bf16.msra.mxu0 0
    %2898 = vmatprep.subr.bf16.mxu0 0
    %2899 = vmatpush2.bf16.msra.mxu0 0
    %2900 = vmatprep.subr.bf16.mxu0 0
    %2901 = vmatpush2.bf16.msra.mxu0 0
    %2902 = vmatprep.subr.bf16.mxu0 0
    %2903 = vmatpush2.bf16.msra.mxu0 0
    %2904 = vmatprep.subr.bf16.mxu0 0
    %2905 = vmatpush2.bf16.msra.mxu0 0
    %2906 = vmatprep.subr.bf16.mxu0 0
    %2907 = vmatpush2.bf16.msra.mxu0 0
    %2908 = vmatprep.mubr.bf16.mxu0 0
    %2909 = vmatmul.mubr.bf16.gmra.mxu0 %v2833
    %v2910 = vpop.f32.mrf.mxu0
    %v2911 = vadd.f32 0.0, %v2910
    %v2912 = vpop.f32.mrf.mxu0
    %v2913 = vadd.f32 0.0, %v2912
    %v2914 = vpop.f32.mrf.mxu0
    %v2915 = vpop.f32.mrf.mxu0
    %2916 = vdwg.mxu0
    %v2921 = vrot.slane %v2870, 2
    %v2922 = vrot.slane %v2872, 2
    %v2923 = vrot.slane %v2911, 2
    %v2924 = vrot.slane %v2913, 2
    %v2929 = vadd.f32 %v2827, %v2921
    %v2930 = vadd.f32 %v2828, %v2922
    %v2931 = vadd.f32 %v2829, %v2923
    %v2932 = vadd.f32 %v2830, %v2924
    %v2933 = vxor.u32 %v2929, 2147483648
    %v2934 = vmul.f32 %v2933, 1.442695
    %v2935 = vpow.pop %v2934
    %v2936 = vadd.f32 %v2935, 1.0
    %v2937 = vrcp.pop %v2936
    %v2938 = vmul.f32 1.0, %v2937
    %v2939 = vxor.u32 %v2930, 2147483648
    %v2940 = vmul.f32 %v2939, 1.442695
    %v2941 = vpow.pop %v2940
    %v2942 = vadd.f32 %v2941, 1.0
    %v2943 = vrcp.pop %v2942
    %v2944 = vmul.f32 1.0, %v2943
    %v2945 = vtanh.pop %v2931
    %v2946 = vxor.u32 %v2932, 2147483648
    %v2947 = vmul.f32 %v2946, 1.442695
    %v2948 = vpow.pop %v2947
    %v2949 = vadd.f32 %v2948, 1.0
    %v2950 = vrcp.pop %v2949
    %v2951 = vmul.f32 1.0, %v2950
    %v2953 = vrot.slane %v2803, 6
    %v2955 = vmul.f32 %v2944, %v2953
    %v2956 = vmul.f32 %v2938, %v2945
    %v2957 = vadd.f32 %v2955, %v2956
    %v2958 = vtanh.pop %v2957
    %v2959 = vmul.f32 %v2951, %v2958
    %2960 = vst [vmem:[#allocation4 + $0x18] sm:$0xc0] %v2959
    %v2961 = vld [vmem:[#allocation4] sm:$0xff]
    %v2962 = vld [vmem:[#allocation4 + $0x8] sm:$0xff]
    %v2963 = vld [vmem:[#allocation4 + $0x10] sm:$0xff]
    %v2964 = vld [vmem:[#allocation4 + $0x18] sm:$0xff]
    %v2965 = vpack.c.bf16 %v2962, %v2961
    %v2966 = vpack.c.bf16 %v2964, %v2963
    %v2967 = vld [vmem:[#allocation12] sm:$0xff]
    %v2968 = vld [vmem:[#allocation12 + $0x8] sm:$0xff]
    %v2969 = vld [vmem:[#allocation12 + $0x10] sm:$0xff]
    %v2970 = vld [vmem:[#allocation12 + $0x18] sm:$0xff]
    %v2971 = vld [vmem:[#allocation12 + $0x20] sm:$0xff]
    %v2972 = vld [vmem:[#allocation12 + $0x28] sm:$0xff]
    %v2973 = vld [vmem:[#allocation12 + $0x30] sm:$0xff]
    %v2974 = vld [vmem:[#allocation12 + $0x38] sm:$0xff]
    %v2975 = vld [vmem:[#allocation12 + $0x40] sm:$0xff]
    %v2976 = vld [vmem:[#allocation12 + $0x48] sm:$0xff]
    %v2977 = vld [vmem:[#allocation12 + $0x50] sm:$0xff]
    %v2978 = vld [vmem:[#allocation12 + $0x58] sm:$0xff]
    %v2979 = vld [vmem:[#allocation12 + $0x60] sm:$0xff]
    %v2980 = vld [vmem:[#allocation12 + $0x68] sm:$0xff]
    %v2981 = vld [vmem:[#allocation12 + $0x70] sm:$0xff]
    %v2982 = vld [vmem:[#allocation12 + $0x78] sm:$0xff]
    %v2983 = vld [vmem:[#allocation12 + $0x80] sm:$0xff]
    %v2984 = vld [vmem:[#allocation12 + $0x88] sm:$0xff]
    %v2985 = vld [vmem:[#allocation12 + $0x90] sm:$0xff]
    %v2986 = vld [vmem:[#allocation12 + $0x98] sm:$0xff]
    %v2987 = vld [vmem:[#allocation12 + $0xa0] sm:$0xff]
    %v2988 = vld [vmem:[#allocation12 + $0xa8] sm:$0xff]
    %v2989 = vld [vmem:[#allocation12 + $0xb0] sm:$0xff]
    %v2990 = vld [vmem:[#allocation12 + $0xb8] sm:$0xff]
    %v2991 = vld [vmem:[#allocation12 + $0xc0] sm:$0xff]
    %v2992 = vld [vmem:[#allocation12 + $0xc8] sm:$0xff]
    %v2993 = vld [vmem:[#allocation12 + $0xd0] sm:$0xff]
    %v2994 = vld [vmem:[#allocation12 + $0xd8] sm:$0xff]
    %v2995 = vld [vmem:[#allocation12 + $0xe0] sm:$0xff]
    %v2996 = vld [vmem:[#allocation12 + $0xe8] sm:$0xff]
    %v2997 = vld [vmem:[#allocation12 + $0xf0] sm:$0xff]
    %v2998 = vld [vmem:[#allocation12 + $0xf8] sm:$0xff]
    %v2999 = vld [vmem:[%s12] sm:$0xf]
    %v3001 = vlaneseq
    %v3002 = vshrl.u32 %v3001, 7
    %v3003 = vsub.s32 0, %v3002
    %v3004 = vrot.slane %v2999, %v3003
    %v3005 = vlaneseq
    %v3006 = vshrl.u32 %v3005, 7
    %v3007 = vsub.s32 1, %v3006
    %v3008 = vrot.slane %v2999, %v3007
    %v3009 = vlaneseq
    %v3010 = vshrl.u32 %v3009, 7
    %v3011 = vsub.s32 2, %v3010
    %v3012 = vrot.slane %v2999, %v3011
    %v3013 = vlaneseq
    %v3014 = vshrl.u32 %v3013, 7
    %v3015 = vsub.s32 3, %v3014
    %v3016 = vrot.slane %v2999, %v3015
    %v3053 = vunpack.c.l.b16 %v2967
    %v3054 = vunpack.c.h.b16 %v2967
    %v3055 = vunpack.c.l.b16 %v2968
    %v3056 = vunpack.c.h.b16 %v2968
    %v3057 = vunpack.c.l.b16 %v2969
    %v3058 = vunpack.c.h.b16 %v2969
    %v3059 = vunpack.c.l.b16 %v2970
    %v3060 = vunpack.c.h.b16 %v2970
    %v3061 = vunpack.c.l.b16 %v2971
    %v3062 = vunpack.c.h.b16 %v2971
    %v3063 = vunpack.c.l.b16 %v2972
    %v3064 = vunpack.c.h.b16 %v2972
    %v3065 = vunpack.c.l.b16 %v2973
    %v3066 = vunpack.c.h.b16 %v2973
    %v3067 = vunpack.c.l.b16 %v2974
    %v3068 = vunpack.c.h.b16 %v2974
    %v3069 = vunpack.c.l.b16 %v2975
    %v3070 = vunpack.c.h.b16 %v2975
    %v3071 = vunpack.c.l.b16 %v2976
    %v3072 = vunpack.c.h.b16 %v2976
    %v3073 = vunpack.c.l.b16 %v2977
    %v3074 = vunpack.c.h.b16 %v2977
    %v3075 = vunpack.c.l.b16 %v2978
    %v3076 = vunpack.c.h.b16 %v2978
    %v3077 = vunpack.c.l.b16 %v2979
    %v3078 = vunpack.c.h.b16 %v2979
    %v3079 = vunpack.c.l.b16 %v2980
    %v3080 = vunpack.c.h.b16 %v2980
    %v3081 = vunpack.c.l.b16 %v2981
    %v3082 = vunpack.c.h.b16 %v2981
    %v3083 = vunpack.c.l.b16 %v2982
    %v3084 = vunpack.c.h.b16 %v2982
    %v3085 = vunpack.c.l.b16 %v2983
    %v3086 = vunpack.c.h.b16 %v2983
    %v3087 = vunpack.c.l.b16 %v2984
    %v3088 = vunpack.c.h.b16 %v2984
    %v3089 = vunpack.c.l.b16 %v2985
    %v3090 = vunpack.c.h.b16 %v2985
    %v3091 = vunpack.c.l.b16 %v2986
    %v3092 = vunpack.c.h.b16 %v2986
    %v3093 = vunpack.c.l.b16 %v2987
    %v3094 = vunpack.c.h.b16 %v2987
    %v3095 = vunpack.c.l.b16 %v2988
    %v3096 = vunpack.c.h.b16 %v2988
    %v3097 = vunpack.c.l.b16 %v2989
    %v3098 = vunpack.c.h.b16 %v2989
    %v3099 = vunpack.c.l.b16 %v2990
    %v3100 = vunpack.c.h.b16 %v2990
    %v3101 = vunpack.c.l.b16 %v2991
    %v3102 = vunpack.c.h.b16 %v2991
    %v3103 = vunpack.c.l.b16 %v2992
    %v3104 = vunpack.c.h.b16 %v2992
    %v3105 = vunpack.c.l.b16 %v2993
    %v3106 = vunpack.c.h.b16 %v2993
    %v3107 = vunpack.c.l.b16 %v2994
    %v3108 = vunpack.c.h.b16 %v2994
    %v3109 = vunpack.c.l.b16 %v2995
    %v3110 = vunpack.c.h.b16 %v2995
    %v3111 = vunpack.c.l.b16 %v2996
    %v3112 = vunpack.c.h.b16 %v2996
    %v3113 = vunpack.c.l.b16 %v2997
    %v3114 = vunpack.c.h.b16 %v2997
    %v3115 = vunpack.c.l.b16 %v2998
    %v3116 = vunpack.c.h.b16 %v2998
    %v3117 = vpack.c.b16 %v3057, %v3053
    %v3118 = vpack.c.b16 %v3058, %v3054
    %v3119 = vpack.c.b16 %v3059, %v3055
    %v3120 = vpack.c.b16 %v3060, %v3056
    %v3121 = vpack.c.b16 %v3065, %v3061
    %v3122 = vpack.c.b16 %v3066, %v3062
    %v3123 = vpack.c.b16 %v3067, %v3063
    %v3124 = vpack.c.b16 %v3068, %v3064
    %v3125 = vpack.c.b16 %v3073, %v3069
    %v3126 = vpack.c.b16 %v3074, %v3070
    %v3127 = vpack.c.b16 %v3075, %v3071
    %v3128 = vpack.c.b16 %v3076, %v3072
    %v3129 = vpack.c.b16 %v3081, %v3077
    %v3130 = vpack.c.b16 %v3082, %v3078
    %v3131 = vpack.c.b16 %v3083, %v3079
    %v3132 = vpack.c.b16 %v3084, %v3080
    %v3133 = vpack.c.b16 %v3089, %v3085
    %v3134 = vpack.c.b16 %v3090, %v3086
    %v3135 = vpack.c.b16 %v3091, %v3087
    %v3136 = vpack.c.b16 %v3092, %v3088
    %v3137 = vpack.c.b16 %v3097, %v3093
    %v3138 = vpack.c.b16 %v3098, %v3094
    %v3139 = vpack.c.b16 %v3099, %v3095
    %v3140 = vpack.c.b16 %v3100, %v3096
    %v3141 = vpack.c.b16 %v3105, %v3101
    %v3142 = vpack.c.b16 %v3106, %v3102
    %v3143 = vpack.c.b16 %v3107, %v3103
    %v3144 = vpack.c.b16 %v3108, %v3104
    %v3145 = vpack.c.b16 %v3113, %v3109
    %v3146 = vpack.c.b16 %v3114, %v3110
    %v3147 = vpack.c.b16 %v3115, %v3111
    %v3148 = vpack.c.b16 %v3116, %v3112
    %3181 = vmatprep.subr.bf16.mxu0 %v3146
    %3182 = vmatpush1.bf16.msra.mxu0 %v3145
    %3183 = vmatprep.subr.bf16.mxu0 %v3142
    %3184 = vmatpush1.bf16.msra.mxu0 %v3141
    %3185 = vmatprep.subr.bf16.mxu0 %v3138
    %3186 = vmatpush1.bf16.msra.mxu0 %v3137
    %3187 = vmatprep.subr.bf16.mxu0 %v3134
    %3188 = vmatpush1.bf16.msra.mxu0 %v3133
    %3189 = vmatprep.subr.bf16.mxu0 %v3130
    %3190 = vmatpush1.bf16.msra.mxu0 %v3129
    %3191 = vmatprep.subr.bf16.mxu0 %v3126
    %3192 = vmatpush1.bf16.msra.mxu0 %v3125
    %3193 = vmatprep.subr.bf16.mxu0 %v3122
    %3194 = vmatpush1.bf16.msra.mxu0 %v3121
    %3195 = vmatprep.subr.bf16.mxu0 %v3118
    %3196 = vmatpush1.bf16.msra.mxu0 %v3117
    %3197 = vmatprep.subr.bf16.mxu0 0
    %3198 = vmatpush2.bf16.msra.mxu0 0
    %3199 = vmatprep.subr.bf16.mxu0 0
    %3200 = vmatpush2.bf16.msra.mxu0 0
    %3201 = vmatprep.subr.bf16.mxu0 0
    %3202 = vmatpush2.bf16.msra.mxu0 0
    %3203 = vmatprep.subr.bf16.mxu0 0
    %3204 = vmatpush2.bf16.msra.mxu0 0
    %3205 = vmatprep.subr.bf16.mxu0 0
    %3206 = vmatpush2.bf16.msra.mxu0 0
    %3207 = vmatprep.subr.bf16.mxu0 0
    %3208 = vmatpush2.bf16.msra.mxu0 0
    %3209 = vmatprep.subr.bf16.mxu0 0
    %3210 = vmatpush2.bf16.msra.mxu0 0
    %3211 = vmatprep.subr.bf16.mxu0 0
    %3212 = vmatpush2.bf16.msra.mxu0 0
    %3213 = vmatprep.mubr.bf16.mxu0 0
    %3214 = vmatmul.mubr.bf16.gmra.mxu0 %v2965
    %v3215 = vpop.f32.mrf.mxu0
    %v3216 = vadd.f32 %v3004, %v3215
    %v3217 = vpop.f32.mrf.mxu0
    %v3218 = vadd.f32 %v3008, %v3217
    %v3219 = vpop.f32.mrf.mxu0
    %v3220 = vadd.f32 %v3004, %v3219
    %v3221 = vpop.f32.mrf.mxu0
    %v3222 = vadd.f32 %v3008, %v3221
    %3223 = vmatprep.mubr.bf16.mxu0 0
    %3224 = vmatmul.mubr.bf16.gmra.mxu0 %v2966
    %v3225 = vpop.f32.mrf.mxu0
    %v3226 = vadd.f32 %v3004, %v3225
    %v3227 = vpop.f32.mrf.mxu0
    %v3228 = vadd.f32 %v3008, %v3227
    %v3229 = vpop.f32.mrf.mxu0
    %v3230 = vadd.f32 %v3004, %v3229
    %v3231 = vpop.f32.mrf.mxu0
    %v3232 = vadd.f32 %v3008, %v3231
    %3233 = vdwg.mxu0
    %3234 = vmatprep.subr.bf16.mxu0 %v3148
    %3235 = vmatpush1.bf16.msra.mxu0 %v3147
    %3236 = vmatprep.subr.bf16.mxu0 %v3144
    %3237 = vmatpush1.bf16.msra.mxu0 %v3143
    %3238 = vmatprep.subr.bf16.mxu0 %v3140
    %3239 = vmatpush1.bf16.msra.mxu0 %v3139
    %3240 = vmatprep.subr.bf16.mxu0 %v3136
    %3241 = vmatpush1.bf16.msra.mxu0 %v3135
    %3242 = vmatprep.subr.bf16.mxu0 %v3132
    %3243 = vmatpush1.bf16.msra.mxu0 %v3131
    %3244 = vmatprep.subr.bf16.mxu0 %v3128
    %3245 = vmatpush1.bf16.msra.mxu0 %v3127
    %3246 = vmatprep.subr.bf16.mxu0 %v3124
    %3247 = vmatpush1.bf16.msra.mxu0 %v3123
    %3248 = vmatprep.subr.bf16.mxu0 %v3120
    %3249 = vmatpush1.bf16.msra.mxu0 %v3119
    %3250 = vmatprep.subr.bf16.mxu0 0
    %3251 = vmatpush2.bf16.msra.mxu0 0
    %3252 = vmatprep.subr.bf16.mxu0 0
    %3253 = vmatpush2.bf16.msra.mxu0 0
    %3254 = vmatprep.subr.bf16.mxu0 0
    %3255 = vmatpush2.bf16.msra.mxu0 0
    %3256 = vmatprep.subr.bf16.mxu0 0
    %3257 = vmatpush2.bf16.msra.mxu0 0
    %3258 = vmatprep.subr.bf16.mxu0 0
    %3259 = vmatpush2.bf16.msra.mxu0 0
    %3260 = vmatprep.subr.bf16.mxu0 0
    %3261 = vmatpush2.bf16.msra.mxu0 0
    %3262 = vmatprep.subr.bf16.mxu0 0
    %3263 = vmatpush2.bf16.msra.mxu0 0
    %3264 = vmatprep.subr.bf16.mxu0 0
    %3265 = vmatpush2.bf16.msra.mxu0 0
    %3266 = vmatprep.mubr.bf16.mxu0 0
    %3267 = vmatmul.mubr.bf16.gmra.mxu0 %v2965
    %v3268 = vpop.f32.mrf.mxu0
    %v3269 = vadd.f32 %v3012, %v3268
    %v3270 = vpop.f32.mrf.mxu0
    %v3271 = vadd.f32 %v3016, %v3270
    %v3272 = vpop.f32.mrf.mxu0
    %v3273 = vadd.f32 %v3012, %v3272
    %v3274 = vpop.f32.mrf.mxu0
    %v3275 = vadd.f32 %v3016, %v3274
    %3276 = vmatprep.mubr.bf16.mxu0 0
    %3277 = vmatmul.mubr.bf16.gmra.mxu0 %v2966
    %v3278 = vpop.f32.mrf.mxu0
    %v3279 = vadd.f32 %v3012, %v3278
    %v3280 = vpop.f32.mrf.mxu0
    %v3281 = vadd.f32 %v3016, %v3280
    %v3282 = vpop.f32.mrf.mxu0
    %v3283 = vadd.f32 %v3012, %v3282
    %v3284 = vpop.f32.mrf.mxu0
    %v3285 = vadd.f32 %v3016, %v3284
    %3286 = vdwg.mxu0
    %3287 = vst [vmem:[#allocation2] sm:$0xff] %v3216
    %3288 = vst [vmem:[#allocation2 + $0x8] sm:$0xff] %v3218
    %3289 = vst [vmem:[#allocation2 + $0x10] sm:$0xff] %v3269
    %3290 = vst [vmem:[#allocation2 + $0x18] sm:$0xff] %v3271
    %3291 = vst [vmem:[#allocation2 + $0x20] sm:$0xff] %v3220
    %3292 = vst [vmem:[#allocation2 + $0x28] sm:$0xff] %v3222
    %3293 = vst [vmem:[#allocation2 + $0x30] sm:$0xff] %v3273
    %3294 = vst [vmem:[#allocation2 + $0x38] sm:$0xff] %v3275
    %3295 = vst [vmem:[#allocation2 + $0x40] sm:$0xff] %v3226
    %3296 = vst [vmem:[#allocation2 + $0x48] sm:$0xff] %v3228
    %3297 = vst [vmem:[#allocation2 + $0x50] sm:$0xff] %v3279
    %3298 = vst [vmem:[#allocation2 + $0x58] sm:$0xff] %v3281
    %3299 = vst [vmem:[#allocation2 + $0x60] sm:$0xff] %v3230
    %3300 = vst [vmem:[#allocation2 + $0x68] sm:$0xff] %v3232
    %3301 = vst [vmem:[#allocation2 + $0x70] sm:$0xff] %v3283
    %3302 = vst [vmem:[#allocation2 + $0x78] sm:$0xff] %v3285
    %v3303 = vld [vmem:[%s10] sm:$0xff]
    %v3304 = vld [vmem:[%s10 + $0x8] sm:$0xff]
    %v3305 = vld [vmem:[%s10 + $0x10] sm:$0xff]
    %v3306 = vld [vmem:[%s10 + $0x18] sm:$0xff]
    %v3307 = vld [vmem:[%s10 + $0x20] sm:$0xff]
    %v3308 = vld [vmem:[%s10 + $0x28] sm:$0xff]
    %v3309 = vld [vmem:[%s10 + $0x30] sm:$0xff]
    %v3310 = vld [vmem:[%s10 + $0x38] sm:$0xff]
    %v3311 = vld [vmem:[%s10 + $0x40] sm:$0xff]
    %v3312 = vld [vmem:[%s10 + $0x48] sm:$0xff]
    %v3313 = vld [vmem:[%s10 + $0x50] sm:$0xff]
    %v3314 = vld [vmem:[%s10 + $0x58] sm:$0xff]
    %v3315 = vld [vmem:[%s10 + $0x60] sm:$0xff]
    %v3316 = vld [vmem:[%s10 + $0x68] sm:$0xff]
    %v3317 = vld [vmem:[%s10 + $0x70] sm:$0xff]
    %v3318 = vld [vmem:[%s10 + $0x78] sm:$0xff]
    %v3319 = vld [vmem:[%s10 + $0x80] sm:$0xff]
    %v3320 = vld [vmem:[%s10 + $0x88] sm:$0xff]
    %v3321 = vld [vmem:[%s10 + $0x90] sm:$0xff]
    %v3322 = vld [vmem:[%s10 + $0x98] sm:$0xff]
    %v3323 = vld [vmem:[%s10 + $0xa0] sm:$0xff]
    %v3324 = vld [vmem:[%s10 + $0xa8] sm:$0xff]
    %v3325 = vld [vmem:[%s10 + $0xb0] sm:$0xff]
    %v3326 = vld [vmem:[%s10 + $0xb8] sm:$0xff]
    %v3327 = vld [vmem:[%s10 + $0xc0] sm:$0xff]
    %v3328 = vld [vmem:[%s10 + $0xc8] sm:$0xff]
    %v3329 = vld [vmem:[%s10 + $0xd0] sm:$0xff]
    %v3330 = vld [vmem:[%s10 + $0xd8] sm:$0xff]
    %v3331 = vld [vmem:[%s10 + $0xe0] sm:$0xff]
    %v3332 = vld [vmem:[%s10 + $0xe8] sm:$0xff]
    %v3333 = vld [vmem:[%s10 + $0xf0] sm:$0xff]
    %v3334 = vld [vmem:[%s10 + $0xf8] sm:$0xff]
    %v3367 = vunpack.c.l.b16 %v3303
    %v3368 = vunpack.c.h.b16 %v3303
    %v3369 = vunpack.c.l.b16 %v3304
    %v3370 = vunpack.c.h.b16 %v3304
    %v3371 = vunpack.c.l.b16 %v3305
    %v3372 = vunpack.c.h.b16 %v3305
    %v3373 = vunpack.c.l.b16 %v3306
    %v3374 = vunpack.c.h.b16 %v3306
    %v3375 = vunpack.c.l.b16 %v3307
    %v3376 = vunpack.c.h.b16 %v3307
    %v3377 = vunpack.c.l.b16 %v3308
    %v3378 = vunpack.c.h.b16 %v3308
    %v3379 = vunpack.c.l.b16 %v3309
    %v3380 = vunpack.c.h.b16 %v3309
    %v3381 = vunpack.c.l.b16 %v3310
    %v3382 = vunpack.c.h.b16 %v3310
    %v3383 = vunpack.c.l.b16 %v3311
    %v3384 = vunpack.c.h.b16 %v3311
    %v3385 = vunpack.c.l.b16 %v3312
    %v3386 = vunpack.c.h.b16 %v3312
    %v3387 = vunpack.c.l.b16 %v3313
    %v3388 = vunpack.c.h.b16 %v3313
    %v3389 = vunpack.c.l.b16 %v3314
    %v3390 = vunpack.c.h.b16 %v3314
    %v3391 = vunpack.c.l.b16 %v3315
    %v3392 = vunpack.c.h.b16 %v3315
    %v3393 = vunpack.c.l.b16 %v3316
    %v3394 = vunpack.c.h.b16 %v3316
    %v3395 = vunpack.c.l.b16 %v3317
    %v3396 = vunpack.c.h.b16 %v3317
    %v3397 = vunpack.c.l.b16 %v3318
    %v3398 = vunpack.c.h.b16 %v3318
    %v3399 = vunpack.c.l.b16 %v3319
    %v3400 = vunpack.c.h.b16 %v3319
    %v3401 = vunpack.c.l.b16 %v3320
    %v3402 = vunpack.c.h.b16 %v3320
    %v3403 = vunpack.c.l.b16 %v3321
    %v3404 = vunpack.c.h.b16 %v3321
    %v3405 = vunpack.c.l.b16 %v3322
    %v3406 = vunpack.c.h.b16 %v3322
    %v3407 = vunpack.c.l.b16 %v3323
    %v3408 = vunpack.c.h.b16 %v3323
    %v3409 = vunpack.c.l.b16 %v3324
    %v3410 = vunpack.c.h.b16 %v3324
    %v3411 = vunpack.c.l.b16 %v3325
    %v3412 = vunpack.c.h.b16 %v3325
    %v3413 = vunpack.c.l.b16 %v3326
    %v3414 = vunpack.c.h.b16 %v3326
    %v3415 = vunpack.c.l.b16 %v3327
    %v3416 = vunpack.c.h.b16 %v3327
    %v3417 = vunpack.c.l.b16 %v3328
    %v3418 = vunpack.c.h.b16 %v3328
    %v3419 = vunpack.c.l.b16 %v3329
    %v3420 = vunpack.c.h.b16 %v3329
    %v3421 = vunpack.c.l.b16 %v3330
    %v3422 = vunpack.c.h.b16 %v3330
    %v3423 = vunpack.c.l.b16 %v3331
    %v3424 = vunpack.c.h.b16 %v3331
    %v3425 = vunpack.c.l.b16 %v3332
    %v3426 = vunpack.c.h.b16 %v3332
    %v3427 = vunpack.c.l.b16 %v3333
    %v3428 = vunpack.c.h.b16 %v3333
    %v3429 = vunpack.c.l.b16 %v3334
    %v3430 = vunpack.c.h.b16 %v3334
    %v3431 = vpack.c.b16 %v3371, %v3367
    %v3432 = vpack.c.b16 %v3372, %v3368
    %v3433 = vpack.c.b16 %v3373, %v3369
    %v3434 = vpack.c.b16 %v3374, %v3370
    %v3435 = vpack.c.b16 %v3379, %v3375
    %v3436 = vpack.c.b16 %v3380, %v3376
    %v3437 = vpack.c.b16 %v3381, %v3377
    %v3438 = vpack.c.b16 %v3382, %v3378
    %v3439 = vpack.c.b16 %v3387, %v3383
    %v3440 = vpack.c.b16 %v3388, %v3384
    %v3441 = vpack.c.b16 %v3389, %v3385
    %v3442 = vpack.c.b16 %v3390, %v3386
    %v3443 = vpack.c.b16 %v3395, %v3391
    %v3444 = vpack.c.b16 %v3396, %v3392
    %v3445 = vpack.c.b16 %v3397, %v3393
    %v3446 = vpack.c.b16 %v3398, %v3394
    %v3447 = vpack.c.b16 %v3403, %v3399
    %v3448 = vpack.c.b16 %v3404, %v3400
    %v3449 = vpack.c.b16 %v3405, %v3401
    %v3450 = vpack.c.b16 %v3406, %v3402
    %v3451 = vpack.c.b16 %v3411, %v3407
    %v3452 = vpack.c.b16 %v3412, %v3408
    %v3453 = vpack.c.b16 %v3413, %v3409
    %v3454 = vpack.c.b16 %v3414, %v3410
    %v3455 = vpack.c.b16 %v3419, %v3415
    %v3456 = vpack.c.b16 %v3420, %v3416
    %v3457 = vpack.c.b16 %v3421, %v3417
    %v3458 = vpack.c.b16 %v3422, %v3418
    %v3459 = vpack.c.b16 %v3427, %v3423
    %v3460 = vpack.c.b16 %v3428, %v3424
    %v3461 = vpack.c.b16 %v3429, %v3425
    %v3462 = vpack.c.b16 %v3430, %v3426
    %3495 = vmatprep.subr.bf16.mxu0 %v3460
    %3496 = vmatpush1.bf16.msra.mxu0 %v3459
    %3497 = vmatprep.subr.bf16.mxu0 %v3456
    %3498 = vmatpush1.bf16.msra.mxu0 %v3455
    %3499 = vmatprep.subr.bf16.mxu0 %v3452
    %3500 = vmatpush1.bf16.msra.mxu0 %v3451
    %3501 = vmatprep.subr.bf16.mxu0 %v3448
    %3502 = vmatpush1.bf16.msra.mxu0 %v3447
    %3503 = vmatprep.subr.bf16.mxu0 %v3444
    %3504 = vmatpush1.bf16.msra.mxu0 %v3443
    %3505 = vmatprep.subr.bf16.mxu0 %v3440
    %3506 = vmatpush1.bf16.msra.mxu0 %v3439
    %3507 = vmatprep.subr.bf16.mxu0 %v3436
    %3508 = vmatpush1.bf16.msra.mxu0 %v3435
    %3509 = vmatprep.subr.bf16.mxu0 %v3432
    %3510 = vmatpush1.bf16.msra.mxu0 %v3431
    %3511 = vmatprep.subr.bf16.mxu0 0
    %3512 = vmatpush2.bf16.msra.mxu0 0
    %3513 = vmatprep.subr.bf16.mxu0 0
    %3514 = vmatpush2.bf16.msra.mxu0 0
    %3515 = vmatprep.subr.bf16.mxu0 0
    %3516 = vmatpush2.bf16.msra.mxu0 0
    %3517 = vmatprep.subr.bf16.mxu0 0
    %3518 = vmatpush2.bf16.msra.mxu0 0
    %3519 = vmatprep.subr.bf16.mxu0 0
    %3520 = vmatpush2.bf16.msra.mxu0 0
    %3521 = vmatprep.subr.bf16.mxu0 0
    %3522 = vmatpush2.bf16.msra.mxu0 0
    %3523 = vmatprep.subr.bf16.mxu0 0
    %3524 = vmatpush2.bf16.msra.mxu0 0
    %3525 = vmatprep.subr.bf16.mxu0 0
    %3526 = vmatpush2.bf16.msra.mxu0 0
    %3527 = vmatprep.mubr.bf16.mxu0 0
    %3528 = vmatmul.mubr.bf16.gmra.mxu0 %v2965
    %v3529 = vpop.f32.mrf.mxu0
    %v3530 = vadd.f32 0.0, %v3529
    %v3531 = vpop.f32.mrf.mxu0
    %v3532 = vadd.f32 0.0, %v3531
    %v3533 = vpop.f32.mrf.mxu0
    %v3534 = vadd.f32 0.0, %v3533
    %v3535 = vpop.f32.mrf.mxu0
    %v3536 = vadd.f32 0.0, %v3535
    %3537 = vmatprep.mubr.bf16.mxu0 0
    %3538 = vmatmul.mubr.bf16.gmra.mxu0 %v2966
    %v3539 = vpop.f32.mrf.mxu0
    %v3540 = vadd.f32 0.0, %v3539
    %v3541 = vpop.f32.mrf.mxu0
    %v3542 = vadd.f32 0.0, %v3541
    %v3543 = vpop.f32.mrf.mxu0
    %v3544 = vadd.f32 0.0, %v3543
    %v3545 = vpop.f32.mrf.mxu0
    %v3546 = vadd.f32 0.0, %v3545
    %3547 = vdwg.mxu0
    %3548 = vmatprep.subr.bf16.mxu0 %v3462
    %3549 = vmatpush1.bf16.msra.mxu0 %v3461
    %3550 = vmatprep.subr.bf16.mxu0 %v3458
    %3551 = vmatpush1.bf16.msra.mxu0 %v3457
    %3552 = vmatprep.subr.bf16.mxu0 %v3454
    %3553 = vmatpush1.bf16.msra.mxu0 %v3453
    %3554 = vmatprep.subr.bf16.mxu0 %v3450
    %3555 = vmatpush1.bf16.msra.mxu0 %v3449
    %3556 = vmatprep.subr.bf16.mxu0 %v3446
    %3557 = vmatpush1.bf16.msra.mxu0 %v3445
    %3558 = vmatprep.subr.bf16.mxu0 %v3442
    %3559 = vmatpush1.bf16.msra.mxu0 %v3441
    %3560 = vmatprep.subr.bf16.mxu0 %v3438
    %3561 = vmatpush1.bf16.msra.mxu0 %v3437
    %3562 = vmatprep.subr.bf16.mxu0 %v3434
    %3563 = vmatpush1.bf16.msra.mxu0 %v3433
    %3564 = vmatprep.subr.bf16.mxu0 0
    %3565 = vmatpush2.bf16.msra.mxu0 0
    %3566 = vmatprep.subr.bf16.mxu0 0
    %3567 = vmatpush2.bf16.msra.mxu0 0
    %3568 = vmatprep.subr.bf16.mxu0 0
    %3569 = vmatpush2.bf16.msra.mxu0 0
    %3570 = vmatprep.subr.bf16.mxu0 0
    %3571 = vmatpush2.bf16.msra.mxu0 0
    %3572 = vmatprep.subr.bf16.mxu0 0
    %3573 = vmatpush2.bf16.msra.mxu0 0
    %3574 = vmatprep.subr.bf16.mxu0 0
    %3575 = vmatpush2.bf16.msra.mxu0 0
    %3576 = vmatprep.subr.bf16.mxu0 0
    %3577 = vmatpush2.bf16.msra.mxu0 0
    %3578 = vmatprep.subr.bf16.mxu0 0
    %3579 = vmatpush2.bf16.msra.mxu0 0
    %3580 = vmatprep.mubr.bf16.mxu0 0
    %3581 = vmatmul.mubr.bf16.gmra.mxu0 %v2965
    %v3582 = vpop.f32.mrf.mxu0
    %v3583 = vadd.f32 0.0, %v3582
    %v3584 = vpop.f32.mrf.mxu0
    %v3585 = vadd.f32 0.0, %v3584
    %v3586 = vpop.f32.mrf.mxu0
    %v3587 = vadd.f32 0.0, %v3586
    %v3588 = vpop.f32.mrf.mxu0
    %v3589 = vadd.f32 0.0, %v3588
    %3590 = vmatprep.mubr.bf16.mxu0 0
    %3591 = vmatmul.mubr.bf16.gmra.mxu0 %v2966
    %v3592 = vpop.f32.mrf.mxu0
    %v3593 = vadd.f32 0.0, %v3592
    %v3594 = vpop.f32.mrf.mxu0
    %v3595 = vadd.f32 0.0, %v3594
    %v3596 = vpop.f32.mrf.mxu0
    %v3597 = vadd.f32 0.0, %v3596
    %v3598 = vpop.f32.mrf.mxu0
    %v3599 = vadd.f32 0.0, %v3598
    %3600 = vdwg.mxu0
    %3601 = vst [vmem:[#allocation3] sm:$0xff] %v3530
    %3602 = vst [vmem:[#allocation3 + $0x8] sm:$0xff] %v3532
    %3603 = vst [vmem:[#allocation3 + $0x10] sm:$0xff] %v3583
    %3604 = vst [vmem:[#allocation3 + $0x18] sm:$0xff] %v3585
    %3605 = vst [vmem:[#allocation3 + $0x20] sm:$0xff] %v3534
    %3606 = vst [vmem:[#allocation3 + $0x28] sm:$0xff] %v3536
    %3607 = vst [vmem:[#allocation3 + $0x30] sm:$0xff] %v3587
    %3608 = vst [vmem:[#allocation3 + $0x38] sm:$0xff] %v3589
    %3609 = vst [vmem:[#allocation3 + $0x40] sm:$0xff] %v3540
    %3610 = vst [vmem:[#allocation3 + $0x48] sm:$0xff] %v3542
    %3611 = vst [vmem:[#allocation3 + $0x50] sm:$0xff] %v3593
    %3612 = vst [vmem:[#allocation3 + $0x58] sm:$0xff] %v3595
    %3613 = vst [vmem:[#allocation3 + $0x60] sm:$0xff] %v3544
    %3614 = vst [vmem:[#allocation3 + $0x68] sm:$0xff] %v3546
    %3615 = vst [vmem:[#allocation3 + $0x70] sm:$0xff] %v3597
    %3616 = vst [vmem:[#allocation3 + $0x78] sm:$0xff] %v3599
    %v3617 = vld [vmem:[#allocation14] sm:$0xff]
    %v3618 = vld [vmem:[#allocation14 + $0x8] sm:$0xff]
    %v3619 = vld [vmem:[#allocation14 + $0x10] sm:$0xff]
    %v3620 = vld [vmem:[#allocation14 + $0x18] sm:$0xff]
    %v3621 = vld [vmem:[#allocation14 + $0x20] sm:$0xff]
    %v3622 = vld [vmem:[#allocation14 + $0x28] sm:$0xff]
    %v3623 = vld [vmem:[#allocation14 + $0x30] sm:$0xff]
    %v3624 = vld [vmem:[#allocation14 + $0x38] sm:$0xff]
    %v3625 = vld [vmem:[#allocation14 + $0x40] sm:$0xff]
    %v3626 = vld [vmem:[#allocation14 + $0x48] sm:$0xff]
    %v3627 = vld [vmem:[#allocation14 + $0x50] sm:$0xff]
    %v3628 = vld [vmem:[#allocation14 + $0x58] sm:$0xff]
    %v3629 = vld [vmem:[#allocation14 + $0x60] sm:$0xff]
    %v3630 = vld [vmem:[#allocation14 + $0x68] sm:$0xff]
    %v3631 = vld [vmem:[#allocation14 + $0x70] sm:$0xff]
    %v3632 = vld [vmem:[#allocation14 + $0x78] sm:$0xff]
    %v3633 = vld [vmem:[#allocation14 + $0x80] sm:$0xff]
    %v3634 = vld [vmem:[#allocation14 + $0x88] sm:$0xff]
    %v3635 = vld [vmem:[#allocation14 + $0x90] sm:$0xff]
    %v3636 = vld [vmem:[#allocation14 + $0x98] sm:$0xff]
    %v3637 = vld [vmem:[#allocation14 + $0xa0] sm:$0xff]
    %v3638 = vld [vmem:[#allocation14 + $0xa8] sm:$0xff]
    %v3639 = vld [vmem:[#allocation14 + $0xb0] sm:$0xff]
    %v3640 = vld [vmem:[#allocation14 + $0xb8] sm:$0xff]
    %v3641 = vld [vmem:[#allocation14 + $0xc0] sm:$0xff]
    %v3642 = vld [vmem:[#allocation14 + $0xc8] sm:$0xff]
    %v3643 = vld [vmem:[#allocation14 + $0xd0] sm:$0xff]
    %v3644 = vld [vmem:[#allocation14 + $0xd8] sm:$0xff]
    %v3645 = vld [vmem:[#allocation14 + $0xe0] sm:$0xff]
    %v3646 = vld [vmem:[#allocation14 + $0xe8] sm:$0xff]
    %v3647 = vld [vmem:[#allocation14 + $0xf0] sm:$0xff]
    %v3648 = vld [vmem:[#allocation14 + $0xf8] sm:$0xff]
    %v3649 = vld [vmem:[#allocation2] sm:$0x3]
    %v3650 = vld [vmem:[#allocation2 + $0x8] sm:$0x3]
    %v3651 = vld [vmem:[#allocation2 + $0x10] sm:$0x3]
    %v3652 = vld [vmem:[#allocation2 + $0x18] sm:$0x3]
    %v3653 = vld [vmem:[#allocation2 + $0x60] sm:$0xc0]
    %v3654 = vld [vmem:[#allocation2 + $0x68] sm:$0xc0]
    %v3655 = vld [vmem:[#allocation2 + $0x70] sm:$0xc0]
    %v3656 = vld [vmem:[#allocation2 + $0x78] sm:$0xc0]
    %v3657 = vld [vmem:[#allocation3] sm:$0x3]
    %v3658 = vld [vmem:[#allocation3 + $0x8] sm:$0x3]
    %v3659 = vld [vmem:[#allocation3 + $0x10] sm:$0x3]
    %v3660 = vld [vmem:[#allocation3 + $0x18] sm:$0x3]
    %v3661 = vld [vmem:[#allocation3 + $0x60] sm:$0xc0]
    %v3662 = vld [vmem:[#allocation3 + $0x68] sm:$0xc0]
    %v3663 = vld [vmem:[#allocation3 + $0x70] sm:$0xc0]
    %v3664 = vld [vmem:[#allocation3 + $0x78] sm:$0xc0]
    %v3669 = vrot.slane %v3661, 6
    %v3670 = vrot.slane %v3662, 6
    %v3671 = vrot.slane %v3663, 6
    %v3672 = vrot.slane %v3664, 6
    %v3677 = vadd.f32 %v3649, %v3669
    %v3678 = vadd.f32 %v3650, %v3670
    %v3679 = vadd.f32 %v3651, %v3671
    %v3680 = vadd.f32 %v3652, %v3672
    %v3685 = vrot.slane %v3657, 2
    %v3686 = vrot.slane %v3658, 2
    %v3687 = vrot.slane %v3659, 2
    %v3688 = vrot.slane %v3660, 2
    %v3693 = vadd.f32 %v3653, %v3685
    %v3694 = vadd.f32 %v3654, %v3686
    %v3695 = vadd.f32 %v3655, %v3687
    %v3696 = vadd.f32 %v3656, %v3688
    %v3701 = vrot.slane %v3693, 6
    %v3702 = vrot.slane %v3694, 6
    %v3703 = vrot.slane %v3695, 6
    %v3704 = vrot.slane %v3696, 6
    %v3709 = vsel %vm177, %v3677, %v3701
    %v3710 = vsel %vm178, %v3678, %v3702
    %v3711 = vsel %vm179, %v3679, %v3703
    %v3712 = vsel %vm180, %v3680, %v3704
    %v3745 = vunpack.c.l.b16 %v3617
    %v3746 = vunpack.c.h.b16 %v3617
    %v3747 = vunpack.c.l.b16 %v3618
    %v3748 = vunpack.c.h.b16 %v3618
    %v3749 = vunpack.c.l.b16 %v3619
    %v3750 = vunpack.c.h.b16 %v3619
    %v3751 = vunpack.c.l.b16 %v3620
    %v3752 = vunpack.c.h.b16 %v3620
    %v3753 = vunpack.c.l.b16 %v3621
    %v3754 = vunpack.c.h.b16 %v3621
    %v3755 = vunpack.c.l.b16 %v3622
    %v3756 = vunpack.c.h.b16 %v3622
    %v3757 = vunpack.c.l.b16 %v3623
    %v3758 = vunpack.c.h.b16 %v3623
    %v3759 = vunpack.c.l.b16 %v3624
    %v3760 = vunpack.c.h.b16 %v3624
    %v3761 = vunpack.c.l.b16 %v3625
    %v3762 = vunpack.c.h.b16 %v3625
    %v3763 = vunpack.c.l.b16 %v3626
    %v3764 = vunpack.c.h.b16 %v3626
    %v3765 = vunpack.c.l.b16 %v3627
    %v3766 = vunpack.c.h.b16 %v3627
    %v3767 = vunpack.c.l.b16 %v3628
    %v3768 = vunpack.c.h.b16 %v3628
    %v3769 = vunpack.c.l.b16 %v3629
    %v3770 = vunpack.c.h.b16 %v3629
    %v3771 = vunpack.c.l.b16 %v3630
    %v3772 = vunpack.c.h.b16 %v3630
    %v3773 = vunpack.c.l.b16 %v3631
    %v3774 = vunpack.c.h.b16 %v3631
    %v3775 = vunpack.c.l.b16 %v3632
    %v3776 = vunpack.c.h.b16 %v3632
    %v3777 = vunpack.c.l.b16 %v3633
    %v3778 = vunpack.c.h.b16 %v3633
    %v3779 = vunpack.c.l.b16 %v3634
    %v3780 = vunpack.c.h.b16 %v3634
    %v3781 = vunpack.c.l.b16 %v3635
    %v3782 = vunpack.c.h.b16 %v3635
    %v3783 = vunpack.c.l.b16 %v3636
    %v3784 = vunpack.c.h.b16 %v3636
    %v3785 = vunpack.c.l.b16 %v3637
    %v3786 = vunpack.c.h.b16 %v3637
    %v3787 = vunpack.c.l.b16 %v3638
    %v3788 = vunpack.c.h.b16 %v3638
    %v3789 = vunpack.c.l.b16 %v3639
    %v3790 = vunpack.c.h.b16 %v3639
    %v3791 = vunpack.c.l.b16 %v3640
    %v3792 = vunpack.c.h.b16 %v3640
    %v3793 = vunpack.c.l.b16 %v3641
    %v3794 = vunpack.c.h.b16 %v3641
    %v3795 = vunpack.c.l.b16 %v3642
    %v3796 = vunpack.c.h.b16 %v3642
    %v3797 = vunpack.c.l.b16 %v3643
    %v3798 = vunpack.c.h.b16 %v3643
    %v3799 = vunpack.c.l.b16 %v3644
    %v3800 = vunpack.c.h.b16 %v3644
    %v3801 = vunpack.c.l.b16 %v3645
    %v3802 = vunpack.c.h.b16 %v3645
    %v3803 = vunpack.c.l.b16 %v3646
    %v3804 = vunpack.c.h.b16 %v3646
    %v3805 = vunpack.c.l.b16 %v3647
    %v3806 = vunpack.c.h.b16 %v3647
    %v3807 = vunpack.c.l.b16 %v3648
    %v3808 = vunpack.c.h.b16 %v3648
    %v3809 = vpack.c.b16 %v3749, %v3745
    %v3810 = vpack.c.b16 %v3750, %v3746
    %v3811 = vpack.c.b16 %v3751, %v3747
    %v3812 = vpack.c.b16 %v3752, %v3748
    %v3813 = vpack.c.b16 %v3757, %v3753
    %v3814 = vpack.c.b16 %v3758, %v3754
    %v3815 = vpack.c.b16 %v3759, %v3755
    %v3816 = vpack.c.b16 %v3760, %v3756
    %v3817 = vpack.c.b16 %v3765, %v3761
    %v3818 = vpack.c.b16 %v3766, %v3762
    %v3819 = vpack.c.b16 %v3767, %v3763
    %v3820 = vpack.c.b16 %v3768, %v3764
    %v3821 = vpack.c.b16 %v3773, %v3769
    %v3822 = vpack.c.b16 %v3774, %v3770
    %v3823 = vpack.c.b16 %v3775, %v3771
    %v3824 = vpack.c.b16 %v3776, %v3772
    %v3825 = vpack.c.b16 %v3781, %v3777
    %v3826 = vpack.c.b16 %v3782, %v3778
    %v3827 = vpack.c.b16 %v3783, %v3779
    %v3828 = vpack.c.b16 %v3784, %v3780
    %v3829 = vpack.c.b16 %v3789, %v3785
    %v3830 = vpack.c.b16 %v3790, %v3786
    %v3831 = vpack.c.b16 %v3791, %v3787
    %v3832 = vpack.c.b16 %v3792, %v3788
    %v3833 = vpack.c.b16 %v3797, %v3793
    %v3834 = vpack.c.b16 %v3798, %v3794
    %v3835 = vpack.c.b16 %v3799, %v3795
    %v3836 = vpack.c.b16 %v3800, %v3796
    %v3837 = vpack.c.b16 %v3805, %v3801
    %v3838 = vpack.c.b16 %v3806, %v3802
    %v3839 = vpack.c.b16 %v3807, %v3803
    %v3840 = vpack.c.b16 %v3808, %v3804
    %3873 = vmatprep.subr.bf16.mxu0 %v3838
    %3874 = vmatpush1.bf16.msra.mxu0 %v3837
    %3875 = vmatprep.subr.bf16.mxu0 %v3834
    %3876 = vmatpush1.bf16.msra.mxu0 %v3833
    %3877 = vmatprep.subr.bf16.mxu0 %v3830
    %3878 = vmatpush1.bf16.msra.mxu0 %v3829
    %3879 = vmatprep.subr.bf16.mxu0 %v3826
    %3880 = vmatpush1.bf16.msra.mxu0 %v3825
    %3881 = vmatprep.subr.bf16.mxu0 %v3822
    %3882 = vmatpush1.bf16.msra.mxu0 %v3821
    %3883 = vmatprep.subr.bf16.mxu0 %v3818
    %3884 = vmatpush1.bf16.msra.mxu0 %v3817
    %3885 = vmatprep.subr.bf16.mxu0 %v3814
    %3886 = vmatpush1.bf16.msra.mxu0 %v3813
    %3887 = vmatprep.subr.bf16.mxu0 %v3810
    %3888 = vmatpush1.bf16.msra.mxu0 %v3809
    %3889 = vmatprep.subr.bf16.mxu0 0
    %3890 = vmatpush2.bf16.msra.mxu0 0
    %3891 = vmatprep.subr.bf16.mxu0 0
    %3892 = vmatpush2.bf16.msra.mxu0 0
    %3893 = vmatprep.subr.bf16.mxu0 0
    %3894 = vmatpush2.bf16.msra.mxu0 0
    %3895 = vmatprep.subr.bf16.mxu0 0
    %3896 = vmatpush2.bf16.msra.mxu0 0
    %3897 = vmatprep.subr.bf16.mxu0 0
    %3898 = vmatpush2.bf16.msra.mxu0 0
    %3899 = vmatprep.subr.bf16.mxu0 0
    %3900 = vmatpush2.bf16.msra.mxu0 0
    %3901 = vmatprep.subr.bf16.mxu0 0
    %3902 = vmatpush2.bf16.msra.mxu0 0
    %3903 = vmatprep.subr.bf16.mxu0 0
    %3904 = vmatpush2.bf16.msra.mxu0 0
    %3905 = vmatprep.mubr.bf16.mxu0 0
    %3906 = vmatmul.mubr.bf16.gmra.mxu0 0
    %v3907 = vpop.f32.mrf.mxu0
    %v3908 = vadd.f32 0.0, %v3907
    %v3909 = vpop.f32.mrf.mxu0
    %v3910 = vadd.f32 0.0, %v3909
    %v3911 = vpop.f32.mrf.mxu0
    %v3912 = vpop.f32.mrf.mxu0
    %3913 = vdwg.mxu0
    %3914 = vmatprep.subr.bf16.mxu0 %v3840
    %3915 = vmatpush1.bf16.msra.mxu0 %v3839
    %3916 = vmatprep.subr.bf16.mxu0 %v3836
    %3917 = vmatpush1.bf16.msra.mxu0 %v3835
    %3918 = vmatprep.subr.bf16.mxu0 %v3832
    %3919 = vmatpush1.bf16.msra.mxu0 %v3831
    %3920 = vmatprep.subr.bf16.mxu0 %v3828
    %3921 = vmatpush1.bf16.msra.mxu0 %v3827
    %3922 = vmatprep.subr.bf16.mxu0 %v3824
    %3923 = vmatpush1.bf16.msra.mxu0 %v3823
    %3924 = vmatprep.subr.bf16.mxu0 %v3820
    %3925 = vmatpush1.bf16.msra.mxu0 %v3819
    %3926 = vmatprep.subr.bf16.mxu0 %v3816
    %3927 = vmatpush1.bf16.msra.mxu0 %v3815
    %3928 = vmatprep.subr.bf16.mxu0 %v3812
    %3929 = vmatpush1.bf16.msra.mxu0 %v3811
    %3930 = vmatprep.subr.bf16.mxu0 0
    %3931 = vmatpush2.bf16.msra.mxu0 0
    %3932 = vmatprep.subr.bf16.mxu0 0
    %3933 = vmatpush2.bf16.msra.mxu0 0
    %3934 = vmatprep.subr.bf16.mxu0 0
    %3935 = vmatpush2.bf16.msra.mxu0 0
    %3936 = vmatprep.subr.bf16.mxu0 0
    %3937 = vmatpush2.bf16.msra.mxu0 0
    %3938 = vmatprep.subr.bf16.mxu0 0
    %3939 = vmatpush2.bf16.msra.mxu0 0
    %3940 = vmatprep.subr.bf16.mxu0 0
    %3941 = vmatpush2.bf16.msra.mxu0 0
    %3942 = vmatprep.subr.bf16.mxu0 0
    %3943 = vmatpush2.bf16.msra.mxu0 0
    %3944 = vmatprep.subr.bf16.mxu0 0
    %3945 = vmatpush2.bf16.msra.mxu0 0
    %3946 = vmatprep.mubr.bf16.mxu0 0
    %3947 = vmatmul.mubr.bf16.gmra.mxu0 0
    %v3948 = vpop.f32.mrf.mxu0
    %v3949 = vadd.f32 0.0, %v3948
    %v3950 = vpop.f32.mrf.mxu0
    %v3951 = vadd.f32 0.0, %v3950
    %v3952 = vpop.f32.mrf.mxu0
    %v3953 = vpop.f32.mrf.mxu0
    %3954 = vdwg.mxu0
    %v3955 = vadd.f32 %v3709, %v3908
    %v3956 = vadd.f32 %v3710, %v3910
    %v3957 = vadd.f32 %v3711, %v3949
    %v3958 = vadd.f32 %v3712, %v3951
    %v3959 = vxor.u32 %v3955, 2147483648
    %v3960 = vmul.f32 %v3959, 1.442695
    %v3961 = vpow.pop %v3960
    %v3962 = vadd.f32 %v3961, 1.0
    %v3963 = vrcp.pop %v3962
    %v3964 = vmul.f32 1.0, %v3963
    %v3965 = vxor.u32 %v3956, 2147483648
    %v3966 = vmul.f32 %v3965, 1.442695
    %v3967 = vpow.pop %v3966
    %v3968 = vadd.f32 %v3967, 1.0
    %v3969 = vrcp.pop %v3968
    %v3970 = vmul.f32 1.0, %v3969
    %v3971 = vtanh.pop %v3957
    %v3972 = vxor.u32 %v3958, 2147483648
    %v3973 = vmul.f32 %v3972, 1.442695
    %v3974 = vpow.pop %v3973
    %v3975 = vadd.f32 %v3974, 1.0
    %v3976 = vrcp.pop %v3975
    %v3977 = vmul.f32 1.0, %v3976
    %v3978 = vmul.f32 %v3970, 0.0
    %v3979 = vmul.f32 %v3964, %v3971
    %v3980 = vadd.f32 %v3978, %v3979
    %v3981 = vtanh.pop %v3980
    %v3982 = vmul.f32 %v3977, %v3981
    %v3983 = vld [vmem:[#allocation2] sm:$0xc]
    %v3984 = vld [vmem:[#allocation2 + $0x8] sm:$0xc]
    %v3985 = vld [vmem:[#allocation2 + $0x10] sm:$0xc]
    %v3986 = vld [vmem:[#allocation2 + $0x18] sm:$0xc]
    %v3987 = vld [vmem:[#allocation2 + $0x60] sm:$0x30]
    %v3988 = vld [vmem:[#allocation2 + $0x68] sm:$0x30]
    %v3989 = vld [vmem:[#allocation2 + $0x70] sm:$0x30]
    %v3990 = vld [vmem:[#allocation2 + $0x78] sm:$0x30]
    %v3991 = vld [vmem:[#allocation3] sm:$0xc]
    %v3992 = vld [vmem:[#allocation3 + $0x8] sm:$0xc]
    %v3993 = vld [vmem:[#allocation3 + $0x10] sm:$0xc]
    %v3994 = vld [vmem:[#allocation3 + $0x18] sm:$0xc]
    %v3995 = vld [vmem:[#allocation3 + $0x60] sm:$0x30]
    %v3996 = vld [vmem:[#allocation3 + $0x68] sm:$0x30]
    %v3997 = vld [vmem:[#allocation3 + $0x70] sm:$0x30]
    %v3998 = vld [vmem:[#allocation3 + $0x78] sm:$0x30]
    %v4003 = vrot.slane %v3995, 2
    %v4004 = vrot.slane %v3996, 2
    %v4005 = vrot.slane %v3997, 2
    %v4006 = vrot.slane %v3998, 2
    %v4011 = vadd.f32 %v3983, %v4003
    %v4012 = vadd.f32 %v3984, %v4004
    %v4013 = vadd.f32 %v3985, %v4005
    %v4014 = vadd.f32 %v3986, %v4006
    %v4019 = vrot.slane %v3991, 6
    %v4020 = vrot.slane %v3992, 6
    %v4021 = vrot.slane %v3993, 6
    %v4022 = vrot.slane %v3994, 6
    %v4027 = vadd.f32 %v3987, %v4019
    %v4028 = vadd.f32 %v3988, %v4020
    %v4029 = vadd.f32 %v3989, %v4021
    %v4030 = vadd.f32 %v3990, %v4022
    %v4035 = vrot.slane %v4027, 2
    %v4036 = vrot.slane %v4028, 2
    %v4037 = vrot.slane %v4029, 2
    %v4038 = vrot.slane %v4030, 2
    %v4043 = vsel %vm177, %v4011, %v4035
    %v4044 = vsel %vm178, %v4012, %v4036
    %v4045 = vsel %vm179, %v4013, %v4037
    %v4046 = vsel %vm180, %v4014, %v4038
    %v4047 = vpack.c.bf16 %v3982, %v3982
    %4048 = vmatprep.subr.bf16.mxu0 %v3838
    %4049 = vmatpush1.bf16.msra.mxu0 %v3837
    %4050 = vmatprep.subr.bf16.mxu0 %v3834
    %4051 = vmatpush1.bf16.msra.mxu0 %v3833
    %4052 = vmatprep.subr.bf16.mxu0 %v3830
    %4053 = vmatpush1.bf16.msra.mxu0 %v3829
    %4054 = vmatprep.subr.bf16.mxu0 %v3826
    %4055 = vmatpush1.bf16.msra.mxu0 %v3825
    %4056 = vmatprep.subr.bf16.mxu0 %v3822
    %4057 = vmatpush1.bf16.msra.mxu0 %v3821
    %4058 = vmatprep.subr.bf16.mxu0 %v3818
    %4059 = vmatpush1.bf16.msra.mxu0 %v3817
    %4060 = vmatprep.subr.bf16.mxu0 %v3814
    %4061 = vmatpush1.bf16.msra.mxu0 %v3813
    %4062 = vmatprep.subr.bf16.mxu0 %v3810
    %4063 = vmatpush1.bf16.msra.mxu0 %v3809
    %4064 = vmatprep.subr.bf16.mxu0 0
    %4065 = vmatpush2.bf16.msra.mxu0 0
    %4066 = vmatprep.subr.bf16.mxu0 0
    %4067 = vmatpush2.bf16.msra.mxu0 0
    %4068 = vmatprep.subr.bf16.mxu0 0
    %4069 = vmatpush2.bf16.msra.mxu0 0
    %4070 = vmatprep.subr.bf16.mxu0 0
    %4071 = vmatpush2.bf16.msra.mxu0 0
    %4072 = vmatprep.subr.bf16.mxu0 0
    %4073 = vmatpush2.bf16.msra.mxu0 0
    %4074 = vmatprep.subr.bf16.mxu0 0
    %4075 = vmatpush2.bf16.msra.mxu0 0
    %4076 = vmatprep.subr.bf16.mxu0 0
    %4077 = vmatpush2.bf16.msra.mxu0 0
    %4078 = vmatprep.subr.bf16.mxu0 0
    %4079 = vmatpush2.bf16.msra.mxu0 0
    %4080 = vmatprep.mubr.bf16.mxu0 0
    %4081 = vmatmul.mubr.bf16.gmra.mxu0 %v4047
    %v4082 = vpop.f32.mrf.mxu0
    %v4083 = vadd.f32 0.0, %v4082
    %v4084 = vpop.f32.mrf.mxu0
    %v4085 = vadd.f32 0.0, %v4084
    %v4086 = vpop.f32.mrf.mxu0
    %v4087 = vpop.f32.mrf.mxu0
    %4088 = vdwg.mxu0
    %4089 = vmatprep.subr.bf16.mxu0 %v3840
    %4090 = vmatpush1.bf16.msra.mxu0 %v3839
    %4091 = vmatprep.subr.bf16.mxu0 %v3836
    %4092 = vmatpush1.bf16.msra.mxu0 %v3835
    %4093 = vmatprep.subr.bf16.mxu0 %v3832
    %4094 = vmatpush1.bf16.msra.mxu0 %v3831
    %4095 = vmatprep.subr.bf16.mxu0 %v3828
    %4096 = vmatpush1.bf16.msra.mxu0 %v3827
    %4097 = vmatprep.subr.bf16.mxu0 %v3824
    %4098 = vmatpush1.bf16.msra.mxu0 %v3823
    %4099 = vmatprep.subr.bf16.mxu0 %v3820
    %4100 = vmatpush1.bf16.msra.mxu0 %v3819
    %4101 = vmatprep.subr.bf16.mxu0 %v3816
    %4102 = vmatpush1.bf16.msra.mxu0 %v3815
    %4103 = vmatprep.subr.bf16.mxu0 %v3812
    %4104 = vmatpush1.bf16.msra.mxu0 %v3811
    %4105 = vmatprep.subr.bf16.mxu0 0
    %4106 = vmatpush2.bf16.msra.mxu0 0
    %4107 = vmatprep.subr.bf16.mxu0 0
    %4108 = vmatpush2.bf16.msra.mxu0 0
    %4109 = vmatprep.subr.bf16.mxu0 0
    %4110 = vmatpush2.bf16.msra.mxu0 0
    %4111 = vmatprep.subr.bf16.mxu0 0
    %4112 = vmatpush2.bf16.msra.mxu0 0
    %4113 = vmatprep.subr.bf16.mxu0 0
    %4114 = vmatpush2.bf16.msra.mxu0 0
    %4115 = vmatprep.subr.bf16.mxu0 0
    %4116 = vmatpush2.bf16.msra.mxu0 0
    %4117 = vmatprep.subr.bf16.mxu0 0
    %4118 = vmatpush2.bf16.msra.mxu0 0
    %4119 = vmatprep.subr.bf16.mxu0 0
    %4120 = vmatpush2.bf16.msra.mxu0 0
    %4121 = vmatprep.mubr.bf16.mxu0 0
    %4122 = vmatmul.mubr.bf16.gmra.mxu0 %v4047
    %v4123 = vpop.f32.mrf.mxu0
    %v4124 = vadd.f32 0.0, %v4123
    %v4125 = vpop.f32.mrf.mxu0
    %v4126 = vadd.f32 0.0, %v4125
    %v4127 = vpop.f32.mrf.mxu0
    %v4128 = vpop.f32.mrf.mxu0
    %4129 = vdwg.mxu0
    %v4134 = vrot.slane %v4083, 6
    %v4135 = vrot.slane %v4085, 6
    %v4136 = vrot.slane %v4124, 6
    %v4137 = vrot.slane %v4126, 6
    %v4142 = vadd.f32 %v4043, %v4134
    %v4143 = vadd.f32 %v4044, %v4135
    %v4144 = vadd.f32 %v4045, %v4136
    %v4145 = vadd.f32 %v4046, %v4137
    %v4146 = vxor.u32 %v4142, 2147483648
    %v4147 = vmul.f32 %v4146, 1.442695
    %v4148 = vpow.pop %v4147
    %v4149 = vadd.f32 %v4148, 1.0
    %v4150 = vrcp.pop %v4149
    %v4151 = vmul.f32 1.0, %v4150
    %v4152 = vxor.u32 %v4143, 2147483648
    %v4153 = vmul.f32 %v4152, 1.442695
    %v4154 = vpow.pop %v4153
    %v4155 = vadd.f32 %v4154, 1.0
    %v4156 = vrcp.pop %v4155
    %v4157 = vmul.f32 1.0, %v4156
    %v4158 = vtanh.pop %v4144
    %v4159 = vxor.u32 %v4145, 2147483648
    %v4160 = vmul.f32 %v4159, 1.442695
    %v4161 = vpow.pop %v4160
    %v4162 = vadd.f32 %v4161, 1.0
    %v4163 = vrcp.pop %v4162
    %v4164 = vmul.f32 1.0, %v4163
    %v4166 = vrot.slane %v3980, 6
    %v4168 = vmul.f32 %v4157, %v4166
    %v4169 = vmul.f32 %v4151, %v4158
    %v4170 = vadd.f32 %v4168, %v4169
    %v4171 = vtanh.pop %v4170
    %v4172 = vmul.f32 %v4164, %v4171
    %v4173 = vld [vmem:[#allocation2] sm:$0x30]
    %v4174 = vld [vmem:[#allocation2 + $0x8] sm:$0x30]
    %v4175 = vld [vmem:[#allocation2 + $0x10] sm:$0x30]
    %v4176 = vld [vmem:[#allocation2 + $0x18] sm:$0x30]
    %v4177 = vld [vmem:[#allocation2 + $0x60] sm:$0xc]
    %v4178 = vld [vmem:[#allocation2 + $0x68] sm:$0xc]
    %v4179 = vld [vmem:[#allocation2 + $0x70] sm:$0xc]
    %v4180 = vld [vmem:[#allocation2 + $0x78] sm:$0xc]
    %v4181 = vld [vmem:[#allocation3] sm:$0x30]
    %v4182 = vld [vmem:[#allocation3 + $0x8] sm:$0x30]
    %v4183 = vld [vmem:[#allocation3 + $0x10] sm:$0x30]
    %v4184 = vld [vmem:[#allocation3 + $0x18] sm:$0x30]
    %v4185 = vld [vmem:[#allocation3 + $0x60] sm:$0xc]
    %v4186 = vld [vmem:[#allocation3 + $0x68] sm:$0xc]
    %v4187 = vld [vmem:[#allocation3 + $0x70] sm:$0xc]
    %v4188 = vld [vmem:[#allocation3 + $0x78] sm:$0xc]
    %v4193 = vrot.slane %v4185, 6
    %v4194 = vrot.slane %v4186, 6
    %v4195 = vrot.slane %v4187, 6
    %v4196 = vrot.slane %v4188, 6
    %v4201 = vadd.f32 %v4173, %v4193
    %v4202 = vadd.f32 %v4174, %v4194
    %v4203 = vadd.f32 %v4175, %v4195
    %v4204 = vadd.f32 %v4176, %v4196
    %v4209 = vrot.slane %v4181, 2
    %v4210 = vrot.slane %v4182, 2
    %v4211 = vrot.slane %v4183, 2
    %v4212 = vrot.slane %v4184, 2
    %v4217 = vadd.f32 %v4177, %v4209
    %v4218 = vadd.f32 %v4178, %v4210
    %v4219 = vadd.f32 %v4179, %v4211
    %v4220 = vadd.f32 %v4180, %v4212
    %v4225 = vrot.slane %v4217, 6
    %v4226 = vrot.slane %v4218, 6
    %v4227 = vrot.slane %v4219, 6
    %v4228 = vrot.slane %v4220, 6
    %v4233 = vsel %vm177, %v4201, %v4225
    %v4234 = vsel %vm178, %v4202, %v4226
    %v4235 = vsel %vm179, %v4203, %v4227
    %v4236 = vsel %vm180, %v4204, %v4228
    %v4237 = vpack.c.bf16 %v4172, %v4172
    %v4239 = vrot.slane %v4237, 1
    %4241 = vmatprep.subr.bf16.mxu0 %v3838
    %4242 = vmatpush1.bf16.msra.mxu0 %v3837
    %4243 = vmatprep.subr.bf16.mxu0 %v3834
    %4244 = vmatpush1.bf16.msra.mxu0 %v3833
    %4245 = vmatprep.subr.bf16.mxu0 %v3830
    %4246 = vmatpush1.bf16.msra.mxu0 %v3829
    %4247 = vmatprep.subr.bf16.mxu0 %v3826
    %4248 = vmatpush1.bf16.msra.mxu0 %v3825
    %4249 = vmatprep.subr.bf16.mxu0 %v3822
    %4250 = vmatpush1.bf16.msra.mxu0 %v3821
    %4251 = vmatprep.subr.bf16.mxu0 %v3818
    %4252 = vmatpush1.bf16.msra.mxu0 %v3817
    %4253 = vmatprep.subr.bf16.mxu0 %v3814
    %4254 = vmatpush1.bf16.msra.mxu0 %v3813
    %4255 = vmatprep.subr.bf16.mxu0 %v3810
    %4256 = vmatpush1.bf16.msra.mxu0 %v3809
    %4257 = vmatprep.subr.bf16.mxu0 0
    %4258 = vmatpush2.bf16.msra.mxu0 0
    %4259 = vmatprep.subr.bf16.mxu0 0
    %4260 = vmatpush2.bf16.msra.mxu0 0
    %4261 = vmatprep.subr.bf16.mxu0 0
    %4262 = vmatpush2.bf16.msra.mxu0 0
    %4263 = vmatprep.subr.bf16.mxu0 0
    %4264 = vmatpush2.bf16.msra.mxu0 0
    %4265 = vmatprep.subr.bf16.mxu0 0
    %4266 = vmatpush2.bf16.msra.mxu0 0
    %4267 = vmatprep.subr.bf16.mxu0 0
    %4268 = vmatpush2.bf16.msra.mxu0 0
    %4269 = vmatprep.subr.bf16.mxu0 0
    %4270 = vmatpush2.bf16.msra.mxu0 0
    %4271 = vmatprep.subr.bf16.mxu0 0
    %4272 = vmatpush2.bf16.msra.mxu0 0
    %4273 = vmatprep.mubr.bf16.mxu0 0
    %4274 = vmatmul.mubr.bf16.gmra.mxu0 %v4239
    %v4275 = vpop.f32.mrf.mxu0
    %v4276 = vadd.f32 0.0, %v4275
    %v4277 = vpop.f32.mrf.mxu0
    %v4278 = vadd.f32 0.0, %v4277
    %v4279 = vpop.f32.mrf.mxu0
    %v4280 = vpop.f32.mrf.mxu0
    %4281 = vdwg.mxu0
    %4282 = vmatprep.subr.bf16.mxu0 %v3840
    %4283 = vmatpush1.bf16.msra.mxu0 %v3839
    %4284 = vmatprep.subr.bf16.mxu0 %v3836
    %4285 = vmatpush1.bf16.msra.mxu0 %v3835
    %4286 = vmatprep.subr.bf16.mxu0 %v3832
    %4287 = vmatpush1.bf16.msra.mxu0 %v3831
    %4288 = vmatprep.subr.bf16.mxu0 %v3828
    %4289 = vmatpush1.bf16.msra.mxu0 %v3827
    %4290 = vmatprep.subr.bf16.mxu0 %v3824
    %4291 = vmatpush1.bf16.msra.mxu0 %v3823
    %4292 = vmatprep.subr.bf16.mxu0 %v3820
    %4293 = vmatpush1.bf16.msra.mxu0 %v3819
    %4294 = vmatprep.subr.bf16.mxu0 %v3816
    %4295 = vmatpush1.bf16.msra.mxu0 %v3815
    %4296 = vmatprep.subr.bf16.mxu0 %v3812
    %4297 = vmatpush1.bf16.msra.mxu0 %v3811
    %4298 = vmatprep.subr.bf16.mxu0 0
    %4299 = vmatpush2.bf16.msra.mxu0 0
    %4300 = vmatprep.subr.bf16.mxu0 0
    %4301 = vmatpush2.bf16.msra.mxu0 0
    %4302 = vmatprep.subr.bf16.mxu0 0
    %4303 = vmatpush2.bf16.msra.mxu0 0
    %4304 = vmatprep.subr.bf16.mxu0 0
    %4305 = vmatpush2.bf16.msra.mxu0 0
    %4306 = vmatprep.subr.bf16.mxu0 0
    %4307 = vmatpush2.bf16.msra.mxu0 0
    %4308 = vmatprep.subr.bf16.mxu0 0
    %4309 = vmatpush2.bf16.msra.mxu0 0
    %4310 = vmatprep.subr.bf16.mxu0 0
    %4311 = vmatpush2.bf16.msra.mxu0 0
    %4312 = vmatprep.subr.bf16.mxu0 0
    %4313 = vmatpush2.bf16.msra.mxu0 0
    %4314 = vmatprep.mubr.bf16.mxu0 0
    %4315 = vmatmul.mubr.bf16.gmra.mxu0 %v4239
    %v4316 = vpop.f32.mrf.mxu0
    %v4317 = vadd.f32 0.0, %v4316
    %v4318 = vpop.f32.mrf.mxu0
    %v4319 = vadd.f32 0.0, %v4318
    %v4320 = vpop.f32.mrf.mxu0
    %v4321 = vpop.f32.mrf.mxu0
    %4322 = vdwg.mxu0
    %v4327 = vrot.slane %v4276, 4
    %v4328 = vrot.slane %v4278, 4
    %v4329 = vrot.slane %v4317, 4
    %v4330 = vrot.slane %v4319, 4
    %v4335 = vadd.f32 %v4233, %v4327
    %v4336 = vadd.f32 %v4234, %v4328
    %v4337 = vadd.f32 %v4235, %v4329
    %v4338 = vadd.f32 %v4236, %v4330
    %v4339 = vxor.u32 %v4335, 2147483648
    %v4340 = vmul.f32 %v4339, 1.442695
    %v4341 = vpow.pop %v4340
    %v4342 = vadd.f32 %v4341, 1.0
    %v4343 = vrcp.pop %v4342
    %v4344 = vmul.f32 1.0, %v4343
    %v4345 = vxor.u32 %v4336, 2147483648
    %v4346 = vmul.f32 %v4345, 1.442695
    %v4347 = vpow.pop %v4346
    %v4348 = vadd.f32 %v4347, 1.0
    %v4349 = vrcp.pop %v4348
    %v4350 = vmul.f32 1.0, %v4349
    %v4351 = vtanh.pop %v4337
    %v4352 = vxor.u32 %v4338, 2147483648
    %v4353 = vmul.f32 %v4352, 1.442695
    %v4354 = vpow.pop %v4353
    %v4355 = vadd.f32 %v4354, 1.0
    %v4356 = vrcp.pop %v4355
    %v4357 = vmul.f32 1.0, %v4356
    %v4359 = vrot.slane %v4170, 6
    %v4361 = vmul.f32 %v4350, %v4359
    %v4362 = vmul.f32 %v4344, %v4351
    %v4363 = vadd.f32 %v4361, %v4362
    %v4364 = vtanh.pop %v4363
    %v4365 = vmul.f32 %v4357, %v4364
    %v4366 = vld [vmem:[#allocation2] sm:$0xc0]
    %v4367 = vld [vmem:[#allocation2 + $0x8] sm:$0xc0]
    %v4368 = vld [vmem:[#allocation2 + $0x10] sm:$0xc0]
    %v4369 = vld [vmem:[#allocation2 + $0x18] sm:$0xc0]
    %v4370 = vld [vmem:[#allocation2 + $0x60] sm:$0x3]
    %v4371 = vld [vmem:[#allocation2 + $0x68] sm:$0x3]
    %v4372 = vld [vmem:[#allocation2 + $0x70] sm:$0x3]
    %v4373 = vld [vmem:[#allocation2 + $0x78] sm:$0x3]
    %v4374 = vld [vmem:[#allocation3] sm:$0xc0]
    %v4375 = vld [vmem:[#allocation3 + $0x8] sm:$0xc0]
    %v4376 = vld [vmem:[#allocation3 + $0x10] sm:$0xc0]
    %v4377 = vld [vmem:[#allocation3 + $0x18] sm:$0xc0]
    %v4378 = vld [vmem:[#allocation3 + $0x60] sm:$0x3]
    %v4379 = vld [vmem:[#allocation3 + $0x68] sm:$0x3]
    %v4380 = vld [vmem:[#allocation3 + $0x70] sm:$0x3]
    %v4381 = vld [vmem:[#allocation3 + $0x78] sm:$0x3]
    %v4386 = vrot.slane %v4378, 2
    %v4387 = vrot.slane %v4379, 2
    %v4388 = vrot.slane %v4380, 2
    %v4389 = vrot.slane %v4381, 2
    %v4394 = vadd.f32 %v4366, %v4386
    %v4395 = vadd.f32 %v4367, %v4387
    %v4396 = vadd.f32 %v4368, %v4388
    %v4397 = vadd.f32 %v4369, %v4389
    %v4402 = vrot.slane %v4374, 6
    %v4403 = vrot.slane %v4375, 6
    %v4404 = vrot.slane %v4376, 6
    %v4405 = vrot.slane %v4377, 6
    %v4410 = vadd.f32 %v4370, %v4402
    %v4411 = vadd.f32 %v4371, %v4403
    %v4412 = vadd.f32 %v4372, %v4404
    %v4413 = vadd.f32 %v4373, %v4405
    %v4418 = vrot.slane %v4410, 2
    %v4419 = vrot.slane %v4411, 2
    %v4420 = vrot.slane %v4412, 2
    %v4421 = vrot.slane %v4413, 2
    %v4426 = vsel %vm177, %v4394, %v4418
    %v4427 = vsel %vm178, %v4395, %v4419
    %v4428 = vsel %vm179, %v4396, %v4420
    %v4429 = vsel %vm180, %v4397, %v4421
    %v4430 = vpack.c.bf16 %v4365, %v4365
    %v4432 = vrot.slane %v4430, 2
    %4434 = vmatprep.subr.bf16.mxu0 %v3838
    %4435 = vmatpush1.bf16.msra.mxu0 %v3837
    %4436 = vmatprep.subr.bf16.mxu0 %v3834
    %4437 = vmatpush1.bf16.msra.mxu0 %v3833
    %4438 = vmatprep.subr.bf16.mxu0 %v3830
    %4439 = vmatpush1.bf16.msra.mxu0 %v3829
    %4440 = vmatprep.subr.bf16.mxu0 %v3826
    %4441 = vmatpush1.bf16.msra.mxu0 %v3825
    %4442 = vmatprep.subr.bf16.mxu0 %v3822
    %4443 = vmatpush1.bf16.msra.mxu0 %v3821
    %4444 = vmatprep.subr.bf16.mxu0 %v3818
    %4445 = vmatpush1.bf16.msra.mxu0 %v3817
    %4446 = vmatprep.subr.bf16.mxu0 %v3814
    %4447 = vmatpush1.bf16.msra.mxu0 %v3813
    %4448 = vmatprep.subr.bf16.mxu0 %v3810
    %4449 = vmatpush1.bf16.msra.mxu0 %v3809
    %4450 = vmatprep.subr.bf16.mxu0 0
    %4451 = vmatpush2.bf16.msra.mxu0 0
    %4452 = vmatprep.subr.bf16.mxu0 0
    %4453 = vmatpush2.bf16.msra.mxu0 0
    %4454 = vmatprep.subr.bf16.mxu0 0
    %4455 = vmatpush2.bf16.msra.mxu0 0
    %4456 = vmatprep.subr.bf16.mxu0 0
    %4457 = vmatpush2.bf16.msra.mxu0 0
    %4458 = vmatprep.subr.bf16.mxu0 0
    %4459 = vmatpush2.bf16.msra.mxu0 0
    %4460 = vmatprep.subr.bf16.mxu0 0
    %4461 = vmatpush2.bf16.msra.mxu0 0
    %4462 = vmatprep.subr.bf16.mxu0 0
    %4463 = vmatpush2.bf16.msra.mxu0 0
    %4464 = vmatprep.subr.bf16.mxu0 0
    %4465 = vmatpush2.bf16.msra.mxu0 0
    %4466 = vmatprep.mubr.bf16.mxu0 0
    %4467 = vmatmul.mubr.bf16.gmra.mxu0 %v4432
    %v4468 = vpop.f32.mrf.mxu0
    %v4469 = vadd.f32 0.0, %v4468
    %v4470 = vpop.f32.mrf.mxu0
    %v4471 = vadd.f32 0.0, %v4470
    %v4472 = vpop.f32.mrf.mxu0
    %v4473 = vpop.f32.mrf.mxu0
    %4474 = vdwg.mxu0
    %4475 = vmatprep.subr.bf16.mxu0 %v3840
    %4476 = vmatpush1.bf16.msra.mxu0 %v3839
    %4477 = vmatprep.subr.bf16.mxu0 %v3836
    %4478 = vmatpush1.bf16.msra.mxu0 %v3835
    %4479 = vmatprep.subr.bf16.mxu0 %v3832
    %4480 = vmatpush1.bf16.msra.mxu0 %v3831
    %4481 = vmatprep.subr.bf16.mxu0 %v3828
    %4482 = vmatpush1.bf16.msra.mxu0 %v3827
    %4483 = vmatprep.subr.bf16.mxu0 %v3824
    %4484 = vmatpush1.bf16.msra.mxu0 %v3823
    %4485 = vmatprep.subr.bf16.mxu0 %v3820
    %4486 = vmatpush1.bf16.msra.mxu0 %v3819
    %4487 = vmatprep.subr.bf16.mxu0 %v3816
    %4488 = vmatpush1.bf16.msra.mxu0 %v3815
    %4489 = vmatprep.subr.bf16.mxu0 %v3812
    %4490 = vmatpush1.bf16.msra.mxu0 %v3811
    %4491 = vmatprep.subr.bf16.mxu0 0
    %4492 = vmatpush2.bf16.msra.mxu0 0
    %4493 = vmatprep.subr.bf16.mxu0 0
    %4494 = vmatpush2.bf16.msra.mxu0 0
    %4495 = vmatprep.subr.bf16.mxu0 0
    %4496 = vmatpush2.bf16.msra.mxu0 0
    %4497 = vmatprep.subr.bf16.mxu0 0
    %4498 = vmatpush2.bf16.msra.mxu0 0
    %4499 = vmatprep.subr.bf16.mxu0 0
    %4500 = vmatpush2.bf16.msra.mxu0 0
    %4501 = vmatprep.subr.bf16.mxu0 0
    %4502 = vmatpush2.bf16.msra.mxu0 0
    %4503 = vmatprep.subr.bf16.mxu0 0
    %4504 = vmatpush2.bf16.msra.mxu0 0
    %4505 = vmatprep.subr.bf16.mxu0 0
    %4506 = vmatpush2.bf16.msra.mxu0 0
    %4507 = vmatprep.mubr.bf16.mxu0 0
    %4508 = vmatmul.mubr.bf16.gmra.mxu0 %v4432
    %v4509 = vpop.f32.mrf.mxu0
    %v4510 = vadd.f32 0.0, %v4509
    %v4511 = vpop.f32.mrf.mxu0
    %v4512 = vadd.f32 0.0, %v4511
    %v4513 = vpop.f32.mrf.mxu0
    %v4514 = vpop.f32.mrf.mxu0
    %4515 = vdwg.mxu0
    %v4520 = vrot.slane %v4469, 2
    %v4521 = vrot.slane %v4471, 2
    %v4522 = vrot.slane %v4510, 2
    %v4523 = vrot.slane %v4512, 2
    %v4528 = vadd.f32 %v4426, %v4520
    %v4529 = vadd.f32 %v4427, %v4521
    %v4530 = vadd.f32 %v4428, %v4522
    %v4531 = vadd.f32 %v4429, %v4523
    %v4532 = vxor.u32 %v4528, 2147483648
    %v4533 = vmul.f32 %v4532, 1.442695
    %v4534 = vpow.pop %v4533
    %v4535 = vadd.f32 %v4534, 1.0
    %v4536 = vrcp.pop %v4535
    %v4537 = vmul.f32 1.0, %v4536
    %v4538 = vxor.u32 %v4529, 2147483648
    %v4539 = vmul.f32 %v4538, 1.442695
    %v4540 = vpow.pop %v4539
    %v4541 = vadd.f32 %v4540, 1.0
    %v4542 = vrcp.pop %v4541
    %v4543 = vmul.f32 1.0, %v4542
    %v4544 = vtanh.pop %v4530
    %v4545 = vxor.u32 %v4531, 2147483648
    %v4546 = vmul.f32 %v4545, 1.442695
    %v4547 = vpow.pop %v4546
    %v4548 = vadd.f32 %v4547, 1.0
    %v4549 = vrcp.pop %v4548
    %v4550 = vmul.f32 1.0, %v4549
    %v4552 = vrot.slane %v4363, 6
    %v4554 = vmul.f32 %v4543, %v4552
    %v4555 = vmul.f32 %v4537, %v4544
    %v4556 = vadd.f32 %v4554, %v4555
    %v4557 = vtanh.pop %v4556
    %v4558 = vmul.f32 %v4550, %v4557
    %v4559 = vld [vmem:[#allocation2 + $0x20] sm:$0x3]
    %v4560 = vld [vmem:[#allocation2 + $0x28] sm:$0x3]
    %v4561 = vld [vmem:[#allocation2 + $0x30] sm:$0x3]
    %v4562 = vld [vmem:[#allocation2 + $0x38] sm:$0x3]
    %v4563 = vld [vmem:[#allocation2 + $0x40] sm:$0xc0]
    %v4564 = vld [vmem:[#allocation2 + $0x48] sm:$0xc0]
    %v4565 = vld [vmem:[#allocation2 + $0x50] sm:$0xc0]
    %v4566 = vld [vmem:[#allocation2 + $0x58] sm:$0xc0]
    %v4567 = vld [vmem:[#allocation3 + $0x20] sm:$0x3]
    %v4568 = vld [vmem:[#allocation3 + $0x28] sm:$0x3]
    %v4569 = vld [vmem:[#allocation3 + $0x30] sm:$0x3]
    %v4570 = vld [vmem:[#allocation3 + $0x38] sm:$0x3]
    %v4571 = vld [vmem:[#allocation3 + $0x40] sm:$0xc0]
    %v4572 = vld [vmem:[#allocation3 + $0x48] sm:$0xc0]
    %v4573 = vld [vmem:[#allocation3 + $0x50] sm:$0xc0]
    %v4574 = vld [vmem:[#allocation3 + $0x58] sm:$0xc0]
    %v4579 = vrot.slane %v4571, 6
    %v4580 = vrot.slane %v4572, 6
    %v4581 = vrot.slane %v4573, 6
    %v4582 = vrot.slane %v4574, 6
    %v4587 = vadd.f32 %v4559, %v4579
    %v4588 = vadd.f32 %v4560, %v4580
    %v4589 = vadd.f32 %v4561, %v4581
    %v4590 = vadd.f32 %v4562, %v4582
    %v4595 = vrot.slane %v4567, 2
    %v4596 = vrot.slane %v4568, 2
    %v4597 = vrot.slane %v4569, 2
    %v4598 = vrot.slane %v4570, 2
    %v4603 = vadd.f32 %v4563, %v4595
    %v4604 = vadd.f32 %v4564, %v4596
    %v4605 = vadd.f32 %v4565, %v4597
    %v4606 = vadd.f32 %v4566, %v4598
    %v4611 = vrot.slane %v4603, 6
    %v4612 = vrot.slane %v4604, 6
    %v4613 = vrot.slane %v4605, 6
    %v4614 = vrot.slane %v4606, 6
    %v4619 = vsel %vm177, %v4587, %v4611
    %v4620 = vsel %vm178, %v4588, %v4612
    %v4621 = vsel %vm179, %v4589, %v4613
    %v4622 = vsel %vm180, %v4590, %v4614
    %v4623 = vpack.c.bf16 %v4558, %v4558
    %v4625 = vrot.slane %v4623, 3
    %4627 = vmatprep.subr.bf16.mxu0 %v3838
    %4628 = vmatpush1.bf16.msra.mxu0 %v3837
    %4629 = vmatprep.subr.bf16.mxu0 %v3834
    %4630 = vmatpush1.bf16.msra.mxu0 %v3833
    %4631 = vmatprep.subr.bf16.mxu0 %v3830
    %4632 = vmatpush1.bf16.msra.mxu0 %v3829
    %4633 = vmatprep.subr.bf16.mxu0 %v3826
    %4634 = vmatpush1.bf16.msra.mxu0 %v3825
    %4635 = vmatprep.subr.bf16.mxu0 %v3822
    %4636 = vmatpush1.bf16.msra.mxu0 %v3821
    %4637 = vmatprep.subr.bf16.mxu0 %v3818
    %4638 = vmatpush1.bf16.msra.mxu0 %v3817
    %4639 = vmatprep.subr.bf16.mxu0 %v3814
    %4640 = vmatpush1.bf16.msra.mxu0 %v3813
    %4641 = vmatprep.subr.bf16.mxu0 %v3810
    %4642 = vmatpush1.bf16.msra.mxu0 %v3809
    %4643 = vmatprep.subr.bf16.mxu0 0
    %4644 = vmatpush2.bf16.msra.mxu0 0
    %4645 = vmatprep.subr.bf16.mxu0 0
    %4646 = vmatpush2.bf16.msra.mxu0 0
    %4647 = vmatprep.subr.bf16.mxu0 0
    %4648 = vmatpush2.bf16.msra.mxu0 0
    %4649 = vmatprep.subr.bf16.mxu0 0
    %4650 = vmatpush2.bf16.msra.mxu0 0
    %4651 = vmatprep.subr.bf16.mxu0 0
    %4652 = vmatpush2.bf16.msra.mxu0 0
    %4653 = vmatprep.subr.bf16.mxu0 0
    %4654 = vmatpush2.bf16.msra.mxu0 0
    %4655 = vmatprep.subr.bf16.mxu0 0
    %4656 = vmatpush2.bf16.msra.mxu0 0
    %4657 = vmatprep.subr.bf16.mxu0 0
    %4658 = vmatpush2.bf16.msra.mxu0 0
    %4659 = vmatprep.mubr.bf16.mxu0 0
    %4660 = vmatmul.mubr.bf16.gmra.mxu0 %v4625
    %v4661 = vpop.f32.mrf.mxu0
    %v4662 = vadd.f32 0.0, %v4661
    %v4663 = vpop.f32.mrf.mxu0
    %v4664 = vadd.f32 0.0, %v4663
    %v4665 = vpop.f32.mrf.mxu0
    %v4666 = vpop.f32.mrf.mxu0
    %4667 = vdwg.mxu0
    %4668 = vmatprep.subr.bf16.mxu0 %v3840
    %4669 = vmatpush1.bf16.msra.mxu0 %v3839
    %4670 = vmatprep.subr.bf16.mxu0 %v3836
    %4671 = vmatpush1.bf16.msra.mxu0 %v3835
    %4672 = vmatprep.subr.bf16.mxu0 %v3832
    %4673 = vmatpush1.bf16.msra.mxu0 %v3831
    %4674 = vmatprep.subr.bf16.mxu0 %v3828
    %4675 = vmatpush1.bf16.msra.mxu0 %v3827
    %4676 = vmatprep.subr.bf16.mxu0 %v3824
    %4677 = vmatpush1.bf16.msra.mxu0 %v3823
    %4678 = vmatprep.subr.bf16.mxu0 %v3820
    %4679 = vmatpush1.bf16.msra.mxu0 %v3819
    %4680 = vmatprep.subr.bf16.mxu0 %v3816
    %4681 = vmatpush1.bf16.msra.mxu0 %v3815
    %4682 = vmatprep.subr.bf16.mxu0 %v3812
    %4683 = vmatpush1.bf16.msra.mxu0 %v3811
    %4684 = vmatprep.subr.bf16.mxu0 0
    %4685 = vmatpush2.bf16.msra.mxu0 0
    %4686 = vmatprep.subr.bf16.mxu0 0
    %4687 = vmatpush2.bf16.msra.mxu0 0
    %4688 = vmatprep.subr.bf16.mxu0 0
    %4689 = vmatpush2.bf16.msra.mxu0 0
    %4690 = vmatprep.subr.bf16.mxu0 0
    %4691 = vmatpush2.bf16.msra.mxu0 0
    %4692 = vmatprep.subr.bf16.mxu0 0
    %4693 = vmatpush2.bf16.msra.mxu0 0
    %4694 = vmatprep.subr.bf16.mxu0 0
    %4695 = vmatpush2.bf16.msra.mxu0 0
    %4696 = vmatprep.subr.bf16.mxu0 0
    %4697 = vmatpush2.bf16.msra.mxu0 0
    %4698 = vmatprep.subr.bf16.mxu0 0
    %4699 = vmatpush2.bf16.msra.mxu0 0
    %4700 = vmatprep.mubr.bf16.mxu0 0
    %4701 = vmatmul.mubr.bf16.gmra.mxu0 %v4625
    %v4702 = vpop.f32.mrf.mxu0
    %v4703 = vadd.f32 0.0, %v4702
    %v4704 = vpop.f32.mrf.mxu0
    %v4705 = vadd.f32 0.0, %v4704
    %v4706 = vpop.f32.mrf.mxu0
    %v4707 = vpop.f32.mrf.mxu0
    %4708 = vdwg.mxu0
    %v4709 = vadd.f32 %v4619, %v4662
    %v4710 = vadd.f32 %v4620, %v4664
    %v4711 = vadd.f32 %v4621, %v4703
    %v4712 = vadd.f32 %v4622, %v4705
    %v4713 = vxor.u32 %v4709, 2147483648
    %v4714 = vmul.f32 %v4713, 1.442695
    %v4715 = vpow.pop %v4714
    %v4716 = vadd.f32 %v4715, 1.0
    %v4717 = vrcp.pop %v4716
    %v4718 = vmul.f32 1.0, %v4717
    %v4719 = vxor.u32 %v4710, 2147483648
    %v4720 = vmul.f32 %v4719, 1.442695
    %v4721 = vpow.pop %v4720
    %v4722 = vadd.f32 %v4721, 1.0
    %v4723 = vrcp.pop %v4722
    %v4724 = vmul.f32 1.0, %v4723
    %v4725 = vtanh.pop %v4711
    %v4726 = vxor.u32 %v4712, 2147483648
    %v4727 = vmul.f32 %v4726, 1.442695
    %v4728 = vpow.pop %v4727
    %v4729 = vadd.f32 %v4728, 1.0
    %v4730 = vrcp.pop %v4729
    %v4731 = vmul.f32 1.0, %v4730
    %v4733 = vrot.slane %v4556, 6
    %v4735 = vmul.f32 %v4724, %v4733
    %v4736 = vmul.f32 %v4718, %v4725
    %v4737 = vadd.f32 %v4735, %v4736
    %v4738 = vtanh.pop %v4737
    %v4739 = vmul.f32 %v4731, %v4738
    %v4740 = vld [vmem:[#allocation2 + $0x20] sm:$0xc]
    %v4741 = vld [vmem:[#allocation2 + $0x28] sm:$0xc]
    %v4742 = vld [vmem:[#allocation2 + $0x30] sm:$0xc]
    %v4743 = vld [vmem:[#allocation2 + $0x38] sm:$0xc]
    %v4744 = vld [vmem:[#allocation2 + $0x40] sm:$0x30]
    %v4745 = vld [vmem:[#allocation2 + $0x48] sm:$0x30]
    %v4746 = vld [vmem:[#allocation2 + $0x50] sm:$0x30]
    %v4747 = vld [vmem:[#allocation2 + $0x58] sm:$0x30]
    %v4748 = vld [vmem:[#allocation3 + $0x20] sm:$0xc]
    %v4749 = vld [vmem:[#allocation3 + $0x28] sm:$0xc]
    %v4750 = vld [vmem:[#allocation3 + $0x30] sm:$0xc]
    %v4751 = vld [vmem:[#allocation3 + $0x38] sm:$0xc]
    %v4752 = vld [vmem:[#allocation3 + $0x40] sm:$0x30]
    %v4753 = vld [vmem:[#allocation3 + $0x48] sm:$0x30]
    %v4754 = vld [vmem:[#allocation3 + $0x50] sm:$0x30]
    %v4755 = vld [vmem:[#allocation3 + $0x58] sm:$0x30]
    %v4760 = vrot.slane %v4752, 2
    %v4761 = vrot.slane %v4753, 2
    %v4762 = vrot.slane %v4754, 2
    %v4763 = vrot.slane %v4755, 2
    %v4768 = vadd.f32 %v4740, %v4760
    %v4769 = vadd.f32 %v4741, %v4761
    %v4770 = vadd.f32 %v4742, %v4762
    %v4771 = vadd.f32 %v4743, %v4763
    %v4776 = vrot.slane %v4748, 6
    %v4777 = vrot.slane %v4749, 6
    %v4778 = vrot.slane %v4750, 6
    %v4779 = vrot.slane %v4751, 6
    %v4784 = vadd.f32 %v4744, %v4776
    %v4785 = vadd.f32 %v4745, %v4777
    %v4786 = vadd.f32 %v4746, %v4778
    %v4787 = vadd.f32 %v4747, %v4779
    %v4792 = vrot.slane %v4784, 2
    %v4793 = vrot.slane %v4785, 2
    %v4794 = vrot.slane %v4786, 2
    %v4795 = vrot.slane %v4787, 2
    %v4800 = vsel %vm177, %v4768, %v4792
    %v4801 = vsel %vm178, %v4769, %v4793
    %v4802 = vsel %vm179, %v4770, %v4794
    %v4803 = vsel %vm180, %v4771, %v4795
    %v4804 = vpack.c.bf16 %v4739, %v4739
    %4805 = vmatprep.subr.bf16.mxu0 %v3838
    %4806 = vmatpush1.bf16.msra.mxu0 %v3837
    %4807 = vmatprep.subr.bf16.mxu0 %v3834
    %4808 = vmatpush1.bf16.msra.mxu0 %v3833
    %4809 = vmatprep.subr.bf16.mxu0 %v3830
    %4810 = vmatpush1.bf16.msra.mxu0 %v3829
    %4811 = vmatprep.subr.bf16.mxu0 %v3826
    %4812 = vmatpush1.bf16.msra.mxu0 %v3825
    %4813 = vmatprep.subr.bf16.mxu0 %v3822
    %4814 = vmatpush1.bf16.msra.mxu0 %v3821
    %4815 = vmatprep.subr.bf16.mxu0 %v3818
    %4816 = vmatpush1.bf16.msra.mxu0 %v3817
    %4817 = vmatprep.subr.bf16.mxu0 %v3814
    %4818 = vmatpush1.bf16.msra.mxu0 %v3813
    %4819 = vmatprep.subr.bf16.mxu0 %v3810
    %4820 = vmatpush1.bf16.msra.mxu0 %v3809
    %4821 = vmatprep.subr.bf16.mxu0 0
    %4822 = vmatpush2.bf16.msra.mxu0 0
    %4823 = vmatprep.subr.bf16.mxu0 0
    %4824 = vmatpush2.bf16.msra.mxu0 0
    %4825 = vmatprep.subr.bf16.mxu0 0
    %4826 = vmatpush2.bf16.msra.mxu0 0
    %4827 = vmatprep.subr.bf16.mxu0 0
    %4828 = vmatpush2.bf16.msra.mxu0 0
    %4829 = vmatprep.subr.bf16.mxu0 0
    %4830 = vmatpush2.bf16.msra.mxu0 0
    %4831 = vmatprep.subr.bf16.mxu0 0
    %4832 = vmatpush2.bf16.msra.mxu0 0
    %4833 = vmatprep.subr.bf16.mxu0 0
    %4834 = vmatpush2.bf16.msra.mxu0 0
    %4835 = vmatprep.subr.bf16.mxu0 0
    %4836 = vmatpush2.bf16.msra.mxu0 0
    %4837 = vmatprep.mubr.bf16.mxu0 0
    %4838 = vmatmul.mubr.bf16.gmra.mxu0 %v4804
    %v4839 = vpop.f32.mrf.mxu0
    %v4840 = vadd.f32 0.0, %v4839
    %v4841 = vpop.f32.mrf.mxu0
    %v4842 = vadd.f32 0.0, %v4841
    %v4843 = vpop.f32.mrf.mxu0
    %v4844 = vpop.f32.mrf.mxu0
    %4845 = vdwg.mxu0
    %4846 = vmatprep.subr.bf16.mxu0 %v3840
    %4847 = vmatpush1.bf16.msra.mxu0 %v3839
    %4848 = vmatprep.subr.bf16.mxu0 %v3836
    %4849 = vmatpush1.bf16.msra.mxu0 %v3835
    %4850 = vmatprep.subr.bf16.mxu0 %v3832
    %4851 = vmatpush1.bf16.msra.mxu0 %v3831
    %4852 = vmatprep.subr.bf16.mxu0 %v3828
    %4853 = vmatpush1.bf16.msra.mxu0 %v3827
    %4854 = vmatprep.subr.bf16.mxu0 %v3824
    %4855 = vmatpush1.bf16.msra.mxu0 %v3823
    %4856 = vmatprep.subr.bf16.mxu0 %v3820
    %4857 = vmatpush1.bf16.msra.mxu0 %v3819
    %4858 = vmatprep.subr.bf16.mxu0 %v3816
    %4859 = vmatpush1.bf16.msra.mxu0 %v3815
    %4860 = vmatprep.subr.bf16.mxu0 %v3812
    %4861 = vmatpush1.bf16.msra.mxu0 %v3811
    %4862 = vmatprep.subr.bf16.mxu0 0
    %4863 = vmatpush2.bf16.msra.mxu0 0
    %4864 = vmatprep.subr.bf16.mxu0 0
    %4865 = vmatpush2.bf16.msra.mxu0 0
    %4866 = vmatprep.subr.bf16.mxu0 0
    %4867 = vmatpush2.bf16.msra.mxu0 0
    %4868 = vmatprep.subr.bf16.mxu0 0
    %4869 = vmatpush2.bf16.msra.mxu0 0
    %4870 = vmatprep.subr.bf16.mxu0 0
    %4871 = vmatpush2.bf16.msra.mxu0 0
    %4872 = vmatprep.subr.bf16.mxu0 0
    %4873 = vmatpush2.bf16.msra.mxu0 0
    %4874 = vmatprep.subr.bf16.mxu0 0
    %4875 = vmatpush2.bf16.msra.mxu0 0
    %4876 = vmatprep.subr.bf16.mxu0 0
    %4877 = vmatpush2.bf16.msra.mxu0 0
    %4878 = vmatprep.mubr.bf16.mxu0 0
    %4879 = vmatmul.mubr.bf16.gmra.mxu0 %v4804
    %v4880 = vpop.f32.mrf.mxu0
    %v4881 = vadd.f32 0.0, %v4880
    %v4882 = vpop.f32.mrf.mxu0
    %v4883 = vadd.f32 0.0, %v4882
    %v4884 = vpop.f32.mrf.mxu0
    %v4885 = vpop.f32.mrf.mxu0
    %4886 = vdwg.mxu0
    %v4891 = vrot.slane %v4840, 6
    %v4892 = vrot.slane %v4842, 6
    %v4893 = vrot.slane %v4881, 6
    %v4894 = vrot.slane %v4883, 6
    %v4899 = vadd.f32 %v4800, %v4891
    %v4900 = vadd.f32 %v4801, %v4892
    %v4901 = vadd.f32 %v4802, %v4893
    %v4902 = vadd.f32 %v4803, %v4894
    %v4903 = vxor.u32 %v4899, 2147483648
    %v4904 = vmul.f32 %v4903, 1.442695
    %v4905 = vpow.pop %v4904
    %v4906 = vadd.f32 %v4905, 1.0
    %v4907 = vrcp.pop %v4906
    %v4908 = vmul.f32 1.0, %v4907
    %v4909 = vxor.u32 %v4900, 2147483648
    %v4910 = vmul.f32 %v4909, 1.442695
    %v4911 = vpow.pop %v4910
    %v4912 = vadd.f32 %v4911, 1.0
    %v4913 = vrcp.pop %v4912
    %v4914 = vmul.f32 1.0, %v4913
    %v4915 = vtanh.pop %v4901
    %v4916 = vxor.u32 %v4902, 2147483648
    %v4917 = vmul.f32 %v4916, 1.442695
    %v4918 = vpow.pop %v4917
    %v4919 = vadd.f32 %v4918, 1.0
    %v4920 = vrcp.pop %v4919
    %v4921 = vmul.f32 1.0, %v4920
    %v4923 = vrot.slane %v4737, 6
    %v4925 = vmul.f32 %v4914, %v4923
    %v4926 = vmul.f32 %v4908, %v4915
    %v4927 = vadd.f32 %v4925, %v4926
    %v4928 = vtanh.pop %v4927
    %v4929 = vmul.f32 %v4921, %v4928
    %v4930 = vld [vmem:[#allocation2 + $0x20] sm:$0x30]
    %v4931 = vld [vmem:[#allocation2 + $0x28] sm:$0x30]
    %v4932 = vld [vmem:[#allocation2 + $0x30] sm:$0x30]
    %v4933 = vld [vmem:[#allocation2 + $0x38] sm:$0x30]
    %v4934 = vld [vmem:[#allocation2 + $0x40] sm:$0xc]
    %v4935 = vld [vmem:[#allocation2 + $0x48] sm:$0xc]
    %v4936 = vld [vmem:[#allocation2 + $0x50] sm:$0xc]
    %v4937 = vld [vmem:[#allocation2 + $0x58] sm:$0xc]
    %v4938 = vld [vmem:[#allocation3 + $0x20] sm:$0x30]
    %v4939 = vld [vmem:[#allocation3 + $0x28] sm:$0x30]
    %v4940 = vld [vmem:[#allocation3 + $0x30] sm:$0x30]
    %v4941 = vld [vmem:[#allocation3 + $0x38] sm:$0x30]
    %v4942 = vld [vmem:[#allocation3 + $0x40] sm:$0xc]
    %v4943 = vld [vmem:[#allocation3 + $0x48] sm:$0xc]
    %v4944 = vld [vmem:[#allocation3 + $0x50] sm:$0xc]
    %v4945 = vld [vmem:[#allocation3 + $0x58] sm:$0xc]
    %v4950 = vrot.slane %v4942, 6
    %v4951 = vrot.slane %v4943, 6
    %v4952 = vrot.slane %v4944, 6
    %v4953 = vrot.slane %v4945, 6
    %v4958 = vadd.f32 %v4930, %v4950
    %v4959 = vadd.f32 %v4931, %v4951
    %v4960 = vadd.f32 %v4932, %v4952
    %v4961 = vadd.f32 %v4933, %v4953
    %v4966 = vrot.slane %v4938, 2
    %v4967 = vrot.slane %v4939, 2
    %v4968 = vrot.slane %v4940, 2
    %v4969 = vrot.slane %v4941, 2
    %v4974 = vadd.f32 %v4934, %v4966
    %v4975 = vadd.f32 %v4935, %v4967
    %v4976 = vadd.f32 %v4936, %v4968
    %v4977 = vadd.f32 %v4937, %v4969
    %v4982 = vrot.slane %v4974, 6
    %v4983 = vrot.slane %v4975, 6
    %v4984 = vrot.slane %v4976, 6
    %v4985 = vrot.slane %v4977, 6
    %v4990 = vsel %vm177, %v4958, %v4982
    %v4991 = vsel %vm178, %v4959, %v4983
    %v4992 = vsel %vm179, %v4960, %v4984
    %v4993 = vsel %vm180, %v4961, %v4985
    %v4994 = vpack.c.bf16 %v4929, %v4929
    %v4996 = vrot.slane %v4994, 1
    %4998 = vmatprep.subr.bf16.mxu0 %v3838
    %4999 = vmatpush1.bf16.msra.mxu0 %v3837
    %5000 = vmatprep.subr.bf16.mxu0 %v3834
    %5001 = vmatpush1.bf16.msra.mxu0 %v3833
    %5002 = vmatprep.subr.bf16.mxu0 %v3830
    %5003 = vmatpush1.bf16.msra.mxu0 %v3829
    %5004 = vmatprep.subr.bf16.mxu0 %v3826
    %5005 = vmatpush1.bf16.msra.mxu0 %v3825
    %5006 = vmatprep.subr.bf16.mxu0 %v3822
    %5007 = vmatpush1.bf16.msra.mxu0 %v3821
    %5008 = vmatprep.subr.bf16.mxu0 %v3818
    %5009 = vmatpush1.bf16.msra.mxu0 %v3817
    %5010 = vmatprep.subr.bf16.mxu0 %v3814
    %5011 = vmatpush1.bf16.msra.mxu0 %v3813
    %5012 = vmatprep.subr.bf16.mxu0 %v3810
    %5013 = vmatpush1.bf16.msra.mxu0 %v3809
    %5014 = vmatprep.subr.bf16.mxu0 0
    %5015 = vmatpush2.bf16.msra.mxu0 0
    %5016 = vmatprep.subr.bf16.mxu0 0
    %5017 = vmatpush2.bf16.msra.mxu0 0
    %5018 = vmatprep.subr.bf16.mxu0 0
    %5019 = vmatpush2.bf16.msra.mxu0 0
    %5020 = vmatprep.subr.bf16.mxu0 0
    %5021 = vmatpush2.bf16.msra.mxu0 0
    %5022 = vmatprep.subr.bf16.mxu0 0
    %5023 = vmatpush2.bf16.msra.mxu0 0
    %5024 = vmatprep.subr.bf16.mxu0 0
    %5025 = vmatpush2.bf16.msra.mxu0 0
    %5026 = vmatprep.subr.bf16.mxu0 0
    %5027 = vmatpush2.bf16.msra.mxu0 0
    %5028 = vmatprep.subr.bf16.mxu0 0
    %5029 = vmatpush2.bf16.msra.mxu0 0
    %5030 = vmatprep.mubr.bf16.mxu0 0
    %5031 = vmatmul.mubr.bf16.gmra.mxu0 %v4996
    %v5032 = vpop.f32.mrf.mxu0
    %v5033 = vadd.f32 0.0, %v5032
    %v5034 = vpop.f32.mrf.mxu0
    %v5035 = vadd.f32 0.0, %v5034
    %v5036 = vpop.f32.mrf.mxu0
    %v5037 = vpop.f32.mrf.mxu0
    %5038 = vdwg.mxu0
    %5039 = vmatprep.subr.bf16.mxu0 %v3840
    %5040 = vmatpush1.bf16.msra.mxu0 %v3839
    %5041 = vmatprep.subr.bf16.mxu0 %v3836
    %5042 = vmatpush1.bf16.msra.mxu0 %v3835
    %5043 = vmatprep.subr.bf16.mxu0 %v3832
    %5044 = vmatpush1.bf16.msra.mxu0 %v3831
    %5045 = vmatprep.subr.bf16.mxu0 %v3828
    %5046 = vmatpush1.bf16.msra.mxu0 %v3827
    %5047 = vmatprep.subr.bf16.mxu0 %v3824
    %5048 = vmatpush1.bf16.msra.mxu0 %v3823
    %5049 = vmatprep.subr.bf16.mxu0 %v3820
    %5050 = vmatpush1.bf16.msra.mxu0 %v3819
    %5051 = vmatprep.subr.bf16.mxu0 %v3816
    %5052 = vmatpush1.bf16.msra.mxu0 %v3815
    %5053 = vmatprep.subr.bf16.mxu0 %v3812
    %5054 = vmatpush1.bf16.msra.mxu0 %v3811
    %5055 = vmatprep.subr.bf16.mxu0 0
    %5056 = vmatpush2.bf16.msra.mxu0 0
    %5057 = vmatprep.subr.bf16.mxu0 0
    %5058 = vmatpush2.bf16.msra.mxu0 0
    %5059 = vmatprep.subr.bf16.mxu0 0
    %5060 = vmatpush2.bf16.msra.mxu0 0
    %5061 = vmatprep.subr.bf16.mxu0 0
    %5062 = vmatpush2.bf16.msra.mxu0 0
    %5063 = vmatprep.subr.bf16.mxu0 0
    %5064 = vmatpush2.bf16.msra.mxu0 0
    %5065 = vmatprep.subr.bf16.mxu0 0
    %5066 = vmatpush2.bf16.msra.mxu0 0
    %5067 = vmatprep.subr.bf16.mxu0 0
    %5068 = vmatpush2.bf16.msra.mxu0 0
    %5069 = vmatprep.subr.bf16.mxu0 0
    %5070 = vmatpush2.bf16.msra.mxu0 0
    %5071 = vmatprep.mubr.bf16.mxu0 0
    %5072 = vmatmul.mubr.bf16.gmra.mxu0 %v4996
    %v5073 = vpop.f32.mrf.mxu0
    %v5074 = vadd.f32 0.0, %v5073
    %v5075 = vpop.f32.mrf.mxu0
    %v5076 = vadd.f32 0.0, %v5075
    %v5077 = vpop.f32.mrf.mxu0
    %v5078 = vpop.f32.mrf.mxu0
    %5079 = vdwg.mxu0
    %v5084 = vrot.slane %v5033, 4
    %v5085 = vrot.slane %v5035, 4
    %v5086 = vrot.slane %v5074, 4
    %v5087 = vrot.slane %v5076, 4
    %v5092 = vadd.f32 %v4990, %v5084
    %v5093 = vadd.f32 %v4991, %v5085
    %v5094 = vadd.f32 %v4992, %v5086
    %v5095 = vadd.f32 %v4993, %v5087
    %v5096 = vxor.u32 %v5092, 2147483648
    %v5097 = vmul.f32 %v5096, 1.442695
    %v5098 = vpow.pop %v5097
    %v5099 = vadd.f32 %v5098, 1.0
    %v5100 = vrcp.pop %v5099
    %v5101 = vmul.f32 1.0, %v5100
    %v5102 = vxor.u32 %v5093, 2147483648
    %v5103 = vmul.f32 %v5102, 1.442695
    %v5104 = vpow.pop %v5103
    %v5105 = vadd.f32 %v5104, 1.0
    %v5106 = vrcp.pop %v5105
    %v5107 = vmul.f32 1.0, %v5106
    %v5108 = vtanh.pop %v5094
    %v5109 = vxor.u32 %v5095, 2147483648
    %v5110 = vmul.f32 %v5109, 1.442695
    %v5111 = vpow.pop %v5110
    %v5112 = vadd.f32 %v5111, 1.0
    %v5113 = vrcp.pop %v5112
    %v5114 = vmul.f32 1.0, %v5113
    %v5116 = vrot.slane %v4927, 6
    %v5118 = vmul.f32 %v5107, %v5116
    %v5119 = vmul.f32 %v5101, %v5108
    %v5120 = vadd.f32 %v5118, %v5119
    %v5121 = vtanh.pop %v5120
    %v5122 = vmul.f32 %v5114, %v5121
    %v5123 = vld [vmem:[#allocation2 + $0x20] sm:$0xc0]
    %v5124 = vld [vmem:[#allocation2 + $0x28] sm:$0xc0]
    %v5125 = vld [vmem:[#allocation2 + $0x30] sm:$0xc0]
    %v5126 = vld [vmem:[#allocation2 + $0x38] sm:$0xc0]
    %v5127 = vld [vmem:[#allocation2 + $0x40] sm:$0x3]
    %v5128 = vld [vmem:[#allocation2 + $0x48] sm:$0x3]
    %v5129 = vld [vmem:[#allocation2 + $0x50] sm:$0x3]
    %v5130 = vld [vmem:[#allocation2 + $0x58] sm:$0x3]
    %v5131 = vld [vmem:[#allocation3 + $0x20] sm:$0xc0]
    %v5132 = vld [vmem:[#allocation3 + $0x28] sm:$0xc0]
    %v5133 = vld [vmem:[#allocation3 + $0x30] sm:$0xc0]
    %v5134 = vld [vmem:[#allocation3 + $0x38] sm:$0xc0]
    %v5135 = vld [vmem:[#allocation3 + $0x40] sm:$0x3]
    %v5136 = vld [vmem:[#allocation3 + $0x48] sm:$0x3]
    %v5137 = vld [vmem:[#allocation3 + $0x50] sm:$0x3]
    %v5138 = vld [vmem:[#allocation3 + $0x58] sm:$0x3]
    %v5143 = vrot.slane %v5135, 2
    %v5144 = vrot.slane %v5136, 2
    %v5145 = vrot.slane %v5137, 2
    %v5146 = vrot.slane %v5138, 2
    %v5151 = vadd.f32 %v5123, %v5143
    %v5152 = vadd.f32 %v5124, %v5144
    %v5153 = vadd.f32 %v5125, %v5145
    %v5154 = vadd.f32 %v5126, %v5146
    %v5159 = vrot.slane %v5131, 6
    %v5160 = vrot.slane %v5132, 6
    %v5161 = vrot.slane %v5133, 6
    %v5162 = vrot.slane %v5134, 6
    %v5167 = vadd.f32 %v5127, %v5159
    %v5168 = vadd.f32 %v5128, %v5160
    %v5169 = vadd.f32 %v5129, %v5161
    %v5170 = vadd.f32 %v5130, %v5162
    %v5175 = vrot.slane %v5167, 2
    %v5176 = vrot.slane %v5168, 2
    %v5177 = vrot.slane %v5169, 2
    %v5178 = vrot.slane %v5170, 2
    %v5183 = vsel %vm177, %v5151, %v5175
    %v5184 = vsel %vm178, %v5152, %v5176
    %v5185 = vsel %vm179, %v5153, %v5177
    %v5186 = vsel %vm180, %v5154, %v5178
    %v5187 = vpack.c.bf16 %v5122, %v5122
    %v5189 = vrot.slane %v5187, 2
    %5191 = vmatprep.subr.bf16.mxu0 %v3838
    %5192 = vmatpush1.bf16.msra.mxu0 %v3837
    %5193 = vmatprep.subr.bf16.mxu0 %v3834
    %5194 = vmatpush1.bf16.msra.mxu0 %v3833
    %5195 = vmatprep.subr.bf16.mxu0 %v3830
    %5196 = vmatpush1.bf16.msra.mxu0 %v3829
    %5197 = vmatprep.subr.bf16.mxu0 %v3826
    %5198 = vmatpush1.bf16.msra.mxu0 %v3825
    %5199 = vmatprep.subr.bf16.mxu0 %v3822
    %5200 = vmatpush1.bf16.msra.mxu0 %v3821
    %5201 = vmatprep.subr.bf16.mxu0 %v3818
    %5202 = vmatpush1.bf16.msra.mxu0 %v3817
    %5203 = vmatprep.subr.bf16.mxu0 %v3814
    %5204 = vmatpush1.bf16.msra.mxu0 %v3813
    %5205 = vmatprep.subr.bf16.mxu0 %v3810
    %5206 = vmatpush1.bf16.msra.mxu0 %v3809
    %5207 = vmatprep.subr.bf16.mxu0 0
    %5208 = vmatpush2.bf16.msra.mxu0 0
    %5209 = vmatprep.subr.bf16.mxu0 0
    %5210 = vmatpush2.bf16.msra.mxu0 0
    %5211 = vmatprep.subr.bf16.mxu0 0
    %5212 = vmatpush2.bf16.msra.mxu0 0
    %5213 = vmatprep.subr.bf16.mxu0 0
    %5214 = vmatpush2.bf16.msra.mxu0 0
    %5215 = vmatprep.subr.bf16.mxu0 0
    %5216 = vmatpush2.bf16.msra.mxu0 0
    %5217 = vmatprep.subr.bf16.mxu0 0
    %5218 = vmatpush2.bf16.msra.mxu0 0
    %5219 = vmatprep.subr.bf16.mxu0 0
    %5220 = vmatpush2.bf16.msra.mxu0 0
    %5221 = vmatprep.subr.bf16.mxu0 0
    %5222 = vmatpush2.bf16.msra.mxu0 0
    %5223 = vmatprep.mubr.bf16.mxu0 0
    %5224 = vmatmul.mubr.bf16.gmra.mxu0 %v5189
    %v5225 = vpop.f32.mrf.mxu0
    %v5226 = vadd.f32 0.0, %v5225
    %v5227 = vpop.f32.mrf.mxu0
    %v5228 = vadd.f32 0.0, %v5227
    %v5229 = vpop.f32.mrf.mxu0
    %v5230 = vpop.f32.mrf.mxu0
    %5231 = vdwg.mxu0
    %5232 = vmatprep.subr.bf16.mxu0 %v3840
    %5233 = vmatpush1.bf16.msra.mxu0 %v3839
    %5234 = vmatprep.subr.bf16.mxu0 %v3836
    %5235 = vmatpush1.bf16.msra.mxu0 %v3835
    %5236 = vmatprep.subr.bf16.mxu0 %v3832
    %5237 = vmatpush1.bf16.msra.mxu0 %v3831
    %5238 = vmatprep.subr.bf16.mxu0 %v3828
    %5239 = vmatpush1.bf16.msra.mxu0 %v3827
    %5240 = vmatprep.subr.bf16.mxu0 %v3824
    %5241 = vmatpush1.bf16.msra.mxu0 %v3823
    %5242 = vmatprep.subr.bf16.mxu0 %v3820
    %5243 = vmatpush1.bf16.msra.mxu0 %v3819
    %5244 = vmatprep.subr.bf16.mxu0 %v3816
    %5245 = vmatpush1.bf16.msra.mxu0 %v3815
    %5246 = vmatprep.subr.bf16.mxu0 %v3812
    %5247 = vmatpush1.bf16.msra.mxu0 %v3811
    %5248 = vmatprep.subr.bf16.mxu0 0
    %5249 = vmatpush2.bf16.msra.mxu0 0
    %5250 = vmatprep.subr.bf16.mxu0 0
    %5251 = vmatpush2.bf16.msra.mxu0 0
    %5252 = vmatprep.subr.bf16.mxu0 0
    %5253 = vmatpush2.bf16.msra.mxu0 0
    %5254 = vmatprep.subr.bf16.mxu0 0
    %5255 = vmatpush2.bf16.msra.mxu0 0
    %5256 = vmatprep.subr.bf16.mxu0 0
    %5257 = vmatpush2.bf16.msra.mxu0 0
    %5258 = vmatprep.subr.bf16.mxu0 0
    %5259 = vmatpush2.bf16.msra.mxu0 0
    %5260 = vmatprep.subr.bf16.mxu0 0
    %5261 = vmatpush2.bf16.msra.mxu0 0
    %5262 = vmatprep.subr.bf16.mxu0 0
    %5263 = vmatpush2.bf16.msra.mxu0 0
    %5264 = vmatprep.mubr.bf16.mxu0 0
    %5265 = vmatmul.mubr.bf16.gmra.mxu0 %v5189
    %v5266 = vpop.f32.mrf.mxu0
    %v5267 = vadd.f32 0.0, %v5266
    %v5268 = vpop.f32.mrf.mxu0
    %v5269 = vadd.f32 0.0, %v5268
    %v5270 = vpop.f32.mrf.mxu0
    %v5271 = vpop.f32.mrf.mxu0
    %5272 = vdwg.mxu0
    %v5277 = vrot.slane %v5226, 2
    %v5278 = vrot.slane %v5228, 2
    %v5279 = vrot.slane %v5267, 2
    %v5280 = vrot.slane %v5269, 2
    %v5285 = vadd.f32 %v5183, %v5277
    %v5286 = vadd.f32 %v5184, %v5278
    %v5287 = vadd.f32 %v5185, %v5279
    %v5288 = vadd.f32 %v5186, %v5280
    %v5289 = vxor.u32 %v5285, 2147483648
    %v5290 = vmul.f32 %v5289, 1.442695
    %v5291 = vpow.pop %v5290
    %v5292 = vadd.f32 %v5291, 1.0
    %v5293 = vrcp.pop %v5292
    %v5294 = vmul.f32 1.0, %v5293
    %v5295 = vxor.u32 %v5286, 2147483648
    %v5296 = vmul.f32 %v5295, 1.442695
    %v5297 = vpow.pop %v5296
    %v5298 = vadd.f32 %v5297, 1.0
    %v5299 = vrcp.pop %v5298
    %v5300 = vmul.f32 1.0, %v5299
    %v5301 = vtanh.pop %v5287
    %v5302 = vxor.u32 %v5288, 2147483648
    %v5303 = vmul.f32 %v5302, 1.442695
    %v5304 = vpow.pop %v5303
    %v5305 = vadd.f32 %v5304, 1.0
    %v5306 = vrcp.pop %v5305
    %v5307 = vmul.f32 1.0, %v5306
    %v5309 = vrot.slane %v5120, 6
    %v5311 = vmul.f32 %v5300, %v5309
    %v5312 = vmul.f32 %v5294, %v5301
    %v5313 = vadd.f32 %v5311, %v5312
    %v5314 = vtanh.pop %v5313
    %v5315 = vmul.f32 %v5307, %v5314
    %v5320 = vrot.slane %v5151, 6
    %v5321 = vrot.slane %v5152, 6
    %v5322 = vrot.slane %v5153, 6
    %v5323 = vrot.slane %v5154, 6
    %v5328 = vsel %vm177, %v5167, %v5320
    %v5329 = vsel %vm178, %v5168, %v5321
    %v5330 = vsel %vm179, %v5169, %v5322
    %v5331 = vsel %vm180, %v5170, %v5323
    %v5332 = vpack.c.bf16 %v5315, %v5315
    %v5334 = vrot.slane %v5332, 3
    %5336 = vmatprep.subr.bf16.mxu0 %v3838
    %5337 = vmatpush1.bf16.msra.mxu0 %v3837
    %5338 = vmatprep.subr.bf16.mxu0 %v3834
    %5339 = vmatpush1.bf16.msra.mxu0 %v3833
    %5340 = vmatprep.subr.bf16.mxu0 %v3830
    %5341 = vmatpush1.bf16.msra.mxu0 %v3829
    %5342 = vmatprep.subr.bf16.mxu0 %v3826
    %5343 = vmatpush1.bf16.msra.mxu0 %v3825
    %5344 = vmatprep.subr.bf16.mxu0 %v3822
    %5345 = vmatpush1.bf16.msra.mxu0 %v3821
    %5346 = vmatprep.subr.bf16.mxu0 %v3818
    %5347 = vmatpush1.bf16.msra.mxu0 %v3817
    %5348 = vmatprep.subr.bf16.mxu0 %v3814
    %5349 = vmatpush1.bf16.msra.mxu0 %v3813
    %5350 = vmatprep.subr.bf16.mxu0 %v3810
    %5351 = vmatpush1.bf16.msra.mxu0 %v3809
    %5352 = vmatprep.subr.bf16.mxu0 0
    %5353 = vmatpush2.bf16.msra.mxu0 0
    %5354 = vmatprep.subr.bf16.mxu0 0
    %5355 = vmatpush2.bf16.msra.mxu0 0
    %5356 = vmatprep.subr.bf16.mxu0 0
    %5357 = vmatpush2.bf16.msra.mxu0 0
    %5358 = vmatprep.subr.bf16.mxu0 0
    %5359 = vmatpush2.bf16.msra.mxu0 0
    %5360 = vmatprep.subr.bf16.mxu0 0
    %5361 = vmatpush2.bf16.msra.mxu0 0
    %5362 = vmatprep.subr.bf16.mxu0 0
    %5363 = vmatpush2.bf16.msra.mxu0 0
    %5364 = vmatprep.subr.bf16.mxu0 0
    %5365 = vmatpush2.bf16.msra.mxu0 0
    %5366 = vmatprep.subr.bf16.mxu0 0
    %5367 = vmatpush2.bf16.msra.mxu0 0
    %5368 = vmatprep.mubr.bf16.mxu0 0
    %5369 = vmatmul.mubr.bf16.gmra.mxu0 %v5334
    %v5370 = vpop.f32.mrf.mxu0
    %v5371 = vadd.f32 0.0, %v5370
    %v5372 = vpop.f32.mrf.mxu0
    %v5373 = vadd.f32 0.0, %v5372
    %v5374 = vpop.f32.mrf.mxu0
    %v5375 = vpop.f32.mrf.mxu0
    %5376 = vdwg.mxu0
    %5377 = vmatprep.subr.bf16.mxu0 %v3840
    %5378 = vmatpush1.bf16.msra.mxu0 %v3839
    %5379 = vmatprep.subr.bf16.mxu0 %v3836
    %5380 = vmatpush1.bf16.msra.mxu0 %v3835
    %5381 = vmatprep.subr.bf16.mxu0 %v3832
    %5382 = vmatpush1.bf16.msra.mxu0 %v3831
    %5383 = vmatprep.subr.bf16.mxu0 %v3828
    %5384 = vmatpush1.bf16.msra.mxu0 %v3827
    %5385 = vmatprep.subr.bf16.mxu0 %v3824
    %5386 = vmatpush1.bf16.msra.mxu0 %v3823
    %5387 = vmatprep.subr.bf16.mxu0 %v3820
    %5388 = vmatpush1.bf16.msra.mxu0 %v3819
    %5389 = vmatprep.subr.bf16.mxu0 %v3816
    %5390 = vmatpush1.bf16.msra.mxu0 %v3815
    %5391 = vmatprep.subr.bf16.mxu0 %v3812
    %5392 = vmatpush1.bf16.msra.mxu0 %v3811
    %5393 = vmatprep.subr.bf16.mxu0 0
    %5394 = vmatpush2.bf16.msra.mxu0 0
    %5395 = vmatprep.subr.bf16.mxu0 0
    %5396 = vmatpush2.bf16.msra.mxu0 0
    %5397 = vmatprep.subr.bf16.mxu0 0
    %5398 = vmatpush2.bf16.msra.mxu0 0
    %5399 = vmatprep.subr.bf16.mxu0 0
    %5400 = vmatpush2.bf16.msra.mxu0 0
    %5401 = vmatprep.subr.bf16.mxu0 0
    %5402 = vmatpush2.bf16.msra.mxu0 0
    %5403 = vmatprep.subr.bf16.mxu0 0
    %5404 = vmatpush2.bf16.msra.mxu0 0
    %5405 = vmatprep.subr.bf16.mxu0 0
    %5406 = vmatpush2.bf16.msra.mxu0 0
    %5407 = vmatprep.subr.bf16.mxu0 0
    %5408 = vmatpush2.bf16.msra.mxu0 0
    %5409 = vmatprep.mubr.bf16.mxu0 0
    %5410 = vmatmul.mubr.bf16.gmra.mxu0 %v5334
    %v5411 = vpop.f32.mrf.mxu0
    %v5412 = vadd.f32 0.0, %v5411
    %v5413 = vpop.f32.mrf.mxu0
    %v5414 = vadd.f32 0.0, %v5413
    %v5415 = vpop.f32.mrf.mxu0
    %v5416 = vpop.f32.mrf.mxu0
    %5417 = vdwg.mxu0
    %v5418 = vadd.f32 %v5328, %v5371
    %v5419 = vadd.f32 %v5329, %v5373
    %v5420 = vadd.f32 %v5330, %v5412
    %v5421 = vadd.f32 %v5331, %v5414
    %v5422 = vxor.u32 %v5418, 2147483648
    %v5423 = vmul.f32 %v5422, 1.442695
    %v5424 = vpow.pop %v5423
    %v5425 = vadd.f32 %v5424, 1.0
    %v5426 = vrcp.pop %v5425
    %v5427 = vmul.f32 1.0, %v5426
    %v5428 = vxor.u32 %v5419, 2147483648
    %v5429 = vmul.f32 %v5428, 1.442695
    %v5430 = vpow.pop %v5429
    %v5431 = vadd.f32 %v5430, 1.0
    %v5432 = vrcp.pop %v5431
    %v5433 = vmul.f32 1.0, %v5432
    %v5434 = vtanh.pop %v5420
    %v5435 = vxor.u32 %v5421, 2147483648
    %v5436 = vmul.f32 %v5435, 1.442695
    %v5437 = vpow.pop %v5436
    %v5438 = vadd.f32 %v5437, 1.0
    %v5439 = vrcp.pop %v5438
    %v5440 = vmul.f32 1.0, %v5439
    %v5442 = vrot.slane %v5313, 6
    %v5444 = vmul.f32 %v5433, %v5442
    %v5445 = vmul.f32 %v5427, %v5434
    %v5446 = vadd.f32 %v5444, %v5445
    %v5447 = vtanh.pop %v5446
    %v5448 = vmul.f32 %v5440, %v5447
    %v5453 = vrot.slane %v4958, 2
    %v5454 = vrot.slane %v4959, 2
    %v5455 = vrot.slane %v4960, 2
    %v5456 = vrot.slane %v4961, 2
    %v5461 = vsel %vm177, %v4974, %v5453
    %v5462 = vsel %vm178, %v4975, %v5454
    %v5463 = vsel %vm179, %v4976, %v5455
    %v5464 = vsel %vm180, %v4977, %v5456
    %v5465 = vpack.c.bf16 %v5448, %v5448
    %5466 = vmatprep.subr.bf16.mxu0 %v3838
    %5467 = vmatpush1.bf16.msra.mxu0 %v3837
    %5468 = vmatprep.subr.bf16.mxu0 %v3834
    %5469 = vmatpush1.bf16.msra.mxu0 %v3833
    %5470 = vmatprep.subr.bf16.mxu0 %v3830
    %5471 = vmatpush1.bf16.msra.mxu0 %v3829
    %5472 = vmatprep.subr.bf16.mxu0 %v3826
    %5473 = vmatpush1.bf16.msra.mxu0 %v3825
    %5474 = vmatprep.subr.bf16.mxu0 %v3822
    %5475 = vmatpush1.bf16.msra.mxu0 %v3821
    %5476 = vmatprep.subr.bf16.mxu0 %v3818
    %5477 = vmatpush1.bf16.msra.mxu0 %v3817
    %5478 = vmatprep.subr.bf16.mxu0 %v3814
    %5479 = vmatpush1.bf16.msra.mxu0 %v3813
    %5480 = vmatprep.subr.bf16.mxu0 %v3810
    %5481 = vmatpush1.bf16.msra.mxu0 %v3809
    %5482 = vmatprep.subr.bf16.mxu0 0
    %5483 = vmatpush2.bf16.msra.mxu0 0
    %5484 = vmatprep.subr.bf16.mxu0 0
    %5485 = vmatpush2.bf16.msra.mxu0 0
    %5486 = vmatprep.subr.bf16.mxu0 0
    %5487 = vmatpush2.bf16.msra.mxu0 0
    %5488 = vmatprep.subr.bf16.mxu0 0
    %5489 = vmatpush2.bf16.msra.mxu0 0
    %5490 = vmatprep.subr.bf16.mxu0 0
    %5491 = vmatpush2.bf16.msra.mxu0 0
    %5492 = vmatprep.subr.bf16.mxu0 0
    %5493 = vmatpush2.bf16.msra.mxu0 0
    %5494 = vmatprep.subr.bf16.mxu0 0
    %5495 = vmatpush2.bf16.msra.mxu0 0
    %5496 = vmatprep.subr.bf16.mxu0 0
    %5497 = vmatpush2.bf16.msra.mxu0 0
    %5498 = vmatprep.mubr.bf16.mxu0 0
    %5499 = vmatmul.mubr.bf16.gmra.mxu0 %v5465
    %v5500 = vpop.f32.mrf.mxu0
    %v5501 = vadd.f32 0.0, %v5500
    %v5502 = vpop.f32.mrf.mxu0
    %v5503 = vadd.f32 0.0, %v5502
    %v5504 = vpop.f32.mrf.mxu0
    %v5505 = vpop.f32.mrf.mxu0
    %5506 = vdwg.mxu0
    %5507 = vmatprep.subr.bf16.mxu0 %v3840
    %5508 = vmatpush1.bf16.msra.mxu0 %v3839
    %5509 = vmatprep.subr.bf16.mxu0 %v3836
    %5510 = vmatpush1.bf16.msra.mxu0 %v3835
    %5511 = vmatprep.subr.bf16.mxu0 %v3832
    %5512 = vmatpush1.bf16.msra.mxu0 %v3831
    %5513 = vmatprep.subr.bf16.mxu0 %v3828
    %5514 = vmatpush1.bf16.msra.mxu0 %v3827
    %5515 = vmatprep.subr.bf16.mxu0 %v3824
    %5516 = vmatpush1.bf16.msra.mxu0 %v3823
    %5517 = vmatprep.subr.bf16.mxu0 %v3820
    %5518 = vmatpush1.bf16.msra.mxu0 %v3819
    %5519 = vmatprep.subr.bf16.mxu0 %v3816
    %5520 = vmatpush1.bf16.msra.mxu0 %v3815
    %5521 = vmatprep.subr.bf16.mxu0 %v3812
    %5522 = vmatpush1.bf16.msra.mxu0 %v3811
    %5523 = vmatprep.subr.bf16.mxu0 0
    %5524 = vmatpush2.bf16.msra.mxu0 0
    %5525 = vmatprep.subr.bf16.mxu0 0
    %5526 = vmatpush2.bf16.msra.mxu0 0
    %5527 = vmatprep.subr.bf16.mxu0 0
    %5528 = vmatpush2.bf16.msra.mxu0 0
    %5529 = vmatprep.subr.bf16.mxu0 0
    %5530 = vmatpush2.bf16.msra.mxu0 0
    %5531 = vmatprep.subr.bf16.mxu0 0
    %5532 = vmatpush2.bf16.msra.mxu0 0
    %5533 = vmatprep.subr.bf16.mxu0 0
    %5534 = vmatpush2.bf16.msra.mxu0 0
    %5535 = vmatprep.subr.bf16.mxu0 0
    %5536 = vmatpush2.bf16.msra.mxu0 0
    %5537 = vmatprep.subr.bf16.mxu0 0
    %5538 = vmatpush2.bf16.msra.mxu0 0
    %5539 = vmatprep.mubr.bf16.mxu0 0
    %5540 = vmatmul.mubr.bf16.gmra.mxu0 %v5465
    %v5541 = vpop.f32.mrf.mxu0
    %v5542 = vadd.f32 0.0, %v5541
    %v5543 = vpop.f32.mrf.mxu0
    %v5544 = vadd.f32 0.0, %v5543
    %v5545 = vpop.f32.mrf.mxu0
    %v5546 = vpop.f32.mrf.mxu0
    %5547 = vdwg.mxu0
    %v5552 = vrot.slane %v5501, 6
    %v5553 = vrot.slane %v5503, 6
    %v5554 = vrot.slane %v5542, 6
    %v5555 = vrot.slane %v5544, 6
    %v5560 = vadd.f32 %v5461, %v5552
    %v5561 = vadd.f32 %v5462, %v5553
    %v5562 = vadd.f32 %v5463, %v5554
    %v5563 = vadd.f32 %v5464, %v5555
    %v5564 = vxor.u32 %v5560, 2147483648
    %v5565 = vmul.f32 %v5564, 1.442695
    %v5566 = vpow.pop %v5565
    %v5567 = vadd.f32 %v5566, 1.0
    %v5568 = vrcp.pop %v5567
    %v5569 = vmul.f32 1.0, %v5568
    %v5570 = vxor.u32 %v5561, 2147483648
    %v5571 = vmul.f32 %v5570, 1.442695
    %v5572 = vpow.pop %v5571
    %v5573 = vadd.f32 %v5572, 1.0
    %v5574 = vrcp.pop %v5573
    %v5575 = vmul.f32 1.0, %v5574
    %v5576 = vtanh.pop %v5562
    %v5577 = vxor.u32 %v5563, 2147483648
    %v5578 = vmul.f32 %v5577, 1.442695
    %v5579 = vpow.pop %v5578
    %v5580 = vadd.f32 %v5579, 1.0
    %v5581 = vrcp.pop %v5580
    %v5582 = vmul.f32 1.0, %v5581
    %v5584 = vrot.slane %v5446, 6
    %v5586 = vmul.f32 %v5575, %v5584
    %v5587 = vmul.f32 %v5569, %v5576
    %v5588 = vadd.f32 %v5586, %v5587
    %v5589 = vtanh.pop %v5588
    %v5590 = vmul.f32 %v5582, %v5589
    %v5595 = vrot.slane %v4768, 6
    %v5596 = vrot.slane %v4769, 6
    %v5597 = vrot.slane %v4770, 6
    %v5598 = vrot.slane %v4771, 6
    %v5603 = vsel %vm177, %v4784, %v5595
    %v5604 = vsel %vm178, %v4785, %v5596
    %v5605 = vsel %vm179, %v4786, %v5597
    %v5606 = vsel %vm180, %v4787, %v5598
    %v5607 = vpack.c.bf16 %v5590, %v5590
    %v5609 = vrot.slane %v5607, 1
    %5611 = vmatprep.subr.bf16.mxu0 %v3838
    %5612 = vmatpush1.bf16.msra.mxu0 %v3837
    %5613 = vmatprep.subr.bf16.mxu0 %v3834
    %5614 = vmatpush1.bf16.msra.mxu0 %v3833
    %5615 = vmatprep.subr.bf16.mxu0 %v3830
    %5616 = vmatpush1.bf16.msra.mxu0 %v3829
    %5617 = vmatprep.subr.bf16.mxu0 %v3826
    %5618 = vmatpush1.bf16.msra.mxu0 %v3825
    %5619 = vmatprep.subr.bf16.mxu0 %v3822
    %5620 = vmatpush1.bf16.msra.mxu0 %v3821
    %5621 = vmatprep.subr.bf16.mxu0 %v3818
    %5622 = vmatpush1.bf16.msra.mxu0 %v3817
    %5623 = vmatprep.subr.bf16.mxu0 %v3814
    %5624 = vmatpush1.bf16.msra.mxu0 %v3813
    %5625 = vmatprep.subr.bf16.mxu0 %v3810
    %5626 = vmatpush1.bf16.msra.mxu0 %v3809
    %5627 = vmatprep.subr.bf16.mxu0 0
    %5628 = vmatpush2.bf16.msra.mxu0 0
    %5629 = vmatprep.subr.bf16.mxu0 0
    %5630 = vmatpush2.bf16.msra.mxu0 0
    %5631 = vmatprep.subr.bf16.mxu0 0
    %5632 = vmatpush2.bf16.msra.mxu0 0
    %5633 = vmatprep.subr.bf16.mxu0 0
    %5634 = vmatpush2.bf16.msra.mxu0 0
    %5635 = vmatprep.subr.bf16.mxu0 0
    %5636 = vmatpush2.bf16.msra.mxu0 0
    %5637 = vmatprep.subr.bf16.mxu0 0
    %5638 = vmatpush2.bf16.msra.mxu0 0
    %5639 = vmatprep.subr.bf16.mxu0 0
    %5640 = vmatpush2.bf16.msra.mxu0 0
    %5641 = vmatprep.subr.bf16.mxu0 0
    %5642 = vmatpush2.bf16.msra.mxu0 0
    %5643 = vmatprep.mubr.bf16.mxu0 0
    %5644 = vmatmul.mubr.bf16.gmra.mxu0 %v5609
    %v5645 = vpop.f32.mrf.mxu0
    %v5646 = vadd.f32 0.0, %v5645
    %v5647 = vpop.f32.mrf.mxu0
    %v5648 = vadd.f32 0.0, %v5647
    %v5649 = vpop.f32.mrf.mxu0
    %v5650 = vpop.f32.mrf.mxu0
    %5651 = vdwg.mxu0
    %5652 = vmatprep.subr.bf16.mxu0 %v3840
    %5653 = vmatpush1.bf16.msra.mxu0 %v3839
    %5654 = vmatprep.subr.bf16.mxu0 %v3836
    %5655 = vmatpush1.bf16.msra.mxu0 %v3835
    %5656 = vmatprep.subr.bf16.mxu0 %v3832
    %5657 = vmatpush1.bf16.msra.mxu0 %v3831
    %5658 = vmatprep.subr.bf16.mxu0 %v3828
    %5659 = vmatpush1.bf16.msra.mxu0 %v3827
    %5660 = vmatprep.subr.bf16.mxu0 %v3824
    %5661 = vmatpush1.bf16.msra.mxu0 %v3823
    %5662 = vmatprep.subr.bf16.mxu0 %v3820
    %5663 = vmatpush1.bf16.msra.mxu0 %v3819
    %5664 = vmatprep.subr.bf16.mxu0 %v3816
    %5665 = vmatpush1.bf16.msra.mxu0 %v3815
    %5666 = vmatprep.subr.bf16.mxu0 %v3812
    %5667 = vmatpush1.bf16.msra.mxu0 %v3811
    %5668 = vmatprep.subr.bf16.mxu0 0
    %5669 = vmatpush2.bf16.msra.mxu0 0
    %5670 = vmatprep.subr.bf16.mxu0 0
    %5671 = vmatpush2.bf16.msra.mxu0 0
    %5672 = vmatprep.subr.bf16.mxu0 0
    %5673 = vmatpush2.bf16.msra.mxu0 0
    %5674 = vmatprep.subr.bf16.mxu0 0
    %5675 = vmatpush2.bf16.msra.mxu0 0
    %5676 = vmatprep.subr.bf16.mxu0 0
    %5677 = vmatpush2.bf16.msra.mxu0 0
    %5678 = vmatprep.subr.bf16.mxu0 0
    %5679 = vmatpush2.bf16.msra.mxu0 0
    %5680 = vmatprep.subr.bf16.mxu0 0
    %5681 = vmatpush2.bf16.msra.mxu0 0
    %5682 = vmatprep.subr.bf16.mxu0 0
    %5683 = vmatpush2.bf16.msra.mxu0 0
    %5684 = vmatprep.mubr.bf16.mxu0 0
    %5685 = vmatmul.mubr.bf16.gmra.mxu0 %v5609
    %v5686 = vpop.f32.mrf.mxu0
    %v5687 = vadd.f32 0.0, %v5686
    %v5688 = vpop.f32.mrf.mxu0
    %v5689 = vadd.f32 0.0, %v5688
    %v5690 = vpop.f32.mrf.mxu0
    %v5691 = vpop.f32.mrf.mxu0
    %5692 = vdwg.mxu0
    %v5697 = vrot.slane %v5646, 4
    %v5698 = vrot.slane %v5648, 4
    %v5699 = vrot.slane %v5687, 4
    %v5700 = vrot.slane %v5689, 4
    %v5705 = vadd.f32 %v5603, %v5697
    %v5706 = vadd.f32 %v5604, %v5698
    %v5707 = vadd.f32 %v5605, %v5699
    %v5708 = vadd.f32 %v5606, %v5700
    %v5709 = vxor.u32 %v5705, 2147483648
    %v5710 = vmul.f32 %v5709, 1.442695
    %v5711 = vpow.pop %v5710
    %v5712 = vadd.f32 %v5711, 1.0
    %v5713 = vrcp.pop %v5712
    %v5714 = vmul.f32 1.0, %v5713
    %v5715 = vxor.u32 %v5706, 2147483648
    %v5716 = vmul.f32 %v5715, 1.442695
    %v5717 = vpow.pop %v5716
    %v5718 = vadd.f32 %v5717, 1.0
    %v5719 = vrcp.pop %v5718
    %v5720 = vmul.f32 1.0, %v5719
    %v5721 = vtanh.pop %v5707
    %v5722 = vxor.u32 %v5708, 2147483648
    %v5723 = vmul.f32 %v5722, 1.442695
    %v5724 = vpow.pop %v5723
    %v5725 = vadd.f32 %v5724, 1.0
    %v5726 = vrcp.pop %v5725
    %v5727 = vmul.f32 1.0, %v5726
    %v5729 = vrot.slane %v5588, 6
    %v5731 = vmul.f32 %v5720, %v5729
    %v5732 = vmul.f32 %v5714, %v5721
    %v5733 = vadd.f32 %v5731, %v5732
    %v5734 = vtanh.pop %v5733
    %v5735 = vmul.f32 %v5727, %v5734
    %v5740 = vrot.slane %v4587, 2
    %v5741 = vrot.slane %v4588, 2
    %v5742 = vrot.slane %v4589, 2
    %v5743 = vrot.slane %v4590, 2
    %v5748 = vsel %vm177, %v4603, %v5740
    %v5749 = vsel %vm178, %v4604, %v5741
    %v5750 = vsel %vm179, %v4605, %v5742
    %v5751 = vsel %vm180, %v4606, %v5743
    %v5752 = vpack.c.bf16 %v5735, %v5735
    %v5754 = vrot.slane %v5752, 2
    %5756 = vmatprep.subr.bf16.mxu0 %v3838
    %5757 = vmatpush1.bf16.msra.mxu0 %v3837
    %5758 = vmatprep.subr.bf16.mxu0 %v3834
    %5759 = vmatpush1.bf16.msra.mxu0 %v3833
    %5760 = vmatprep.subr.bf16.mxu0 %v3830
    %5761 = vmatpush1.bf16.msra.mxu0 %v3829
    %5762 = vmatprep.subr.bf16.mxu0 %v3826
    %5763 = vmatpush1.bf16.msra.mxu0 %v3825
    %5764 = vmatprep.subr.bf16.mxu0 %v3822
    %5765 = vmatpush1.bf16.msra.mxu0 %v3821
    %5766 = vmatprep.subr.bf16.mxu0 %v3818
    %5767 = vmatpush1.bf16.msra.mxu0 %v3817
    %5768 = vmatprep.subr.bf16.mxu0 %v3814
    %5769 = vmatpush1.bf16.msra.mxu0 %v3813
    %5770 = vmatprep.subr.bf16.mxu0 %v3810
    %5771 = vmatpush1.bf16.msra.mxu0 %v3809
    %5772 = vmatprep.subr.bf16.mxu0 0
    %5773 = vmatpush2.bf16.msra.mxu0 0
    %5774 = vmatprep.subr.bf16.mxu0 0
    %5775 = vmatpush2.bf16.msra.mxu0 0
    %5776 = vmatprep.subr.bf16.mxu0 0
    %5777 = vmatpush2.bf16.msra.mxu0 0
    %5778 = vmatprep.subr.bf16.mxu0 0
    %5779 = vmatpush2.bf16.msra.mxu0 0
    %5780 = vmatprep.subr.bf16.mxu0 0
    %5781 = vmatpush2.bf16.msra.mxu0 0
    %5782 = vmatprep.subr.bf16.mxu0 0
    %5783 = vmatpush2.bf16.msra.mxu0 0
    %5784 = vmatprep.subr.bf16.mxu0 0
    %5785 = vmatpush2.bf16.msra.mxu0 0
    %5786 = vmatprep.subr.bf16.mxu0 0
    %5787 = vmatpush2.bf16.msra.mxu0 0
    %5788 = vmatprep.mubr.bf16.mxu0 0
    %5789 = vmatmul.mubr.bf16.gmra.mxu0 %v5754
    %v5790 = vpop.f32.mrf.mxu0
    %v5791 = vadd.f32 0.0, %v5790
    %v5792 = vpop.f32.mrf.mxu0
    %v5793 = vadd.f32 0.0, %v5792
    %v5794 = vpop.f32.mrf.mxu0
    %v5795 = vpop.f32.mrf.mxu0
    %5796 = vdwg.mxu0
    %5797 = vmatprep.subr.bf16.mxu0 %v3840
    %5798 = vmatpush1.bf16.msra.mxu0 %v3839
    %5799 = vmatprep.subr.bf16.mxu0 %v3836
    %5800 = vmatpush1.bf16.msra.mxu0 %v3835
    %5801 = vmatprep.subr.bf16.mxu0 %v3832
    %5802 = vmatpush1.bf16.msra.mxu0 %v3831
    %5803 = vmatprep.subr.bf16.mxu0 %v3828
    %5804 = vmatpush1.bf16.msra.mxu0 %v3827
    %5805 = vmatprep.subr.bf16.mxu0 %v3824
    %5806 = vmatpush1.bf16.msra.mxu0 %v3823
    %5807 = vmatprep.subr.bf16.mxu0 %v3820
    %5808 = vmatpush1.bf16.msra.mxu0 %v3819
    %5809 = vmatprep.subr.bf16.mxu0 %v3816
    %5810 = vmatpush1.bf16.msra.mxu0 %v3815
    %5811 = vmatprep.subr.bf16.mxu0 %v3812
    %5812 = vmatpush1.bf16.msra.mxu0 %v3811
    %5813 = vmatprep.subr.bf16.mxu0 0
    %5814 = vmatpush2.bf16.msra.mxu0 0
    %5815 = vmatprep.subr.bf16.mxu0 0
    %5816 = vmatpush2.bf16.msra.mxu0 0
    %5817 = vmatprep.subr.bf16.mxu0 0
    %5818 = vmatpush2.bf16.msra.mxu0 0
    %5819 = vmatprep.subr.bf16.mxu0 0
    %5820 = vmatpush2.bf16.msra.mxu0 0
    %5821 = vmatprep.subr.bf16.mxu0 0
    %5822 = vmatpush2.bf16.msra.mxu0 0
    %5823 = vmatprep.subr.bf16.mxu0 0
    %5824 = vmatpush2.bf16.msra.mxu0 0
    %5825 = vmatprep.subr.bf16.mxu0 0
    %5826 = vmatpush2.bf16.msra.mxu0 0
    %5827 = vmatprep.subr.bf16.mxu0 0
    %5828 = vmatpush2.bf16.msra.mxu0 0
    %5829 = vmatprep.mubr.bf16.mxu0 0
    %5830 = vmatmul.mubr.bf16.gmra.mxu0 %v5754
    %v5831 = vpop.f32.mrf.mxu0
    %v5832 = vadd.f32 0.0, %v5831
    %v5833 = vpop.f32.mrf.mxu0
    %v5834 = vadd.f32 0.0, %v5833
    %v5835 = vpop.f32.mrf.mxu0
    %v5836 = vpop.f32.mrf.mxu0
    %5837 = vdwg.mxu0
    %v5842 = vrot.slane %v5791, 2
    %v5843 = vrot.slane %v5793, 2
    %v5844 = vrot.slane %v5832, 2
    %v5845 = vrot.slane %v5834, 2
    %v5850 = vadd.f32 %v5748, %v5842
    %v5851 = vadd.f32 %v5749, %v5843
    %v5852 = vadd.f32 %v5750, %v5844
    %v5853 = vadd.f32 %v5751, %v5845
    %v5854 = vxor.u32 %v5850, 2147483648
    %v5855 = vmul.f32 %v5854, 1.442695
    %v5856 = vpow.pop %v5855
    %v5857 = vadd.f32 %v5856, 1.0
    %v5858 = vrcp.pop %v5857
    %v5859 = vmul.f32 1.0, %v5858
    %v5860 = vxor.u32 %v5851, 2147483648
    %v5861 = vmul.f32 %v5860, 1.442695
    %v5862 = vpow.pop %v5861
    %v5863 = vadd.f32 %v5862, 1.0
    %v5864 = vrcp.pop %v5863
    %v5865 = vmul.f32 1.0, %v5864
    %v5866 = vtanh.pop %v5852
    %v5867 = vxor.u32 %v5853, 2147483648
    %v5868 = vmul.f32 %v5867, 1.442695
    %v5869 = vpow.pop %v5868
    %v5870 = vadd.f32 %v5869, 1.0
    %v5871 = vrcp.pop %v5870
    %v5872 = vmul.f32 1.0, %v5871
    %v5874 = vrot.slane %v5733, 6
    %v5876 = vmul.f32 %v5865, %v5874
    %v5877 = vmul.f32 %v5859, %v5866
    %v5878 = vadd.f32 %v5876, %v5877
    %v5879 = vtanh.pop %v5878
    %v5880 = vmul.f32 %v5872, %v5879
    %v5885 = vrot.slane %v4394, 6
    %v5886 = vrot.slane %v4395, 6
    %v5887 = vrot.slane %v4396, 6
    %v5888 = vrot.slane %v4397, 6
    %v5893 = vsel %vm177, %v4410, %v5885
    %v5894 = vsel %vm178, %v4411, %v5886
    %v5895 = vsel %vm179, %v4412, %v5887
    %v5896 = vsel %vm180, %v4413, %v5888
    %v5897 = vpack.c.bf16 %v5880, %v5880
    %v5899 = vrot.slane %v5897, 3
    %5901 = vmatprep.subr.bf16.mxu0 %v3838
    %5902 = vmatpush1.bf16.msra.mxu0 %v3837
    %5903 = vmatprep.subr.bf16.mxu0 %v3834
    %5904 = vmatpush1.bf16.msra.mxu0 %v3833
    %5905 = vmatprep.subr.bf16.mxu0 %v3830
    %5906 = vmatpush1.bf16.msra.mxu0 %v3829
    %5907 = vmatprep.subr.bf16.mxu0 %v3826
    %5908 = vmatpush1.bf16.msra.mxu0 %v3825
    %5909 = vmatprep.subr.bf16.mxu0 %v3822
    %5910 = vmatpush1.bf16.msra.mxu0 %v3821
    %5911 = vmatprep.subr.bf16.mxu0 %v3818
    %5912 = vmatpush1.bf16.msra.mxu0 %v3817
    %5913 = vmatprep.subr.bf16.mxu0 %v3814
    %5914 = vmatpush1.bf16.msra.mxu0 %v3813
    %5915 = vmatprep.subr.bf16.mxu0 %v3810
    %5916 = vmatpush1.bf16.msra.mxu0 %v3809
    %5917 = vmatprep.subr.bf16.mxu0 0
    %5918 = vmatpush2.bf16.msra.mxu0 0
    %5919 = vmatprep.subr.bf16.mxu0 0
    %5920 = vmatpush2.bf16.msra.mxu0 0
    %5921 = vmatprep.subr.bf16.mxu0 0
    %5922 = vmatpush2.bf16.msra.mxu0 0
    %5923 = vmatprep.subr.bf16.mxu0 0
    %5924 = vmatpush2.bf16.msra.mxu0 0
    %5925 = vmatprep.subr.bf16.mxu0 0
    %5926 = vmatpush2.bf16.msra.mxu0 0
    %5927 = vmatprep.subr.bf16.mxu0 0
    %5928 = vmatpush2.bf16.msra.mxu0 0
    %5929 = vmatprep.subr.bf16.mxu0 0
    %5930 = vmatpush2.bf16.msra.mxu0 0
    %5931 = vmatprep.subr.bf16.mxu0 0
    %5932 = vmatpush2.bf16.msra.mxu0 0
    %5933 = vmatprep.mubr.bf16.mxu0 0
    %5934 = vmatmul.mubr.bf16.gmra.mxu0 %v5899
    %v5935 = vpop.f32.mrf.mxu0
    %v5936 = vadd.f32 0.0, %v5935
    %v5937 = vpop.f32.mrf.mxu0
    %v5938 = vadd.f32 0.0, %v5937
    %v5939 = vpop.f32.mrf.mxu0
    %v5940 = vpop.f32.mrf.mxu0
    %5941 = vdwg.mxu0
    %5942 = vmatprep.subr.bf16.mxu0 %v3840
    %5943 = vmatpush1.bf16.msra.mxu0 %v3839
    %5944 = vmatprep.subr.bf16.mxu0 %v3836
    %5945 = vmatpush1.bf16.msra.mxu0 %v3835
    %5946 = vmatprep.subr.bf16.mxu0 %v3832
    %5947 = vmatpush1.bf16.msra.mxu0 %v3831
    %5948 = vmatprep.subr.bf16.mxu0 %v3828
    %5949 = vmatpush1.bf16.msra.mxu0 %v3827
    %5950 = vmatprep.subr.bf16.mxu0 %v3824
    %5951 = vmatpush1.bf16.msra.mxu0 %v3823
    %5952 = vmatprep.subr.bf16.mxu0 %v3820
    %5953 = vmatpush1.bf16.msra.mxu0 %v3819
    %5954 = vmatprep.subr.bf16.mxu0 %v3816
    %5955 = vmatpush1.bf16.msra.mxu0 %v3815
    %5956 = vmatprep.subr.bf16.mxu0 %v3812
    %5957 = vmatpush1.bf16.msra.mxu0 %v3811
    %5958 = vmatprep.subr.bf16.mxu0 0
    %5959 = vmatpush2.bf16.msra.mxu0 0
    %5960 = vmatprep.subr.bf16.mxu0 0
    %5961 = vmatpush2.bf16.msra.mxu0 0
    %5962 = vmatprep.subr.bf16.mxu0 0
    %5963 = vmatpush2.bf16.msra.mxu0 0
    %5964 = vmatprep.subr.bf16.mxu0 0
    %5965 = vmatpush2.bf16.msra.mxu0 0
    %5966 = vmatprep.subr.bf16.mxu0 0
    %5967 = vmatpush2.bf16.msra.mxu0 0
    %5968 = vmatprep.subr.bf16.mxu0 0
    %5969 = vmatpush2.bf16.msra.mxu0 0
    %5970 = vmatprep.subr.bf16.mxu0 0
    %5971 = vmatpush2.bf16.msra.mxu0 0
    %5972 = vmatprep.subr.bf16.mxu0 0
    %5973 = vmatpush2.bf16.msra.mxu0 0
    %5974 = vmatprep.mubr.bf16.mxu0 0
    %5975 = vmatmul.mubr.bf16.gmra.mxu0 %v5899
    %v5976 = vpop.f32.mrf.mxu0
    %v5977 = vadd.f32 0.0, %v5976
    %v5978 = vpop.f32.mrf.mxu0
    %v5979 = vadd.f32 0.0, %v5978
    %v5980 = vpop.f32.mrf.mxu0
    %v5981 = vpop.f32.mrf.mxu0
    %5982 = vdwg.mxu0
    %v5983 = vadd.f32 %v5893, %v5936
    %v5984 = vadd.f32 %v5894, %v5938
    %v5985 = vadd.f32 %v5895, %v5977
    %v5986 = vadd.f32 %v5896, %v5979
    %v5987 = vxor.u32 %v5983, 2147483648
    %v5988 = vmul.f32 %v5987, 1.442695
    %v5989 = vpow.pop %v5988
    %v5990 = vadd.f32 %v5989, 1.0
    %v5991 = vrcp.pop %v5990
    %v5992 = vmul.f32 1.0, %v5991
    %v5993 = vxor.u32 %v5984, 2147483648
    %v5994 = vmul.f32 %v5993, 1.442695
    %v5995 = vpow.pop %v5994
    %v5996 = vadd.f32 %v5995, 1.0
    %v5997 = vrcp.pop %v5996
    %v5998 = vmul.f32 1.0, %v5997
    %v5999 = vtanh.pop %v5985
    %v6000 = vxor.u32 %v5986, 2147483648
    %v6001 = vmul.f32 %v6000, 1.442695
    %v6002 = vpow.pop %v6001
    %v6003 = vadd.f32 %v6002, 1.0
    %v6004 = vrcp.pop %v6003
    %v6005 = vmul.f32 1.0, %v6004
    %v6007 = vrot.slane %v5878, 6
    %v6009 = vmul.f32 %v5998, %v6007
    %v6010 = vmul.f32 %v5992, %v5999
    %v6011 = vadd.f32 %v6009, %v6010
    %v6012 = vtanh.pop %v6011
    %v6013 = vmul.f32 %v6005, %v6012
    %v6018 = vrot.slane %v4201, 2
    %v6019 = vrot.slane %v4202, 2
    %v6020 = vrot.slane %v4203, 2
    %v6021 = vrot.slane %v4204, 2
    %v6026 = vsel %vm177, %v4217, %v6018
    %v6027 = vsel %vm178, %v4218, %v6019
    %v6028 = vsel %vm179, %v4219, %v6020
    %v6029 = vsel %vm180, %v4220, %v6021
    %v6030 = vpack.c.bf16 %v6013, %v6013
    %6031 = vmatprep.subr.bf16.mxu0 %v3838
    %6032 = vmatpush1.bf16.msra.mxu0 %v3837
    %6033 = vmatprep.subr.bf16.mxu0 %v3834
    %6034 = vmatpush1.bf16.msra.mxu0 %v3833
    %6035 = vmatprep.subr.bf16.mxu0 %v3830
    %6036 = vmatpush1.bf16.msra.mxu0 %v3829
    %6037 = vmatprep.subr.bf16.mxu0 %v3826
    %6038 = vmatpush1.bf16.msra.mxu0 %v3825
    %6039 = vmatprep.subr.bf16.mxu0 %v3822
    %6040 = vmatpush1.bf16.msra.mxu0 %v3821
    %6041 = vmatprep.subr.bf16.mxu0 %v3818
    %6042 = vmatpush1.bf16.msra.mxu0 %v3817
    %6043 = vmatprep.subr.bf16.mxu0 %v3814
    %6044 = vmatpush1.bf16.msra.mxu0 %v3813
    %6045 = vmatprep.subr.bf16.mxu0 %v3810
    %6046 = vmatpush1.bf16.msra.mxu0 %v3809
    %6047 = vmatprep.subr.bf16.mxu0 0
    %6048 = vmatpush2.bf16.msra.mxu0 0
    %6049 = vmatprep.subr.bf16.mxu0 0
    %6050 = vmatpush2.bf16.msra.mxu0 0
    %6051 = vmatprep.subr.bf16.mxu0 0
    %6052 = vmatpush2.bf16.msra.mxu0 0
    %6053 = vmatprep.subr.bf16.mxu0 0
    %6054 = vmatpush2.bf16.msra.mxu0 0
    %6055 = vmatprep.subr.bf16.mxu0 0
    %6056 = vmatpush2.bf16.msra.mxu0 0
    %6057 = vmatprep.subr.bf16.mxu0 0
    %6058 = vmatpush2.bf16.msra.mxu0 0
    %6059 = vmatprep.subr.bf16.mxu0 0
    %6060 = vmatpush2.bf16.msra.mxu0 0
    %6061 = vmatprep.subr.bf16.mxu0 0
    %6062 = vmatpush2.bf16.msra.mxu0 0
    %6063 = vmatprep.mubr.bf16.mxu0 0
    %6064 = vmatmul.mubr.bf16.gmra.mxu0 %v6030
    %v6065 = vpop.f32.mrf.mxu0
    %v6066 = vadd.f32 0.0, %v6065
    %v6067 = vpop.f32.mrf.mxu0
    %v6068 = vadd.f32 0.0, %v6067
    %v6069 = vpop.f32.mrf.mxu0
    %v6070 = vpop.f32.mrf.mxu0
    %6071 = vdwg.mxu0
    %6072 = vmatprep.subr.bf16.mxu0 %v3840
    %6073 = vmatpush1.bf16.msra.mxu0 %v3839
    %6074 = vmatprep.subr.bf16.mxu0 %v3836
    %6075 = vmatpush1.bf16.msra.mxu0 %v3835
    %6076 = vmatprep.subr.bf16.mxu0 %v3832
    %6077 = vmatpush1.bf16.msra.mxu0 %v3831
    %6078 = vmatprep.subr.bf16.mxu0 %v3828
    %6079 = vmatpush1.bf16.msra.mxu0 %v3827
    %6080 = vmatprep.subr.bf16.mxu0 %v3824
    %6081 = vmatpush1.bf16.msra.mxu0 %v3823
    %6082 = vmatprep.subr.bf16.mxu0 %v3820
    %6083 = vmatpush1.bf16.msra.mxu0 %v3819
    %6084 = vmatprep.subr.bf16.mxu0 %v3816
    %6085 = vmatpush1.bf16.msra.mxu0 %v3815
    %6086 = vmatprep.subr.bf16.mxu0 %v3812
    %6087 = vmatpush1.bf16.msra.mxu0 %v3811
    %6088 = vmatprep.subr.bf16.mxu0 0
    %6089 = vmatpush2.bf16.msra.mxu0 0
    %6090 = vmatprep.subr.bf16.mxu0 0
    %6091 = vmatpush2.bf16.msra.mxu0 0
    %6092 = vmatprep.subr.bf16.mxu0 0
    %6093 = vmatpush2.bf16.msra.mxu0 0
    %6094 = vmatprep.subr.bf16.mxu0 0
    %6095 = vmatpush2.bf16.msra.mxu0 0
    %6096 = vmatprep.subr.bf16.mxu0 0
    %6097 = vmatpush2.bf16.msra.mxu0 0
    %6098 = vmatprep.subr.bf16.mxu0 0
    %6099 = vmatpush2.bf16.msra.mxu0 0
    %6100 = vmatprep.subr.bf16.mxu0 0
    %6101 = vmatpush2.bf16.msra.mxu0 0
    %6102 = vmatprep.subr.bf16.mxu0 0
    %6103 = vmatpush2.bf16.msra.mxu0 0
    %6104 = vmatprep.mubr.bf16.mxu0 0
    %6105 = vmatmul.mubr.bf16.gmra.mxu0 %v6030
    %v6106 = vpop.f32.mrf.mxu0
    %v6107 = vadd.f32 0.0, %v6106
    %v6108 = vpop.f32.mrf.mxu0
    %v6109 = vadd.f32 0.0, %v6108
    %v6110 = vpop.f32.mrf.mxu0
    %v6111 = vpop.f32.mrf.mxu0
    %6112 = vdwg.mxu0
    %v6117 = vrot.slane %v6066, 6
    %v6118 = vrot.slane %v6068, 6
    %v6119 = vrot.slane %v6107, 6
    %v6120 = vrot.slane %v6109, 6
    %v6125 = vadd.f32 %v6026, %v6117
    %v6126 = vadd.f32 %v6027, %v6118
    %v6127 = vadd.f32 %v6028, %v6119
    %v6128 = vadd.f32 %v6029, %v6120
    %v6129 = vxor.u32 %v6125, 2147483648
    %v6130 = vmul.f32 %v6129, 1.442695
    %v6131 = vpow.pop %v6130
    %v6132 = vadd.f32 %v6131, 1.0
    %v6133 = vrcp.pop %v6132
    %v6134 = vmul.f32 1.0, %v6133
    %v6135 = vxor.u32 %v6126, 2147483648
    %v6136 = vmul.f32 %v6135, 1.442695
    %v6137 = vpow.pop %v6136
    %v6138 = vadd.f32 %v6137, 1.0
    %v6139 = vrcp.pop %v6138
    %v6140 = vmul.f32 1.0, %v6139
    %v6141 = vtanh.pop %v6127
    %v6142 = vxor.u32 %v6128, 2147483648
    %v6143 = vmul.f32 %v6142, 1.442695
    %v6144 = vpow.pop %v6143
    %v6145 = vadd.f32 %v6144, 1.0
    %v6146 = vrcp.pop %v6145
    %v6147 = vmul.f32 1.0, %v6146
    %v6149 = vrot.slane %v6011, 6
    %v6151 = vmul.f32 %v6140, %v6149
    %v6152 = vmul.f32 %v6134, %v6141
    %v6153 = vadd.f32 %v6151, %v6152
    %v6154 = vtanh.pop %v6153
    %v6155 = vmul.f32 %v6147, %v6154
    %v6160 = vrot.slane %v4011, 6
    %v6161 = vrot.slane %v4012, 6
    %v6162 = vrot.slane %v4013, 6
    %v6163 = vrot.slane %v4014, 6
    %v6168 = vsel %vm177, %v4027, %v6160
    %v6169 = vsel %vm178, %v4028, %v6161
    %v6170 = vsel %vm179, %v4029, %v6162
    %v6171 = vsel %vm180, %v4030, %v6163
    %v6172 = vpack.c.bf16 %v6155, %v6155
    %v6174 = vrot.slane %v6172, 1
    %6176 = vmatprep.subr.bf16.mxu0 %v3838
    %6177 = vmatpush1.bf16.msra.mxu0 %v3837
    %6178 = vmatprep.subr.bf16.mxu0 %v3834
    %6179 = vmatpush1.bf16.msra.mxu0 %v3833
    %6180 = vmatprep.subr.bf16.mxu0 %v3830
    %6181 = vmatpush1.bf16.msra.mxu0 %v3829
    %6182 = vmatprep.subr.bf16.mxu0 %v3826
    %6183 = vmatpush1.bf16.msra.mxu0 %v3825
    %6184 = vmatprep.subr.bf16.mxu0 %v3822
    %6185 = vmatpush1.bf16.msra.mxu0 %v3821
    %6186 = vmatprep.subr.bf16.mxu0 %v3818
    %6187 = vmatpush1.bf16.msra.mxu0 %v3817
    %6188 = vmatprep.subr.bf16.mxu0 %v3814
    %6189 = vmatpush1.bf16.msra.mxu0 %v3813
    %6190 = vmatprep.subr.bf16.mxu0 %v3810
    %6191 = vmatpush1.bf16.msra.mxu0 %v3809
    %6192 = vmatprep.subr.bf16.mxu0 0
    %6193 = vmatpush2.bf16.msra.mxu0 0
    %6194 = vmatprep.subr.bf16.mxu0 0
    %6195 = vmatpush2.bf16.msra.mxu0 0
    %6196 = vmatprep.subr.bf16.mxu0 0
    %6197 = vmatpush2.bf16.msra.mxu0 0
    %6198 = vmatprep.subr.bf16.mxu0 0
    %6199 = vmatpush2.bf16.msra.mxu0 0
    %6200 = vmatprep.subr.bf16.mxu0 0
    %6201 = vmatpush2.bf16.msra.mxu0 0
    %6202 = vmatprep.subr.bf16.mxu0 0
    %6203 = vmatpush2.bf16.msra.mxu0 0
    %6204 = vmatprep.subr.bf16.mxu0 0
    %6205 = vmatpush2.bf16.msra.mxu0 0
    %6206 = vmatprep.subr.bf16.mxu0 0
    %6207 = vmatpush2.bf16.msra.mxu0 0
    %6208 = vmatprep.mubr.bf16.mxu0 0
    %6209 = vmatmul.mubr.bf16.gmra.mxu0 %v6174
    %v6210 = vpop.f32.mrf.mxu0
    %v6211 = vadd.f32 0.0, %v6210
    %v6212 = vpop.f32.mrf.mxu0
    %v6213 = vadd.f32 0.0, %v6212
    %v6214 = vpop.f32.mrf.mxu0
    %v6215 = vpop.f32.mrf.mxu0
    %6216 = vdwg.mxu0
    %6217 = vmatprep.subr.bf16.mxu0 %v3840
    %6218 = vmatpush1.bf16.msra.mxu0 %v3839
    %6219 = vmatprep.subr.bf16.mxu0 %v3836
    %6220 = vmatpush1.bf16.msra.mxu0 %v3835
    %6221 = vmatprep.subr.bf16.mxu0 %v3832
    %6222 = vmatpush1.bf16.msra.mxu0 %v3831
    %6223 = vmatprep.subr.bf16.mxu0 %v3828
    %6224 = vmatpush1.bf16.msra.mxu0 %v3827
    %6225 = vmatprep.subr.bf16.mxu0 %v3824
    %6226 = vmatpush1.bf16.msra.mxu0 %v3823
    %6227 = vmatprep.subr.bf16.mxu0 %v3820
    %6228 = vmatpush1.bf16.msra.mxu0 %v3819
    %6229 = vmatprep.subr.bf16.mxu0 %v3816
    %6230 = vmatpush1.bf16.msra.mxu0 %v3815
    %6231 = vmatprep.subr.bf16.mxu0 %v3812
    %6232 = vmatpush1.bf16.msra.mxu0 %v3811
    %6233 = vmatprep.subr.bf16.mxu0 0
    %6234 = vmatpush2.bf16.msra.mxu0 0
    %6235 = vmatprep.subr.bf16.mxu0 0
    %6236 = vmatpush2.bf16.msra.mxu0 0
    %6237 = vmatprep.subr.bf16.mxu0 0
    %6238 = vmatpush2.bf16.msra.mxu0 0
    %6239 = vmatprep.subr.bf16.mxu0 0
    %6240 = vmatpush2.bf16.msra.mxu0 0
    %6241 = vmatprep.subr.bf16.mxu0 0
    %6242 = vmatpush2.bf16.msra.mxu0 0
    %6243 = vmatprep.subr.bf16.mxu0 0
    %6244 = vmatpush2.bf16.msra.mxu0 0
    %6245 = vmatprep.subr.bf16.mxu0 0
    %6246 = vmatpush2.bf16.msra.mxu0 0
    %6247 = vmatprep.subr.bf16.mxu0 0
    %6248 = vmatpush2.bf16.msra.mxu0 0
    %6249 = vmatprep.mubr.bf16.mxu0 0
    %6250 = vmatmul.mubr.bf16.gmra.mxu0 %v6174
    %v6251 = vpop.f32.mrf.mxu0
    %v6252 = vadd.f32 0.0, %v6251
    %v6253 = vpop.f32.mrf.mxu0
    %v6254 = vadd.f32 0.0, %v6253
    %v6255 = vpop.f32.mrf.mxu0
    %v6256 = vpop.f32.mrf.mxu0
    %6257 = vdwg.mxu0
    %v6262 = vrot.slane %v6211, 4
    %v6263 = vrot.slane %v6213, 4
    %v6264 = vrot.slane %v6252, 4
    %v6265 = vrot.slane %v6254, 4
    %v6270 = vadd.f32 %v6168, %v6262
    %v6271 = vadd.f32 %v6169, %v6263
    %v6272 = vadd.f32 %v6170, %v6264
    %v6273 = vadd.f32 %v6171, %v6265
    %v6274 = vxor.u32 %v6270, 2147483648
    %v6275 = vmul.f32 %v6274, 1.442695
    %v6276 = vpow.pop %v6275
    %v6277 = vadd.f32 %v6276, 1.0
    %v6278 = vrcp.pop %v6277
    %v6279 = vmul.f32 1.0, %v6278
    %v6280 = vxor.u32 %v6271, 2147483648
    %v6281 = vmul.f32 %v6280, 1.442695
    %v6282 = vpow.pop %v6281
    %v6283 = vadd.f32 %v6282, 1.0
    %v6284 = vrcp.pop %v6283
    %v6285 = vmul.f32 1.0, %v6284
    %v6286 = vtanh.pop %v6272
    %v6287 = vxor.u32 %v6273, 2147483648
    %v6288 = vmul.f32 %v6287, 1.442695
    %v6289 = vpow.pop %v6288
    %v6290 = vadd.f32 %v6289, 1.0
    %v6291 = vrcp.pop %v6290
    %v6292 = vmul.f32 1.0, %v6291
    %v6294 = vrot.slane %v6153, 6
    %v6296 = vmul.f32 %v6285, %v6294
    %v6297 = vmul.f32 %v6279, %v6286
    %v6298 = vadd.f32 %v6296, %v6297
    %v6299 = vtanh.pop %v6298
    %v6300 = vmul.f32 %v6292, %v6299
    %v6305 = vrot.slane %v3677, 2
    %v6306 = vrot.slane %v3678, 2
    %v6307 = vrot.slane %v3679, 2
    %v6308 = vrot.slane %v3680, 2
    %v6313 = vsel %vm177, %v3693, %v6305
    %v6314 = vsel %vm178, %v3694, %v6306
    %v6315 = vsel %vm179, %v3695, %v6307
    %v6316 = vsel %vm180, %v3696, %v6308
    %v6317 = vpack.c.bf16 %v6300, %v6300
    %v6319 = vrot.slane %v6317, 2
    %6321 = vmatprep.subr.bf16.mxu0 %v3838
    %6322 = vmatpush1.bf16.msra.mxu0 %v3837
    %6323 = vmatprep.subr.bf16.mxu0 %v3834
    %6324 = vmatpush1.bf16.msra.mxu0 %v3833
    %6325 = vmatprep.subr.bf16.mxu0 %v3830
    %6326 = vmatpush1.bf16.msra.mxu0 %v3829
    %6327 = vmatprep.subr.bf16.mxu0 %v3826
    %6328 = vmatpush1.bf16.msra.mxu0 %v3825
    %6329 = vmatprep.subr.bf16.mxu0 %v3822
    %6330 = vmatpush1.bf16.msra.mxu0 %v3821
    %6331 = vmatprep.subr.bf16.mxu0 %v3818
    %6332 = vmatpush1.bf16.msra.mxu0 %v3817
    %6333 = vmatprep.subr.bf16.mxu0 %v3814
    %6334 = vmatpush1.bf16.msra.mxu0 %v3813
    %6335 = vmatprep.subr.bf16.mxu0 %v3810
    %6336 = vmatpush1.bf16.msra.mxu0 %v3809
    %6337 = vmatprep.subr.bf16.mxu0 0
    %6338 = vmatpush2.bf16.msra.mxu0 0
    %6339 = vmatprep.subr.bf16.mxu0 0
    %6340 = vmatpush2.bf16.msra.mxu0 0
    %6341 = vmatprep.subr.bf16.mxu0 0
    %6342 = vmatpush2.bf16.msra.mxu0 0
    %6343 = vmatprep.subr.bf16.mxu0 0
    %6344 = vmatpush2.bf16.msra.mxu0 0
    %6345 = vmatprep.subr.bf16.mxu0 0
    %6346 = vmatpush2.bf16.msra.mxu0 0
    %6347 = vmatprep.subr.bf16.mxu0 0
    %6348 = vmatpush2.bf16.msra.mxu0 0
    %6349 = vmatprep.subr.bf16.mxu0 0
    %6350 = vmatpush2.bf16.msra.mxu0 0
    %6351 = vmatprep.subr.bf16.mxu0 0
    %6352 = vmatpush2.bf16.msra.mxu0 0
    %6353 = vmatprep.mubr.bf16.mxu0 0
    %6354 = vmatmul.mubr.bf16.gmra.mxu0 %v6319
    %v6355 = vpop.f32.mrf.mxu0
    %v6356 = vadd.f32 0.0, %v6355
    %v6357 = vpop.f32.mrf.mxu0
    %v6358 = vadd.f32 0.0, %v6357
    %v6359 = vpop.f32.mrf.mxu0
    %v6360 = vpop.f32.mrf.mxu0
    %6361 = vdwg.mxu0
    %6362 = vmatprep.subr.bf16.mxu0 %v3840
    %6363 = vmatpush1.bf16.msra.mxu0 %v3839
    %6364 = vmatprep.subr.bf16.mxu0 %v3836
    %6365 = vmatpush1.bf16.msra.mxu0 %v3835
    %6366 = vmatprep.subr.bf16.mxu0 %v3832
    %6367 = vmatpush1.bf16.msra.mxu0 %v3831
    %6368 = vmatprep.subr.bf16.mxu0 %v3828
    %6369 = vmatpush1.bf16.msra.mxu0 %v3827
    %6370 = vmatprep.subr.bf16.mxu0 %v3824
    %6371 = vmatpush1.bf16.msra.mxu0 %v3823
    %6372 = vmatprep.subr.bf16.mxu0 %v3820
    %6373 = vmatpush1.bf16.msra.mxu0 %v3819
    %6374 = vmatprep.subr.bf16.mxu0 %v3816
    %6375 = vmatpush1.bf16.msra.mxu0 %v3815
    %6376 = vmatprep.subr.bf16.mxu0 %v3812
    %6377 = vmatpush1.bf16.msra.mxu0 %v3811
    %6378 = vmatprep.subr.bf16.mxu0 0
    %6379 = vmatpush2.bf16.msra.mxu0 0
    %6380 = vmatprep.subr.bf16.mxu0 0
    %6381 = vmatpush2.bf16.msra.mxu0 0
    %6382 = vmatprep.subr.bf16.mxu0 0
    %6383 = vmatpush2.bf16.msra.mxu0 0
    %6384 = vmatprep.subr.bf16.mxu0 0
    %6385 = vmatpush2.bf16.msra.mxu0 0
    %6386 = vmatprep.subr.bf16.mxu0 0
    %6387 = vmatpush2.bf16.msra.mxu0 0
    %6388 = vmatprep.subr.bf16.mxu0 0
    %6389 = vmatpush2.bf16.msra.mxu0 0
    %6390 = vmatprep.subr.bf16.mxu0 0
    %6391 = vmatpush2.bf16.msra.mxu0 0
    %6392 = vmatprep.subr.bf16.mxu0 0
    %6393 = vmatpush2.bf16.msra.mxu0 0
    %6394 = vmatprep.mubr.bf16.mxu0 0
    %6395 = vmatmul.mubr.bf16.gmra.mxu0 %v6319
    %v6396 = vpop.f32.mrf.mxu0
    %v6397 = vadd.f32 0.0, %v6396
    %v6398 = vpop.f32.mrf.mxu0
    %v6399 = vadd.f32 0.0, %v6398
    %v6400 = vpop.f32.mrf.mxu0
    %v6401 = vpop.f32.mrf.mxu0
    %6402 = vdwg.mxu0
    %v6407 = vrot.slane %v6356, 2
    %v6408 = vrot.slane %v6358, 2
    %v6409 = vrot.slane %v6397, 2
    %v6410 = vrot.slane %v6399, 2
    %v6415 = vadd.f32 %v6313, %v6407
    %v6416 = vadd.f32 %v6314, %v6408
    %v6417 = vadd.f32 %v6315, %v6409
    %v6418 = vadd.f32 %v6316, %v6410
    %v6419 = vxor.u32 %v6415, 2147483648
    %v6420 = vmul.f32 %v6419, 1.442695
    %v6421 = vpow.pop %v6420
    %v6422 = vadd.f32 %v6421, 1.0
    %v6423 = vrcp.pop %v6422
    %v6424 = vmul.f32 1.0, %v6423
    %v6425 = vxor.u32 %v6416, 2147483648
    %v6426 = vmul.f32 %v6425, 1.442695
    %v6427 = vpow.pop %v6426
    %v6428 = vadd.f32 %v6427, 1.0
    %v6429 = vrcp.pop %v6428
    %v6430 = vmul.f32 1.0, %v6429
    %v6431 = vtanh.pop %v6417
    %v6432 = vxor.u32 %v6418, 2147483648
    %v6433 = vmul.f32 %v6432, 1.442695
    %v6434 = vpow.pop %v6433
    %v6435 = vadd.f32 %v6434, 1.0
    %v6436 = vrcp.pop %v6435
    %v6437 = vmul.f32 1.0, %v6436
    %v6439 = vrot.slane %v6298, 6
    %v6441 = vmul.f32 %v6430, %v6439
    %v6442 = vmul.f32 %v6424, %v6431
    %v6443 = vadd.f32 %v6441, %v6442
    %v6444 = vtanh.pop %v6443
    %v6445 = vmul.f32 %v6437, %v6444
    %v6447 = vrot.slane %v3982, 2
    %v6449 = vsel %vm181, %v6445, %v6447
    %v6450 = vld [vmem:[%s0] sm:$0xf]
    %v6451 = vld [vmem:[%s0 + $0x4] sm:$0xf]
    %v6452 = vld [vmem:[%s0 + $0x8] sm:$0xf]
    %v6453 = vld [vmem:[%s0 + $0xc] sm:$0xf]
    %v6454 = vld [vmem:[#allocation6] sm:$0xf]
    %v6455 = vld [vmem:[#allocation6 + $0x4] sm:$0xf]
    %v6456 = vld [vmem:[#allocation6 + $0x8] sm:$0xf]
    %v6457 = vld [vmem:[#allocation6 + $0xc] sm:$0xf]
    %v6458 = vld [vmem:[#allocation6 + $0x10] sm:$0xf]
    %v6459 = vld [vmem:[%s2] sm:$0x1]
    %v6461 = vlaneseq
    %v6462 = vshrl.u32 %v6461, 7
    %v6463 = vsub.s32 0, %v6462
    %v6464 = vrot.slane %v6459, %v6463
    %v6470 = vunpack.c.l.b16 %v6450
    %v6471 = vunpack.c.l.b16 %v6451
    %v6472 = vunpack.c.l.b16 %v6452
    %v6473 = vunpack.c.l.b16 %v6453
    %v6474 = vpack.c.b16 %v6471, %v6470
    %v6475 = vpack.c.b16 %v6473, %v6472
    %v6481 = vunpack.c.l.b16 %v6454
    %v6482 = vunpack.c.l.b16 %v6455
    %v6483 = vunpack.c.l.b16 %v6456
    %v6484 = vunpack.c.l.b16 %v6457
    %v6485 = vunpack.c.l.b16 %v6458
    %v6486 = vpack.c.b16 %v6482, %v6481
    %v6487 = vpack.c.b16 %v6484, %v6483
    %v6488 = vpack.c.b16 %v6485, %v6485
    %vm6491 = vcmask 326656
    %v6493 = vsel %vm6491, %v6474, 0
    %v6496 = vsel %vm6491, %v6475, 0
    %v6499 = vsel %vm237, %v6488, 0
    %6501 = vmatprep.subr.bf16.mxu0 0
    %6502 = vmatpush1.bf16.msra.mxu0 0
    %6503 = vmatprep.subr.bf16.mxu0 0
    %6504 = vmatpush1.bf16.msra.mxu0 0
    %6505 = vmatprep.subr.bf16.mxu0 0
    %6506 = vmatpush1.bf16.msra.mxu0 0
    %6507 = vmatprep.subr.bf16.mxu0 0
    %6508 = vmatpush1.bf16.msra.mxu0 0
    %6509 = vmatprep.subr.bf16.mxu0 0
    %6510 = vmatpush1.bf16.msra.mxu0 0
    %6511 = vmatprep.subr.bf16.mxu0 0
    %6512 = vmatpush1.bf16.msra.mxu0 %v6499
    %6513 = vmatprep.subr.bf16.mxu0 0
    %6514 = vmatpush1.bf16.msra.mxu0 %v6487
    %6515 = vmatprep.subr.bf16.mxu0 0
    %6516 = vmatpush1.bf16.msra.mxu0 %v6486
    %6517 = vmatprep.subr.bf16.mxu0 0
    %6518 = vmatpush2.bf16.msra.mxu0 0
    %6519 = vmatprep.subr.bf16.mxu0 0
    %6520 = vmatpush2.bf16.msra.mxu0 0
    %6521 = vmatprep.subr.bf16.mxu0 0
    %6522 = vmatpush2.bf16.msra.mxu0 0
    %6523 = vmatprep.subr.bf16.mxu0 0
    %6524 = vmatpush2.bf16.msra.mxu0 0
    %6525 = vmatprep.subr.bf16.mxu0 0
    %6526 = vmatpush2.bf16.msra.mxu0 0
    %6527 = vmatprep.subr.bf16.mxu0 0
    %6528 = vmatpush2.bf16.msra.mxu0 0
    %6529 = vmatprep.subr.bf16.mxu0 0
    %6530 = vmatpush2.bf16.msra.mxu0 0
    %6531 = vmatprep.subr.bf16.mxu0 0
    %6532 = vmatpush2.bf16.msra.mxu0 0
    %6533 = vmatprep.mubr.bf16.mxu0 0
    %6534 = vmatmul.mubr.bf16.gmra.mxu0 %v6493
    %v6535 = vpop.f32.mrf.mxu0
    %v6536 = vadd.f32 %v6464, %v6535
    %v6537 = vpop.f32.mrf.mxu0
    %v6538 = vpop.f32.mrf.mxu0
    %v6539 = vadd.f32 %v6464, %v6538
    %v6540 = vpop.f32.mrf.mxu0
    %6541 = vmatprep.mubr.bf16.mxu0 0
    %6542 = vmatmul.mubr.bf16.gmra.mxu0 %v6496
    %v6543 = vpop.f32.mrf.mxu0
    %v6544 = vadd.f32 %v6464, %v6543
    %v6545 = vpop.f32.mrf.mxu0
    %v6546 = vpop.f32.mrf.mxu0
    %v6547 = vadd.f32 %v6464, %v6546
    %v6548 = vpop.f32.mrf.mxu0
    %6549 = vdwg.mxu0
    %v6550 = vmax.f32 %v6536, 0.0
    %v6551 = vmax.f32 %v6539, 0.0
    %v6552 = vmax.f32 %v6544, 0.0
    %v6553 = vmax.f32 %v6547, 0.0
    %v6554 = vmax.f32 %v6550, %v6552
    %v6555 = vmax.f32 %v6551, %v6553
    %6556 = vst [vmem:[#allocation5 + $0x1] sm:$0xff] %v6554
    %6557 = vst [vmem:[#allocation5 + $0x9] sm:$0xff] %v6555
    %v6558 = vlaneseq
    %v6559 = vshrl.u32 %v6558, 7
    %v6560 = vadd.s32 %v6559, 8
    %v6561 = vand.u32 %v6559, 7
    %v6562 = vand.u32 %v6560, 7
    %vm6563 = vcmp.eq.s32.totalorder %v6561, 0
    %vm6564 = vcmp.eq.s32.totalorder %v6562, 0
    %v6565 = vld [vmem:[#allocation5] sm:$0xff]
    %v6566 = vld [vmem:[#allocation5 + $0x8] sm:$0xff]
    %v6567 = vsel %vm6563, 0.0, %v6565
    %v6568 = vsel %vm6564, 0.0, %v6566
    %vm6569 = vcmp.eq.s32.totalorder %v6561, 7
    %vm6570 = vcmp.eq.s32.totalorder %v6562, 7
    %v6571 = vld [vmem:[#allocation5 + $0x2] sm:$0xff]
    %v6572 = vld [vmem:[#allocation5 + $0xa] sm:$0xff]
    %v6573 = vsel %vm6569, 0.0, %v6571
    %v6574 = vsel %vm6570, 0.0, %v6572
    %v6575 = vpack.c.bf16 %v6568, %v6567
    %v6576 = vpack.c.bf16 %v6555, %v6554
    %v6577 = vpack.c.bf16 %v6574, %v6573
    %v6578 = vld [vmem:[#allocation9] sm:$0xf]
    %v6579 = vld [vmem:[#allocation9 + $0x4] sm:$0xf]
    %v6580 = vld [vmem:[#allocation9 + $0x8] sm:$0xf]
    %v6581 = vld [vmem:[#allocation9 + $0xc] sm:$0xf]
    %v6582 = vld [vmem:[#allocation9 + $0x10] sm:$0xf]
    %v6583 = vld [vmem:[#allocation9 + $0x14] sm:$0xf]
    %v6584 = vld [vmem:[#allocation9 + $0x18] sm:$0xf]
    %v6585 = vld [vmem:[#allocation9 + $0x1c] sm:$0xf]
    %v6586 = vld [vmem:[#allocation9 + $0x20] sm:$0xf]
    %v6587 = vld [vmem:[#allocation9 + $0x24] sm:$0xf]
    %v6588 = vld [vmem:[#allocation9 + $0x28] sm:$0xf]
    %v6589 = vld [vmem:[#allocation9 + $0x2c] sm:$0xf]
    %v6590 = vld [vmem:[#allocation9 + $0x30] sm:$0xf]
    %v6591 = vld [vmem:[#allocation9 + $0x34] sm:$0xf]
    %v6592 = vld [vmem:[#allocation9 + $0x38] sm:$0xf]
    %v6593 = vld [vmem:[#allocation9 + $0x3c] sm:$0xf]
    %v6594 = vld [vmem:[#allocation9 + $0x40] sm:$0xf]
    %v6595 = vld [vmem:[#allocation9 + $0x44] sm:$0xf]
    %v6596 = vld [vmem:[#allocation9 + $0x48] sm:$0xf]
    %v6597 = vld [vmem:[#allocation9 + $0x4c] sm:$0xf]
    %v6598 = vld [vmem:[#allocation9 + $0x50] sm:$0xf]
    %v6599 = vld [vmem:[#allocation9 + $0x54] sm:$0xf]
    %v6600 = vld [vmem:[#allocation9 + $0x58] sm:$0xf]
    %v6601 = vld [vmem:[#allocation9 + $0x5c] sm:$0xf]
    %v6602 = vld [vmem:[#allocation9 + $0x60] sm:$0xf]
    %v6603 = vld [vmem:[#allocation9 + $0x64] sm:$0xf]
    %v6604 = vld [vmem:[#allocation9 + $0x68] sm:$0xf]
    %v6605 = vld [vmem:[#allocation9 + $0x6c] sm:$0xf]
    %v6606 = vld [vmem:[#allocation9 + $0x70] sm:$0xf]
    %v6607 = vld [vmem:[#allocation9 + $0x74] sm:$0xf]
    %v6608 = vld [vmem:[#allocation9 + $0x78] sm:$0xf]
    %v6609 = vld [vmem:[#allocation9 + $0x7c] sm:$0xf]
    %v6610 = vld [vmem:[#allocation9 + $0x80] sm:$0xf]
    %v6611 = vld [vmem:[#allocation9 + $0x84] sm:$0xf]
    %v6612 = vld [vmem:[#allocation9 + $0x88] sm:$0xf]
    %v6613 = vld [vmem:[#allocation9 + $0x8c] sm:$0xf]
    %v6614 = vld [vmem:[#allocation9 + $0x90] sm:$0xf]
    %v6615 = vld [vmem:[#allocation9 + $0x94] sm:$0xf]
    %v6616 = vld [vmem:[#allocation9 + $0x98] sm:$0xf]
    %v6617 = vld [vmem:[#allocation9 + $0x9c] sm:$0xf]
    %v6618 = vld [vmem:[#allocation9 + $0xa0] sm:$0xf]
    %v6619 = vld [vmem:[#allocation9 + $0xa4] sm:$0xf]
    %v6620 = vld [vmem:[#allocation9 + $0xa8] sm:$0xf]
    %v6621 = vld [vmem:[#allocation9 + $0xac] sm:$0xf]
    %v6622 = vld [vmem:[#allocation9 + $0xb0] sm:$0xf]
    %v6623 = vld [vmem:[#allocation9 + $0xb4] sm:$0xf]
    %v6624 = vld [vmem:[#allocation9 + $0xb8] sm:$0xf]
    %v6625 = vld [vmem:[#allocation9 + $0xbc] sm:$0xf]
    %v6626 = vld [vmem:[%s4] sm:$0x1]
    %v6628 = vlaneseq
    %v6629 = vshrl.u32 %v6628, 7
    %v6630 = vsub.s32 0, %v6629
    %v6631 = vrot.slane %v6626, %v6630
    %v6681 = vunpack.c.l.b16 %v6578
    %v6682 = vunpack.c.l.b16 %v6579
    %v6683 = vunpack.c.l.b16 %v6580
    %v6684 = vunpack.c.l.b16 %v6581
    %v6685 = vunpack.c.l.b16 %v6582
    %v6686 = vunpack.c.l.b16 %v6583
    %v6687 = vunpack.c.l.b16 %v6584
    %v6688 = vunpack.c.l.b16 %v6585
    %v6689 = vunpack.c.l.b16 %v6586
    %v6690 = vunpack.c.l.b16 %v6587
    %v6691 = vunpack.c.l.b16 %v6588
    %v6692 = vunpack.c.l.b16 %v6589
    %v6693 = vunpack.c.l.b16 %v6590
    %v6694 = vunpack.c.l.b16 %v6591
    %v6695 = vunpack.c.l.b16 %v6592
    %v6696 = vunpack.c.l.b16 %v6593
    %v6697 = vunpack.c.l.b16 %v6594
    %v6698 = vunpack.c.l.b16 %v6595
    %v6699 = vunpack.c.l.b16 %v6596
    %v6700 = vunpack.c.l.b16 %v6597
    %v6701 = vunpack.c.l.b16 %v6598
    %v6702 = vunpack.c.l.b16 %v6599
    %v6703 = vunpack.c.l.b16 %v6600
    %v6704 = vunpack.c.l.b16 %v6601
    %v6705 = vunpack.c.l.b16 %v6602
    %v6706 = vunpack.c.l.b16 %v6603
    %v6707 = vunpack.c.l.b16 %v6604
    %v6708 = vunpack.c.l.b16 %v6605
    %v6709 = vunpack.c.l.b16 %v6606
    %v6710 = vunpack.c.l.b16 %v6607
    %v6711 = vunpack.c.l.b16 %v6608
    %v6712 = vunpack.c.l.b16 %v6609
    %v6713 = vunpack.c.l.b16 %v6610
    %v6714 = vunpack.c.l.b16 %v6611
    %v6715 = vunpack.c.l.b16 %v6612
    %v6716 = vunpack.c.l.b16 %v6613
    %v6717 = vunpack.c.l.b16 %v6614
    %v6718 = vunpack.c.l.b16 %v6615
    %v6719 = vunpack.c.l.b16 %v6616
    %v6720 = vunpack.c.l.b16 %v6617
    %v6721 = vunpack.c.l.b16 %v6618
    %v6722 = vunpack.c.l.b16 %v6619
    %v6723 = vunpack.c.l.b16 %v6620
    %v6724 = vunpack.c.l.b16 %v6621
    %v6725 = vunpack.c.l.b16 %v6622
    %v6726 = vunpack.c.l.b16 %v6623
    %v6727 = vunpack.c.l.b16 %v6624
    %v6728 = vunpack.c.l.b16 %v6625
    %v6729 = vpack.c.b16 %v6682, %v6681
    %v6730 = vpack.c.b16 %v6684, %v6683
    %v6731 = vpack.c.b16 %v6686, %v6685
    %v6732 = vpack.c.b16 %v6688, %v6687
    %v6733 = vpack.c.b16 %v6690, %v6689
    %v6734 = vpack.c.b16 %v6692, %v6691
    %v6735 = vpack.c.b16 %v6694, %v6693
    %v6736 = vpack.c.b16 %v6696, %v6695
    %v6737 = vpack.c.b16 %v6698, %v6697
    %v6738 = vpack.c.b16 %v6700, %v6699
    %v6739 = vpack.c.b16 %v6702, %v6701
    %v6740 = vpack.c.b16 %v6704, %v6703
    %v6741 = vpack.c.b16 %v6706, %v6705
    %v6742 = vpack.c.b16 %v6708, %v6707
    %v6743 = vpack.c.b16 %v6710, %v6709
    %v6744 = vpack.c.b16 %v6712, %v6711
    %v6745 = vpack.c.b16 %v6714, %v6713
    %v6746 = vpack.c.b16 %v6716, %v6715
    %v6747 = vpack.c.b16 %v6718, %v6717
    %v6748 = vpack.c.b16 %v6720, %v6719
    %v6749 = vpack.c.b16 %v6722, %v6721
    %v6750 = vpack.c.b16 %v6724, %v6723
    %v6751 = vpack.c.b16 %v6726, %v6725
    %v6752 = vpack.c.b16 %v6728, %v6727
    %6777 = vmatprep.subr.bf16.mxu0 0
    %6778 = vmatpush1.bf16.msra.mxu0 %v6736
    %6779 = vmatprep.subr.bf16.mxu0 0
    %6780 = vmatpush1.bf16.msra.mxu0 %v6735
    %6781 = vmatprep.subr.bf16.mxu0 0
    %6782 = vmatpush1.bf16.msra.mxu0 %v6734
    %6783 = vmatprep.subr.bf16.mxu0 0
    %6784 = vmatpush1.bf16.msra.mxu0 %v6733
    %6785 = vmatprep.subr.bf16.mxu0 0
    %6786 = vmatpush1.bf16.msra.mxu0 %v6732
    %6787 = vmatprep.subr.bf16.mxu0 0
    %6788 = vmatpush1.bf16.msra.mxu0 %v6731
    %6789 = vmatprep.subr.bf16.mxu0 0
    %6790 = vmatpush1.bf16.msra.mxu0 %v6730
    %6791 = vmatprep.subr.bf16.mxu0 0
    %6792 = vmatpush1.bf16.msra.mxu0 %v6729
    %6793 = vmatprep.subr.bf16.mxu0 0
    %6794 = vmatpush2.bf16.msra.mxu0 %v6744
    %6795 = vmatprep.subr.bf16.mxu0 0
    %6796 = vmatpush2.bf16.msra.mxu0 %v6743
    %6797 = vmatprep.subr.bf16.mxu0 0
    %6798 = vmatpush2.bf16.msra.mxu0 %v6742
    %6799 = vmatprep.subr.bf16.mxu0 0
    %6800 = vmatpush2.bf16.msra.mxu0 %v6741
    %6801 = vmatprep.subr.bf16.mxu0 0
    %6802 = vmatpush2.bf16.msra.mxu0 %v6740
    %6803 = vmatprep.subr.bf16.mxu0 0
    %6804 = vmatpush2.bf16.msra.mxu0 %v6739
    %6805 = vmatprep.subr.bf16.mxu0 0
    %6806 = vmatpush2.bf16.msra.mxu0 %v6738
    %6807 = vmatprep.subr.bf16.mxu0 0
    %6808 = vmatpush2.bf16.msra.mxu0 %v6737
    %6809 = vmatprep.mubr.bf16.mxu0 %v6576
    %6810 = vmatmul.mubr.bf16.gmra.mxu0 %v6575
    %v6811 = vpop.f32.mrf.mxu0
    %v6812 = vadd.f32 %v6631, %v6811
    %v6813 = vpop.f32.mrf.mxu0
    %v6814 = vpop.f32.mrf.mxu0
    %v6815 = vadd.f32 %v6631, %v6814
    %v6816 = vpop.f32.mrf.mxu0
    %6817 = vdwg.mxu0
    %6818 = vmatprep.subr.bf16.mxu0 0
    %6819 = vmatpush1.bf16.msra.mxu0 %v6752
    %6820 = vmatprep.subr.bf16.mxu0 0
    %6821 = vmatpush1.bf16.msra.mxu0 %v6751
    %6822 = vmatprep.subr.bf16.mxu0 0
    %6823 = vmatpush1.bf16.msra.mxu0 %v6750
    %6824 = vmatprep.subr.bf16.mxu0 0
    %6825 = vmatpush1.bf16.msra.mxu0 %v6749
    %6826 = vmatprep.subr.bf16.mxu0 0
    %6827 = vmatpush1.bf16.msra.mxu0 %v6748
    %6828 = vmatprep.subr.bf16.mxu0 0
    %6829 = vmatpush1.bf16.msra.mxu0 %v6747
    %6830 = vmatprep.subr.bf16.mxu0 0
    %6831 = vmatpush1.bf16.msra.mxu0 %v6746
    %6832 = vmatprep.subr.bf16.mxu0 0
    %6833 = vmatpush1.bf16.msra.mxu0 %v6745
    %6834 = vmatprep.subr.bf16.mxu0 0
    %6835 = vmatpush2.bf16.msra.mxu0 0
    %6836 = vmatprep.subr.bf16.mxu0 0
    %6837 = vmatpush2.bf16.msra.mxu0 0
    %6838 = vmatprep.subr.bf16.mxu0 0
    %6839 = vmatpush2.bf16.msra.mxu0 0
    %6840 = vmatprep.subr.bf16.mxu0 0
    %6841 = vmatpush2.bf16.msra.mxu0 0
    %6842 = vmatprep.subr.bf16.mxu0 0
    %6843 = vmatpush2.bf16.msra.mxu0 0
    %6844 = vmatprep.subr.bf16.mxu0 0
    %6845 = vmatpush2.bf16.msra.mxu0 0
    %6846 = vmatprep.subr.bf16.mxu0 0
    %6847 = vmatpush2.bf16.msra.mxu0 0
    %6848 = vmatprep.subr.bf16.mxu0 0
    %6849 = vmatpush2.bf16.msra.mxu0 0
    %6850 = vmatprep.mubr.bf16.mxu0 0
    %6851 = vmatmul.mubr.bf16.gmra.mxu0 %v6577
    %v6852 = vpop.f32.mrf.mxu0
    %v6853 = vadd.f32 %v6812, %v6852
    %v6854 = vpop.f32.mrf.mxu0
    %v6855 = vpop.f32.mrf.mxu0
    %v6856 = vadd.f32 %v6815, %v6855
    %v6857 = vpop.f32.mrf.mxu0
    %6858 = vdwg.mxu0
    %v6859 = vmax.f32 %v6853, 0.0
    %v6860 = vmax.f32 %v6856, 0.0
    %v6861 = vrot.slane %v6859, 4
    %v6862 = vmax.f32 %v6859, %v6861
    %v6863 = vrot.slane %v6862, 2
    %v6864 = vmax.f32 %v6862, %v6863
    %v6865 = vrot.slane %v6864, 1
    %v6866 = vmax.f32 %v6864, %v6865
    %v6867 = vrot.slane %v6860, 4
    %v6868 = vmax.f32 %v6860, %v6867
    %v6869 = vrot.slane %v6868, 2
    %v6870 = vmax.f32 %v6868, %v6869
    %v6871 = vrot.slane %v6870, 1
    %v6872 = vmax.f32 %v6870, %v6871
    %v6873 = vpack.c.bf16 %v6866, %v6866
    %v6874 = vpack.c.bf16 %v6872, %v6872
    %v6875 = vld [vmem:[#allocation15] sm:$0xf]
    %v6876 = vld [vmem:[#allocation15 + $0x4] sm:$0xf]
    %v6877 = vld [vmem:[#allocation15 + $0x8] sm:$0xf]
    %v6878 = vld [vmem:[#allocation15 + $0xc] sm:$0xf]
    %v6879 = vld [vmem:[#allocation15 + $0x10] sm:$0xf]
    %v6880 = vld [vmem:[#allocation15 + $0x14] sm:$0xf]
    %v6881 = vld [vmem:[#allocation15 + $0x18] sm:$0xf]
    %v6882 = vld [vmem:[#allocation15 + $0x1c] sm:$0xf]
    %v6883 = vld [vmem:[#allocation15 + $0x20] sm:$0xf]
    %v6884 = vld [vmem:[#allocation15 + $0x24] sm:$0xf]
    %v6885 = vld [vmem:[#allocation15 + $0x28] sm:$0xf]
    %v6886 = vld [vmem:[#allocation15 + $0x2c] sm:$0xf]
    %v6887 = vld [vmem:[#allocation15 + $0x30] sm:$0xf]
    %v6888 = vld [vmem:[#allocation15 + $0x34] sm:$0xf]
    %v6889 = vld [vmem:[#allocation15 + $0x38] sm:$0xf]
    %v6890 = vld [vmem:[#allocation15 + $0x3c] sm:$0xf]
    %v6891 = vpack.c.bf16 %v6449, %v6449
    %v6892 = vld [vmem:[#allocation17] sm:$0xf]
    %v6893 = vld [vmem:[#allocation17 + $0x4] sm:$0xf]
    %v6894 = vld [vmem:[#allocation17 + $0x8] sm:$0xf]
    %v6895 = vld [vmem:[#allocation17 + $0xc] sm:$0xf]
    %v6896 = vld [vmem:[#allocation17 + $0x10] sm:$0xf]
    %v6897 = vld [vmem:[#allocation17 + $0x14] sm:$0xf]
    %v6898 = vld [vmem:[#allocation17 + $0x18] sm:$0xf]
    %v6899 = vld [vmem:[#allocation17 + $0x1c] sm:$0xf]
    %v6900 = vld [vmem:[#allocation17 + $0x20] sm:$0xf]
    %v6901 = vld [vmem:[#allocation17 + $0x24] sm:$0xf]
    %v6902 = vld [vmem:[#allocation17 + $0x28] sm:$0xf]
    %v6903 = vld [vmem:[#allocation17 + $0x2c] sm:$0xf]
    %v6904 = vld [vmem:[#allocation17 + $0x30] sm:$0xf]
    %v6905 = vld [vmem:[#allocation17 + $0x34] sm:$0xf]
    %v6906 = vld [vmem:[#allocation17 + $0x38] sm:$0xf]
    %v6907 = vld [vmem:[#allocation17 + $0x3c] sm:$0xf]
    %v6909 = vrot.slane %v6891, 3
    %v6927 = vunpack.c.l.b16 %v6892
    %v6928 = vunpack.c.l.b16 %v6893
    %v6929 = vunpack.c.l.b16 %v6894
    %v6930 = vunpack.c.l.b16 %v6895
    %v6931 = vunpack.c.l.b16 %v6896
    %v6932 = vunpack.c.l.b16 %v6897
    %v6933 = vunpack.c.l.b16 %v6898
    %v6934 = vunpack.c.l.b16 %v6899
    %v6935 = vunpack.c.l.b16 %v6900
    %v6936 = vunpack.c.l.b16 %v6901
    %v6937 = vunpack.c.l.b16 %v6902
    %v6938 = vunpack.c.l.b16 %v6903
    %v6939 = vunpack.c.l.b16 %v6904
    %v6940 = vunpack.c.l.b16 %v6905
    %v6941 = vunpack.c.l.b16 %v6906
    %v6942 = vunpack.c.l.b16 %v6907
    %v6943 = vpack.c.b16 %v6928, %v6927
    %v6944 = vpack.c.b16 %v6930, %v6929
    %v6945 = vpack.c.b16 %v6932, %v6931
    %v6946 = vpack.c.b16 %v6934, %v6933
    %v6947 = vpack.c.b16 %v6936, %v6935
    %v6948 = vpack.c.b16 %v6938, %v6937
    %v6949 = vpack.c.b16 %v6940, %v6939
    %v6950 = vpack.c.b16 %v6942, %v6941
    %6959 = vmatprep.subr.bf16.mxu0 0
    %6960 = vmatpush1.bf16.msra.mxu0 %v6950
    %6961 = vmatprep.subr.bf16.mxu0 0
    %6962 = vmatpush1.bf16.msra.mxu0 %v6949
    %6963 = vmatprep.subr.bf16.mxu0 0
    %6964 = vmatpush1.bf16.msra.mxu0 %v6948
    %6965 = vmatprep.subr.bf16.mxu0 0
    %6966 = vmatpush1.bf16.msra.mxu0 %v6947
    %6967 = vmatprep.subr.bf16.mxu0 0
    %6968 = vmatpush1.bf16.msra.mxu0 %v6946
    %6969 = vmatprep.subr.bf16.mxu0 0
    %6970 = vmatpush1.bf16.msra.mxu0 %v6945
    %6971 = vmatprep.subr.bf16.mxu0 0
    %6972 = vmatpush1.bf16.msra.mxu0 %v6944
    %6973 = vmatprep.subr.bf16.mxu0 0
    %6974 = vmatpush1.bf16.msra.mxu0 %v6943
    %6975 = vmatprep.subr.bf16.mxu0 0
    %6976 = vmatpush2.bf16.msra.mxu0 0
    %6977 = vmatprep.subr.bf16.mxu0 0
    %6978 = vmatpush2.bf16.msra.mxu0 0
    %6979 = vmatprep.subr.bf16.mxu0 0
    %6980 = vmatpush2.bf16.msra.mxu0 0
    %6981 = vmatprep.subr.bf16.mxu0 0
    %6982 = vmatpush2.bf16.msra.mxu0 0
    %6983 = vmatprep.subr.bf16.mxu0 0
    %6984 = vmatpush2.bf16.msra.mxu0 0
    %6985 = vmatprep.subr.bf16.mxu0 0
    %6986 = vmatpush2.bf16.msra.mxu0 0
    %6987 = vmatprep.subr.bf16.mxu0 0
    %6988 = vmatpush2.bf16.msra.mxu0 0
    %6989 = vmatprep.subr.bf16.mxu0 0
    %6990 = vmatpush2.bf16.msra.mxu0 0
    %6991 = vmatprep.mubr.bf16.mxu0 0
    %6992 = vmatmul.mubr.bf16.gmra.mxu0 %v6909
    %v6993 = vpop.f32.mrf.mxu0
    %v6994 = vadd.f32 0.0, %v6993
    %v6995 = vpop.f32.mrf.mxu0
    %v6996 = vpop.f32.mrf.mxu0
    %v6997 = vpop.f32.mrf.mxu0
    %6998 = vdwg.mxu0
    %v7001 = vunpack.c.l.b16 %v6873
    %v7002 = vunpack.c.l.b16 %v6874
    %vm7003 = vcmask 1041409
    %v7004 = vsel %vm7003, %v7002, %v7001
    %v7005 = vpack.c.b16 %v7004, %v7004
    %v7023 = vunpack.c.l.b16 %v6875
    %v7024 = vunpack.c.l.b16 %v6876
    %v7025 = vunpack.c.l.b16 %v6877
    %v7026 = vunpack.c.l.b16 %v6878
    %v7027 = vunpack.c.l.b16 %v6879
    %v7028 = vunpack.c.l.b16 %v6880
    %v7029 = vunpack.c.l.b16 %v6881
    %v7030 = vunpack.c.l.b16 %v6882
    %v7031 = vunpack.c.l.b16 %v6883
    %v7032 = vunpack.c.l.b16 %v6884
    %v7033 = vunpack.c.l.b16 %v6885
    %v7034 = vunpack.c.l.b16 %v6886
    %v7035 = vunpack.c.l.b16 %v6887
    %v7036 = vunpack.c.l.b16 %v6888
    %v7037 = vunpack.c.l.b16 %v6889
    %v7038 = vunpack.c.l.b16 %v6890
    %v7039 = vpack.c.b16 %v7024, %v7023
    %v7040 = vpack.c.b16 %v7026, %v7025
    %v7041 = vpack.c.b16 %v7028, %v7027
    %v7042 = vpack.c.b16 %v7030, %v7029
    %v7043 = vpack.c.b16 %v7032, %v7031
    %v7044 = vpack.c.b16 %v7034, %v7033
    %v7045 = vpack.c.b16 %v7036, %v7035
    %v7046 = vpack.c.b16 %v7038, %v7037
    %7055 = vmatprep.subr.bf16.mxu0 0
    %7056 = vmatpush1.bf16.msra.mxu0 %v7046
    %7057 = vmatprep.subr.bf16.mxu0 0
    %7058 = vmatpush1.bf16.msra.mxu0 %v7045
    %7059 = vmatprep.subr.bf16.mxu0 0
    %7060 = vmatpush1.bf16.msra.mxu0 %v7044
    %7061 = vmatprep.subr.bf16.mxu0 0
    %7062 = vmatpush1.bf16.msra.mxu0 %v7043
    %7063 = vmatprep.subr.bf16.mxu0 0
    %7064 = vmatpush1.bf16.msra.mxu0 %v7042
    %7065 = vmatprep.subr.bf16.mxu0 0
    %7066 = vmatpush1.bf16.msra.mxu0 %v7041
    %7067 = vmatprep.subr.bf16.mxu0 0
    %7068 = vmatpush1.bf16.msra.mxu0 %v7040
    %7069 = vmatprep.subr.bf16.mxu0 0
    %7070 = vmatpush1.bf16.msra.mxu0 %v7039
    %7071 = vmatprep.subr.bf16.mxu0 0
    %7072 = vmatpush2.bf16.msra.mxu0 0
    %7073 = vmatprep.subr.bf16.mxu0 0
    %7074 = vmatpush2.bf16.msra.mxu0 0
    %7075 = vmatprep.subr.bf16.mxu0 0
    %7076 = vmatpush2.bf16.msra.mxu0 0
    %7077 = vmatprep.subr.bf16.mxu0 0
    %7078 = vmatpush2.bf16.msra.mxu0 0
    %7079 = vmatprep.subr.bf16.mxu0 0
    %7080 = vmatpush2.bf16.msra.mxu0 0
    %7081 = vmatprep.subr.bf16.mxu0 0
    %7082 = vmatpush2.bf16.msra.mxu0 0
    %7083 = vmatprep.subr.bf16.mxu0 0
    %7084 = vmatpush2.bf16.msra.mxu0 0
    %7085 = vmatprep.subr.bf16.mxu0 0
    %7086 = vmatpush2.bf16.msra.mxu0 0
    %7087 = vmatprep.mubr.bf16.mxu0 0
    %7088 = vmatmul.mubr.bf16.gmra.mxu0 %v7005
    %v7089 = vpop.f32.mrf.mxu0
    %v7090 = vadd.f32 %v6994, %v7089
    %v7091 = vpop.f32.mrf.mxu0
    %v7092 = vpop.f32.mrf.mxu0
    %v7093 = vpop.f32.mrf.mxu0
    %7094 = vdwg.mxu0
    %v7095 = vld [vmem:[%s15] sm:$0x1]
    %v7097 = vlaneseq
    %v7098 = vshrl.u32 %v7097, 7
    %v7099 = vsub.s32 0, %v7098
    %v7100 = vrot.slane %v7095, %v7099
    %v7102 = vadd.f32 %v7090, %v7100
    %v7103 = vmax.f32 %v7102, 0.0
    %v7104 = vpack.c.bf16 %v7103, %v7103
    %v7105 = vld [vmem:[#allocation18] sm:$0xf]
    %v7106 = vld [vmem:[#allocation18 + $0x4] sm:$0xf]
    %v7107 = vld [vmem:[#allocation18 + $0x8] sm:$0xf]
    %v7108 = vld [vmem:[#allocation18 + $0xc] sm:$0xf]
    %v7109 = vld [vmem:[#allocation18 + $0x10] sm:$0xf]
    %v7110 = vld [vmem:[#allocation18 + $0x14] sm:$0xf]
    %v7111 = vld [vmem:[#allocation18 + $0x18] sm:$0xf]
    %v7112 = vld [vmem:[#allocation18 + $0x1c] sm:$0xf]
    %v7113 = vld [vmem:[#allocation18 + $0x20] sm:$0xf]
    %v7114 = vld [vmem:[#allocation18 + $0x24] sm:$0xf]
    %v7115 = vld [vmem:[#allocation18 + $0x28] sm:$0xf]
    %v7116 = vld [vmem:[#allocation18 + $0x2c] sm:$0xf]
    %v7117 = vld [vmem:[#allocation18 + $0x30] sm:$0xf]
    %v7118 = vld [vmem:[#allocation18 + $0x34] sm:$0xf]
    %v7119 = vld [vmem:[#allocation18 + $0x38] sm:$0xf]
    %v7120 = vld [vmem:[#allocation18 + $0x3c] sm:$0xf]
    %v7121 = vld [vmem:[%s17] sm:$0x1]
    %v7123 = vlaneseq
    %v7124 = vshrl.u32 %v7123, 7
    %v7125 = vsub.s32 0, %v7124
    %v7126 = vrot.slane %v7121, %v7125
    %v7144 = vunpack.c.l.b16 %v7105
    %v7145 = vunpack.c.l.b16 %v7106
    %v7146 = vunpack.c.l.b16 %v7107
    %v7147 = vunpack.c.l.b16 %v7108
    %v7148 = vunpack.c.l.b16 %v7109
    %v7149 = vunpack.c.l.b16 %v7110
    %v7150 = vunpack.c.l.b16 %v7111
    %v7151 = vunpack.c.l.b16 %v7112
    %v7152 = vunpack.c.l.b16 %v7113
    %v7153 = vunpack.c.l.b16 %v7114
    %v7154 = vunpack.c.l.b16 %v7115
    %v7155 = vunpack.c.l.b16 %v7116
    %v7156 = vunpack.c.l.b16 %v7117
    %v7157 = vunpack.c.l.b16 %v7118
    %v7158 = vunpack.c.l.b16 %v7119
    %v7159 = vunpack.c.l.b16 %v7120
    %v7160 = vpack.c.b16 %v7145, %v7144
    %v7161 = vpack.c.b16 %v7147, %v7146
    %v7162 = vpack.c.b16 %v7149, %v7148
    %v7163 = vpack.c.b16 %v7151, %v7150
    %v7164 = vpack.c.b16 %v7153, %v7152
    %v7165 = vpack.c.b16 %v7155, %v7154
    %v7166 = vpack.c.b16 %v7157, %v7156
    %v7167 = vpack.c.b16 %v7159, %v7158
    %7176 = vmatprep.subr.bf16.mxu0 0
    %7177 = vmatpush1.bf16.msra.mxu0 %v7167
    %7178 = vmatprep.subr.bf16.mxu0 0
    %7179 = vmatpush1.bf16.msra.mxu0 %v7166
    %7180 = vmatprep.subr.bf16.mxu0 0
    %7181 = vmatpush1.bf16.msra.mxu0 %v7165
    %7182 = vmatprep.subr.bf16.mxu0 0
    %7183 = vmatpush1.bf16.msra.mxu0 %v7164
    %7184 = vmatprep.subr.bf16.mxu0 0
    %7185 = vmatpush1.bf16.msra.mxu0 %v7163
    %7186 = vmatprep.subr.bf16.mxu0 0
    %7187 = vmatpush1.bf16.msra.mxu0 %v7162
    %7188 = vmatprep.subr.bf16.mxu0 0
    %7189 = vmatpush1.bf16.msra.mxu0 %v7161
    %7190 = vmatprep.subr.bf16.mxu0 0
    %7191 = vmatpush1.bf16.msra.mxu0 %v7160
    %7192 = vmatprep.subr.bf16.mxu0 0
    %7193 = vmatpush2.bf16.msra.mxu0 0
    %7194 = vmatprep.subr.bf16.mxu0 0
    %7195 = vmatpush2.bf16.msra.mxu0 0
    %7196 = vmatprep.subr.bf16.mxu0 0
    %7197 = vmatpush2.bf16.msra.mxu0 0
    %7198 = vmatprep.subr.bf16.mxu0 0
    %7199 = vmatpush2.bf16.msra.mxu0 0
    %7200 = vmatprep.subr.bf16.mxu0 0
    %7201 = vmatpush2.bf16.msra.mxu0 0
    %7202 = vmatprep.subr.bf16.mxu0 0
    %7203 = vmatpush2.bf16.msra.mxu0 0
    %7204 = vmatprep.subr.bf16.mxu0 0
    %7205 = vmatpush2.bf16.msra.mxu0 0
    %7206 = vmatprep.subr.bf16.mxu0 0
    %7207 = vmatpush2.bf16.msra.mxu0 0
    %7208 = vmatprep.mubr.bf16.mxu0 0
    %7209 = vmatmul.mubr.bf16.gmra.mxu0 %v7104
    %v7210 = vpop.f32.mrf.mxu0
    %v7211 = vadd.f32 %v7126, %v7210
    %v7212 = vpop.f32.mrf.mxu0
    %v7213 = vpop.f32.mrf.mxu0
    %v7214 = vpop.f32.mrf.mxu0
    %7215 = vdwg.mxu0
    %v7216 = vxor.u32 %v7211, 2147483648
    %v7217 = vmul.f32 %v7216, 1.442695
    %v7218 = vpow.pop %v7217
    %v7219 = vadd.f32 %v7218, 1.0
    %v7220 = vrcp.pop %v7219
    %v7221 = vmul.f32 1.0, %v7220
    %v7222 = vmul.f32 %v7221, 90.0
    %7223 = vst [vmem:[#allocation20] sm:$0x3] %v7222
    // Predicated region
    $region106: #{transfer_learning_forward.1} parent=1 // pred_check
      _
    $region107: #{transfer_learning_forward.1} parent=1 // pred_check_branch
      %7225 = sbr.rel (0) target = $region109
    $region108: #{transfer_learning_forward.1} parent=1 // pred_region
      %s7227 = ssub.s32 32, 32
      %7228 = vsyncadd [#allocation8], %s7227
      %s7230 = sshll.u32 [#allocation20], 4
      %s7231 = int_to_ptr.vmem [resolvable:$true] %s7230
      %7233 = dma.vmem_to_hbm [thread:$0]  %s7231, 32, %s18, [#allocation8]
    $region109: #{transfer_learning_forward.1} parent=1 // pred_fallthru
      _
    // Predicated region
    $region110: #{transfer_learning_forward.1} parent=1 // pred_check
      _
    $region111: #{transfer_learning_forward.1} parent=1 // pred_check_branch
      %7235 = sbr.rel (0) target = $region113
    $region112: #{transfer_learning_forward.1} parent=1 // pred_region
      %7236 = dma.done [#allocation8], 32
    $region113: #{transfer_learning_forward.1} parent=1 // pred_fallthru
      _
    %7237 = vsyncpa [#allocation7], 1
    %7238 = vsyncpa [#allocation10], 1
    %7239 = vsyncpa [#allocation13], 1
    %7240 = vsyncpa [#allocation16], 1
    %7241 = vsyncpa [#allocation19], 1
    %7242 = vsyncpa [#allocation8], 1

</llo_original>
